<compile_context>
chip_gen: v7x
topology: tpu7x:2x2x1
jax: 0.10.0
libtpu: 0.0.40
codegen_flags: <defaults>
</compile_context>

<pallas_src>
import functools

import jax
import jax.numpy as jnp
from jax import lax
from jax.experimental import pallas as pl
from jax.experimental.pallas import tpu as pltpu

IN_DIM = 128          # fixed by the module
JOINT_DIM = 128       # joint_layer_dims


# -----------------------------------------------------------------------------
# wrapper-side parameter fusion (done once, outside the kernel)
# -----------------------------------------------------------------------------
def _fuse_params(params, n_parts, matmul_dtype=jnp.float32):
    """Fold the affine joint trunk into each joint head and pack every head's
    (in, out) weight/bias into one (128, 5P+8) block (no lane padding)."""
    w_W,  b_W  = params["W"]            # (128, P),  (1, P)
    w_no, b_no = params["nocs"]         # (128, 3P)
    w_cf, b_cf = params["confi"]        # (128, 1)
    w_j1, b_j1 = params["joint1"]       # (128, 128)  BN already folded
    w_j2, b_j2 = params["joint2"]       # (128, 128)  BN already folded
    w_hm, b_hm = params["heatmap"]      # (128, 1)
    w_uv, b_uv = params["unitvec"]      # (128, 3)
    w_ax, b_ax = params["axis"]         # (128, 3)
    w_jc, b_jc = params["joint_cls"]    # (128, P)

    # joint trunk: conv+BN -> dropout(id) -> conv+BN -> dropout(id), no
    # activation => affine (valid in eval mode only), so it folds exactly:
    #   h = x@w1 + b1 ; h = h@w2 + b2 ; head = h@w + b
    #   => head = x @ (w1@w2@w) + ((b1@w2 + b2)@w + b)
    w_t = w_j1 @ w_j2                   # (128, 128)
    b_t = b_j1 @ w_j2 + b_j2            # (1, 128)

    def fold_head(w, b):
        return w_t @ w, b_t @ w + b

    w_hm, b_hm = fold_head(w_hm, b_hm)
    w_uv, b_uv = fold_head(w_uv, b_uv)
    w_ax, b_ax = fold_head(w_ax, b_ax)
    w_jc, b_jc = fold_head(w_jc, b_jc)

    # packed column layout (activation-grouped):
    #   [ W(P) | joint_cls(P) | nocs(3P) confi(1) heatmap(1) | unitvec(3) axis(3) ]
    #     softmax  softmax      ---------- sigmoid ---------   ------ tanh ------
    w_cat = jnp.concatenate([w_W, w_jc, w_no, w_cf, w_hm, w_uv, w_ax], axis=1)
    b_cat = jnp.concatenate([b_W, b_jc, b_no, b_cf, b_hm, b_uv, b_ax], axis=1)
    d_total = w_cat.shape[1]            # 5P + 8, output width (no padding)
    return w_cat.astype(matmul_dtype), b_cat.astype(jnp.float32), d_total


# -----------------------------------------------------------------------------
# kernel: one fused matmul + masked column-group activations, ONE store
# -----------------------------------------------------------------------------
def _ancsh_fused_kernel(x_ref, w_ref, b_ref, out_ref, *, n_parts, matmul_dtype):
    P = n_parts

    # (1, C, tile_n) block.  The PyTorch permute(0, 2, 1) is folded into the
    # matmul by contracting over lhs dim 0 -> no explicit transpose and no
    # (tile_n, 128) f32 temp is materialised here.
    x = x_ref[0]
    if jnp.dtype(matmul_dtype) != jnp.float32:
        x = x.astype(matmul_dtype)      # bf16 operands on v5e, f32 accumulate

    y = lax.dot_general(
        x, w_ref[...],
        dimension_numbers=(((0,), (0,)), ((), ())),
        preferred_element_type=jnp.float32,
    ) + b_ref[...]                      # (tile_n, d_total)

    # Column-group activations blended with lane-iota masks so the whole
    # activated tile is built in registers and written with a single store.
    col = lax.broadcasted_iota(jnp.int32, y.shape, 1)
    in_w   = col < P                                    # W        -> softmax
    in_jc  = (col >= P) & (col < 2 * P)                 # joint_cls-> softmax
    in_sig = (col >= 2 * P) & (col < 5 * P + 2)         # nocs|confi|heatmap
    # remaining columns (5P+2 .. 5P+7): unitvec|axis -> tanh

    def group_softmax(mask):
        z = jnp.where(mask, y, -jnp.inf)
        m = jnp.max(z, axis=-1, keepdims=True)
        e = jnp.exp(z - m)                              # exactly 0 off-group
        s = jnp.sum(e, axis=-1, keepdims=True)
        return e / s                                    # exact normalisation

    act = jnp.where(
        in_w, group_softmax(in_w),
        jnp.where(in_jc, group_softmax(in_jc),
                  jnp.where(in_sig, jax.nn.sigmoid(y), jnp.tanh(y))))

    out_ref[0, :, :] = act              # single lane-masked store per tile


# -----------------------------------------------------------------------------
# wrapper
# -----------------------------------------------------------------------------
def _default_matmul_dtype():
    # v5e has no fast f32 MXU path; bf16 operands (f32 accumulation) keep the
    # kernel HBM-bound there.  v6e / v7x stay in f32 (already under HBM time).
    try:
        kind = jax.devices()[0].device_kind.lower()
    except Exception:
        return jnp.float32
    if "v5 lite" in kind or "v5e" in kind or "v5litepod" in kind:
        return jnp.bfloat16
    return jnp.float32


def ancsh_head_forward(x_bcn, params, n_parts, tile_n=2048, matmul_dtype=None):
    """x_bcn: (B, 128, N) float32 (PyTorch Conv1d layout).  Returns pred dict.

    tile_n: points per grid step (multiple of 128).  2048 is a good default for
    v6e/v7x; raise to 4096 on v7x for very large N (VMEM use stays a few MiB).
    """
    B, C, N = x_bcn.shape
    assert C == IN_DIM
    P = n_parts
    if matmul_dtype is None:
        matmul_dtype = _default_matmul_dtype()

    w_pack, b_pack, d_total = _fuse_params(params, P, matmul_dtype)

    # tile along the point axis; keep tile_n a multiple of 128 (lane width) and
    # no larger than the rounded-up point count.  Ragged N is handled by Pallas
    # boundary clamping: OOB tail rows are garbage in VMEM but their writeback
    # is masked, so no wrapper-side pad / slice is needed.
    tile_n = max(128, (int(tile_n) // 128) * 128)
    tile_n = min(tile_n, ((N + 127) // 128) * 128)
    grid = (B, pl.cdiv(N, tile_n))

    kernel = functools.partial(_ancsh_fused_kernel, n_parts=P,
                               matmul_dtype=matmul_dtype)

    packed = pl.pallas_call(
        kernel,
        out_shape=jax.ShapeDtypeStruct((B, N, d_total), jnp.float32),
        grid_spec=pltpu.PrefetchScalarGridSpec(
            num_scalar_prefetch=0,
            grid=grid,
            in_specs=[
                pl.BlockSpec((1, C, tile_n), lambda b, j: (b, 0, j)),
                pl.BlockSpec((IN_DIM, d_total), lambda b, j: (0, 0)),
                pl.BlockSpec((1, d_total), lambda b, j: (0, 0)),
            ],
            out_specs=pl.BlockSpec((1, tile_n, d_total), lambda b, j: (b, j, 0)),
        ),
        compiler_params=pltpu.CompilerParams(
            dimension_semantics=("parallel", "parallel")),
    )(x_bcn.astype(jnp.float32), w_pack, b_pack)

    # Under jit these slices are views that fuse with downstream consumers;
    # callers that can consume the packed tensor directly should do so.
    return {
        "W":                    packed[:, :, 0:P],
        "index_per_point":      packed[:, :, P:2 * P],
        "nocs_per_point":       packed[:, :, 2 * P:5 * P],
        "confi_per_point":      packed[:, :, 5 * P:5 * P + 1],
        "heatmap_per_point":    packed[:, :, 5 * P + 1:5 * P + 2],
        "unitvec_per_point":    packed[:, :, 5 * P + 2:5 * P + 5],
        "joint_axis_per_point": packed[:, :, 5 * P + 5:5 * P + 8],
    }


# -----------------------------------------------------------------------------
# deterministic parameter construction (Conv1d k=1 weights, BN folded)
# -----------------------------------------------------------------------------
def make_params(key, n_parts):
    P = n_parts

    def conv(key, in_dim, out_dim, scale=0.05):
        kw, kb = jax.random.split(key)
        w = scale * jax.random.normal(kw, (in_dim, out_dim), jnp.float32)  # conv_w.T
        b = scale * jax.random.normal(kb, (1, out_dim), jnp.float32)
        return w, b

    def bn_stats(key, dim):
        k1, k2, k3, k4 = jax.random.split(key, 4)
        gamma = 1.0 + 0.1 * jax.random.normal(k1, (dim,), jnp.float32)
        beta = 0.1 * jax.random.normal(k2, (dim,), jnp.float32)
        mean = 0.1 * jax.random.normal(k3, (dim,), jnp.float32)
        var = jnp.abs(1.0 + 0.1 * jax.random.normal(k4, (dim,), jnp.float32))
        return gamma, beta, mean, var

    def fold_bn(w, b, gamma, beta, mean, var, eps=1e-5):
        s = gamma / jnp.sqrt(var + eps)
        return w * s[None, :], (b - mean[None, :]) * s[None, :] + beta[None, :]

    keys = jax.random.split(key, 16)
    params = {
        "W": conv(keys[0], IN_DIM, P),
        "nocs": conv(keys[1], IN_DIM, 3 * P),
        "confi": conv(keys[2], IN_DIM, 1),
        "heatmap": conv(keys[3], JOINT_DIM, 1),
        "unitvec": conv(keys[4], JOINT_DIM, 3),
        "axis": conv(keys[5], JOINT_DIM, 3),
        "joint_cls": conv(keys[6], JOINT_DIM, P),
    }
    # joint trunk: conv -> BN (eval) -> dropout(id) -> conv -> BN (eval) -> dropout(id)
    w1, b1 = conv(keys[7], IN_DIM, JOINT_DIM)
    w2, b2 = conv(keys[8], JOINT_DIM, JOINT_DIM)
    params["joint1"] = fold_bn(w1, b1, *bn_stats(keys[9], JOINT_DIM))
    params["joint2"] = fold_bn(w2, b2, *bn_stats(keys[10], JOINT_DIM))
    # TODO(synk): mixed_pred=True branch (scale/trans/gocs heads) not included;
    # module default is mixed_pred=False.
    return params


# -----------------------------------------------------------------------------
# pure-JAX reference (un-fused math) for a correctness check
# -----------------------------------------------------------------------------
def reference_forward(x_bcn, params, n_parts):
    x = jnp.transpose(x_bcn, (0, 2, 1)).astype(jnp.float32)  # (B, N, C)

    def lin(h, p):
        w, b = p
        return h @ w + b

    W = jax.nn.softmax(lin(x, params["W"]), axis=-1)
    nocs = jax.nn.sigmoid(lin(x, params["nocs"]))
    confi = jax.nn.sigmoid(lin(x, params["confi"]))
    h = lin(lin(x, params["joint1"]), params["joint2"])
    hm = jax.nn.sigmoid(lin(h, params["heatmap"]))
    uv = jnp.tanh(lin(h, params["unitvec"]))
    ax = jnp.tanh(lin(h, params["axis"]))
    jc = jax.nn.softmax(lin(h, params["joint_cls"]), axis=-1)
    return {
        "W": W, "nocs_per_point": nocs, "confi_per_point": confi,
        "heatmap_per_point": hm, "unitvec_per_point": uv,
        "joint_axis_per_point": ax, "index_per_point": jc,
    }


if __name__ == "__main__":
    # Ragged N (not a tile multiple) on purpose to exercise the no-pad path.
    B, N, n_parts = 2, 2000, 4   # grid = (2, 2) at tile_n=1024

    key = jax.random.PRNGKey(0)
    kx, kp = jax.random.split(key)
    x = jax.random.normal(kx, (B, IN_DIM, N), jnp.float32)   # PyTorch (B, C, N)
    params = make_params(kp, n_parts)

    fwd = jax.jit(functools.partial(ancsh_head_forward, n_parts=n_parts,
                                    tile_n=1024))
    pred = fwd(x, params)
    jax.block_until_ready(pred)

    ref = reference_forward(x, params, n_parts)
    mm_dtype = _default_matmul_dtype()
    tol = 2e-3 if jnp.dtype(mm_dtype) == jnp.float32 else 2e-2  # bf16 on v5e
    for k in ref:
        assert pred[k].shape == ref[k].shape, (k, pred[k].shape, ref[k].shape)
        assert jnp.allclose(pred[k], ref[k], atol=tol, rtol=tol), f"mismatch in {k}"

    print("KERNEL_OK")
</pallas_src>

<mosaic_0001>
module attributes {stable_mosaic.version = 11 : i64} {
  func.func @_ancsh_fused_kernel(%arg0: i32, %arg1: i32, %arg2: memref<1x128x1024xf32, #tpu.memory_space<vmem>>, %arg3: memref<128x28xf32, #tpu.memory_space<vmem>>, %arg4: memref<1x28xf32, #tpu.memory_space<vmem>>, %arg5: memref<1x1024x28xf32, #tpu.memory_space<vmem>>) attributes {dimension_semantics = [#tpu.dimension_semantics<parallel>, #tpu.dimension_semantics<parallel>], iteration_bounds = array<i64: 2, 2>, scalar_prefetch = 0 : i64, scratch_operands = 0 : i64, tpu.core_type = #tpu.core_type<tc>, window_params = [{transform_indices = @transform_0, window_bounds = array<i64: 1, 128, 1024>}, {pipeline_mode = #tpu.pipeline_mode<synchronous>, transform_indices = @transform_1, window_bounds = array<i64: 128, 28>}, {pipeline_mode = #tpu.pipeline_mode<synchronous>, transform_indices = @transform_2, window_bounds = array<i64: 1, 28>}, {transform_indices = @transform_3, window_bounds = array<i64: 1, 1024, 28>}]} {
    %c0 = arith.constant 0 : index
    %c0_0 = arith.constant 0 : index
    %c0_1 = arith.constant 0 : index
    %0 = vector.load %arg2[%c0, %c0_0, %c0_1] : memref<1x128x1024xf32, #tpu.memory_space<vmem>>, vector<1x128x1024xf32>
    %1 = vector.shape_cast %0 : vector<1x128x1024xf32> to vector<128x1024xf32>
    %c0_2 = arith.constant 0 : index
    %c0_3 = arith.constant 0 : index
    %2 = vector.load %arg3[%c0_2, %c0_3] : memref<128x28xf32, #tpu.memory_space<vmem>>, vector<128x28xf32>
    %cst = arith.constant dense<0.000000e+00> : vector<1024x28xf32>
    %3 = tpu.matmul %1, %2, %cst {dimension_numbers = #tpu.dot_dimension_numbers<[0], [0], [1], [1], [0, 1, 1, 1], [], []>} : vector<128x1024xf32>, vector<128x28xf32>, vector<1024x28xf32> -> vector<1024x28xf32>
    %c0_4 = arith.constant 0 : index
    %c0_5 = arith.constant 0 : index
    %4 = vector.load %arg4[%c0_4, %c0_5] : memref<1x28xf32, #tpu.memory_space<vmem>>, vector<1x28xf32>
    %5 = vector.broadcast %4 : vector<1x28xf32> to vector<1024x28xf32>
    %6 = arith.addf %3, %5 : vector<1024x28xf32>
    %7 = tpu.iota {dimensions = array<i32: 1>} : vector<1024x28xi32>
    %c4_i32 = arith.constant 4 : i32
    %8 = vector.broadcast %c4_i32 : i32 to vector<1024x28xi32>
    %9 = arith.cmpi slt, %7, %8 : vector<1024x28xi32>
    %c4_i32_6 = arith.constant 4 : i32
    %10 = vector.broadcast %c4_i32_6 : i32 to vector<1024x28xi32>
    %11 = arith.cmpi sge, %7, %10 : vector<1024x28xi32>
    %c8_i32 = arith.constant 8 : i32
    %12 = vector.broadcast %c8_i32 : i32 to vector<1024x28xi32>
    %13 = arith.cmpi slt, %7, %12 : vector<1024x28xi32>
    %14 = arith.andi %11, %13 : vector<1024x28xi1>
    %c8_i32_7 = arith.constant 8 : i32
    %15 = vector.broadcast %c8_i32_7 : i32 to vector<1024x28xi32>
    %16 = arith.cmpi sge, %7, %15 : vector<1024x28xi32>
    %c22_i32 = arith.constant 22 : i32
    %17 = vector.broadcast %c22_i32 : i32 to vector<1024x28xi32>
    %18 = arith.cmpi slt, %7, %17 : vector<1024x28xi32>
    %19 = arith.andi %16, %18 : vector<1024x28xi1>
    %cst_8 = arith.constant 0xFF800000 : f32
    %20 = vector.broadcast %cst_8 : f32 to vector<1024x28xf32>
    %21 = arith.select %9, %6, %20 : vector<1024x28xi1>, vector<1024x28xf32>
    %cst_9 = arith.constant dense<0xFF800000> : vector<1024xf32>
    %22 = vector.multi_reduction <maximumf>, %21, %cst_9 [1] : vector<1024x28xf32> to vector<1024xf32>
    %23 = vector.shape_cast %22 : vector<1024xf32> to vector<1024x1xf32>
    %24 = vector.broadcast %23 : vector<1024x1xf32> to vector<1024x28xf32>
    %25 = arith.subf %21, %24 : vector<1024x28xf32>
    %26 = math.exp %25 : vector<1024x28xf32>
    %cst_10 = arith.constant dense<0.000000e+00> : vector<1024xf32>
    %27 = vector.multi_reduction <add>, %26, %cst_10 [1] : vector<1024x28xf32> to vector<1024xf32>
    %28 = vector.shape_cast %27 : vector<1024xf32> to vector<1024x1xf32>
    %29 = vector.broadcast %28 : vector<1024x1xf32> to vector<1024x28xf32>
    %30 = arith.divf %26, %29 : vector<1024x28xf32>
    %cst_11 = arith.constant 0xFF800000 : f32
    %31 = vector.broadcast %cst_11 : f32 to vector<1024x28xf32>
    %32 = arith.select %14, %6, %31 : vector<1024x28xi1>, vector<1024x28xf32>
    %cst_12 = arith.constant dense<0xFF800000> : vector<1024xf32>
    %33 = vector.multi_reduction <maximumf>, %32, %cst_12 [1] : vector<1024x28xf32> to vector<1024xf32>
    %34 = vector.shape_cast %33 : vector<1024xf32> to vector<1024x1xf32>
    %35 = vector.broadcast %34 : vector<1024x1xf32> to vector<1024x28xf32>
    %36 = arith.subf %32, %35 : vector<1024x28xf32>
    %37 = math.exp %36 : vector<1024x28xf32>
    %cst_13 = arith.constant dense<0.000000e+00> : vector<1024xf32>
    %38 = vector.multi_reduction <add>, %37, %cst_13 [1] : vector<1024x28xf32> to vector<1024xf32>
    %39 = vector.shape_cast %38 : vector<1024xf32> to vector<1024x1xf32>
    %40 = vector.broadcast %39 : vector<1024x1xf32> to vector<1024x28xf32>
    %41 = arith.divf %37, %40 : vector<1024x28xf32>
    %42 = arith.negf %6 : vector<1024x28xf32>
    %43 = math.exp %42 : vector<1024x28xf32>
    %cst_14 = arith.constant 1.000000e+00 : f32
    %44 = vector.broadcast %cst_14 : f32 to vector<1024x28xf32>
    %45 = arith.addf %44, %43 : vector<1024x28xf32>
    %46 = arith.divf %44, %45 : vector<1024x28xf32>
    %47 = math.tanh %6 : vector<1024x28xf32>
    %48 = arith.select %19, %46, %47 : vector<1024x28xi1>, vector<1024x28xf32>
    %49 = arith.select %14, %41, %48 : vector<1024x28xi1>, vector<1024x28xf32>
    %50 = arith.select %9, %30, %49 : vector<1024x28xi1>, vector<1024x28xf32>
    %c0_15 = arith.constant 0 : index
    %c0_16 = arith.constant 0 : index
    %c0_17 = arith.constant 0 : index
    %51 = vector.load %arg5[%c0_15, %c0_16, %c0_17] : memref<1x1024x28xf32, #tpu.memory_space<vmem>>, vector<1x1024x28xf32>
    %52 = vector.shape_cast %51 : vector<1x1024x28xf32> to vector<1024x28xf32>
    %53 = vector.shape_cast %50 : vector<1024x28xf32> to vector<1x1024x28xf32>
    tpu.vector_store %arg5[%c0_15, %c0_16, %c0_17], %53 {strides = array<i32>} : memref<1x1024x28xf32, #tpu.memory_space<vmem>>, vector<1x1024x28xf32>,
    return
  }
  func.func @transform_0(%arg0: i32, %arg1: i32) -> (i32, i32, i32) {
    %c0_i32 = arith.constant 0 : i32
    %c0_i32_0 = arith.constant 0 : i32
    return %arg0, %c0_i32, %arg1 : i32, i32, i32
  }
  func.func @transform_1(%arg0: i32, %arg1: i32) -> (i32, i32) {
    %c0_i32 = arith.constant 0 : i32
    %c0_i32_0 = arith.constant 0 : i32
    %c0_i32_1 = arith.constant 0 : i32
    return %c0_i32, %c0_i32_0 : i32, i32
  }
  func.func @transform_2(%arg0: i32, %arg1: i32) -> (i32, i32) {
    %c0_i32 = arith.constant 0 : i32
    %c0_i32_0 = arith.constant 0 : i32
    %c0_i32_1 = arith.constant 0 : i32
    return %c0_i32, %c0_i32_0 : i32, i32
  }
  func.func @transform_3(%arg0: i32, %arg1: i32) -> (i32, i32, i32) {
    %c0_i32 = arith.constant 0 : i32
    %c0_i32_0 = arith.constant 0 : i32
    return %arg0, %arg1, %c0_i32 : i32, i32, i32
  }
}

</mosaic_0001>

<llo_original>
// kernel: ancsh_head_forward.1
$region0: #{ancsh_head_forward.1}
  #allocation0 [shape = 'u32[]', space=smem, size = 0x4, offset = 0x4, fixed_abs, tag = 'smem constant byte address 0x4 - core index']
  #allocation1 [shape = 'u32[144,128]{1,0:T(1,128)}', space=vmem, size = 0x12000, scoped, tag = 'internal scratch']
  %s0 = inlined_call_operand.vmem [shape: f32[2,128,2000], index: 0, kind: input, shape index: {}]
  %s1 = inlined_call_operand.vmem [shape: f32[128,28], index: 1, kind: input, shape index: {}]
  %s2 = inlined_call_operand.vmem [shape: f32[1,28], index: 2, kind: input, shape index: {}]
  %s3 = inlined_call_operand.vmem [shape: f32[2,2000,28], index: 3, kind: output, shape index: {}]
  %s4 = sld [smem:[#allocation0]]
  $region116: #{ancsh_head_forward.1} parent=0
    _
  %s6 = ssub.s32 1, %s4
  %s7 = scalar_select 0, %s6, %s4
  $region1: #{ancsh_head_forward.1} parent=0
    #allocation2 [shape = 'u8[1048576]{0}', space=vmem, size = 0x100000, scoped, tag = 'input window, operand 0']
    #allocation3 [shape = 'u8[1048576]{0}', space=vmem, size = 0x100000, scoped, tag = 'output window, operand 0']
    loop: start=0, step=1, limit=6
    $region2: #{ancsh_head_forward.1} parent=1 // loop_pre_header
      _
    $region3: #{ancsh_head_forward.1} parent=1 // loop_header
      %s9 = sphi 0, %s13
      %p10 = scmp.ge.s32.totalorder %s9, 6
      %s16 = sphi 0, %s28
      %s17 = sphi 0, %s24
      %s18 = sphi 0, %s16
      %s19 = sphi 0, %s17
      %s20 = sphi 0, %s18
      %s21 = sphi 0, %s19
      %s33 = sphi 0, %s35
      %s36 = sphi 0, %s33
      %s37 = sphi 0, %s36
      %s53 = sphi 0, %s37
      %s57 = sphi 0, %s57
      %s59 = sphi 0, %s57
      %s60 = sphi 0, %s59
      %s74 = sphi 0, %s60
      %s78 = sphi 0, %s78
      %s80 = sphi 0, %s78
      %s81 = sphi 0, %s80
      %s95 = sphi 0, %s81
      %s103 = sphi 0, %s105
      %s106 = sphi 0, %s103
      %s107 = sphi 0, %s106
      %s123 = sphi 0, %s107
    $region4: #{ancsh_head_forward.1} parent=1 // loop_header_branch
      %12 = sbr.rel (%p10) target = $region8
    $region5: #{ancsh_head_forward.1} parent=1 // loop_body
      %s14 = ssub.s32 %s9, 1
      %s15 = ssub.s32 %s9, 2
      %s22 = sadd.s32 1, %s17
      %p23 = scmp.ge.s32.totalorder %s22, 2
      %s24 = scalar_select %p23, 0, %s22
      %s25 = sadd.s32 1, %s16
      %s26 = scalar_select %p23, %s25, %s16
      %p27 = scmp.ge.s32.totalorder %s26, 2
      %s28 = scalar_select %p27, 0, %s26
      %s29 = ssub.s32 %s16, %s28
      %s30 = ssub.s32 %s17, %s24
      %s31 = sor.u32 %s29, %s30
      %p32 = scmp.eq.s32.totalorder %s31, 0
      %s34 = sadd.s32 %s33, 1
      %s35 = scalar_select %p32, %s33, %s34
      %p38 = pneg %p32
      %p39 = scmp.eq.s32.totalorder %s9, 3
      %p40 = por %p38, %p39
      %p41 = scmp.ne.s32.totalorder %s33, %s36
      %p42 = scmp.eq.s32.totalorder %s9, 0
      %p43 = por %p41, %p42
      %p44 = scmp.ne.s32.totalorder %s33, %s36
      %p45 = scmp.eq.s32.totalorder %s14, 3
      %p46 = por %p44, %p45
      %p47 = scmp.ne.s32.totalorder %s36, %s37
      %p48 = scmp.eq.s32.totalorder %s14, 0
      %p49 = por %p47, %p48
      %p50 = scmp.ne.s32.totalorder %s36, %s37
      %p51 = scmp.eq.s32.totalorder %s15, 3
      %p52 = por %p50, %p51
      %p54 = scmp.ne.s32.totalorder %s37, %s53
      %p55 = scmp.eq.s32.totalorder %s15, 0
      %p56 = por %p54, %p55
      %s58 = sadd.s32 %s57, 1
      %p61 = scmp.eq.s32.totalorder %s9, 3
      %p62 = scmp.ne.s32.totalorder %s57, %s59
      %p63 = scmp.eq.s32.totalorder %s9, 0
      %p64 = por %p62, %p63
      %p65 = scmp.ne.s32.totalorder %s57, %s59
      %p66 = scmp.eq.s32.totalorder %s14, 3
      %p67 = por %p65, %p66
      %p68 = scmp.ne.s32.totalorder %s59, %s60
      %p69 = scmp.eq.s32.totalorder %s14, 0
      %p70 = por %p68, %p69
      %p71 = scmp.ne.s32.totalorder %s59, %s60
      %p72 = scmp.eq.s32.totalorder %s15, 3
      %p73 = por %p71, %p72
      %p75 = scmp.ne.s32.totalorder %s60, %s74
      %p76 = scmp.eq.s32.totalorder %s15, 0
      %p77 = por %p75, %p76
      %s79 = sadd.s32 %s78, 1
      %p82 = scmp.eq.s32.totalorder %s9, 3
      %p83 = scmp.ne.s32.totalorder %s78, %s80
      %p84 = scmp.eq.s32.totalorder %s9, 0
      %p85 = por %p83, %p84
      %p86 = scmp.ne.s32.totalorder %s78, %s80
      %p87 = scmp.eq.s32.totalorder %s14, 3
      %p88 = por %p86, %p87
      %p89 = scmp.ne.s32.totalorder %s80, %s81
      %p90 = scmp.eq.s32.totalorder %s14, 0
      %p91 = por %p89, %p90
      %p92 = scmp.ne.s32.totalorder %s80, %s81
      %p93 = scmp.eq.s32.totalorder %s15, 3
      %p94 = por %p92, %p93
      %p96 = scmp.ne.s32.totalorder %s81, %s95
      %p97 = scmp.eq.s32.totalorder %s15, 0
      %p98 = por %p96, %p97
      %s99 = ssub.s32 %s16, %s28
      %s100 = ssub.s32 %s17, %s24
      %s101 = sor.u32 %s99, %s100
      %p102 = scmp.eq.s32.totalorder %s101, 0
      %s104 = sadd.s32 %s103, 1
      %s105 = scalar_select %p102, %s103, %s104
      %p108 = pneg %p102
      %p109 = scmp.eq.s32.totalorder %s9, 3
      %p110 = por %p108, %p109
      %p111 = scmp.ne.s32.totalorder %s103, %s106
      %p112 = scmp.eq.s32.totalorder %s9, 0
      %p113 = por %p111, %p112
      %p114 = scmp.ne.s32.totalorder %s103, %s106
      %p115 = scmp.eq.s32.totalorder %s14, 3
      %p116 = por %p114, %p115
      %p117 = scmp.ne.s32.totalorder %s106, %s107
      %p118 = scmp.eq.s32.totalorder %s14, 0
      %p119 = por %p117, %p118
      %p120 = scmp.ne.s32.totalorder %s106, %s107
      %p121 = scmp.eq.s32.totalorder %s15, 3
      %p122 = por %p120, %p121
      %p124 = scmp.ne.s32.totalorder %s107, %s123
      %p125 = scmp.eq.s32.totalorder %s15, 0
      %p126 = por %p124, %p125
      %p127 = scmp.le.s32.totalorder 1, %s9
      %p128 = scmp.lt.s32.totalorder %s9, 5
      %p129 = pnand %p127, %p128
      %p130 = pneg %p129
      // Predicated region
      $region9: #{ancsh_head_forward.1} parent=5 // pred_check
        _
      $region10: #{ancsh_head_forward.1} parent=5 // pred_check_branch
        %132 = sbr.rel (%p129) target = $region12
      $region11: #{ancsh_head_forward.1} parent=5 // pred_region
        %s133 = ssub.s32 %s9, 1
        // Predicated region
        $region13: #{ancsh_head_forward.1} parent=11 // pred_check
          %p134 = pneg %p70
        $region14: #{ancsh_head_forward.1} parent=11 // pred_check_branch
          %136 = sbr.rel (%p134) target = $region16
        $region15: #{ancsh_head_forward.1} parent=11 // pred_region
          _
        $region16: #{ancsh_head_forward.1} parent=11 // pred_fallthru
          _
        // Predicated region
        $region17: #{ancsh_head_forward.1} parent=11 // pred_check
          %p137 = pneg %p91
        $region18: #{ancsh_head_forward.1} parent=11 // pred_check_branch
          %139 = sbr.rel (%p137) target = $region20
        $region19: #{ancsh_head_forward.1} parent=11 // pred_region
          _
        $region20: #{ancsh_head_forward.1} parent=11 // pred_fallthru
          _
      $region12: #{ancsh_head_forward.1} parent=5 // pred_fallthru
        _
      %p140 = scmp.lt.s32.totalorder %s9, 4
      // Predicated region
      $region21: #{ancsh_head_forward.1} parent=5 // pred_check
        %p141 = pneg %p140
      $region22: #{ancsh_head_forward.1} parent=5 // pred_check_branch
        %143 = sbr.rel (%p141) target = $region24
      $region23: #{ancsh_head_forward.1} parent=5 // pred_region
        // Predicated region
        $region25: #{ancsh_head_forward.1} parent=23 // pred_check
          %p144 = pneg %p43
        $region26: #{ancsh_head_forward.1} parent=23 // pred_check_branch
          %146 = sbr.rel (%p144) target = $region28
        $region27: #{ancsh_head_forward.1} parent=23 // pred_region
          %s147 = sand.u32 %s33, 1
          %s148 = sand.u32 %s33, 1
          %s149 = smul.addr %s148, 1024
          %s150 = scalar_lea.vmem [#allocation2], %s149
          %s151 = smul.u32 8, %s17
          %s152 = smul.addr %s16, 256
          %s153 = sadd.s32 %s151, %s152
          %s154 = smul.addr %s153, 8
          %s155 = scalar_lea.vmem %s0, %s154
          // Predicated region
          $region29: #{ancsh_head_forward.1} parent=27 // pred_check
            _
          $region30: #{ancsh_head_forward.1} parent=27 // pred_check_branch
            %157 = sbr.rel (0) target = $region32
          $region31: #{ancsh_head_forward.1} parent=27 // pred_region
            // Predicated region
            $region33: #{ancsh_head_forward.1} parent=31 // pred_check
              _
            $region34: #{ancsh_head_forward.1} parent=31 // pred_check_branch
              %159 = sbr.rel (0) target = $region36
            $region35: #{ancsh_head_forward.1} parent=31 // pred_region
              loop: start=0, step=1, limit=1
              $region37: #{ancsh_head_forward.1} parent=35 // loop_pre_header
                _
              $region38: #{ancsh_head_forward.1} parent=35 // loop_header
                %s161 = sphi 0, %s165
                %p162 = scmp.ge.s32.totalorder %s161, 1
                %s166 = sphi %s155, %s155
                %s167 = sphi %s150, %s150
              $region39: #{ancsh_head_forward.1} parent=35 // loop_header_branch
                %164 = sbr.rel (%p162) target = $region43
              $region40: #{ancsh_head_forward.1} parent=35 // loop_body
                %v168 = vld [vmem:[%s166] sm:$0xff]
                %169 = vst [vmem:[%s167] sm:$0xff] %v168
                %v170 = vld [vmem:[%s166 + $0x8] sm:$0xff]
                %171 = vst [vmem:[%s167 + $0x8] sm:$0xff] %v170
                %v172 = vld [vmem:[%s166 + $0x10] sm:$0xff]
                %173 = vst [vmem:[%s167 + $0x10] sm:$0xff] %v172
                %v174 = vld [vmem:[%s166 + $0x18] sm:$0xff]
                %175 = vst [vmem:[%s167 + $0x18] sm:$0xff] %v174
                %v176 = vld [vmem:[%s166 + $0x20] sm:$0xff]
                %177 = vst [vmem:[%s167 + $0x20] sm:$0xff] %v176
                %v178 = vld [vmem:[%s166 + $0x28] sm:$0xff]
                %179 = vst [vmem:[%s167 + $0x28] sm:$0xff] %v178
                %v180 = vld [vmem:[%s166 + $0x30] sm:$0xff]
                %181 = vst [vmem:[%s167 + $0x30] sm:$0xff] %v180
                %v182 = vld [vmem:[%s166 + $0x38] sm:$0xff]
                %183 = vst [vmem:[%s167 + $0x38] sm:$0xff] %v182
                %v184 = vld [vmem:[%s166 + $0x80] sm:$0xff]
                %185 = vst [vmem:[%s167 + $0x40] sm:$0xff] %v184
                %v186 = vld [vmem:[%s166 + $0x88] sm:$0xff]
                %187 = vst [vmem:[%s167 + $0x48] sm:$0xff] %v186
                %v188 = vld [vmem:[%s166 + $0x90] sm:$0xff]
                %189 = vst [vmem:[%s167 + $0x50] sm:$0xff] %v188
                %v190 = vld [vmem:[%s166 + $0x98] sm:$0xff]
                %191 = vst [vmem:[%s167 + $0x58] sm:$0xff] %v190
                %v192 = vld [vmem:[%s166 + $0xa0] sm:$0xff]
                %193 = vst [vmem:[%s167 + $0x60] sm:$0xff] %v192
                %v194 = vld [vmem:[%s166 + $0xa8] sm:$0xff]
                %195 = vst [vmem:[%s167 + $0x68] sm:$0xff] %v194
                %v196 = vld [vmem:[%s166 + $0xb0] sm:$0xff]
                %197 = vst [vmem:[%s167 + $0x70] sm:$0xff] %v196
                %v198 = vld [vmem:[%s166 + $0xb8] sm:$0xff]
                %199 = vst [vmem:[%s167 + $0x78] sm:$0xff] %v198
                %v200 = vld [vmem:[%s166 + $0x100] sm:$0xff]
                %201 = vst [vmem:[%s167 + $0x80] sm:$0xff] %v200
                %v202 = vld [vmem:[%s166 + $0x108] sm:$0xff]
                %203 = vst [vmem:[%s167 + $0x88] sm:$0xff] %v202
                %v204 = vld [vmem:[%s166 + $0x110] sm:$0xff]
                %205 = vst [vmem:[%s167 + $0x90] sm:$0xff] %v204
                %v206 = vld [vmem:[%s166 + $0x118] sm:$0xff]
                %207 = vst [vmem:[%s167 + $0x98] sm:$0xff] %v206
                %v208 = vld [vmem:[%s166 + $0x120] sm:$0xff]
                %209 = vst [vmem:[%s167 + $0xa0] sm:$0xff] %v208
                %v210 = vld [vmem:[%s166 + $0x128] sm:$0xff]
                %211 = vst [vmem:[%s167 + $0xa8] sm:$0xff] %v210
                %v212 = vld [vmem:[%s166 + $0x130] sm:$0xff]
                %213 = vst [vmem:[%s167 + $0xb0] sm:$0xff] %v212
                %v214 = vld [vmem:[%s166 + $0x138] sm:$0xff]
                %215 = vst [vmem:[%s167 + $0xb8] sm:$0xff] %v214
                %v216 = vld [vmem:[%s166 + $0x180] sm:$0xff]
                %217 = vst [vmem:[%s167 + $0xc0] sm:$0xff] %v216
                %v218 = vld [vmem:[%s166 + $0x188] sm:$0xff]
                %219 = vst [vmem:[%s167 + $0xc8] sm:$0xff] %v218
                %v220 = vld [vmem:[%s166 + $0x190] sm:$0xff]
                %221 = vst [vmem:[%s167 + $0xd0] sm:$0xff] %v220
                %v222 = vld [vmem:[%s166 + $0x198] sm:$0xff]
                %223 = vst [vmem:[%s167 + $0xd8] sm:$0xff] %v222
                %v224 = vld [vmem:[%s166 + $0x1a0] sm:$0xff]
                %225 = vst [vmem:[%s167 + $0xe0] sm:$0xff] %v224
                %v226 = vld [vmem:[%s166 + $0x1a8] sm:$0xff]
                %227 = vst [vmem:[%s167 + $0xe8] sm:$0xff] %v226
                %v228 = vld [vmem:[%s166 + $0x1b0] sm:$0xff]
                %229 = vst [vmem:[%s167 + $0xf0] sm:$0xff] %v228
                %v230 = vld [vmem:[%s166 + $0x1b8] sm:$0xff]
                %231 = vst [vmem:[%s167 + $0xf8] sm:$0xff] %v230
                %v232 = vld [vmem:[%s166 + $0x200] sm:$0xff]
                %233 = vst [vmem:[%s167 + $0x100] sm:$0xff] %v232
                %v234 = vld [vmem:[%s166 + $0x208] sm:$0xff]
                %235 = vst [vmem:[%s167 + $0x108] sm:$0xff] %v234
                %v236 = vld [vmem:[%s166 + $0x210] sm:$0xff]
                %237 = vst [vmem:[%s167 + $0x110] sm:$0xff] %v236
                %v238 = vld [vmem:[%s166 + $0x218] sm:$0xff]
                %239 = vst [vmem:[%s167 + $0x118] sm:$0xff] %v238
                %v240 = vld [vmem:[%s166 + $0x220] sm:$0xff]
                %241 = vst [vmem:[%s167 + $0x120] sm:$0xff] %v240
                %v242 = vld [vmem:[%s166 + $0x228] sm:$0xff]
                %243 = vst [vmem:[%s167 + $0x128] sm:$0xff] %v242
                %v244 = vld [vmem:[%s166 + $0x230] sm:$0xff]
                %245 = vst [vmem:[%s167 + $0x130] sm:$0xff] %v244
                %v246 = vld [vmem:[%s166 + $0x238] sm:$0xff]
                %247 = vst [vmem:[%s167 + $0x138] sm:$0xff] %v246
                %v248 = vld [vmem:[%s166 + $0x280] sm:$0xff]
                %249 = vst [vmem:[%s167 + $0x140] sm:$0xff] %v248
                %v250 = vld [vmem:[%s166 + $0x288] sm:$0xff]
                %251 = vst [vmem:[%s167 + $0x148] sm:$0xff] %v250
                %v252 = vld [vmem:[%s166 + $0x290] sm:$0xff]
                %253 = vst [vmem:[%s167 + $0x150] sm:$0xff] %v252
                %v254 = vld [vmem:[%s166 + $0x298] sm:$0xff]
                %255 = vst [vmem:[%s167 + $0x158] sm:$0xff] %v254
                %v256 = vld [vmem:[%s166 + $0x2a0] sm:$0xff]
                %257 = vst [vmem:[%s167 + $0x160] sm:$0xff] %v256
                %v258 = vld [vmem:[%s166 + $0x2a8] sm:$0xff]
                %259 = vst [vmem:[%s167 + $0x168] sm:$0xff] %v258
                %v260 = vld [vmem:[%s166 + $0x2b0] sm:$0xff]
                %261 = vst [vmem:[%s167 + $0x170] sm:$0xff] %v260
                %v262 = vld [vmem:[%s166 + $0x2b8] sm:$0xff]
                %263 = vst [vmem:[%s167 + $0x178] sm:$0xff] %v262
                %v264 = vld [vmem:[%s166 + $0x300] sm:$0xff]
                %265 = vst [vmem:[%s167 + $0x180] sm:$0xff] %v264
                %v266 = vld [vmem:[%s166 + $0x308] sm:$0xff]
                %267 = vst [vmem:[%s167 + $0x188] sm:$0xff] %v266
                %v268 = vld [vmem:[%s166 + $0x310] sm:$0xff]
                %269 = vst [vmem:[%s167 + $0x190] sm:$0xff] %v268
                %v270 = vld [vmem:[%s166 + $0x318] sm:$0xff]
                %271 = vst [vmem:[%s167 + $0x198] sm:$0xff] %v270
                %v272 = vld [vmem:[%s166 + $0x320] sm:$0xff]
                %273 = vst [vmem:[%s167 + $0x1a0] sm:$0xff] %v272
                %v274 = vld [vmem:[%s166 + $0x328] sm:$0xff]
                %275 = vst [vmem:[%s167 + $0x1a8] sm:$0xff] %v274
                %v276 = vld [vmem:[%s166 + $0x330] sm:$0xff]
                %277 = vst [vmem:[%s167 + $0x1b0] sm:$0xff] %v276
                %v278 = vld [vmem:[%s166 + $0x338] sm:$0xff]
                %279 = vst [vmem:[%s167 + $0x1b8] sm:$0xff] %v278
                %v280 = vld [vmem:[%s166 + $0x380] sm:$0xff]
                %281 = vst [vmem:[%s167 + $0x1c0] sm:$0xff] %v280
                %v282 = vld [vmem:[%s166 + $0x388] sm:$0xff]
                %283 = vst [vmem:[%s167 + $0x1c8] sm:$0xff] %v282
                %v284 = vld [vmem:[%s166 + $0x390] sm:$0xff]
                %285 = vst [vmem:[%s167 + $0x1d0] sm:$0xff] %v284
                %v286 = vld [vmem:[%s166 + $0x398] sm:$0xff]
                %287 = vst [vmem:[%s167 + $0x1d8] sm:$0xff] %v286
                %v288 = vld [vmem:[%s166 + $0x3a0] sm:$0xff]
                %289 = vst [vmem:[%s167 + $0x1e0] sm:$0xff] %v288
                %v290 = vld [vmem:[%s166 + $0x3a8] sm:$0xff]
                %291 = vst [vmem:[%s167 + $0x1e8] sm:$0xff] %v290
                %v292 = vld [vmem:[%s166 + $0x3b0] sm:$0xff]
                %293 = vst [vmem:[%s167 + $0x1f0] sm:$0xff] %v292
                %v294 = vld [vmem:[%s166 + $0x3b8] sm:$0xff]
                %295 = vst [vmem:[%s167 + $0x1f8] sm:$0xff] %v294
                %v296 = vld [vmem:[%s166 + $0x400] sm:$0xff]
                %297 = vst [vmem:[%s167 + $0x200] sm:$0xff] %v296
                %v298 = vld [vmem:[%s166 + $0x408] sm:$0xff]
                %299 = vst [vmem:[%s167 + $0x208] sm:$0xff] %v298
                %v300 = vld [vmem:[%s166 + $0x410] sm:$0xff]
                %301 = vst [vmem:[%s167 + $0x210] sm:$0xff] %v300
                %v302 = vld [vmem:[%s166 + $0x418] sm:$0xff]
                %303 = vst [vmem:[%s167 + $0x218] sm:$0xff] %v302
                %v304 = vld [vmem:[%s166 + $0x420] sm:$0xff]
                %305 = vst [vmem:[%s167 + $0x220] sm:$0xff] %v304
                %v306 = vld [vmem:[%s166 + $0x428] sm:$0xff]
                %307 = vst [vmem:[%s167 + $0x228] sm:$0xff] %v306
                %v308 = vld [vmem:[%s166 + $0x430] sm:$0xff]
                %309 = vst [vmem:[%s167 + $0x230] sm:$0xff] %v308
                %v310 = vld [vmem:[%s166 + $0x438] sm:$0xff]
                %311 = vst [vmem:[%s167 + $0x238] sm:$0xff] %v310
                %v312 = vld [vmem:[%s166 + $0x480] sm:$0xff]
                %313 = vst [vmem:[%s167 + $0x240] sm:$0xff] %v312
                %v314 = vld [vmem:[%s166 + $0x488] sm:$0xff]
                %315 = vst [vmem:[%s167 + $0x248] sm:$0xff] %v314
                %v316 = vld [vmem:[%s166 + $0x490] sm:$0xff]
                %317 = vst [vmem:[%s167 + $0x250] sm:$0xff] %v316
                %v318 = vld [vmem:[%s166 + $0x498] sm:$0xff]
                %319 = vst [vmem:[%s167 + $0x258] sm:$0xff] %v318
                %v320 = vld [vmem:[%s166 + $0x4a0] sm:$0xff]
                %321 = vst [vmem:[%s167 + $0x260] sm:$0xff] %v320
                %v322 = vld [vmem:[%s166 + $0x4a8] sm:$0xff]
                %323 = vst [vmem:[%s167 + $0x268] sm:$0xff] %v322
                %v324 = vld [vmem:[%s166 + $0x4b0] sm:$0xff]
                %325 = vst [vmem:[%s167 + $0x270] sm:$0xff] %v324
                %v326 = vld [vmem:[%s166 + $0x4b8] sm:$0xff]
                %327 = vst [vmem:[%s167 + $0x278] sm:$0xff] %v326
                %v328 = vld [vmem:[%s166 + $0x500] sm:$0xff]
                %329 = vst [vmem:[%s167 + $0x280] sm:$0xff] %v328
                %v330 = vld [vmem:[%s166 + $0x508] sm:$0xff]
                %331 = vst [vmem:[%s167 + $0x288] sm:$0xff] %v330
                %v332 = vld [vmem:[%s166 + $0x510] sm:$0xff]
                %333 = vst [vmem:[%s167 + $0x290] sm:$0xff] %v332
                %v334 = vld [vmem:[%s166 + $0x518] sm:$0xff]
                %335 = vst [vmem:[%s167 + $0x298] sm:$0xff] %v334
                %v336 = vld [vmem:[%s166 + $0x520] sm:$0xff]
                %337 = vst [vmem:[%s167 + $0x2a0] sm:$0xff] %v336
                %v338 = vld [vmem:[%s166 + $0x528] sm:$0xff]
                %339 = vst [vmem:[%s167 + $0x2a8] sm:$0xff] %v338
                %v340 = vld [vmem:[%s166 + $0x530] sm:$0xff]
                %341 = vst [vmem:[%s167 + $0x2b0] sm:$0xff] %v340
                %v342 = vld [vmem:[%s166 + $0x538] sm:$0xff]
                %343 = vst [vmem:[%s167 + $0x2b8] sm:$0xff] %v342
                %v344 = vld [vmem:[%s166 + $0x580] sm:$0xff]
                %345 = vst [vmem:[%s167 + $0x2c0] sm:$0xff] %v344
                %v346 = vld [vmem:[%s166 + $0x588] sm:$0xff]
                %347 = vst [vmem:[%s167 + $0x2c8] sm:$0xff] %v346
                %v348 = vld [vmem:[%s166 + $0x590] sm:$0xff]
                %349 = vst [vmem:[%s167 + $0x2d0] sm:$0xff] %v348
                %v350 = vld [vmem:[%s166 + $0x598] sm:$0xff]
                %351 = vst [vmem:[%s167 + $0x2d8] sm:$0xff] %v350
                %v352 = vld [vmem:[%s166 + $0x5a0] sm:$0xff]
                %353 = vst [vmem:[%s167 + $0x2e0] sm:$0xff] %v352
                %v354 = vld [vmem:[%s166 + $0x5a8] sm:$0xff]
                %355 = vst [vmem:[%s167 + $0x2e8] sm:$0xff] %v354
                %v356 = vld [vmem:[%s166 + $0x5b0] sm:$0xff]
                %357 = vst [vmem:[%s167 + $0x2f0] sm:$0xff] %v356
                %v358 = vld [vmem:[%s166 + $0x5b8] sm:$0xff]
                %359 = vst [vmem:[%s167 + $0x2f8] sm:$0xff] %v358
                %v360 = vld [vmem:[%s166 + $0x600] sm:$0xff]
                %361 = vst [vmem:[%s167 + $0x300] sm:$0xff] %v360
                %v362 = vld [vmem:[%s166 + $0x608] sm:$0xff]
                %363 = vst [vmem:[%s167 + $0x308] sm:$0xff] %v362
                %v364 = vld [vmem:[%s166 + $0x610] sm:$0xff]
                %365 = vst [vmem:[%s167 + $0x310] sm:$0xff] %v364
                %v366 = vld [vmem:[%s166 + $0x618] sm:$0xff]
                %367 = vst [vmem:[%s167 + $0x318] sm:$0xff] %v366
                %v368 = vld [vmem:[%s166 + $0x620] sm:$0xff]
                %369 = vst [vmem:[%s167 + $0x320] sm:$0xff] %v368
                %v370 = vld [vmem:[%s166 + $0x628] sm:$0xff]
                %371 = vst [vmem:[%s167 + $0x328] sm:$0xff] %v370
                %v372 = vld [vmem:[%s166 + $0x630] sm:$0xff]
                %373 = vst [vmem:[%s167 + $0x330] sm:$0xff] %v372
                %v374 = vld [vmem:[%s166 + $0x638] sm:$0xff]
                %375 = vst [vmem:[%s167 + $0x338] sm:$0xff] %v374
                %v376 = vld [vmem:[%s166 + $0x680] sm:$0xff]
                %377 = vst [vmem:[%s167 + $0x340] sm:$0xff] %v376
                %v378 = vld [vmem:[%s166 + $0x688] sm:$0xff]
                %379 = vst [vmem:[%s167 + $0x348] sm:$0xff] %v378
                %v380 = vld [vmem:[%s166 + $0x690] sm:$0xff]
                %381 = vst [vmem:[%s167 + $0x350] sm:$0xff] %v380
                %v382 = vld [vmem:[%s166 + $0x698] sm:$0xff]
                %383 = vst [vmem:[%s167 + $0x358] sm:$0xff] %v382
                %v384 = vld [vmem:[%s166 + $0x6a0] sm:$0xff]
                %385 = vst [vmem:[%s167 + $0x360] sm:$0xff] %v384
                %v386 = vld [vmem:[%s166 + $0x6a8] sm:$0xff]
                %387 = vst [vmem:[%s167 + $0x368] sm:$0xff] %v386
                %v388 = vld [vmem:[%s166 + $0x6b0] sm:$0xff]
                %389 = vst [vmem:[%s167 + $0x370] sm:$0xff] %v388
                %v390 = vld [vmem:[%s166 + $0x6b8] sm:$0xff]
                %391 = vst [vmem:[%s167 + $0x378] sm:$0xff] %v390
                %v392 = vld [vmem:[%s166 + $0x700] sm:$0xff]
                %393 = vst [vmem:[%s167 + $0x380] sm:$0xff] %v392
                %v394 = vld [vmem:[%s166 + $0x708] sm:$0xff]
                %395 = vst [vmem:[%s167 + $0x388] sm:$0xff] %v394
                %v396 = vld [vmem:[%s166 + $0x710] sm:$0xff]
                %397 = vst [vmem:[%s167 + $0x390] sm:$0xff] %v396
                %v398 = vld [vmem:[%s166 + $0x718] sm:$0xff]
                %399 = vst [vmem:[%s167 + $0x398] sm:$0xff] %v398
                %v400 = vld [vmem:[%s166 + $0x720] sm:$0xff]
                %401 = vst [vmem:[%s167 + $0x3a0] sm:$0xff] %v400
                %v402 = vld [vmem:[%s166 + $0x728] sm:$0xff]
                %403 = vst [vmem:[%s167 + $0x3a8] sm:$0xff] %v402
                %v404 = vld [vmem:[%s166 + $0x730] sm:$0xff]
                %405 = vst [vmem:[%s167 + $0x3b0] sm:$0xff] %v404
                %v406 = vld [vmem:[%s166 + $0x738] sm:$0xff]
                %407 = vst [vmem:[%s167 + $0x3b8] sm:$0xff] %v406
                %v408 = vld [vmem:[%s166 + $0x780] sm:$0xff]
                %409 = vst [vmem:[%s167 + $0x3c0] sm:$0xff] %v408
                %v410 = vld [vmem:[%s166 + $0x788] sm:$0xff]
                %411 = vst [vmem:[%s167 + $0x3c8] sm:$0xff] %v410
                %v412 = vld [vmem:[%s166 + $0x790] sm:$0xff]
                %413 = vst [vmem:[%s167 + $0x3d0] sm:$0xff] %v412
                %v414 = vld [vmem:[%s166 + $0x798] sm:$0xff]
                %415 = vst [vmem:[%s167 + $0x3d8] sm:$0xff] %v414
                %v416 = vld [vmem:[%s166 + $0x7a0] sm:$0xff]
                %417 = vst [vmem:[%s167 + $0x3e0] sm:$0xff] %v416
                %v418 = vld [vmem:[%s166 + $0x7a8] sm:$0xff]
                %419 = vst [vmem:[%s167 + $0x3e8] sm:$0xff] %v418
                %v420 = vld [vmem:[%s166 + $0x7b0] sm:$0xff]
                %421 = vst [vmem:[%s167 + $0x3f0] sm:$0xff] %v420
                %v422 = vld [vmem:[%s166 + $0x7b8] sm:$0xff]
                %423 = vst [vmem:[%s167 + $0x3f8] sm:$0xff] %v422
              $region41: #{ancsh_head_forward.1} parent=35 // loop_footer
                %s165 = sadd.s32 1, %s161
              $region42: #{ancsh_head_forward.1} parent=35 // loop_footer_branch
                %160 = sbr.rel target = $region38
              $region43: #{ancsh_head_forward.1} parent=35 // loop_exit
                _
            $region36: #{ancsh_head_forward.1} parent=31 // pred_fallthru
              _
            // Predicated region
            $region44: #{ancsh_head_forward.1} parent=31 // pred_check
              _
            $region45: #{ancsh_head_forward.1} parent=31 // pred_check_branch
              %425 = sbr.rel target = $region47
            $region46: #{ancsh_head_forward.1} parent=31 // pred_region
              _
            $region47: #{ancsh_head_forward.1} parent=31 // pred_fallthru
              _
          $region32: #{ancsh_head_forward.1} parent=27 // pred_fallthru
            _
          %426 = vnop
        $region28: #{ancsh_head_forward.1} parent=23 // pred_fallthru
          _
      $region24: #{ancsh_head_forward.1} parent=5 // pred_fallthru
        _
      %p427 = scmp.le.s32.totalorder 1, %s9
      %p428 = scmp.lt.s32.totalorder %s9, 5
      %p429 = pnand %p427, %p428
      %p430 = pneg %p429
      // Predicated region
      $region48: #{ancsh_head_forward.1} parent=5 // pred_check
        _
      $region49: #{ancsh_head_forward.1} parent=5 // pred_check_branch
        %432 = sbr.rel (%p429) target = $region51
      $region50: #{ancsh_head_forward.1} parent=5 // pred_region
        %s433 = ssub.s32 %s9, 1
        %s434 = sand.u32 %s36, 1
        %s435 = sand.u32 %s36, 1
        %s436 = smul.addr %s435, 1024
        %s437 = scalar_lea.vmem [#allocation2], %s436
        // Predicated region
        $region52: #{ancsh_head_forward.1} parent=50 // pred_check
          %p438 = pneg %p49
        $region53: #{ancsh_head_forward.1} parent=50 // pred_check_branch
          %440 = sbr.rel (%p438) target = $region55
        $region54: #{ancsh_head_forward.1} parent=50 // pred_region
          _
        $region55: #{ancsh_head_forward.1} parent=50 // pred_fallthru
          _
        %s441 = sand.u32 %s36, 1
        %s442 = sand.u32 %s36, 1
        %s443 = smul.addr %s442, 1024
        %s444 = scalar_lea.vmem [#allocation2], %s443
        %p445 = pneg %p49
        %p446 = pneg %p46
        %p447 = pneg %p70
        %p448 = pneg %p67
        %p449 = pneg %p91
        %p450 = pneg %p88
        %p451 = pneg %p119
        %p452 = pneg %p116
        %s453 = sand.u32 %s106, 1
        %s454 = sand.u32 %s106, 1
        %s455 = smul.addr %s454, 1024
        %s456 = scalar_lea.vmem [#allocation3], %s455
        %s457 = smul.u32 8, %s19
        %s458 = smul.u32 128, %s19
        %s459 = ssub.s32 250, %s458
        %p460 = scmp.lt.s32.totalorder %s459, 128
        %s461 = scalar_select %p460, %s459, 128
        %s462 = smul.u32 128, %s461
        %v463 = vld [vmem:[%s437] sm:$0xff]
        %v464 = vld [vmem:[%s437 + $0x8] sm:$0xff]
        %v465 = vld [vmem:[%s437 + $0x10] sm:$0xff]
        %v466 = vld [vmem:[%s437 + $0x18] sm:$0xff]
        %v467 = vld [vmem:[%s437 + $0x20] sm:$0xff]
        %v468 = vld [vmem:[%s437 + $0x28] sm:$0xff]
        %v469 = vld [vmem:[%s437 + $0x30] sm:$0xff]
        %v470 = vld [vmem:[%s437 + $0x38] sm:$0xff]
        %v471 = vld [vmem:[%s437 + $0x40] sm:$0xff]
        %v472 = vld [vmem:[%s437 + $0x48] sm:$0xff]
        %v473 = vld [vmem:[%s437 + $0x50] sm:$0xff]
        %v474 = vld [vmem:[%s437 + $0x58] sm:$0xff]
        %v475 = vld [vmem:[%s437 + $0x60] sm:$0xff]
        %v476 = vld [vmem:[%s437 + $0x68] sm:$0xff]
        %v477 = vld [vmem:[%s437 + $0x70] sm:$0xff]
        %v478 = vld [vmem:[%s437 + $0x78] sm:$0xff]
        %v479 = vld [vmem:[%s437 + $0x80] sm:$0xff]
        %v480 = vld [vmem:[%s437 + $0x88] sm:$0xff]
        %v481 = vld [vmem:[%s437 + $0x90] sm:$0xff]
        %v482 = vld [vmem:[%s437 + $0x98] sm:$0xff]
        %v483 = vld [vmem:[%s437 + $0xa0] sm:$0xff]
        %v484 = vld [vmem:[%s437 + $0xa8] sm:$0xff]
        %v485 = vld [vmem:[%s437 + $0xb0] sm:$0xff]
        %v486 = vld [vmem:[%s437 + $0xb8] sm:$0xff]
        %v487 = vld [vmem:[%s437 + $0xc0] sm:$0xff]
        %v488 = vld [vmem:[%s437 + $0xc8] sm:$0xff]
        %v489 = vld [vmem:[%s437 + $0xd0] sm:$0xff]
        %v490 = vld [vmem:[%s437 + $0xd8] sm:$0xff]
        %v491 = vld [vmem:[%s437 + $0xe0] sm:$0xff]
        %v492 = vld [vmem:[%s437 + $0xe8] sm:$0xff]
        %v493 = vld [vmem:[%s437 + $0xf0] sm:$0xff]
        %v494 = vld [vmem:[%s437 + $0xf8] sm:$0xff]
        %v495 = vld [vmem:[%s437 + $0x100] sm:$0xff]
        %v496 = vld [vmem:[%s437 + $0x108] sm:$0xff]
        %v497 = vld [vmem:[%s437 + $0x110] sm:$0xff]
        %v498 = vld [vmem:[%s437 + $0x118] sm:$0xff]
        %v499 = vld [vmem:[%s437 + $0x120] sm:$0xff]
        %v500 = vld [vmem:[%s437 + $0x128] sm:$0xff]
        %v501 = vld [vmem:[%s437 + $0x130] sm:$0xff]
        %v502 = vld [vmem:[%s437 + $0x138] sm:$0xff]
        %v503 = vld [vmem:[%s437 + $0x140] sm:$0xff]
        %v504 = vld [vmem:[%s437 + $0x148] sm:$0xff]
        %v505 = vld [vmem:[%s437 + $0x150] sm:$0xff]
        %v506 = vld [vmem:[%s437 + $0x158] sm:$0xff]
        %v507 = vld [vmem:[%s437 + $0x160] sm:$0xff]
        %v508 = vld [vmem:[%s437 + $0x168] sm:$0xff]
        %v509 = vld [vmem:[%s437 + $0x170] sm:$0xff]
        %v510 = vld [vmem:[%s437 + $0x178] sm:$0xff]
        %v511 = vld [vmem:[%s437 + $0x180] sm:$0xff]
        %v512 = vld [vmem:[%s437 + $0x188] sm:$0xff]
        %v513 = vld [vmem:[%s437 + $0x190] sm:$0xff]
        %v514 = vld [vmem:[%s437 + $0x198] sm:$0xff]
        %v515 = vld [vmem:[%s437 + $0x1a0] sm:$0xff]
        %v516 = vld [vmem:[%s437 + $0x1a8] sm:$0xff]
        %v517 = vld [vmem:[%s437 + $0x1b0] sm:$0xff]
        %v518 = vld [vmem:[%s437 + $0x1b8] sm:$0xff]
        %v519 = vld [vmem:[%s437 + $0x1c0] sm:$0xff]
        %v520 = vld [vmem:[%s437 + $0x1c8] sm:$0xff]
        %v521 = vld [vmem:[%s437 + $0x1d0] sm:$0xff]
        %v522 = vld [vmem:[%s437 + $0x1d8] sm:$0xff]
        %v523 = vld [vmem:[%s437 + $0x1e0] sm:$0xff]
        %v524 = vld [vmem:[%s437 + $0x1e8] sm:$0xff]
        %v525 = vld [vmem:[%s437 + $0x1f0] sm:$0xff]
        %v526 = vld [vmem:[%s437 + $0x1f8] sm:$0xff]
        %v527 = vld [vmem:[%s437 + $0x200] sm:$0xff]
        %v528 = vld [vmem:[%s437 + $0x208] sm:$0xff]
        %v529 = vld [vmem:[%s437 + $0x210] sm:$0xff]
        %v530 = vld [vmem:[%s437 + $0x218] sm:$0xff]
        %v531 = vld [vmem:[%s437 + $0x220] sm:$0xff]
        %v532 = vld [vmem:[%s437 + $0x228] sm:$0xff]
        %v533 = vld [vmem:[%s437 + $0x230] sm:$0xff]
        %v534 = vld [vmem:[%s437 + $0x238] sm:$0xff]
        %v535 = vld [vmem:[%s437 + $0x240] sm:$0xff]
        %v536 = vld [vmem:[%s437 + $0x248] sm:$0xff]
        %v537 = vld [vmem:[%s437 + $0x250] sm:$0xff]
        %v538 = vld [vmem:[%s437 + $0x258] sm:$0xff]
        %v539 = vld [vmem:[%s437 + $0x260] sm:$0xff]
        %v540 = vld [vmem:[%s437 + $0x268] sm:$0xff]
        %v541 = vld [vmem:[%s437 + $0x270] sm:$0xff]
        %v542 = vld [vmem:[%s437 + $0x278] sm:$0xff]
        %v543 = vld [vmem:[%s437 + $0x280] sm:$0xff]
        %v544 = vld [vmem:[%s437 + $0x288] sm:$0xff]
        %v545 = vld [vmem:[%s437 + $0x290] sm:$0xff]
        %v546 = vld [vmem:[%s437 + $0x298] sm:$0xff]
        %v547 = vld [vmem:[%s437 + $0x2a0] sm:$0xff]
        %v548 = vld [vmem:[%s437 + $0x2a8] sm:$0xff]
        %v549 = vld [vmem:[%s437 + $0x2b0] sm:$0xff]
        %v550 = vld [vmem:[%s437 + $0x2b8] sm:$0xff]
        %v551 = vld [vmem:[%s437 + $0x2c0] sm:$0xff]
        %v552 = vld [vmem:[%s437 + $0x2c8] sm:$0xff]
        %v553 = vld [vmem:[%s437 + $0x2d0] sm:$0xff]
        %v554 = vld [vmem:[%s437 + $0x2d8] sm:$0xff]
        %v555 = vld [vmem:[%s437 + $0x2e0] sm:$0xff]
        %v556 = vld [vmem:[%s437 + $0x2e8] sm:$0xff]
        %v557 = vld [vmem:[%s437 + $0x2f0] sm:$0xff]
        %v558 = vld [vmem:[%s437 + $0x2f8] sm:$0xff]
        %v559 = vld [vmem:[%s437 + $0x300] sm:$0xff]
        %v560 = vld [vmem:[%s437 + $0x308] sm:$0xff]
        %v561 = vld [vmem:[%s437 + $0x310] sm:$0xff]
        %v562 = vld [vmem:[%s437 + $0x318] sm:$0xff]
        %v563 = vld [vmem:[%s437 + $0x320] sm:$0xff]
        %v564 = vld [vmem:[%s437 + $0x328] sm:$0xff]
        %v565 = vld [vmem:[%s437 + $0x330] sm:$0xff]
        %v566 = vld [vmem:[%s437 + $0x338] sm:$0xff]
        %v567 = vld [vmem:[%s437 + $0x340] sm:$0xff]
        %v568 = vld [vmem:[%s437 + $0x348] sm:$0xff]
        %v569 = vld [vmem:[%s437 + $0x350] sm:$0xff]
        %v570 = vld [vmem:[%s437 + $0x358] sm:$0xff]
        %v571 = vld [vmem:[%s437 + $0x360] sm:$0xff]
        %v572 = vld [vmem:[%s437 + $0x368] sm:$0xff]
        %v573 = vld [vmem:[%s437 + $0x370] sm:$0xff]
        %v574 = vld [vmem:[%s437 + $0x378] sm:$0xff]
        %v575 = vld [vmem:[%s437 + $0x380] sm:$0xff]
        %v576 = vld [vmem:[%s437 + $0x388] sm:$0xff]
        %v577 = vld [vmem:[%s437 + $0x390] sm:$0xff]
        %v578 = vld [vmem:[%s437 + $0x398] sm:$0xff]
        %v579 = vld [vmem:[%s437 + $0x3a0] sm:$0xff]
        %v580 = vld [vmem:[%s437 + $0x3a8] sm:$0xff]
        %v581 = vld [vmem:[%s437 + $0x3b0] sm:$0xff]
        %v582 = vld [vmem:[%s437 + $0x3b8] sm:$0xff]
        %v583 = vld [vmem:[%s437 + $0x3c0] sm:$0xff]
        %v584 = vld [vmem:[%s437 + $0x3c8] sm:$0xff]
        %v585 = vld [vmem:[%s437 + $0x3d0] sm:$0xff]
        %v586 = vld [vmem:[%s437 + $0x3d8] sm:$0xff]
        %v587 = vld [vmem:[%s437 + $0x3e0] sm:$0xff]
        %v588 = vld [vmem:[%s437 + $0x3e8] sm:$0xff]
        %v589 = vld [vmem:[%s437 + $0x3f0] sm:$0xff]
        %v590 = vld [vmem:[%s437 + $0x3f8] sm:$0xff]
        %v591 = vld [vmem:[%s1] sm:$0xff]
        %v592 = vld [vmem:[%s1 + $0x8] sm:$0xff]
        %v593 = vld [vmem:[%s1 + $0x10] sm:$0xff]
        %v594 = vld [vmem:[%s1 + $0x18] sm:$0xff]
        %v595 = vld [vmem:[%s1 + $0x20] sm:$0xff]
        %v596 = vld [vmem:[%s1 + $0x28] sm:$0xff]
        %v597 = vld [vmem:[%s1 + $0x30] sm:$0xff]
        %v598 = vld [vmem:[%s1 + $0x38] sm:$0xff]
        %v599 = vld [vmem:[%s1 + $0x40] sm:$0xff]
        %v600 = vld [vmem:[%s1 + $0x48] sm:$0xff]
        %v601 = vld [vmem:[%s1 + $0x50] sm:$0xff]
        %v602 = vld [vmem:[%s1 + $0x58] sm:$0xff]
        %v603 = vld [vmem:[%s1 + $0x60] sm:$0xff]
        %v604 = vld [vmem:[%s1 + $0x68] sm:$0xff]
        %v605 = vld [vmem:[%s1 + $0x70] sm:$0xff]
        %v606 = vld [vmem:[%s1 + $0x78] sm:$0xff]
        %v607 = vld [vmem:[%s2] sm:$0x1]
        %v609 = vlaneseq
        %v610 = vshrl.u32 %v609, 7
        %v611 = vsub.s32 0, %v610
        %v612 = vrot.slane %v607, %v611
        %614 = vxpose.xlu0.b32.start [1/16] %v463, 128
        %615 = vxpose.xlu0.b32.cont [2/16] %v471, 128
        %616 = vxpose.xlu0.b32.cont [3/16] %v479, 128
        %617 = vxpose.xlu0.b32.cont [4/16] %v487, 128
        %618 = vxpose.xlu0.b32.cont [5/16] %v495, 128
        %619 = vxpose.xlu0.b32.cont [6/16] %v503, 128
        %620 = vxpose.xlu0.b32.cont [7/16] %v511, 128
        %621 = vxpose.xlu0.b32.cont [8/16] %v519, 128
        %622 = vxpose.xlu0.b32.cont [9/16] %v527, 128
        %623 = vxpose.xlu0.b32.cont [10/16] %v535, 128
        %624 = vxpose.xlu0.b32.cont [11/16] %v543, 128
        %625 = vxpose.xlu0.b32.cont [12/16] %v551, 128
        %626 = vxpose.xlu0.b32.cont [13/16] %v559, 128
        %627 = vxpose.xlu0.b32.cont [14/16] %v567, 128
        %628 = vxpose.xlu0.b32.cont [15/16] %v575, 128
        %629 = vxpose.xlu0.b32.end [16/16] %v583, 128
        %v630 = vpop.trf.xlu0
        %v631 = vpop.trf.xlu0
        %v632 = vpop.trf.xlu0
        %v633 = vpop.trf.xlu0
        %v634 = vpop.trf.xlu0
        %v635 = vpop.trf.xlu0
        %v636 = vpop.trf.xlu0
        %v637 = vpop.trf.xlu0
        %v638 = vpop.trf.xlu0
        %v639 = vpop.trf.xlu0
        %v640 = vpop.trf.xlu0
        %v641 = vpop.trf.xlu0
        %v642 = vpop.trf.xlu0
        %v643 = vpop.trf.xlu0
        %v644 = vpop.trf.xlu0
        %v645 = vpop.trf.xlu0
        %646 = vxpose.xlu0.b32.start [1/16] %v464, 128
        %647 = vxpose.xlu0.b32.cont [2/16] %v472, 128
        %648 = vxpose.xlu0.b32.cont [3/16] %v480, 128
        %649 = vxpose.xlu0.b32.cont [4/16] %v488, 128
        %650 = vxpose.xlu0.b32.cont [5/16] %v496, 128
        %651 = vxpose.xlu0.b32.cont [6/16] %v504, 128
        %652 = vxpose.xlu0.b32.cont [7/16] %v512, 128
        %653 = vxpose.xlu0.b32.cont [8/16] %v520, 128
        %654 = vxpose.xlu0.b32.cont [9/16] %v528, 128
        %655 = vxpose.xlu0.b32.cont [10/16] %v536, 128
        %656 = vxpose.xlu0.b32.cont [11/16] %v544, 128
        %657 = vxpose.xlu0.b32.cont [12/16] %v552, 128
        %658 = vxpose.xlu0.b32.cont [13/16] %v560, 128
        %659 = vxpose.xlu0.b32.cont [14/16] %v568, 128
        %660 = vxpose.xlu0.b32.cont [15/16] %v576, 128
        %661 = vxpose.xlu0.b32.end [16/16] %v584, 128
        %v662 = vpop.trf.xlu0
        %v663 = vpop.trf.xlu0
        %v664 = vpop.trf.xlu0
        %v665 = vpop.trf.xlu0
        %v666 = vpop.trf.xlu0
        %v667 = vpop.trf.xlu0
        %v668 = vpop.trf.xlu0
        %v669 = vpop.trf.xlu0
        %v670 = vpop.trf.xlu0
        %v671 = vpop.trf.xlu0
        %v672 = vpop.trf.xlu0
        %v673 = vpop.trf.xlu0
        %v674 = vpop.trf.xlu0
        %v675 = vpop.trf.xlu0
        %v676 = vpop.trf.xlu0
        %v677 = vpop.trf.xlu0
        %678 = vxpose.xlu0.b32.start [1/16] %v465, 128
        %679 = vxpose.xlu0.b32.cont [2/16] %v473, 128
        %680 = vxpose.xlu0.b32.cont [3/16] %v481, 128
        %681 = vxpose.xlu0.b32.cont [4/16] %v489, 128
        %682 = vxpose.xlu0.b32.cont [5/16] %v497, 128
        %683 = vxpose.xlu0.b32.cont [6/16] %v505, 128
        %684 = vxpose.xlu0.b32.cont [7/16] %v513, 128
        %685 = vxpose.xlu0.b32.cont [8/16] %v521, 128
        %686 = vxpose.xlu0.b32.cont [9/16] %v529, 128
        %687 = vxpose.xlu0.b32.cont [10/16] %v537, 128
        %688 = vxpose.xlu0.b32.cont [11/16] %v545, 128
        %689 = vxpose.xlu0.b32.cont [12/16] %v553, 128
        %690 = vxpose.xlu0.b32.cont [13/16] %v561, 128
        %691 = vxpose.xlu0.b32.cont [14/16] %v569, 128
        %692 = vxpose.xlu0.b32.cont [15/16] %v577, 128
        %693 = vxpose.xlu0.b32.end [16/16] %v585, 128
        %v694 = vpop.trf.xlu0
        %v695 = vpop.trf.xlu0
        %v696 = vpop.trf.xlu0
        %v697 = vpop.trf.xlu0
        %v698 = vpop.trf.xlu0
        %v699 = vpop.trf.xlu0
        %v700 = vpop.trf.xlu0
        %v701 = vpop.trf.xlu0
        %v702 = vpop.trf.xlu0
        %v703 = vpop.trf.xlu0
        %v704 = vpop.trf.xlu0
        %v705 = vpop.trf.xlu0
        %v706 = vpop.trf.xlu0
        %v707 = vpop.trf.xlu0
        %v708 = vpop.trf.xlu0
        %v709 = vpop.trf.xlu0
        %710 = vxpose.xlu0.b32.start [1/16] %v466, 128
        %711 = vxpose.xlu0.b32.cont [2/16] %v474, 128
        %712 = vxpose.xlu0.b32.cont [3/16] %v482, 128
        %713 = vxpose.xlu0.b32.cont [4/16] %v490, 128
        %714 = vxpose.xlu0.b32.cont [5/16] %v498, 128
        %715 = vxpose.xlu0.b32.cont [6/16] %v506, 128
        %716 = vxpose.xlu0.b32.cont [7/16] %v514, 128
        %717 = vxpose.xlu0.b32.cont [8/16] %v522, 128
        %718 = vxpose.xlu0.b32.cont [9/16] %v530, 128
        %719 = vxpose.xlu0.b32.cont [10/16] %v538, 128
        %720 = vxpose.xlu0.b32.cont [11/16] %v546, 128
        %721 = vxpose.xlu0.b32.cont [12/16] %v554, 128
        %722 = vxpose.xlu0.b32.cont [13/16] %v562, 128
        %723 = vxpose.xlu0.b32.cont [14/16] %v570, 128
        %724 = vxpose.xlu0.b32.cont [15/16] %v578, 128
        %725 = vxpose.xlu0.b32.end [16/16] %v586, 128
        %v726 = vpop.trf.xlu0
        %v727 = vpop.trf.xlu0
        %v728 = vpop.trf.xlu0
        %v729 = vpop.trf.xlu0
        %v730 = vpop.trf.xlu0
        %v731 = vpop.trf.xlu0
        %v732 = vpop.trf.xlu0
        %v733 = vpop.trf.xlu0
        %v734 = vpop.trf.xlu0
        %v735 = vpop.trf.xlu0
        %v736 = vpop.trf.xlu0
        %v737 = vpop.trf.xlu0
        %v738 = vpop.trf.xlu0
        %v739 = vpop.trf.xlu0
        %v740 = vpop.trf.xlu0
        %v741 = vpop.trf.xlu0
        %742 = vxpose.xlu0.b32.start [1/16] %v467, 128
        %743 = vxpose.xlu0.b32.cont [2/16] %v475, 128
        %744 = vxpose.xlu0.b32.cont [3/16] %v483, 128
        %745 = vxpose.xlu0.b32.cont [4/16] %v491, 128
        %746 = vxpose.xlu0.b32.cont [5/16] %v499, 128
        %747 = vxpose.xlu0.b32.cont [6/16] %v507, 128
        %748 = vxpose.xlu0.b32.cont [7/16] %v515, 128
        %749 = vxpose.xlu0.b32.cont [8/16] %v523, 128
        %750 = vxpose.xlu0.b32.cont [9/16] %v531, 128
        %751 = vxpose.xlu0.b32.cont [10/16] %v539, 128
        %752 = vxpose.xlu0.b32.cont [11/16] %v547, 128
        %753 = vxpose.xlu0.b32.cont [12/16] %v555, 128
        %754 = vxpose.xlu0.b32.cont [13/16] %v563, 128
        %755 = vxpose.xlu0.b32.cont [14/16] %v571, 128
        %756 = vxpose.xlu0.b32.cont [15/16] %v579, 128
        %757 = vxpose.xlu0.b32.end [16/16] %v587, 128
        %v758 = vpop.trf.xlu0
        %v759 = vpop.trf.xlu0
        %v760 = vpop.trf.xlu0
        %v761 = vpop.trf.xlu0
        %v762 = vpop.trf.xlu0
        %v763 = vpop.trf.xlu0
        %v764 = vpop.trf.xlu0
        %v765 = vpop.trf.xlu0
        %v766 = vpop.trf.xlu0
        %v767 = vpop.trf.xlu0
        %v768 = vpop.trf.xlu0
        %v769 = vpop.trf.xlu0
        %v770 = vpop.trf.xlu0
        %v771 = vpop.trf.xlu0
        %v772 = vpop.trf.xlu0
        %v773 = vpop.trf.xlu0
        %774 = vxpose.xlu0.b32.start [1/16] %v468, 128
        %775 = vxpose.xlu0.b32.cont [2/16] %v476, 128
        %776 = vxpose.xlu0.b32.cont [3/16] %v484, 128
        %777 = vxpose.xlu0.b32.cont [4/16] %v492, 128
        %778 = vxpose.xlu0.b32.cont [5/16] %v500, 128
        %779 = vxpose.xlu0.b32.cont [6/16] %v508, 128
        %780 = vxpose.xlu0.b32.cont [7/16] %v516, 128
        %781 = vxpose.xlu0.b32.cont [8/16] %v524, 128
        %782 = vxpose.xlu0.b32.cont [9/16] %v532, 128
        %783 = vxpose.xlu0.b32.cont [10/16] %v540, 128
        %784 = vxpose.xlu0.b32.cont [11/16] %v548, 128
        %785 = vxpose.xlu0.b32.cont [12/16] %v556, 128
        %786 = vxpose.xlu0.b32.cont [13/16] %v564, 128
        %787 = vxpose.xlu0.b32.cont [14/16] %v572, 128
        %788 = vxpose.xlu0.b32.cont [15/16] %v580, 128
        %789 = vxpose.xlu0.b32.end [16/16] %v588, 128
        %v790 = vpop.trf.xlu0
        %v791 = vpop.trf.xlu0
        %v792 = vpop.trf.xlu0
        %v793 = vpop.trf.xlu0
        %v794 = vpop.trf.xlu0
        %v795 = vpop.trf.xlu0
        %v796 = vpop.trf.xlu0
        %v797 = vpop.trf.xlu0
        %v798 = vpop.trf.xlu0
        %v799 = vpop.trf.xlu0
        %v800 = vpop.trf.xlu0
        %v801 = vpop.trf.xlu0
        %v802 = vpop.trf.xlu0
        %v803 = vpop.trf.xlu0
        %v804 = vpop.trf.xlu0
        %v805 = vpop.trf.xlu0
        %806 = vxpose.xlu0.b32.start [1/16] %v469, 128
        %807 = vxpose.xlu0.b32.cont [2/16] %v477, 128
        %808 = vxpose.xlu0.b32.cont [3/16] %v485, 128
        %809 = vxpose.xlu0.b32.cont [4/16] %v493, 128
        %810 = vxpose.xlu0.b32.cont [5/16] %v501, 128
        %811 = vxpose.xlu0.b32.cont [6/16] %v509, 128
        %812 = vxpose.xlu0.b32.cont [7/16] %v517, 128
        %813 = vxpose.xlu0.b32.cont [8/16] %v525, 128
        %814 = vxpose.xlu0.b32.cont [9/16] %v533, 128
        %815 = vxpose.xlu0.b32.cont [10/16] %v541, 128
        %816 = vxpose.xlu0.b32.cont [11/16] %v549, 128
        %817 = vxpose.xlu0.b32.cont [12/16] %v557, 128
        %818 = vxpose.xlu0.b32.cont [13/16] %v565, 128
        %819 = vxpose.xlu0.b32.cont [14/16] %v573, 128
        %820 = vxpose.xlu0.b32.cont [15/16] %v581, 128
        %821 = vxpose.xlu0.b32.end [16/16] %v589, 128
        %v822 = vpop.trf.xlu0
        %v823 = vpop.trf.xlu0
        %v824 = vpop.trf.xlu0
        %v825 = vpop.trf.xlu0
        %v826 = vpop.trf.xlu0
        %v827 = vpop.trf.xlu0
        %v828 = vpop.trf.xlu0
        %v829 = vpop.trf.xlu0
        %v830 = vpop.trf.xlu0
        %v831 = vpop.trf.xlu0
        %v832 = vpop.trf.xlu0
        %v833 = vpop.trf.xlu0
        %v834 = vpop.trf.xlu0
        %v835 = vpop.trf.xlu0
        %v836 = vpop.trf.xlu0
        %v837 = vpop.trf.xlu0
        %838 = vxpose.xlu0.b32.start [1/16] %v470, 128
        %839 = vxpose.xlu0.b32.cont [2/16] %v478, 128
        %840 = vxpose.xlu0.b32.cont [3/16] %v486, 128
        %841 = vxpose.xlu0.b32.cont [4/16] %v494, 128
        %842 = vxpose.xlu0.b32.cont [5/16] %v502, 128
        %843 = vxpose.xlu0.b32.cont [6/16] %v510, 128
        %844 = vxpose.xlu0.b32.cont [7/16] %v518, 128
        %845 = vxpose.xlu0.b32.cont [8/16] %v526, 128
        %846 = vxpose.xlu0.b32.cont [9/16] %v534, 128
        %847 = vxpose.xlu0.b32.cont [10/16] %v542, 128
        %848 = vxpose.xlu0.b32.cont [11/16] %v550, 128
        %849 = vxpose.xlu0.b32.cont [12/16] %v558, 128
        %850 = vxpose.xlu0.b32.cont [13/16] %v566, 128
        %851 = vxpose.xlu0.b32.cont [14/16] %v574, 128
        %852 = vxpose.xlu0.b32.cont [15/16] %v582, 128
        %853 = vxpose.xlu0.b32.end [16/16] %v590, 128
        %v854 = vpop.trf.xlu0
        %v855 = vpop.trf.xlu0
        %v856 = vpop.trf.xlu0
        %v857 = vpop.trf.xlu0
        %v858 = vpop.trf.xlu0
        %v859 = vpop.trf.xlu0
        %v860 = vpop.trf.xlu0
        %v861 = vpop.trf.xlu0
        %v862 = vpop.trf.xlu0
        %v863 = vpop.trf.xlu0
        %v864 = vpop.trf.xlu0
        %v865 = vpop.trf.xlu0
        %v866 = vpop.trf.xlu0
        %v867 = vpop.trf.xlu0
        %v868 = vpop.trf.xlu0
        %v869 = vpop.trf.xlu0
        %870 = vmatprep.subr.mxu0 0.0
        %871 = vmatpush1.msra.mxu0 %v591
        %872 = vmatprep.subr.mxu0 0.0
        %873 = vmatpush1.msra.mxu0 %v592
        %874 = vmatprep.subr.mxu0 0.0
        %875 = vmatpush1.msra.mxu0 %v593
        %876 = vmatprep.subr.mxu0 0.0
        %877 = vmatpush1.msra.mxu0 %v594
        %878 = vmatprep.subr.mxu0 0.0
        %879 = vmatpush1.msra.mxu0 %v595
        %880 = vmatprep.subr.mxu0 0.0
        %881 = vmatpush1.msra.mxu0 %v596
        %882 = vmatprep.subr.mxu0 0.0
        %883 = vmatpush1.msra.mxu0 %v597
        %884 = vmatprep.subr.mxu0 0.0
        %885 = vmatpush1.msra.mxu0 %v598
        %886 = vmatprep.subr.mxu0 0.0
        %887 = vmatpush1.msra.mxu0 %v599
        %888 = vmatprep.subr.mxu0 0.0
        %889 = vmatpush1.msra.mxu0 %v600
        %890 = vmatprep.subr.mxu0 0.0
        %891 = vmatpush1.msra.mxu0 %v601
        %892 = vmatprep.subr.mxu0 0.0
        %893 = vmatpush1.msra.mxu0 %v602
        %894 = vmatprep.subr.mxu0 0.0
        %895 = vmatpush1.msra.mxu0 %v603
        %896 = vmatprep.subr.mxu0 0.0
        %897 = vmatpush1.msra.mxu0 %v604
        %898 = vmatprep.subr.mxu0 0.0
        %899 = vmatpush1.msra.mxu0 %v605
        %900 = vmatprep.subr.mxu0 0.0
        %901 = vmatpush1.msra.mxu0 %v606
        %902 = vmatprep.subr.mxu0 0.0
        %903 = vmatpush1.msra.mxu0 0.0
        %904 = vmatprep.subr.mxu0 0.0
        %905 = vmatpush1.msra.mxu0 0.0
        %906 = vmatprep.subr.mxu0 0.0
        %907 = vmatpush1.msra.mxu0 0.0
        %908 = vmatprep.subr.mxu0 0.0
        %909 = vmatpush1.msra.mxu0 0.0
        %910 = vmatprep.subr.mxu0 0.0
        %911 = vmatpush1.msra.mxu0 0.0
        %912 = vmatprep.subr.mxu0 0.0
        %913 = vmatpush1.msra.mxu0 0.0
        %914 = vmatprep.subr.mxu0 0.0
        %915 = vmatpush1.msra.mxu0 0.0
        %916 = vmatprep.subr.mxu0 0.0
        %917 = vmatpush1.msra.mxu0 0.0
        %918 = vmatprep.subr.mxu0 0.0
        %919 = vmatpush1.msra.mxu0 0.0
        %920 = vmatprep.subr.mxu0 0.0
        %921 = vmatpush1.msra.mxu0 0.0
        %922 = vmatprep.subr.mxu0 0.0
        %923 = vmatpush1.msra.mxu0 0.0
        %924 = vmatprep.subr.mxu0 0.0
        %925 = vmatpush1.msra.mxu0 0.0
        %926 = vmatprep.subr.mxu0 0.0
        %927 = vmatpush1.msra.mxu0 0.0
        %928 = vmatprep.subr.mxu0 0.0
        %929 = vmatpush1.msra.mxu0 0.0
        %930 = vmatprep.subr.mxu0 0.0
        %931 = vmatpush1.msra.mxu0 0.0
        %932 = vmatprep.subr.mxu0 0.0
        %933 = vmatpush1.msra.mxu0 0.0
        %934 = vmatprep.mubr.f32.mxu0 0.0
        %935 = vmatmul.mubr.f32.gmra.mrb[0].mxu0 %v630
        %v936 = vpop.f32.mrb[0].mxu0
        %v937 = vadd.f32 %v612, %v936
        %v938 = vpop.f32.mrb[0].mxu0
        %939 = vmatprep.mubr.f32.mxu0 0.0
        %940 = vmatmul.mubr.f32.gmra.mrb[0].mxu0 %v631
        %v941 = vpop.f32.mrb[0].mxu0
        %v942 = vadd.f32 %v612, %v941
        %v943 = vpop.f32.mrb[0].mxu0
        %944 = vmatprep.mubr.f32.mxu0 0.0
        %945 = vmatmul.mubr.f32.gmra.mrb[0].mxu0 %v632
        %v946 = vpop.f32.mrb[0].mxu0
        %v947 = vadd.f32 %v612, %v946
        %v948 = vpop.f32.mrb[0].mxu0
        %949 = vmatprep.mubr.f32.mxu0 0.0
        %950 = vmatmul.mubr.f32.gmra.mrb[0].mxu0 %v633
        %v951 = vpop.f32.mrb[0].mxu0
        %v952 = vadd.f32 %v612, %v951
        %v953 = vpop.f32.mrb[0].mxu0
        %954 = vmatprep.mubr.f32.mxu0 0.0
        %955 = vmatmul.mubr.f32.gmra.mrb[0].mxu0 %v634
        %v956 = vpop.f32.mrb[0].mxu0
        %v957 = vadd.f32 %v612, %v956
        %v958 = vpop.f32.mrb[0].mxu0
        %959 = vmatprep.mubr.f32.mxu0 0.0
        %960 = vmatmul.mubr.f32.gmra.mrb[0].mxu0 %v635
        %v961 = vpop.f32.mrb[0].mxu0
        %v962 = vadd.f32 %v612, %v961
        %v963 = vpop.f32.mrb[0].mxu0
        %964 = vmatprep.mubr.f32.mxu0 0.0
        %965 = vmatmul.mubr.f32.gmra.mrb[0].mxu0 %v636
        %v966 = vpop.f32.mrb[0].mxu0
        %v967 = vadd.f32 %v612, %v966
        %v968 = vpop.f32.mrb[0].mxu0
        %969 = vmatprep.mubr.f32.mxu0 0.0
        %970 = vmatmul.mubr.f32.gmra.mrb[0].mxu0 %v637
        %v971 = vpop.f32.mrb[0].mxu0
        %v972 = vadd.f32 %v612, %v971
        %v973 = vpop.f32.mrb[0].mxu0
        %974 = vmatprep.mubr.f32.mxu0 0.0
        %975 = vmatmul.mubr.f32.gmra.mrb[0].mxu0 %v638
        %v976 = vpop.f32.mrb[0].mxu0
        %v977 = vadd.f32 %v612, %v976
        %v978 = vpop.f32.mrb[0].mxu0
        %979 = vmatprep.mubr.f32.mxu0 0.0
        %980 = vmatmul.mubr.f32.gmra.mrb[0].mxu0 %v639
        %v981 = vpop.f32.mrb[0].mxu0
        %v982 = vadd.f32 %v612, %v981
        %v983 = vpop.f32.mrb[0].mxu0
        %984 = vmatprep.mubr.f32.mxu0 0.0
        %985 = vmatmul.mubr.f32.gmra.mrb[0].mxu0 %v640
        %v986 = vpop.f32.mrb[0].mxu0
        %v987 = vadd.f32 %v612, %v986
        %v988 = vpop.f32.mrb[0].mxu0
        %989 = vmatprep.mubr.f32.mxu0 0.0
        %990 = vmatmul.mubr.f32.gmra.mrb[0].mxu0 %v641
        %v991 = vpop.f32.mrb[0].mxu0
        %v992 = vadd.f32 %v612, %v991
        %v993 = vpop.f32.mrb[0].mxu0
        %994 = vmatprep.mubr.f32.mxu0 0.0
        %995 = vmatmul.mubr.f32.gmra.mrb[0].mxu0 %v642
        %v996 = vpop.f32.mrb[0].mxu0
        %v997 = vadd.f32 %v612, %v996
        %v998 = vpop.f32.mrb[0].mxu0
        %999 = vmatprep.mubr.f32.mxu0 0.0
        %1000 = vmatmul.mubr.f32.gmra.mrb[0].mxu0 %v643
        %v1001 = vpop.f32.mrb[0].mxu0
        %v1002 = vadd.f32 %v612, %v1001
        %v1003 = vpop.f32.mrb[0].mxu0
        %1004 = vmatprep.mubr.f32.mxu0 0.0
        %1005 = vmatmul.mubr.f32.gmra.mrb[0].mxu0 %v644
        %v1006 = vpop.f32.mrb[0].mxu0
        %v1007 = vadd.f32 %v612, %v1006
        %v1008 = vpop.f32.mrb[0].mxu0
        %1009 = vmatprep.mubr.f32.mxu0 0.0
        %1010 = vmatmul.mubr.f32.gmra.mrb[0].mxu0 %v645
        %v1011 = vpop.f32.mrb[0].mxu0
        %v1012 = vadd.f32 %v612, %v1011
        %v1013 = vpop.f32.mrb[0].mxu0
        %1014 = vmatprep.mubr.f32.mxu0 0.0
        %1015 = vmatmul.mubr.f32.gmra.mrb[0].mxu0 %v662
        %v1016 = vpop.f32.mrb[0].mxu0
        %v1017 = vadd.f32 %v612, %v1016
        %v1018 = vpop.f32.mrb[0].mxu0
        %1019 = vmatprep.mubr.f32.mxu0 0.0
        %1020 = vmatmul.mubr.f32.gmra.mrb[0].mxu0 %v663
        %v1021 = vpop.f32.mrb[0].mxu0
        %v1022 = vadd.f32 %v612, %v1021
        %v1023 = vpop.f32.mrb[0].mxu0
        %1024 = vmatprep.mubr.f32.mxu0 0.0
        %1025 = vmatmul.mubr.f32.gmra.mrb[0].mxu0 %v664
        %v1026 = vpop.f32.mrb[0].mxu0
        %v1027 = vadd.f32 %v612, %v1026
        %v1028 = vpop.f32.mrb[0].mxu0
        %1029 = vmatprep.mubr.f32.mxu0 0.0
        %1030 = vmatmul.mubr.f32.gmra.mrb[0].mxu0 %v665
        %v1031 = vpop.f32.mrb[0].mxu0
        %v1032 = vadd.f32 %v612, %v1031
        %v1033 = vpop.f32.mrb[0].mxu0
        %1034 = vmatprep.mubr.f32.mxu0 0.0
        %1035 = vmatmul.mubr.f32.gmra.mrb[0].mxu0 %v666
        %v1036 = vpop.f32.mrb[0].mxu0
        %v1037 = vadd.f32 %v612, %v1036
        %v1038 = vpop.f32.mrb[0].mxu0
        %1039 = vmatprep.mubr.f32.mxu0 0.0
        %1040 = vmatmul.mubr.f32.gmra.mrb[0].mxu0 %v667
        %v1041 = vpop.f32.mrb[0].mxu0
        %v1042 = vadd.f32 %v612, %v1041
        %v1043 = vpop.f32.mrb[0].mxu0
        %1044 = vmatprep.mubr.f32.mxu0 0.0
        %1045 = vmatmul.mubr.f32.gmra.mrb[0].mxu0 %v668
        %v1046 = vpop.f32.mrb[0].mxu0
        %v1047 = vadd.f32 %v612, %v1046
        %v1048 = vpop.f32.mrb[0].mxu0
        %1049 = vmatprep.mubr.f32.mxu0 0.0
        %1050 = vmatmul.mubr.f32.gmra.mrb[0].mxu0 %v669
        %v1051 = vpop.f32.mrb[0].mxu0
        %v1052 = vadd.f32 %v612, %v1051
        %v1053 = vpop.f32.mrb[0].mxu0
        %1054 = vmatprep.mubr.f32.mxu0 0.0
        %1055 = vmatmul.mubr.f32.gmra.mrb[0].mxu0 %v670
        %v1056 = vpop.f32.mrb[0].mxu0
        %v1057 = vadd.f32 %v612, %v1056
        %v1058 = vpop.f32.mrb[0].mxu0
        %1059 = vmatprep.mubr.f32.mxu0 0.0
        %1060 = vmatmul.mubr.f32.gmra.mrb[0].mxu0 %v671
        %v1061 = vpop.f32.mrb[0].mxu0
        %v1062 = vadd.f32 %v612, %v1061
        %v1063 = vpop.f32.mrb[0].mxu0
        %1064 = vmatprep.mubr.f32.mxu0 0.0
        %1065 = vmatmul.mubr.f32.gmra.mrb[0].mxu0 %v672
        %v1066 = vpop.f32.mrb[0].mxu0
        %v1067 = vadd.f32 %v612, %v1066
        %v1068 = vpop.f32.mrb[0].mxu0
        %1069 = vmatprep.mubr.f32.mxu0 0.0
        %1070 = vmatmul.mubr.f32.gmra.mrb[0].mxu0 %v673
        %v1071 = vpop.f32.mrb[0].mxu0
        %v1072 = vadd.f32 %v612, %v1071
        %v1073 = vpop.f32.mrb[0].mxu0
        %1074 = vmatprep.mubr.f32.mxu0 0.0
        %1075 = vmatmul.mubr.f32.gmra.mrb[0].mxu0 %v674
        %v1076 = vpop.f32.mrb[0].mxu0
        %v1077 = vadd.f32 %v612, %v1076
        %v1078 = vpop.f32.mrb[0].mxu0
        %1079 = vmatprep.mubr.f32.mxu0 0.0
        %1080 = vmatmul.mubr.f32.gmra.mrb[0].mxu0 %v675
        %v1081 = vpop.f32.mrb[0].mxu0
        %v1082 = vadd.f32 %v612, %v1081
        %v1083 = vpop.f32.mrb[0].mxu0
        %1084 = vmatprep.mubr.f32.mxu0 0.0
        %1085 = vmatmul.mubr.f32.gmra.mrb[0].mxu0 %v676
        %v1086 = vpop.f32.mrb[0].mxu0
        %v1087 = vadd.f32 %v612, %v1086
        %v1088 = vpop.f32.mrb[0].mxu0
        %1089 = vmatprep.mubr.f32.mxu0 0.0
        %1090 = vmatmul.mubr.f32.gmra.mrb[0].mxu0 %v677
        %v1091 = vpop.f32.mrb[0].mxu0
        %v1092 = vadd.f32 %v612, %v1091
        %v1093 = vpop.f32.mrb[0].mxu0
        %1094 = vmatprep.mubr.f32.mxu0 0.0
        %1095 = vmatmul.mubr.f32.gmra.mrb[0].mxu0 %v694
        %v1096 = vpop.f32.mrb[0].mxu0
        %v1097 = vadd.f32 %v612, %v1096
        %v1098 = vpop.f32.mrb[0].mxu0
        %1099 = vmatprep.mubr.f32.mxu0 0.0
        %1100 = vmatmul.mubr.f32.gmra.mrb[0].mxu0 %v695
        %v1101 = vpop.f32.mrb[0].mxu0
        %v1102 = vadd.f32 %v612, %v1101
        %v1103 = vpop.f32.mrb[0].mxu0
        %1104 = vmatprep.mubr.f32.mxu0 0.0
        %1105 = vmatmul.mubr.f32.gmra.mrb[0].mxu0 %v696
        %v1106 = vpop.f32.mrb[0].mxu0
        %v1107 = vadd.f32 %v612, %v1106
        %v1108 = vpop.f32.mrb[0].mxu0
        %1109 = vmatprep.mubr.f32.mxu0 0.0
        %1110 = vmatmul.mubr.f32.gmra.mrb[0].mxu0 %v697
        %v1111 = vpop.f32.mrb[0].mxu0
        %v1112 = vadd.f32 %v612, %v1111
        %v1113 = vpop.f32.mrb[0].mxu0
        %1114 = vmatprep.mubr.f32.mxu0 0.0
        %1115 = vmatmul.mubr.f32.gmra.mrb[0].mxu0 %v698
        %v1116 = vpop.f32.mrb[0].mxu0
        %v1117 = vadd.f32 %v612, %v1116
        %v1118 = vpop.f32.mrb[0].mxu0
        %1119 = vmatprep.mubr.f32.mxu0 0.0
        %1120 = vmatmul.mubr.f32.gmra.mrb[0].mxu0 %v699
        %v1121 = vpop.f32.mrb[0].mxu0
        %v1122 = vadd.f32 %v612, %v1121
        %v1123 = vpop.f32.mrb[0].mxu0
        %1124 = vmatprep.mubr.f32.mxu0 0.0
        %1125 = vmatmul.mubr.f32.gmra.mrb[0].mxu0 %v700
        %v1126 = vpop.f32.mrb[0].mxu0
        %v1127 = vadd.f32 %v612, %v1126
        %v1128 = vpop.f32.mrb[0].mxu0
        %1129 = vmatprep.mubr.f32.mxu0 0.0
        %1130 = vmatmul.mubr.f32.gmra.mrb[0].mxu0 %v701
        %v1131 = vpop.f32.mrb[0].mxu0
        %v1132 = vadd.f32 %v612, %v1131
        %v1133 = vpop.f32.mrb[0].mxu0
        %1134 = vmatprep.mubr.f32.mxu0 0.0
        %1135 = vmatmul.mubr.f32.gmra.mrb[0].mxu0 %v702
        %v1136 = vpop.f32.mrb[0].mxu0
        %v1137 = vadd.f32 %v612, %v1136
        %v1138 = vpop.f32.mrb[0].mxu0
        %1139 = vmatprep.mubr.f32.mxu0 0.0
        %1140 = vmatmul.mubr.f32.gmra.mrb[0].mxu0 %v703
        %v1141 = vpop.f32.mrb[0].mxu0
        %v1142 = vadd.f32 %v612, %v1141
        %v1143 = vpop.f32.mrb[0].mxu0
        %1144 = vmatprep.mubr.f32.mxu0 0.0
        %1145 = vmatmul.mubr.f32.gmra.mrb[0].mxu0 %v704
        %v1146 = vpop.f32.mrb[0].mxu0
        %v1147 = vadd.f32 %v612, %v1146
        %v1148 = vpop.f32.mrb[0].mxu0
        %1149 = vmatprep.mubr.f32.mxu0 0.0
        %1150 = vmatmul.mubr.f32.gmra.mrb[0].mxu0 %v705
        %v1151 = vpop.f32.mrb[0].mxu0
        %v1152 = vadd.f32 %v612, %v1151
        %v1153 = vpop.f32.mrb[0].mxu0
        %1154 = vmatprep.mubr.f32.mxu0 0.0
        %1155 = vmatmul.mubr.f32.gmra.mrb[0].mxu0 %v706
        %v1156 = vpop.f32.mrb[0].mxu0
        %v1157 = vadd.f32 %v612, %v1156
        %v1158 = vpop.f32.mrb[0].mxu0
        %1159 = vmatprep.mubr.f32.mxu0 0.0
        %1160 = vmatmul.mubr.f32.gmra.mrb[0].mxu0 %v707
        %v1161 = vpop.f32.mrb[0].mxu0
        %v1162 = vadd.f32 %v612, %v1161
        %v1163 = vpop.f32.mrb[0].mxu0
        %1164 = vmatprep.mubr.f32.mxu0 0.0
        %1165 = vmatmul.mubr.f32.gmra.mrb[0].mxu0 %v708
        %v1166 = vpop.f32.mrb[0].mxu0
        %v1167 = vadd.f32 %v612, %v1166
        %v1168 = vpop.f32.mrb[0].mxu0
        %1169 = vmatprep.mubr.f32.mxu0 0.0
        %1170 = vmatmul.mubr.f32.gmra.mrb[0].mxu0 %v709
        %v1171 = vpop.f32.mrb[0].mxu0
        %v1172 = vadd.f32 %v612, %v1171
        %v1173 = vpop.f32.mrb[0].mxu0
        %1174 = vmatprep.mubr.f32.mxu0 0.0
        %1175 = vmatmul.mubr.f32.gmra.mrb[0].mxu0 %v726
        %v1176 = vpop.f32.mrb[0].mxu0
        %v1177 = vadd.f32 %v612, %v1176
        %v1178 = vpop.f32.mrb[0].mxu0
        %1179 = vmatprep.mubr.f32.mxu0 0.0
        %1180 = vmatmul.mubr.f32.gmra.mrb[0].mxu0 %v727
        %v1181 = vpop.f32.mrb[0].mxu0
        %v1182 = vadd.f32 %v612, %v1181
        %v1183 = vpop.f32.mrb[0].mxu0
        %1184 = vmatprep.mubr.f32.mxu0 0.0
        %1185 = vmatmul.mubr.f32.gmra.mrb[0].mxu0 %v728
        %v1186 = vpop.f32.mrb[0].mxu0
        %v1187 = vadd.f32 %v612, %v1186
        %v1188 = vpop.f32.mrb[0].mxu0
        %1189 = vmatprep.mubr.f32.mxu0 0.0
        %1190 = vmatmul.mubr.f32.gmra.mrb[0].mxu0 %v729
        %v1191 = vpop.f32.mrb[0].mxu0
        %v1192 = vadd.f32 %v612, %v1191
        %v1193 = vpop.f32.mrb[0].mxu0
        %1194 = vmatprep.mubr.f32.mxu0 0.0
        %1195 = vmatmul.mubr.f32.gmra.mrb[0].mxu0 %v730
        %v1196 = vpop.f32.mrb[0].mxu0
        %v1197 = vadd.f32 %v612, %v1196
        %v1198 = vpop.f32.mrb[0].mxu0
        %1199 = vmatprep.mubr.f32.mxu0 0.0
        %1200 = vmatmul.mubr.f32.gmra.mrb[0].mxu0 %v731
        %v1201 = vpop.f32.mrb[0].mxu0
        %v1202 = vadd.f32 %v612, %v1201
        %v1203 = vpop.f32.mrb[0].mxu0
        %1204 = vmatprep.mubr.f32.mxu0 0.0
        %1205 = vmatmul.mubr.f32.gmra.mrb[0].mxu0 %v732
        %v1206 = vpop.f32.mrb[0].mxu0
        %v1207 = vadd.f32 %v612, %v1206
        %v1208 = vpop.f32.mrb[0].mxu0
        %1209 = vmatprep.mubr.f32.mxu0 0.0
        %1210 = vmatmul.mubr.f32.gmra.mrb[0].mxu0 %v733
        %v1211 = vpop.f32.mrb[0].mxu0
        %v1212 = vadd.f32 %v612, %v1211
        %v1213 = vpop.f32.mrb[0].mxu0
        %1214 = vmatprep.mubr.f32.mxu0 0.0
        %1215 = vmatmul.mubr.f32.gmra.mrb[0].mxu0 %v734
        %v1216 = vpop.f32.mrb[0].mxu0
        %v1217 = vadd.f32 %v612, %v1216
        %v1218 = vpop.f32.mrb[0].mxu0
        %1219 = vmatprep.mubr.f32.mxu0 0.0
        %1220 = vmatmul.mubr.f32.gmra.mrb[0].mxu0 %v735
        %v1221 = vpop.f32.mrb[0].mxu0
        %v1222 = vadd.f32 %v612, %v1221
        %v1223 = vpop.f32.mrb[0].mxu0
        %1224 = vmatprep.mubr.f32.mxu0 0.0
        %1225 = vmatmul.mubr.f32.gmra.mrb[0].mxu0 %v736
        %v1226 = vpop.f32.mrb[0].mxu0
        %v1227 = vadd.f32 %v612, %v1226
        %v1228 = vpop.f32.mrb[0].mxu0
        %1229 = vmatprep.mubr.f32.mxu0 0.0
        %1230 = vmatmul.mubr.f32.gmra.mrb[0].mxu0 %v737
        %v1231 = vpop.f32.mrb[0].mxu0
        %v1232 = vadd.f32 %v612, %v1231
        %v1233 = vpop.f32.mrb[0].mxu0
        %1234 = vmatprep.mubr.f32.mxu0 0.0
        %1235 = vmatmul.mubr.f32.gmra.mrb[0].mxu0 %v738
        %v1236 = vpop.f32.mrb[0].mxu0
        %v1237 = vadd.f32 %v612, %v1236
        %v1238 = vpop.f32.mrb[0].mxu0
        %1239 = vmatprep.mubr.f32.mxu0 0.0
        %1240 = vmatmul.mubr.f32.gmra.mrb[0].mxu0 %v739
        %v1241 = vpop.f32.mrb[0].mxu0
        %v1242 = vadd.f32 %v612, %v1241
        %v1243 = vpop.f32.mrb[0].mxu0
        %1244 = vmatprep.mubr.f32.mxu0 0.0
        %1245 = vmatmul.mubr.f32.gmra.mrb[0].mxu0 %v740
        %v1246 = vpop.f32.mrb[0].mxu0
        %v1247 = vadd.f32 %v612, %v1246
        %v1248 = vpop.f32.mrb[0].mxu0
        %1249 = vmatprep.mubr.f32.mxu0 0.0
        %1250 = vmatmul.mubr.f32.gmra.mrb[0].mxu0 %v741
        %v1251 = vpop.f32.mrb[0].mxu0
        %v1252 = vadd.f32 %v612, %v1251
        %v1253 = vpop.f32.mrb[0].mxu0
        %1254 = vmatprep.mubr.f32.mxu0 0.0
        %1255 = vmatmul.mubr.f32.gmra.mrb[0].mxu0 %v758
        %v1256 = vpop.f32.mrb[0].mxu0
        %v1257 = vadd.f32 %v612, %v1256
        %v1258 = vpop.f32.mrb[0].mxu0
        %1259 = vmatprep.mubr.f32.mxu0 0.0
        %1260 = vmatmul.mubr.f32.gmra.mrb[0].mxu0 %v759
        %v1261 = vpop.f32.mrb[0].mxu0
        %v1262 = vadd.f32 %v612, %v1261
        %v1263 = vpop.f32.mrb[0].mxu0
        %1264 = vmatprep.mubr.f32.mxu0 0.0
        %1265 = vmatmul.mubr.f32.gmra.mrb[0].mxu0 %v760
        %v1266 = vpop.f32.mrb[0].mxu0
        %v1267 = vadd.f32 %v612, %v1266
        %v1268 = vpop.f32.mrb[0].mxu0
        %1269 = vmatprep.mubr.f32.mxu0 0.0
        %1270 = vmatmul.mubr.f32.gmra.mrb[0].mxu0 %v761
        %v1271 = vpop.f32.mrb[0].mxu0
        %v1272 = vadd.f32 %v612, %v1271
        %v1273 = vpop.f32.mrb[0].mxu0
        %1274 = vmatprep.mubr.f32.mxu0 0.0
        %1275 = vmatmul.mubr.f32.gmra.mrb[0].mxu0 %v762
        %v1276 = vpop.f32.mrb[0].mxu0
        %v1277 = vadd.f32 %v612, %v1276
        %v1278 = vpop.f32.mrb[0].mxu0
        %1279 = vmatprep.mubr.f32.mxu0 0.0
        %1280 = vmatmul.mubr.f32.gmra.mrb[0].mxu0 %v763
        %v1281 = vpop.f32.mrb[0].mxu0
        %v1282 = vadd.f32 %v612, %v1281
        %v1283 = vpop.f32.mrb[0].mxu0
        %1284 = vmatprep.mubr.f32.mxu0 0.0
        %1285 = vmatmul.mubr.f32.gmra.mrb[0].mxu0 %v764
        %v1286 = vpop.f32.mrb[0].mxu0
        %v1287 = vadd.f32 %v612, %v1286
        %v1288 = vpop.f32.mrb[0].mxu0
        %1289 = vmatprep.mubr.f32.mxu0 0.0
        %1290 = vmatmul.mubr.f32.gmra.mrb[0].mxu0 %v765
        %v1291 = vpop.f32.mrb[0].mxu0
        %v1292 = vadd.f32 %v612, %v1291
        %v1293 = vpop.f32.mrb[0].mxu0
        %1294 = vmatprep.mubr.f32.mxu0 0.0
        %1295 = vmatmul.mubr.f32.gmra.mrb[0].mxu0 %v766
        %v1296 = vpop.f32.mrb[0].mxu0
        %v1297 = vadd.f32 %v612, %v1296
        %v1298 = vpop.f32.mrb[0].mxu0
        %1299 = vmatprep.mubr.f32.mxu0 0.0
        %1300 = vmatmul.mubr.f32.gmra.mrb[0].mxu0 %v767
        %v1301 = vpop.f32.mrb[0].mxu0
        %v1302 = vadd.f32 %v612, %v1301
        %v1303 = vpop.f32.mrb[0].mxu0
        %1304 = vmatprep.mubr.f32.mxu0 0.0
        %1305 = vmatmul.mubr.f32.gmra.mrb[0].mxu0 %v768
        %v1306 = vpop.f32.mrb[0].mxu0
        %v1307 = vadd.f32 %v612, %v1306
        %v1308 = vpop.f32.mrb[0].mxu0
        %1309 = vmatprep.mubr.f32.mxu0 0.0
        %1310 = vmatmul.mubr.f32.gmra.mrb[0].mxu0 %v769
        %v1311 = vpop.f32.mrb[0].mxu0
        %v1312 = vadd.f32 %v612, %v1311
        %v1313 = vpop.f32.mrb[0].mxu0
        %1314 = vmatprep.mubr.f32.mxu0 0.0
        %1315 = vmatmul.mubr.f32.gmra.mrb[0].mxu0 %v770
        %v1316 = vpop.f32.mrb[0].mxu0
        %v1317 = vadd.f32 %v612, %v1316
        %v1318 = vpop.f32.mrb[0].mxu0
        %1319 = vmatprep.mubr.f32.mxu0 0.0
        %1320 = vmatmul.mubr.f32.gmra.mrb[0].mxu0 %v771
        %v1321 = vpop.f32.mrb[0].mxu0
        %v1322 = vadd.f32 %v612, %v1321
        %v1323 = vpop.f32.mrb[0].mxu0
        %1324 = vmatprep.mubr.f32.mxu0 0.0
        %1325 = vmatmul.mubr.f32.gmra.mrb[0].mxu0 %v772
        %v1326 = vpop.f32.mrb[0].mxu0
        %v1327 = vadd.f32 %v612, %v1326
        %v1328 = vpop.f32.mrb[0].mxu0
        %1329 = vmatprep.mubr.f32.mxu0 0.0
        %1330 = vmatmul.mubr.f32.gmra.mrb[0].mxu0 %v773
        %v1331 = vpop.f32.mrb[0].mxu0
        %v1332 = vadd.f32 %v612, %v1331
        %v1333 = vpop.f32.mrb[0].mxu0
        %1334 = vmatprep.mubr.f32.mxu0 0.0
        %1335 = vmatmul.mubr.f32.gmra.mrb[0].mxu0 %v790
        %v1336 = vpop.f32.mrb[0].mxu0
        %v1337 = vadd.f32 %v612, %v1336
        %v1338 = vpop.f32.mrb[0].mxu0
        %1339 = vmatprep.mubr.f32.mxu0 0.0
        %1340 = vmatmul.mubr.f32.gmra.mrb[0].mxu0 %v791
        %v1341 = vpop.f32.mrb[0].mxu0
        %v1342 = vadd.f32 %v612, %v1341
        %v1343 = vpop.f32.mrb[0].mxu0
        %1344 = vmatprep.mubr.f32.mxu0 0.0
        %1345 = vmatmul.mubr.f32.gmra.mrb[0].mxu0 %v792
        %v1346 = vpop.f32.mrb[0].mxu0
        %v1347 = vadd.f32 %v612, %v1346
        %v1348 = vpop.f32.mrb[0].mxu0
        %1349 = vmatprep.mubr.f32.mxu0 0.0
        %1350 = vmatmul.mubr.f32.gmra.mrb[0].mxu0 %v793
        %v1351 = vpop.f32.mrb[0].mxu0
        %v1352 = vadd.f32 %v612, %v1351
        %v1353 = vpop.f32.mrb[0].mxu0
        %1354 = vmatprep.mubr.f32.mxu0 0.0
        %1355 = vmatmul.mubr.f32.gmra.mrb[0].mxu0 %v794
        %v1356 = vpop.f32.mrb[0].mxu0
        %v1357 = vadd.f32 %v612, %v1356
        %v1358 = vpop.f32.mrb[0].mxu0
        %1359 = vmatprep.mubr.f32.mxu0 0.0
        %1360 = vmatmul.mubr.f32.gmra.mrb[0].mxu0 %v795
        %v1361 = vpop.f32.mrb[0].mxu0
        %v1362 = vadd.f32 %v612, %v1361
        %v1363 = vpop.f32.mrb[0].mxu0
        %1364 = vmatprep.mubr.f32.mxu0 0.0
        %1365 = vmatmul.mubr.f32.gmra.mrb[0].mxu0 %v796
        %v1366 = vpop.f32.mrb[0].mxu0
        %v1367 = vadd.f32 %v612, %v1366
        %v1368 = vpop.f32.mrb[0].mxu0
        %1369 = vmatprep.mubr.f32.mxu0 0.0
        %1370 = vmatmul.mubr.f32.gmra.mrb[0].mxu0 %v797
        %v1371 = vpop.f32.mrb[0].mxu0
        %v1372 = vadd.f32 %v612, %v1371
        %v1373 = vpop.f32.mrb[0].mxu0
        %1374 = vmatprep.mubr.f32.mxu0 0.0
        %1375 = vmatmul.mubr.f32.gmra.mrb[0].mxu0 %v798
        %v1376 = vpop.f32.mrb[0].mxu0
        %v1377 = vadd.f32 %v612, %v1376
        %v1378 = vpop.f32.mrb[0].mxu0
        %1379 = vmatprep.mubr.f32.mxu0 0.0
        %1380 = vmatmul.mubr.f32.gmra.mrb[0].mxu0 %v799
        %v1381 = vpop.f32.mrb[0].mxu0
        %v1382 = vadd.f32 %v612, %v1381
        %v1383 = vpop.f32.mrb[0].mxu0
        %1384 = vmatprep.mubr.f32.mxu0 0.0
        %1385 = vmatmul.mubr.f32.gmra.mrb[0].mxu0 %v800
        %v1386 = vpop.f32.mrb[0].mxu0
        %v1387 = vadd.f32 %v612, %v1386
        %v1388 = vpop.f32.mrb[0].mxu0
        %1389 = vmatprep.mubr.f32.mxu0 0.0
        %1390 = vmatmul.mubr.f32.gmra.mrb[0].mxu0 %v801
        %v1391 = vpop.f32.mrb[0].mxu0
        %v1392 = vadd.f32 %v612, %v1391
        %v1393 = vpop.f32.mrb[0].mxu0
        %1394 = vmatprep.mubr.f32.mxu0 0.0
        %1395 = vmatmul.mubr.f32.gmra.mrb[0].mxu0 %v802
        %v1396 = vpop.f32.mrb[0].mxu0
        %v1397 = vadd.f32 %v612, %v1396
        %v1398 = vpop.f32.mrb[0].mxu0
        %1399 = vmatprep.mubr.f32.mxu0 0.0
        %1400 = vmatmul.mubr.f32.gmra.mrb[0].mxu0 %v803
        %v1401 = vpop.f32.mrb[0].mxu0
        %v1402 = vadd.f32 %v612, %v1401
        %v1403 = vpop.f32.mrb[0].mxu0
        %1404 = vmatprep.mubr.f32.mxu0 0.0
        %1405 = vmatmul.mubr.f32.gmra.mrb[0].mxu0 %v804
        %v1406 = vpop.f32.mrb[0].mxu0
        %v1407 = vadd.f32 %v612, %v1406
        %v1408 = vpop.f32.mrb[0].mxu0
        %1409 = vmatprep.mubr.f32.mxu0 0.0
        %1410 = vmatmul.mubr.f32.gmra.mrb[0].mxu0 %v805
        %v1411 = vpop.f32.mrb[0].mxu0
        %v1412 = vadd.f32 %v612, %v1411
        %v1413 = vpop.f32.mrb[0].mxu0
        %1414 = vmatprep.mubr.f32.mxu0 0.0
        %1415 = vmatmul.mubr.f32.gmra.mrb[0].mxu0 %v822
        %v1416 = vpop.f32.mrb[0].mxu0
        %v1417 = vadd.f32 %v612, %v1416
        %v1418 = vpop.f32.mrb[0].mxu0
        %1419 = vmatprep.mubr.f32.mxu0 0.0
        %1420 = vmatmul.mubr.f32.gmra.mrb[0].mxu0 %v823
        %v1421 = vpop.f32.mrb[0].mxu0
        %v1422 = vadd.f32 %v612, %v1421
        %v1423 = vpop.f32.mrb[0].mxu0
        %1424 = vmatprep.mubr.f32.mxu0 0.0
        %1425 = vmatmul.mubr.f32.gmra.mrb[0].mxu0 %v824
        %v1426 = vpop.f32.mrb[0].mxu0
        %v1427 = vadd.f32 %v612, %v1426
        %v1428 = vpop.f32.mrb[0].mxu0
        %1429 = vmatprep.mubr.f32.mxu0 0.0
        %1430 = vmatmul.mubr.f32.gmra.mrb[0].mxu0 %v825
        %v1431 = vpop.f32.mrb[0].mxu0
        %v1432 = vadd.f32 %v612, %v1431
        %v1433 = vpop.f32.mrb[0].mxu0
        %1434 = vmatprep.mubr.f32.mxu0 0.0
        %1435 = vmatmul.mubr.f32.gmra.mrb[0].mxu0 %v826
        %v1436 = vpop.f32.mrb[0].mxu0
        %v1437 = vadd.f32 %v612, %v1436
        %v1438 = vpop.f32.mrb[0].mxu0
        %1439 = vmatprep.mubr.f32.mxu0 0.0
        %1440 = vmatmul.mubr.f32.gmra.mrb[0].mxu0 %v827
        %v1441 = vpop.f32.mrb[0].mxu0
        %v1442 = vadd.f32 %v612, %v1441
        %v1443 = vpop.f32.mrb[0].mxu0
        %1444 = vmatprep.mubr.f32.mxu0 0.0
        %1445 = vmatmul.mubr.f32.gmra.mrb[0].mxu0 %v828
        %v1446 = vpop.f32.mrb[0].mxu0
        %v1447 = vadd.f32 %v612, %v1446
        %v1448 = vpop.f32.mrb[0].mxu0
        %1449 = vmatprep.mubr.f32.mxu0 0.0
        %1450 = vmatmul.mubr.f32.gmra.mrb[0].mxu0 %v829
        %v1451 = vpop.f32.mrb[0].mxu0
        %v1452 = vadd.f32 %v612, %v1451
        %v1453 = vpop.f32.mrb[0].mxu0
        %1454 = vmatprep.mubr.f32.mxu0 0.0
        %1455 = vmatmul.mubr.f32.gmra.mrb[0].mxu0 %v830
        %v1456 = vpop.f32.mrb[0].mxu0
        %v1457 = vadd.f32 %v612, %v1456
        %v1458 = vpop.f32.mrb[0].mxu0
        %1459 = vmatprep.mubr.f32.mxu0 0.0
        %1460 = vmatmul.mubr.f32.gmra.mrb[0].mxu0 %v831
        %v1461 = vpop.f32.mrb[0].mxu0
        %v1462 = vadd.f32 %v612, %v1461
        %v1463 = vpop.f32.mrb[0].mxu0
        %1464 = vmatprep.mubr.f32.mxu0 0.0
        %1465 = vmatmul.mubr.f32.gmra.mrb[0].mxu0 %v832
        %v1466 = vpop.f32.mrb[0].mxu0
        %v1467 = vadd.f32 %v612, %v1466
        %v1468 = vpop.f32.mrb[0].mxu0
        %1469 = vmatprep.mubr.f32.mxu0 0.0
        %1470 = vmatmul.mubr.f32.gmra.mrb[0].mxu0 %v833
        %v1471 = vpop.f32.mrb[0].mxu0
        %v1472 = vadd.f32 %v612, %v1471
        %v1473 = vpop.f32.mrb[0].mxu0
        %1474 = vmatprep.mubr.f32.mxu0 0.0
        %1475 = vmatmul.mubr.f32.gmra.mrb[0].mxu0 %v834
        %v1476 = vpop.f32.mrb[0].mxu0
        %v1477 = vadd.f32 %v612, %v1476
        %v1478 = vpop.f32.mrb[0].mxu0
        %1479 = vmatprep.mubr.f32.mxu0 0.0
        %1480 = vmatmul.mubr.f32.gmra.mrb[0].mxu0 %v835
        %v1481 = vpop.f32.mrb[0].mxu0
        %v1482 = vadd.f32 %v612, %v1481
        %v1483 = vpop.f32.mrb[0].mxu0
        %1484 = vmatprep.mubr.f32.mxu0 0.0
        %1485 = vmatmul.mubr.f32.gmra.mrb[0].mxu0 %v836
        %v1486 = vpop.f32.mrb[0].mxu0
        %v1487 = vadd.f32 %v612, %v1486
        %v1488 = vpop.f32.mrb[0].mxu0
        %1489 = vmatprep.mubr.f32.mxu0 0.0
        %1490 = vmatmul.mubr.f32.gmra.mrb[0].mxu0 %v837
        %v1491 = vpop.f32.mrb[0].mxu0
        %v1492 = vadd.f32 %v612, %v1491
        %v1493 = vpop.f32.mrb[0].mxu0
        %1494 = vmatprep.mubr.f32.mxu0 0.0
        %1495 = vmatmul.mubr.f32.gmra.mrb[0].mxu0 %v854
        %v1496 = vpop.f32.mrb[0].mxu0
        %v1497 = vadd.f32 %v612, %v1496
        %v1498 = vpop.f32.mrb[0].mxu0
        %1499 = vmatprep.mubr.f32.mxu0 0.0
        %1500 = vmatmul.mubr.f32.gmra.mrb[0].mxu0 %v855
        %v1501 = vpop.f32.mrb[0].mxu0
        %v1502 = vadd.f32 %v612, %v1501
        %v1503 = vpop.f32.mrb[0].mxu0
        %1504 = vmatprep.mubr.f32.mxu0 0.0
        %1505 = vmatmul.mubr.f32.gmra.mrb[0].mxu0 %v856
        %v1506 = vpop.f32.mrb[0].mxu0
        %v1507 = vadd.f32 %v612, %v1506
        %v1508 = vpop.f32.mrb[0].mxu0
        %1509 = vmatprep.mubr.f32.mxu0 0.0
        %1510 = vmatmul.mubr.f32.gmra.mrb[0].mxu0 %v857
        %v1511 = vpop.f32.mrb[0].mxu0
        %v1512 = vadd.f32 %v612, %v1511
        %v1513 = vpop.f32.mrb[0].mxu0
        %1514 = vmatprep.mubr.f32.mxu0 0.0
        %1515 = vmatmul.mubr.f32.gmra.mrb[0].mxu0 %v858
        %v1516 = vpop.f32.mrb[0].mxu0
        %v1517 = vadd.f32 %v612, %v1516
        %v1518 = vpop.f32.mrb[0].mxu0
        %1519 = vmatprep.mubr.f32.mxu0 0.0
        %1520 = vmatmul.mubr.f32.gmra.mrb[0].mxu0 %v859
        %v1521 = vpop.f32.mrb[0].mxu0
        %v1522 = vadd.f32 %v612, %v1521
        %v1523 = vpop.f32.mrb[0].mxu0
        %1524 = vmatprep.mubr.f32.mxu0 0.0
        %1525 = vmatmul.mubr.f32.gmra.mrb[0].mxu0 %v860
        %v1526 = vpop.f32.mrb[0].mxu0
        %v1527 = vadd.f32 %v612, %v1526
        %v1528 = vpop.f32.mrb[0].mxu0
        %1529 = vmatprep.mubr.f32.mxu0 0.0
        %1530 = vmatmul.mubr.f32.gmra.mrb[0].mxu0 %v861
        %v1531 = vpop.f32.mrb[0].mxu0
        %v1532 = vadd.f32 %v612, %v1531
        %v1533 = vpop.f32.mrb[0].mxu0
        %1534 = vmatprep.mubr.f32.mxu0 0.0
        %1535 = vmatmul.mubr.f32.gmra.mrb[0].mxu0 %v862
        %v1536 = vpop.f32.mrb[0].mxu0
        %v1537 = vadd.f32 %v612, %v1536
        %v1538 = vpop.f32.mrb[0].mxu0
        %1539 = vmatprep.mubr.f32.mxu0 0.0
        %1540 = vmatmul.mubr.f32.gmra.mrb[0].mxu0 %v863
        %v1541 = vpop.f32.mrb[0].mxu0
        %v1542 = vadd.f32 %v612, %v1541
        %v1543 = vpop.f32.mrb[0].mxu0
        %1544 = vmatprep.mubr.f32.mxu0 0.0
        %1545 = vmatmul.mubr.f32.gmra.mrb[0].mxu0 %v864
        %v1546 = vpop.f32.mrb[0].mxu0
        %v1547 = vadd.f32 %v612, %v1546
        %v1548 = vpop.f32.mrb[0].mxu0
        %1549 = vmatprep.mubr.f32.mxu0 0.0
        %1550 = vmatmul.mubr.f32.gmra.mrb[0].mxu0 %v865
        %v1551 = vpop.f32.mrb[0].mxu0
        %v1552 = vadd.f32 %v612, %v1551
        %v1553 = vpop.f32.mrb[0].mxu0
        %1554 = vmatprep.mubr.f32.mxu0 0.0
        %1555 = vmatmul.mubr.f32.gmra.mrb[0].mxu0 %v866
        %v1556 = vpop.f32.mrb[0].mxu0
        %v1557 = vadd.f32 %v612, %v1556
        %v1558 = vpop.f32.mrb[0].mxu0
        %1559 = vmatprep.mubr.f32.mxu0 0.0
        %1560 = vmatmul.mubr.f32.gmra.mrb[0].mxu0 %v867
        %v1561 = vpop.f32.mrb[0].mxu0
        %v1562 = vadd.f32 %v612, %v1561
        %v1563 = vpop.f32.mrb[0].mxu0
        %1564 = vmatprep.mubr.f32.mxu0 0.0
        %1565 = vmatmul.mubr.f32.gmra.mrb[0].mxu0 %v868
        %v1566 = vpop.f32.mrb[0].mxu0
        %v1567 = vadd.f32 %v612, %v1566
        %v1568 = vpop.f32.mrb[0].mxu0
        %1569 = vmatprep.mubr.f32.mxu0 0.0
        %1570 = vmatmul.mubr.f32.gmra.mrb[0].mxu0 %v869
        %v1571 = vpop.f32.mrb[0].mxu0
        %v1572 = vadd.f32 %v612, %v1571
        %v1573 = vpop.f32.mrb[0].mxu0
        %1574 = vdwg.mxu0
        %v1575 = vlaneseq
        %v1576 = vand.u32 %v1575, 127
        %vm1577 = vcmp.lt.s32.totalorder %v1576, 4
        %vm1578 = vcmp.ge.s32.totalorder %v1576, 4
        %vm1579 = vcmp.lt.s32.totalorder %v1576, 8
        %vm1580 = vmand %vm1578, %vm1579
        %vm1581 = vcmp.ge.s32.totalorder %v1576, 8
        %vm1582 = vcmp.lt.s32.totalorder %v1576, 22
        %vm1583 = vmand %vm1581, %vm1582
        %v1584 = vsel %vm1577, %v937, -inf
        %v1585 = vsel %vm1577, %v942, -inf
        %v1586 = vsel %vm1577, %v947, -inf
        %v1587 = vsel %vm1577, %v952, -inf
        %v1588 = vsel %vm1577, %v957, -inf
        %v1589 = vsel %vm1577, %v962, -inf
        %v1590 = vsel %vm1577, %v967, -inf
        %v1591 = vsel %vm1577, %v972, -inf
        %v1592 = vsel %vm1577, %v977, -inf
        %v1593 = vsel %vm1577, %v982, -inf
        %v1594 = vsel %vm1577, %v987, -inf
        %v1595 = vsel %vm1577, %v992, -inf
        %v1596 = vsel %vm1577, %v997, -inf
        %v1597 = vsel %vm1577, %v1002, -inf
        %v1598 = vsel %vm1577, %v1007, -inf
        %v1599 = vsel %vm1577, %v1012, -inf
        %v1600 = vsel %vm1577, %v1017, -inf
        %v1601 = vsel %vm1577, %v1022, -inf
        %v1602 = vsel %vm1577, %v1027, -inf
        %v1603 = vsel %vm1577, %v1032, -inf
        %v1604 = vsel %vm1577, %v1037, -inf
        %v1605 = vsel %vm1577, %v1042, -inf
        %v1606 = vsel %vm1577, %v1047, -inf
        %v1607 = vsel %vm1577, %v1052, -inf
        %v1608 = vsel %vm1577, %v1057, -inf
        %v1609 = vsel %vm1577, %v1062, -inf
        %v1610 = vsel %vm1577, %v1067, -inf
        %v1611 = vsel %vm1577, %v1072, -inf
        %v1612 = vsel %vm1577, %v1077, -inf
        %v1613 = vsel %vm1577, %v1082, -inf
        %v1614 = vsel %vm1577, %v1087, -inf
        %v1615 = vsel %vm1577, %v1092, -inf
        %v1616 = vsel %vm1577, %v1097, -inf
        %v1617 = vsel %vm1577, %v1102, -inf
        %v1618 = vsel %vm1577, %v1107, -inf
        %v1619 = vsel %vm1577, %v1112, -inf
        %v1620 = vsel %vm1577, %v1117, -inf
        %v1621 = vsel %vm1577, %v1122, -inf
        %v1622 = vsel %vm1577, %v1127, -inf
        %v1623 = vsel %vm1577, %v1132, -inf
        %v1624 = vsel %vm1577, %v1137, -inf
        %v1625 = vsel %vm1577, %v1142, -inf
        %v1626 = vsel %vm1577, %v1147, -inf
        %v1627 = vsel %vm1577, %v1152, -inf
        %v1628 = vsel %vm1577, %v1157, -inf
        %v1629 = vsel %vm1577, %v1162, -inf
        %v1630 = vsel %vm1577, %v1167, -inf
        %v1631 = vsel %vm1577, %v1172, -inf
        %v1632 = vsel %vm1577, %v1177, -inf
        %v1633 = vsel %vm1577, %v1182, -inf
        %v1634 = vsel %vm1577, %v1187, -inf
        %v1635 = vsel %vm1577, %v1192, -inf
        %v1636 = vsel %vm1577, %v1197, -inf
        %v1637 = vsel %vm1577, %v1202, -inf
        %v1638 = vsel %vm1577, %v1207, -inf
        %v1639 = vsel %vm1577, %v1212, -inf
        %v1640 = vsel %vm1577, %v1217, -inf
        %v1641 = vsel %vm1577, %v1222, -inf
        %v1642 = vsel %vm1577, %v1227, -inf
        %v1643 = vsel %vm1577, %v1232, -inf
        %v1644 = vsel %vm1577, %v1237, -inf
        %v1645 = vsel %vm1577, %v1242, -inf
        %v1646 = vsel %vm1577, %v1247, -inf
        %v1647 = vsel %vm1577, %v1252, -inf
        %v1648 = vsel %vm1577, %v1257, -inf
        %v1649 = vsel %vm1577, %v1262, -inf
        %v1650 = vsel %vm1577, %v1267, -inf
        %v1651 = vsel %vm1577, %v1272, -inf
        %v1652 = vsel %vm1577, %v1277, -inf
        %v1653 = vsel %vm1577, %v1282, -inf
        %v1654 = vsel %vm1577, %v1287, -inf
        %v1655 = vsel %vm1577, %v1292, -inf
        %v1656 = vsel %vm1577, %v1297, -inf
        %v1657 = vsel %vm1577, %v1302, -inf
        %v1658 = vsel %vm1577, %v1307, -inf
        %v1659 = vsel %vm1577, %v1312, -inf
        %v1660 = vsel %vm1577, %v1317, -inf
        %v1661 = vsel %vm1577, %v1322, -inf
        %v1662 = vsel %vm1577, %v1327, -inf
        %v1663 = vsel %vm1577, %v1332, -inf
        %v1664 = vsel %vm1577, %v1337, -inf
        %v1665 = vsel %vm1577, %v1342, -inf
        %v1666 = vsel %vm1577, %v1347, -inf
        %v1667 = vsel %vm1577, %v1352, -inf
        %v1668 = vsel %vm1577, %v1357, -inf
        %v1669 = vsel %vm1577, %v1362, -inf
        %v1670 = vsel %vm1577, %v1367, -inf
        %v1671 = vsel %vm1577, %v1372, -inf
        %v1672 = vsel %vm1577, %v1377, -inf
        %v1673 = vsel %vm1577, %v1382, -inf
        %v1674 = vsel %vm1577, %v1387, -inf
        %v1675 = vsel %vm1577, %v1392, -inf
        %v1676 = vsel %vm1577, %v1397, -inf
        %v1677 = vsel %vm1577, %v1402, -inf
        %v1678 = vsel %vm1577, %v1407, -inf
        %v1679 = vsel %vm1577, %v1412, -inf
        %v1680 = vsel %vm1577, %v1417, -inf
        %v1681 = vsel %vm1577, %v1422, -inf
        %v1682 = vsel %vm1577, %v1427, -inf
        %v1683 = vsel %vm1577, %v1432, -inf
        %v1684 = vsel %vm1577, %v1437, -inf
        %v1685 = vsel %vm1577, %v1442, -inf
        %v1686 = vsel %vm1577, %v1447, -inf
        %v1687 = vsel %vm1577, %v1452, -inf
        %v1688 = vsel %vm1577, %v1457, -inf
        %v1689 = vsel %vm1577, %v1462, -inf
        %v1690 = vsel %vm1577, %v1467, -inf
        %v1691 = vsel %vm1577, %v1472, -inf
        %v1692 = vsel %vm1577, %v1477, -inf
        %v1693 = vsel %vm1577, %v1482, -inf
        %v1694 = vsel %vm1577, %v1487, -inf
        %v1695 = vsel %vm1577, %v1492, -inf
        %v1696 = vsel %vm1577, %v1497, -inf
        %v1697 = vsel %vm1577, %v1502, -inf
        %v1698 = vsel %vm1577, %v1507, -inf
        %v1699 = vsel %vm1577, %v1512, -inf
        %v1700 = vsel %vm1577, %v1517, -inf
        %v1701 = vsel %vm1577, %v1522, -inf
        %v1702 = vsel %vm1577, %v1527, -inf
        %v1703 = vsel %vm1577, %v1532, -inf
        %v1704 = vsel %vm1577, %v1537, -inf
        %v1705 = vsel %vm1577, %v1542, -inf
        %v1706 = vsel %vm1577, %v1547, -inf
        %v1707 = vsel %vm1577, %v1552, -inf
        %v1708 = vsel %vm1577, %v1557, -inf
        %v1709 = vsel %vm1577, %v1562, -inf
        %v1710 = vsel %vm1577, %v1567, -inf
        %v1711 = vsel %vm1577, %v1572, -inf
        %vm1712 = vcmask 228352
        %v1713 = vsel %vm1712, %v1584, -inf
        %1714 = vmax.xlane.f32.xlu0 %v1713
        %v1715 = vpop.xlane.xlu0 %1714
        %v1716 = vsel %vm1712, %v1585, -inf
        %1717 = vmax.xlane.f32.xlu0 %v1716
        %v1718 = vpop.xlane.xlu0 %1717
        %v1719 = vsel %vm1712, %v1586, -inf
        %1720 = vmax.xlane.f32.xlu0 %v1719
        %v1721 = vpop.xlane.xlu0 %1720
        %v1722 = vsel %vm1712, %v1587, -inf
        %1723 = vmax.xlane.f32.xlu0 %v1722
        %v1724 = vpop.xlane.xlu0 %1723
        %v1725 = vsel %vm1712, %v1588, -inf
        %1726 = vmax.xlane.f32.xlu0 %v1725
        %v1727 = vpop.xlane.xlu0 %1726
        %v1728 = vsel %vm1712, %v1589, -inf
        %1729 = vmax.xlane.f32.xlu0 %v1728
        %v1730 = vpop.xlane.xlu0 %1729
        %v1731 = vsel %vm1712, %v1590, -inf
        %1732 = vmax.xlane.f32.xlu0 %v1731
        %v1733 = vpop.xlane.xlu0 %1732
        %v1734 = vsel %vm1712, %v1591, -inf
        %1735 = vmax.xlane.f32.xlu0 %v1734
        %v1736 = vpop.xlane.xlu0 %1735
        %v1737 = vsel %vm1712, %v1592, -inf
        %1738 = vmax.xlane.f32.xlu0 %v1737
        %v1739 = vpop.xlane.xlu0 %1738
        %v1740 = vsel %vm1712, %v1593, -inf
        %1741 = vmax.xlane.f32.xlu0 %v1740
        %v1742 = vpop.xlane.xlu0 %1741
        %v1743 = vsel %vm1712, %v1594, -inf
        %1744 = vmax.xlane.f32.xlu0 %v1743
        %v1745 = vpop.xlane.xlu0 %1744
        %v1746 = vsel %vm1712, %v1595, -inf
        %1747 = vmax.xlane.f32.xlu0 %v1746
        %v1748 = vpop.xlane.xlu0 %1747
        %v1749 = vsel %vm1712, %v1596, -inf
        %1750 = vmax.xlane.f32.xlu0 %v1749
        %v1751 = vpop.xlane.xlu0 %1750
        %v1752 = vsel %vm1712, %v1597, -inf
        %1753 = vmax.xlane.f32.xlu0 %v1752
        %v1754 = vpop.xlane.xlu0 %1753
        %v1755 = vsel %vm1712, %v1598, -inf
        %1756 = vmax.xlane.f32.xlu0 %v1755
        %v1757 = vpop.xlane.xlu0 %1756
        %v1758 = vsel %vm1712, %v1599, -inf
        %1759 = vmax.xlane.f32.xlu0 %v1758
        %v1760 = vpop.xlane.xlu0 %1759
        %v1761 = vsel %vm1712, %v1600, -inf
        %1762 = vmax.xlane.f32.xlu0 %v1761
        %v1763 = vpop.xlane.xlu0 %1762
        %v1764 = vsel %vm1712, %v1601, -inf
        %1765 = vmax.xlane.f32.xlu0 %v1764
        %v1766 = vpop.xlane.xlu0 %1765
        %v1767 = vsel %vm1712, %v1602, -inf
        %1768 = vmax.xlane.f32.xlu0 %v1767
        %v1769 = vpop.xlane.xlu0 %1768
        %v1770 = vsel %vm1712, %v1603, -inf
        %1771 = vmax.xlane.f32.xlu0 %v1770
        %v1772 = vpop.xlane.xlu0 %1771
        %v1773 = vsel %vm1712, %v1604, -inf
        %1774 = vmax.xlane.f32.xlu0 %v1773
        %v1775 = vpop.xlane.xlu0 %1774
        %v1776 = vsel %vm1712, %v1605, -inf
        %1777 = vmax.xlane.f32.xlu0 %v1776
        %v1778 = vpop.xlane.xlu0 %1777
        %v1779 = vsel %vm1712, %v1606, -inf
        %1780 = vmax.xlane.f32.xlu0 %v1779
        %v1781 = vpop.xlane.xlu0 %1780
        %v1782 = vsel %vm1712, %v1607, -inf
        %1783 = vmax.xlane.f32.xlu0 %v1782
        %v1784 = vpop.xlane.xlu0 %1783
        %v1785 = vsel %vm1712, %v1608, -inf
        %1786 = vmax.xlane.f32.xlu0 %v1785
        %v1787 = vpop.xlane.xlu0 %1786
        %v1788 = vsel %vm1712, %v1609, -inf
        %1789 = vmax.xlane.f32.xlu0 %v1788
        %v1790 = vpop.xlane.xlu0 %1789
        %v1791 = vsel %vm1712, %v1610, -inf
        %1792 = vmax.xlane.f32.xlu0 %v1791
        %v1793 = vpop.xlane.xlu0 %1792
        %v1794 = vsel %vm1712, %v1611, -inf
        %1795 = vmax.xlane.f32.xlu0 %v1794
        %v1796 = vpop.xlane.xlu0 %1795
        %v1797 = vsel %vm1712, %v1612, -inf
        %1798 = vmax.xlane.f32.xlu0 %v1797
        %v1799 = vpop.xlane.xlu0 %1798
        %v1800 = vsel %vm1712, %v1613, -inf
        %1801 = vmax.xlane.f32.xlu0 %v1800
        %v1802 = vpop.xlane.xlu0 %1801
        %v1803 = vsel %vm1712, %v1614, -inf
        %1804 = vmax.xlane.f32.xlu0 %v1803
        %v1805 = vpop.xlane.xlu0 %1804
        %v1806 = vsel %vm1712, %v1615, -inf
        %1807 = vmax.xlane.f32.xlu0 %v1806
        %v1808 = vpop.xlane.xlu0 %1807
        %v1809 = vsel %vm1712, %v1616, -inf
        %1810 = vmax.xlane.f32.xlu0 %v1809
        %v1811 = vpop.xlane.xlu0 %1810
        %v1812 = vsel %vm1712, %v1617, -inf
        %1813 = vmax.xlane.f32.xlu0 %v1812
        %v1814 = vpop.xlane.xlu0 %1813
        %v1815 = vsel %vm1712, %v1618, -inf
        %1816 = vmax.xlane.f32.xlu0 %v1815
        %v1817 = vpop.xlane.xlu0 %1816
        %v1818 = vsel %vm1712, %v1619, -inf
        %1819 = vmax.xlane.f32.xlu0 %v1818
        %v1820 = vpop.xlane.xlu0 %1819
        %v1821 = vsel %vm1712, %v1620, -inf
        %1822 = vmax.xlane.f32.xlu0 %v1821
        %v1823 = vpop.xlane.xlu0 %1822
        %v1824 = vsel %vm1712, %v1621, -inf
        %1825 = vmax.xlane.f32.xlu0 %v1824
        %v1826 = vpop.xlane.xlu0 %1825
        %v1827 = vsel %vm1712, %v1622, -inf
        %1828 = vmax.xlane.f32.xlu0 %v1827
        %v1829 = vpop.xlane.xlu0 %1828
        %v1830 = vsel %vm1712, %v1623, -inf
        %1831 = vmax.xlane.f32.xlu0 %v1830
        %v1832 = vpop.xlane.xlu0 %1831
        %v1833 = vsel %vm1712, %v1624, -inf
        %1834 = vmax.xlane.f32.xlu0 %v1833
        %v1835 = vpop.xlane.xlu0 %1834
        %v1836 = vsel %vm1712, %v1625, -inf
        %1837 = vmax.xlane.f32.xlu0 %v1836
        %v1838 = vpop.xlane.xlu0 %1837
        %v1839 = vsel %vm1712, %v1626, -inf
        %1840 = vmax.xlane.f32.xlu0 %v1839
        %v1841 = vpop.xlane.xlu0 %1840
        %v1842 = vsel %vm1712, %v1627, -inf
        %1843 = vmax.xlane.f32.xlu0 %v1842
        %v1844 = vpop.xlane.xlu0 %1843
        %v1845 = vsel %vm1712, %v1628, -inf
        %1846 = vmax.xlane.f32.xlu0 %v1845
        %v1847 = vpop.xlane.xlu0 %1846
        %v1848 = vsel %vm1712, %v1629, -inf
        %1849 = vmax.xlane.f32.xlu0 %v1848
        %v1850 = vpop.xlane.xlu0 %1849
        %v1851 = vsel %vm1712, %v1630, -inf
        %1852 = vmax.xlane.f32.xlu0 %v1851
        %v1853 = vpop.xlane.xlu0 %1852
        %v1854 = vsel %vm1712, %v1631, -inf
        %1855 = vmax.xlane.f32.xlu0 %v1854
        %v1856 = vpop.xlane.xlu0 %1855
        %v1857 = vsel %vm1712, %v1632, -inf
        %1858 = vmax.xlane.f32.xlu0 %v1857
        %v1859 = vpop.xlane.xlu0 %1858
        %v1860 = vsel %vm1712, %v1633, -inf
        %1861 = vmax.xlane.f32.xlu0 %v1860
        %v1862 = vpop.xlane.xlu0 %1861
        %v1863 = vsel %vm1712, %v1634, -inf
        %1864 = vmax.xlane.f32.xlu0 %v1863
        %v1865 = vpop.xlane.xlu0 %1864
        %v1866 = vsel %vm1712, %v1635, -inf
        %1867 = vmax.xlane.f32.xlu0 %v1866
        %v1868 = vpop.xlane.xlu0 %1867
        %v1869 = vsel %vm1712, %v1636, -inf
        %1870 = vmax.xlane.f32.xlu0 %v1869
        %v1871 = vpop.xlane.xlu0 %1870
        %v1872 = vsel %vm1712, %v1637, -inf
        %1873 = vmax.xlane.f32.xlu0 %v1872
        %v1874 = vpop.xlane.xlu0 %1873
        %v1875 = vsel %vm1712, %v1638, -inf
        %1876 = vmax.xlane.f32.xlu0 %v1875
        %v1877 = vpop.xlane.xlu0 %1876
        %v1878 = vsel %vm1712, %v1639, -inf
        %1879 = vmax.xlane.f32.xlu0 %v1878
        %v1880 = vpop.xlane.xlu0 %1879
        %v1881 = vsel %vm1712, %v1640, -inf
        %1882 = vmax.xlane.f32.xlu0 %v1881
        %v1883 = vpop.xlane.xlu0 %1882
        %v1884 = vsel %vm1712, %v1641, -inf
        %1885 = vmax.xlane.f32.xlu0 %v1884
        %v1886 = vpop.xlane.xlu0 %1885
        %v1887 = vsel %vm1712, %v1642, -inf
        %1888 = vmax.xlane.f32.xlu0 %v1887
        %v1889 = vpop.xlane.xlu0 %1888
        %v1890 = vsel %vm1712, %v1643, -inf
        %1891 = vmax.xlane.f32.xlu0 %v1890
        %v1892 = vpop.xlane.xlu0 %1891
        %v1893 = vsel %vm1712, %v1644, -inf
        %1894 = vmax.xlane.f32.xlu0 %v1893
        %v1895 = vpop.xlane.xlu0 %1894
        %v1896 = vsel %vm1712, %v1645, -inf
        %1897 = vmax.xlane.f32.xlu0 %v1896
        %v1898 = vpop.xlane.xlu0 %1897
        %v1899 = vsel %vm1712, %v1646, -inf
        %1900 = vmax.xlane.f32.xlu0 %v1899
        %v1901 = vpop.xlane.xlu0 %1900
        %v1902 = vsel %vm1712, %v1647, -inf
        %1903 = vmax.xlane.f32.xlu0 %v1902
        %v1904 = vpop.xlane.xlu0 %1903
        %v1905 = vsel %vm1712, %v1648, -inf
        %1906 = vmax.xlane.f32.xlu0 %v1905
        %v1907 = vpop.xlane.xlu0 %1906
        %v1908 = vsel %vm1712, %v1649, -inf
        %1909 = vmax.xlane.f32.xlu0 %v1908
        %v1910 = vpop.xlane.xlu0 %1909
        %v1911 = vsel %vm1712, %v1650, -inf
        %1912 = vmax.xlane.f32.xlu0 %v1911
        %v1913 = vpop.xlane.xlu0 %1912
        %v1914 = vsel %vm1712, %v1651, -inf
        %1915 = vmax.xlane.f32.xlu0 %v1914
        %v1916 = vpop.xlane.xlu0 %1915
        %v1917 = vsel %vm1712, %v1652, -inf
        %1918 = vmax.xlane.f32.xlu0 %v1917
        %v1919 = vpop.xlane.xlu0 %1918
        %v1920 = vsel %vm1712, %v1653, -inf
        %1921 = vmax.xlane.f32.xlu0 %v1920
        %v1922 = vpop.xlane.xlu0 %1921
        %v1923 = vsel %vm1712, %v1654, -inf
        %1924 = vmax.xlane.f32.xlu0 %v1923
        %v1925 = vpop.xlane.xlu0 %1924
        %v1926 = vsel %vm1712, %v1655, -inf
        %1927 = vmax.xlane.f32.xlu0 %v1926
        %v1928 = vpop.xlane.xlu0 %1927
        %v1929 = vsel %vm1712, %v1656, -inf
        %1930 = vmax.xlane.f32.xlu0 %v1929
        %v1931 = vpop.xlane.xlu0 %1930
        %v1932 = vsel %vm1712, %v1657, -inf
        %1933 = vmax.xlane.f32.xlu0 %v1932
        %v1934 = vpop.xlane.xlu0 %1933
        %v1935 = vsel %vm1712, %v1658, -inf
        %1936 = vmax.xlane.f32.xlu0 %v1935
        %v1937 = vpop.xlane.xlu0 %1936
        %v1938 = vsel %vm1712, %v1659, -inf
        %1939 = vmax.xlane.f32.xlu0 %v1938
        %v1940 = vpop.xlane.xlu0 %1939
        %v1941 = vsel %vm1712, %v1660, -inf
        %1942 = vmax.xlane.f32.xlu0 %v1941
        %v1943 = vpop.xlane.xlu0 %1942
        %v1944 = vsel %vm1712, %v1661, -inf
        %1945 = vmax.xlane.f32.xlu0 %v1944
        %v1946 = vpop.xlane.xlu0 %1945
        %v1947 = vsel %vm1712, %v1662, -inf
        %1948 = vmax.xlane.f32.xlu0 %v1947
        %v1949 = vpop.xlane.xlu0 %1948
        %v1950 = vsel %vm1712, %v1663, -inf
        %1951 = vmax.xlane.f32.xlu0 %v1950
        %v1952 = vpop.xlane.xlu0 %1951
        %v1953 = vsel %vm1712, %v1664, -inf
        %1954 = vmax.xlane.f32.xlu0 %v1953
        %v1955 = vpop.xlane.xlu0 %1954
        %v1956 = vsel %vm1712, %v1665, -inf
        %1957 = vmax.xlane.f32.xlu0 %v1956
        %v1958 = vpop.xlane.xlu0 %1957
        %v1959 = vsel %vm1712, %v1666, -inf
        %1960 = vmax.xlane.f32.xlu0 %v1959
        %v1961 = vpop.xlane.xlu0 %1960
        %v1962 = vsel %vm1712, %v1667, -inf
        %1963 = vmax.xlane.f32.xlu0 %v1962
        %v1964 = vpop.xlane.xlu0 %1963
        %v1965 = vsel %vm1712, %v1668, -inf
        %1966 = vmax.xlane.f32.xlu0 %v1965
        %v1967 = vpop.xlane.xlu0 %1966
        %v1968 = vsel %vm1712, %v1669, -inf
        %1969 = vmax.xlane.f32.xlu0 %v1968
        %v1970 = vpop.xlane.xlu0 %1969
        %v1971 = vsel %vm1712, %v1670, -inf
        %1972 = vmax.xlane.f32.xlu0 %v1971
        %v1973 = vpop.xlane.xlu0 %1972
        %v1974 = vsel %vm1712, %v1671, -inf
        %1975 = vmax.xlane.f32.xlu0 %v1974
        %v1976 = vpop.xlane.xlu0 %1975
        %v1977 = vsel %vm1712, %v1672, -inf
        %1978 = vmax.xlane.f32.xlu0 %v1977
        %v1979 = vpop.xlane.xlu0 %1978
        %v1980 = vsel %vm1712, %v1673, -inf
        %1981 = vmax.xlane.f32.xlu0 %v1980
        %v1982 = vpop.xlane.xlu0 %1981
        %v1983 = vsel %vm1712, %v1674, -inf
        %1984 = vmax.xlane.f32.xlu0 %v1983
        %v1985 = vpop.xlane.xlu0 %1984
        %v1986 = vsel %vm1712, %v1675, -inf
        %1987 = vmax.xlane.f32.xlu0 %v1986
        %v1988 = vpop.xlane.xlu0 %1987
        %v1989 = vsel %vm1712, %v1676, -inf
        %1990 = vmax.xlane.f32.xlu0 %v1989
        %v1991 = vpop.xlane.xlu0 %1990
        %v1992 = vsel %vm1712, %v1677, -inf
        %1993 = vmax.xlane.f32.xlu0 %v1992
        %v1994 = vpop.xlane.xlu0 %1993
        %v1995 = vsel %vm1712, %v1678, -inf
        %1996 = vmax.xlane.f32.xlu0 %v1995
        %v1997 = vpop.xlane.xlu0 %1996
        %v1998 = vsel %vm1712, %v1679, -inf
        %1999 = vmax.xlane.f32.xlu0 %v1998
        %v2000 = vpop.xlane.xlu0 %1999
        %v2001 = vsel %vm1712, %v1680, -inf
        %2002 = vmax.xlane.f32.xlu0 %v2001
        %v2003 = vpop.xlane.xlu0 %2002
        %v2004 = vsel %vm1712, %v1681, -inf
        %2005 = vmax.xlane.f32.xlu0 %v2004
        %v2006 = vpop.xlane.xlu0 %2005
        %v2007 = vsel %vm1712, %v1682, -inf
        %2008 = vmax.xlane.f32.xlu0 %v2007
        %v2009 = vpop.xlane.xlu0 %2008
        %v2010 = vsel %vm1712, %v1683, -inf
        %2011 = vmax.xlane.f32.xlu0 %v2010
        %v2012 = vpop.xlane.xlu0 %2011
        %v2013 = vsel %vm1712, %v1684, -inf
        %2014 = vmax.xlane.f32.xlu0 %v2013
        %v2015 = vpop.xlane.xlu0 %2014
        %v2016 = vsel %vm1712, %v1685, -inf
        %2017 = vmax.xlane.f32.xlu0 %v2016
        %v2018 = vpop.xlane.xlu0 %2017
        %v2019 = vsel %vm1712, %v1686, -inf
        %2020 = vmax.xlane.f32.xlu0 %v2019
        %v2021 = vpop.xlane.xlu0 %2020
        %v2022 = vsel %vm1712, %v1687, -inf
        %2023 = vmax.xlane.f32.xlu0 %v2022
        %v2024 = vpop.xlane.xlu0 %2023
        %v2025 = vsel %vm1712, %v1688, -inf
        %2026 = vmax.xlane.f32.xlu0 %v2025
        %v2027 = vpop.xlane.xlu0 %2026
        %v2028 = vsel %vm1712, %v1689, -inf
        %2029 = vmax.xlane.f32.xlu0 %v2028
        %v2030 = vpop.xlane.xlu0 %2029
        %v2031 = vsel %vm1712, %v1690, -inf
        %2032 = vmax.xlane.f32.xlu0 %v2031
        %v2033 = vpop.xlane.xlu0 %2032
        %v2034 = vsel %vm1712, %v1691, -inf
        %2035 = vmax.xlane.f32.xlu0 %v2034
        %v2036 = vpop.xlane.xlu0 %2035
        %v2037 = vsel %vm1712, %v1692, -inf
        %2038 = vmax.xlane.f32.xlu0 %v2037
        %v2039 = vpop.xlane.xlu0 %2038
        %v2040 = vsel %vm1712, %v1693, -inf
        %2041 = vmax.xlane.f32.xlu0 %v2040
        %v2042 = vpop.xlane.xlu0 %2041
        %v2043 = vsel %vm1712, %v1694, -inf
        %2044 = vmax.xlane.f32.xlu0 %v2043
        %v2045 = vpop.xlane.xlu0 %2044
        %v2046 = vsel %vm1712, %v1695, -inf
        %2047 = vmax.xlane.f32.xlu0 %v2046
        %v2048 = vpop.xlane.xlu0 %2047
        %v2049 = vsel %vm1712, %v1696, -inf
        %2050 = vmax.xlane.f32.xlu0 %v2049
        %v2051 = vpop.xlane.xlu0 %2050
        %v2052 = vsel %vm1712, %v1697, -inf
        %2053 = vmax.xlane.f32.xlu0 %v2052
        %v2054 = vpop.xlane.xlu0 %2053
        %v2055 = vsel %vm1712, %v1698, -inf
        %2056 = vmax.xlane.f32.xlu0 %v2055
        %v2057 = vpop.xlane.xlu0 %2056
        %v2058 = vsel %vm1712, %v1699, -inf
        %2059 = vmax.xlane.f32.xlu0 %v2058
        %v2060 = vpop.xlane.xlu0 %2059
        %v2061 = vsel %vm1712, %v1700, -inf
        %2062 = vmax.xlane.f32.xlu0 %v2061
        %v2063 = vpop.xlane.xlu0 %2062
        %v2064 = vsel %vm1712, %v1701, -inf
        %2065 = vmax.xlane.f32.xlu0 %v2064
        %v2066 = vpop.xlane.xlu0 %2065
        %v2067 = vsel %vm1712, %v1702, -inf
        %2068 = vmax.xlane.f32.xlu0 %v2067
        %v2069 = vpop.xlane.xlu0 %2068
        %v2070 = vsel %vm1712, %v1703, -inf
        %2071 = vmax.xlane.f32.xlu0 %v2070
        %v2072 = vpop.xlane.xlu0 %2071
        %v2073 = vsel %vm1712, %v1704, -inf
        %2074 = vmax.xlane.f32.xlu0 %v2073
        %v2075 = vpop.xlane.xlu0 %2074
        %v2076 = vsel %vm1712, %v1705, -inf
        %2077 = vmax.xlane.f32.xlu0 %v2076
        %v2078 = vpop.xlane.xlu0 %2077
        %v2079 = vsel %vm1712, %v1706, -inf
        %2080 = vmax.xlane.f32.xlu0 %v2079
        %v2081 = vpop.xlane.xlu0 %2080
        %v2082 = vsel %vm1712, %v1707, -inf
        %2083 = vmax.xlane.f32.xlu0 %v2082
        %v2084 = vpop.xlane.xlu0 %2083
        %v2085 = vsel %vm1712, %v1708, -inf
        %2086 = vmax.xlane.f32.xlu0 %v2085
        %v2087 = vpop.xlane.xlu0 %2086
        %v2088 = vsel %vm1712, %v1709, -inf
        %2089 = vmax.xlane.f32.xlu0 %v2088
        %v2090 = vpop.xlane.xlu0 %2089
        %v2091 = vsel %vm1712, %v1710, -inf
        %2092 = vmax.xlane.f32.xlu0 %v2091
        %v2093 = vpop.xlane.xlu0 %2092
        %v2094 = vsel %vm1712, %v1711, -inf
        %2095 = vmax.xlane.f32.xlu0 %v2094
        %v2096 = vpop.xlane.xlu0 %2095
        %v2097 = vsub.f32 %v1584, %v1715
        %v2098 = vsub.f32 %v1585, %v1718
        %v2099 = vsub.f32 %v1586, %v1721
        %v2100 = vsub.f32 %v1587, %v1724
        %v2101 = vsub.f32 %v1588, %v1727
        %v2102 = vsub.f32 %v1589, %v1730
        %v2103 = vsub.f32 %v1590, %v1733
        %v2104 = vsub.f32 %v1591, %v1736
        %v2105 = vsub.f32 %v1592, %v1739
        %v2106 = vsub.f32 %v1593, %v1742
        %v2107 = vsub.f32 %v1594, %v1745
        %v2108 = vsub.f32 %v1595, %v1748
        %v2109 = vsub.f32 %v1596, %v1751
        %v2110 = vsub.f32 %v1597, %v1754
        %v2111 = vsub.f32 %v1598, %v1757
        %v2112 = vsub.f32 %v1599, %v1760
        %v2113 = vsub.f32 %v1600, %v1763
        %v2114 = vsub.f32 %v1601, %v1766
        %v2115 = vsub.f32 %v1602, %v1769
        %v2116 = vsub.f32 %v1603, %v1772
        %v2117 = vsub.f32 %v1604, %v1775
        %v2118 = vsub.f32 %v1605, %v1778
        %v2119 = vsub.f32 %v1606, %v1781
        %v2120 = vsub.f32 %v1607, %v1784
        %v2121 = vsub.f32 %v1608, %v1787
        %v2122 = vsub.f32 %v1609, %v1790
        %v2123 = vsub.f32 %v1610, %v1793
        %v2124 = vsub.f32 %v1611, %v1796
        %v2125 = vsub.f32 %v1612, %v1799
        %v2126 = vsub.f32 %v1613, %v1802
        %v2127 = vsub.f32 %v1614, %v1805
        %v2128 = vsub.f32 %v1615, %v1808
        %v2129 = vsub.f32 %v1616, %v1811
        %v2130 = vsub.f32 %v1617, %v1814
        %v2131 = vsub.f32 %v1618, %v1817
        %v2132 = vsub.f32 %v1619, %v1820
        %v2133 = vsub.f32 %v1620, %v1823
        %v2134 = vsub.f32 %v1621, %v1826
        %v2135 = vsub.f32 %v1622, %v1829
        %v2136 = vsub.f32 %v1623, %v1832
        %v2137 = vsub.f32 %v1624, %v1835
        %v2138 = vsub.f32 %v1625, %v1838
        %v2139 = vsub.f32 %v1626, %v1841
        %v2140 = vsub.f32 %v1627, %v1844
        %v2141 = vsub.f32 %v1628, %v1847
        %v2142 = vsub.f32 %v1629, %v1850
        %v2143 = vsub.f32 %v1630, %v1853
        %v2144 = vsub.f32 %v1631, %v1856
        %v2145 = vsub.f32 %v1632, %v1859
        %v2146 = vsub.f32 %v1633, %v1862
        %v2147 = vsub.f32 %v1634, %v1865
        %v2148 = vsub.f32 %v1635, %v1868
        %v2149 = vsub.f32 %v1636, %v1871
        %v2150 = vsub.f32 %v1637, %v1874
        %v2151 = vsub.f32 %v1638, %v1877
        %v2152 = vsub.f32 %v1639, %v1880
        %v2153 = vsub.f32 %v1640, %v1883
        %v2154 = vsub.f32 %v1641, %v1886
        %v2155 = vsub.f32 %v1642, %v1889
        %v2156 = vsub.f32 %v1643, %v1892
        %v2157 = vsub.f32 %v1644, %v1895
        %v2158 = vsub.f32 %v1645, %v1898
        %v2159 = vsub.f32 %v1646, %v1901
        %v2160 = vsub.f32 %v1647, %v1904
        %v2161 = vsub.f32 %v1648, %v1907
        %v2162 = vsub.f32 %v1649, %v1910
        %v2163 = vsub.f32 %v1650, %v1913
        %v2164 = vsub.f32 %v1651, %v1916
        %v2165 = vsub.f32 %v1652, %v1919
        %v2166 = vsub.f32 %v1653, %v1922
        %v2167 = vsub.f32 %v1654, %v1925
        %v2168 = vsub.f32 %v1655, %v1928
        %v2169 = vsub.f32 %v1656, %v1931
        %v2170 = vsub.f32 %v1657, %v1934
        %v2171 = vsub.f32 %v1658, %v1937
        %v2172 = vsub.f32 %v1659, %v1940
        %v2173 = vsub.f32 %v1660, %v1943
        %v2174 = vsub.f32 %v1661, %v1946
        %v2175 = vsub.f32 %v1662, %v1949
        %v2176 = vsub.f32 %v1663, %v1952
        %v2177 = vsub.f32 %v1664, %v1955
        %v2178 = vsub.f32 %v1665, %v1958
        %v2179 = vsub.f32 %v1666, %v1961
        %v2180 = vsub.f32 %v1667, %v1964
        %v2181 = vsub.f32 %v1668, %v1967
        %v2182 = vsub.f32 %v1669, %v1970
        %v2183 = vsub.f32 %v1670, %v1973
        %v2184 = vsub.f32 %v1671, %v1976
        %v2185 = vsub.f32 %v1672, %v1979
        %v2186 = vsub.f32 %v1673, %v1982
        %v2187 = vsub.f32 %v1674, %v1985
        %v2188 = vsub.f32 %v1675, %v1988
        %v2189 = vsub.f32 %v1676, %v1991
        %v2190 = vsub.f32 %v1677, %v1994
        %v2191 = vsub.f32 %v1678, %v1997
        %v2192 = vsub.f32 %v1679, %v2000
        %v2193 = vsub.f32 %v1680, %v2003
        %v2194 = vsub.f32 %v1681, %v2006
        %v2195 = vsub.f32 %v1682, %v2009
        %v2196 = vsub.f32 %v1683, %v2012
        %v2197 = vsub.f32 %v1684, %v2015
        %v2198 = vsub.f32 %v1685, %v2018
        %v2199 = vsub.f32 %v1686, %v2021
        %v2200 = vsub.f32 %v1687, %v2024
        %v2201 = vsub.f32 %v1688, %v2027
        %v2202 = vsub.f32 %v1689, %v2030
        %v2203 = vsub.f32 %v1690, %v2033
        %v2204 = vsub.f32 %v1691, %v2036
        %v2205 = vsub.f32 %v1692, %v2039
        %v2206 = vsub.f32 %v1693, %v2042
        %v2207 = vsub.f32 %v1694, %v2045
        %v2208 = vsub.f32 %v1695, %v2048
        %v2209 = vsub.f32 %v1696, %v2051
        %v2210 = vsub.f32 %v1697, %v2054
        %v2211 = vsub.f32 %v1698, %v2057
        %v2212 = vsub.f32 %v1699, %v2060
        %v2213 = vsub.f32 %v1700, %v2063
        %v2214 = vsub.f32 %v1701, %v2066
        %v2215 = vsub.f32 %v1702, %v2069
        %v2216 = vsub.f32 %v1703, %v2072
        %v2217 = vsub.f32 %v1704, %v2075
        %v2218 = vsub.f32 %v1705, %v2078
        %v2219 = vsub.f32 %v1706, %v2081
        %v2220 = vsub.f32 %v1707, %v2084
        %v2221 = vsub.f32 %v1708, %v2087
        %v2222 = vsub.f32 %v1709, %v2090
        %v2223 = vsub.f32 %v1710, %v2093
        %v2224 = vsub.f32 %v1711, %v2096
        %v2225 = vmul.f32 %v2097, 1.442695
        %v2226 = vpow.pop %v2225
        %v2227 = vmul.f32 %v2098, 1.442695
        %v2228 = vpow.pop %v2227
        %v2229 = vmul.f32 %v2099, 1.442695
        %v2230 = vpow.pop %v2229
        %v2231 = vmul.f32 %v2100, 1.442695
        %v2232 = vpow.pop %v2231
        %v2233 = vmul.f32 %v2101, 1.442695
        %v2234 = vpow.pop %v2233
        %v2235 = vmul.f32 %v2102, 1.442695
        %v2236 = vpow.pop %v2235
        %v2237 = vmul.f32 %v2103, 1.442695
        %v2238 = vpow.pop %v2237
        %v2239 = vmul.f32 %v2104, 1.442695
        %v2240 = vpow.pop %v2239
        %v2241 = vmul.f32 %v2105, 1.442695
        %v2242 = vpow.pop %v2241
        %v2243 = vmul.f32 %v2106, 1.442695
        %v2244 = vpow.pop %v2243
        %v2245 = vmul.f32 %v2107, 1.442695
        %v2246 = vpow.pop %v2245
        %v2247 = vmul.f32 %v2108, 1.442695
        %v2248 = vpow.pop %v2247
        %v2249 = vmul.f32 %v2109, 1.442695
        %v2250 = vpow.pop %v2249
        %v2251 = vmul.f32 %v2110, 1.442695
        %v2252 = vpow.pop %v2251
        %v2253 = vmul.f32 %v2111, 1.442695
        %v2254 = vpow.pop %v2253
        %v2255 = vmul.f32 %v2112, 1.442695
        %v2256 = vpow.pop %v2255
        %v2257 = vmul.f32 %v2113, 1.442695
        %v2258 = vpow.pop %v2257
        %v2259 = vmul.f32 %v2114, 1.442695
        %v2260 = vpow.pop %v2259
        %v2261 = vmul.f32 %v2115, 1.442695
        %v2262 = vpow.pop %v2261
        %v2263 = vmul.f32 %v2116, 1.442695
        %v2264 = vpow.pop %v2263
        %v2265 = vmul.f32 %v2117, 1.442695
        %v2266 = vpow.pop %v2265
        %v2267 = vmul.f32 %v2118, 1.442695
        %v2268 = vpow.pop %v2267
        %v2269 = vmul.f32 %v2119, 1.442695
        %v2270 = vpow.pop %v2269
        %v2271 = vmul.f32 %v2120, 1.442695
        %v2272 = vpow.pop %v2271
        %v2273 = vmul.f32 %v2121, 1.442695
        %v2274 = vpow.pop %v2273
        %v2275 = vmul.f32 %v2122, 1.442695
        %v2276 = vpow.pop %v2275
        %v2277 = vmul.f32 %v2123, 1.442695
        %v2278 = vpow.pop %v2277
        %v2279 = vmul.f32 %v2124, 1.442695
        %v2280 = vpow.pop %v2279
        %v2281 = vmul.f32 %v2125, 1.442695
        %v2282 = vpow.pop %v2281
        %v2283 = vmul.f32 %v2126, 1.442695
        %v2284 = vpow.pop %v2283
        %v2285 = vmul.f32 %v2127, 1.442695
        %v2286 = vpow.pop %v2285
        %v2287 = vmul.f32 %v2128, 1.442695
        %v2288 = vpow.pop %v2287
        %v2289 = vmul.f32 %v2129, 1.442695
        %v2290 = vpow.pop %v2289
        %v2291 = vmul.f32 %v2130, 1.442695
        %v2292 = vpow.pop %v2291
        %v2293 = vmul.f32 %v2131, 1.442695
        %v2294 = vpow.pop %v2293
        %v2295 = vmul.f32 %v2132, 1.442695
        %v2296 = vpow.pop %v2295
        %v2297 = vmul.f32 %v2133, 1.442695
        %v2298 = vpow.pop %v2297
        %v2299 = vmul.f32 %v2134, 1.442695
        %v2300 = vpow.pop %v2299
        %v2301 = vmul.f32 %v2135, 1.442695
        %v2302 = vpow.pop %v2301
        %v2303 = vmul.f32 %v2136, 1.442695
        %v2304 = vpow.pop %v2303
        %v2305 = vmul.f32 %v2137, 1.442695
        %v2306 = vpow.pop %v2305
        %v2307 = vmul.f32 %v2138, 1.442695
        %v2308 = vpow.pop %v2307
        %v2309 = vmul.f32 %v2139, 1.442695
        %v2310 = vpow.pop %v2309
        %v2311 = vmul.f32 %v2140, 1.442695
        %v2312 = vpow.pop %v2311
        %v2313 = vmul.f32 %v2141, 1.442695
        %v2314 = vpow.pop %v2313
        %v2315 = vmul.f32 %v2142, 1.442695
        %v2316 = vpow.pop %v2315
        %v2317 = vmul.f32 %v2143, 1.442695
        %v2318 = vpow.pop %v2317
        %v2319 = vmul.f32 %v2144, 1.442695
        %v2320 = vpow.pop %v2319
        %v2321 = vmul.f32 %v2145, 1.442695
        %v2322 = vpow.pop %v2321
        %v2323 = vmul.f32 %v2146, 1.442695
        %v2324 = vpow.pop %v2323
        %v2325 = vmul.f32 %v2147, 1.442695
        %v2326 = vpow.pop %v2325
        %v2327 = vmul.f32 %v2148, 1.442695
        %v2328 = vpow.pop %v2327
        %v2329 = vmul.f32 %v2149, 1.442695
        %v2330 = vpow.pop %v2329
        %v2331 = vmul.f32 %v2150, 1.442695
        %v2332 = vpow.pop %v2331
        %v2333 = vmul.f32 %v2151, 1.442695
        %v2334 = vpow.pop %v2333
        %v2335 = vmul.f32 %v2152, 1.442695
        %v2336 = vpow.pop %v2335
        %v2337 = vmul.f32 %v2153, 1.442695
        %v2338 = vpow.pop %v2337
        %v2339 = vmul.f32 %v2154, 1.442695
        %v2340 = vpow.pop %v2339
        %v2341 = vmul.f32 %v2155, 1.442695
        %v2342 = vpow.pop %v2341
        %v2343 = vmul.f32 %v2156, 1.442695
        %v2344 = vpow.pop %v2343
        %v2345 = vmul.f32 %v2157, 1.442695
        %v2346 = vpow.pop %v2345
        %v2347 = vmul.f32 %v2158, 1.442695
        %v2348 = vpow.pop %v2347
        %v2349 = vmul.f32 %v2159, 1.442695
        %v2350 = vpow.pop %v2349
        %v2351 = vmul.f32 %v2160, 1.442695
        %v2352 = vpow.pop %v2351
        %v2353 = vmul.f32 %v2161, 1.442695
        %v2354 = vpow.pop %v2353
        %v2355 = vmul.f32 %v2162, 1.442695
        %v2356 = vpow.pop %v2355
        %v2357 = vmul.f32 %v2163, 1.442695
        %v2358 = vpow.pop %v2357
        %v2359 = vmul.f32 %v2164, 1.442695
        %v2360 = vpow.pop %v2359
        %v2361 = vmul.f32 %v2165, 1.442695
        %v2362 = vpow.pop %v2361
        %v2363 = vmul.f32 %v2166, 1.442695
        %v2364 = vpow.pop %v2363
        %v2365 = vmul.f32 %v2167, 1.442695
        %v2366 = vpow.pop %v2365
        %v2367 = vmul.f32 %v2168, 1.442695
        %v2368 = vpow.pop %v2367
        %v2369 = vmul.f32 %v2169, 1.442695
        %v2370 = vpow.pop %v2369
        %v2371 = vmul.f32 %v2170, 1.442695
        %v2372 = vpow.pop %v2371
        %v2373 = vmul.f32 %v2171, 1.442695
        %v2374 = vpow.pop %v2373
        %v2375 = vmul.f32 %v2172, 1.442695
        %v2376 = vpow.pop %v2375
        %v2377 = vmul.f32 %v2173, 1.442695
        %v2378 = vpow.pop %v2377
        %v2379 = vmul.f32 %v2174, 1.442695
        %v2380 = vpow.pop %v2379
        %v2381 = vmul.f32 %v2175, 1.442695
        %v2382 = vpow.pop %v2381
        %v2383 = vmul.f32 %v2176, 1.442695
        %v2384 = vpow.pop %v2383
        %v2385 = vmul.f32 %v2177, 1.442695
        %v2386 = vpow.pop %v2385
        %v2387 = vmul.f32 %v2178, 1.442695
        %v2388 = vpow.pop %v2387
        %v2389 = vmul.f32 %v2179, 1.442695
        %v2390 = vpow.pop %v2389
        %v2391 = vmul.f32 %v2180, 1.442695
        %v2392 = vpow.pop %v2391
        %v2393 = vmul.f32 %v2181, 1.442695
        %v2394 = vpow.pop %v2393
        %v2395 = vmul.f32 %v2182, 1.442695
        %v2396 = vpow.pop %v2395
        %v2397 = vmul.f32 %v2183, 1.442695
        %v2398 = vpow.pop %v2397
        %v2399 = vmul.f32 %v2184, 1.442695
        %v2400 = vpow.pop %v2399
        %v2401 = vmul.f32 %v2185, 1.442695
        %v2402 = vpow.pop %v2401
        %v2403 = vmul.f32 %v2186, 1.442695
        %v2404 = vpow.pop %v2403
        %v2405 = vmul.f32 %v2187, 1.442695
        %v2406 = vpow.pop %v2405
        %v2407 = vmul.f32 %v2188, 1.442695
        %v2408 = vpow.pop %v2407
        %v2409 = vmul.f32 %v2189, 1.442695
        %v2410 = vpow.pop %v2409
        %v2411 = vmul.f32 %v2190, 1.442695
        %v2412 = vpow.pop %v2411
        %v2413 = vmul.f32 %v2191, 1.442695
        %v2414 = vpow.pop %v2413
        %v2415 = vmul.f32 %v2192, 1.442695
        %v2416 = vpow.pop %v2415
        %v2417 = vmul.f32 %v2193, 1.442695
        %v2418 = vpow.pop %v2417
        %v2419 = vmul.f32 %v2194, 1.442695
        %v2420 = vpow.pop %v2419
        %v2421 = vmul.f32 %v2195, 1.442695
        %v2422 = vpow.pop %v2421
        %v2423 = vmul.f32 %v2196, 1.442695
        %v2424 = vpow.pop %v2423
        %v2425 = vmul.f32 %v2197, 1.442695
        %v2426 = vpow.pop %v2425
        %v2427 = vmul.f32 %v2198, 1.442695
        %v2428 = vpow.pop %v2427
        %v2429 = vmul.f32 %v2199, 1.442695
        %v2430 = vpow.pop %v2429
        %v2431 = vmul.f32 %v2200, 1.442695
        %v2432 = vpow.pop %v2431
        %v2433 = vmul.f32 %v2201, 1.442695
        %v2434 = vpow.pop %v2433
        %v2435 = vmul.f32 %v2202, 1.442695
        %v2436 = vpow.pop %v2435
        %v2437 = vmul.f32 %v2203, 1.442695
        %v2438 = vpow.pop %v2437
        %v2439 = vmul.f32 %v2204, 1.442695
        %v2440 = vpow.pop %v2439
        %v2441 = vmul.f32 %v2205, 1.442695
        %v2442 = vpow.pop %v2441
        %v2443 = vmul.f32 %v2206, 1.442695
        %v2444 = vpow.pop %v2443
        %v2445 = vmul.f32 %v2207, 1.442695
        %v2446 = vpow.pop %v2445
        %v2447 = vmul.f32 %v2208, 1.442695
        %v2448 = vpow.pop %v2447
        %v2449 = vmul.f32 %v2209, 1.442695
        %v2450 = vpow.pop %v2449
        %v2451 = vmul.f32 %v2210, 1.442695
        %v2452 = vpow.pop %v2451
        %v2453 = vmul.f32 %v2211, 1.442695
        %v2454 = vpow.pop %v2453
        %v2455 = vmul.f32 %v2212, 1.442695
        %v2456 = vpow.pop %v2455
        %v2457 = vmul.f32 %v2213, 1.442695
        %v2458 = vpow.pop %v2457
        %v2459 = vmul.f32 %v2214, 1.442695
        %v2460 = vpow.pop %v2459
        %v2461 = vmul.f32 %v2215, 1.442695
        %v2462 = vpow.pop %v2461
        %v2463 = vmul.f32 %v2216, 1.442695
        %v2464 = vpow.pop %v2463
        %v2465 = vmul.f32 %v2217, 1.442695
        %v2466 = vpow.pop %v2465
        %v2467 = vmul.f32 %v2218, 1.442695
        %v2468 = vpow.pop %v2467
        %v2469 = vmul.f32 %v2219, 1.442695
        %v2470 = vpow.pop %v2469
        %v2471 = vmul.f32 %v2220, 1.442695
        %v2472 = vpow.pop %v2471
        %v2473 = vmul.f32 %v2221, 1.442695
        %v2474 = vpow.pop %v2473
        %v2475 = vmul.f32 %v2222, 1.442695
        %v2476 = vpow.pop %v2475
        %v2477 = vmul.f32 %v2223, 1.442695
        %v2478 = vpow.pop %v2477
        %v2479 = vmul.f32 %v2224, 1.442695
        %v2480 = vpow.pop %v2479
        %v2481 = vsel %vm1712, %v2226, 0.0
        %2482 = vadd.xlane.f32.xlu0 %v2481
        %v2483 = vpop.xlane.xlu0 %2482
        %v2484 = vsel %vm1712, %v2228, 0.0
        %2485 = vadd.xlane.f32.xlu0 %v2484
        %v2486 = vpop.xlane.xlu0 %2485
        %v2487 = vsel %vm1712, %v2230, 0.0
        %2488 = vadd.xlane.f32.xlu0 %v2487
        %v2489 = vpop.xlane.xlu0 %2488
        %v2490 = vsel %vm1712, %v2232, 0.0
        %2491 = vadd.xlane.f32.xlu0 %v2490
        %v2492 = vpop.xlane.xlu0 %2491
        %v2493 = vsel %vm1712, %v2234, 0.0
        %2494 = vadd.xlane.f32.xlu0 %v2493
        %v2495 = vpop.xlane.xlu0 %2494
        %v2496 = vsel %vm1712, %v2236, 0.0
        %2497 = vadd.xlane.f32.xlu0 %v2496
        %v2498 = vpop.xlane.xlu0 %2497
        %v2499 = vsel %vm1712, %v2238, 0.0
        %2500 = vadd.xlane.f32.xlu0 %v2499
        %v2501 = vpop.xlane.xlu0 %2500
        %v2502 = vsel %vm1712, %v2240, 0.0
        %2503 = vadd.xlane.f32.xlu0 %v2502
        %v2504 = vpop.xlane.xlu0 %2503
        %v2505 = vsel %vm1712, %v2242, 0.0
        %2506 = vadd.xlane.f32.xlu0 %v2505
        %v2507 = vpop.xlane.xlu0 %2506
        %v2508 = vsel %vm1712, %v2244, 0.0
        %2509 = vadd.xlane.f32.xlu0 %v2508
        %v2510 = vpop.xlane.xlu0 %2509
        %v2511 = vsel %vm1712, %v2246, 0.0
        %2512 = vadd.xlane.f32.xlu0 %v2511
        %v2513 = vpop.xlane.xlu0 %2512
        %v2514 = vsel %vm1712, %v2248, 0.0
        %2515 = vadd.xlane.f32.xlu0 %v2514
        %v2516 = vpop.xlane.xlu0 %2515
        %v2517 = vsel %vm1712, %v2250, 0.0
        %2518 = vadd.xlane.f32.xlu0 %v2517
        %v2519 = vpop.xlane.xlu0 %2518
        %v2520 = vsel %vm1712, %v2252, 0.0
        %2521 = vadd.xlane.f32.xlu0 %v2520
        %v2522 = vpop.xlane.xlu0 %2521
        %v2523 = vsel %vm1712, %v2254, 0.0
        %2524 = vadd.xlane.f32.xlu0 %v2523
        %v2525 = vpop.xlane.xlu0 %2524
        %v2526 = vsel %vm1712, %v2256, 0.0
        %2527 = vadd.xlane.f32.xlu0 %v2526
        %v2528 = vpop.xlane.xlu0 %2527
        %v2529 = vsel %vm1712, %v2258, 0.0
        %2530 = vadd.xlane.f32.xlu0 %v2529
        %v2531 = vpop.xlane.xlu0 %2530
        %v2532 = vsel %vm1712, %v2260, 0.0
        %2533 = vadd.xlane.f32.xlu0 %v2532
        %v2534 = vpop.xlane.xlu0 %2533
        %v2535 = vsel %vm1712, %v2262, 0.0
        %2536 = vadd.xlane.f32.xlu0 %v2535
        %v2537 = vpop.xlane.xlu0 %2536
        %v2538 = vsel %vm1712, %v2264, 0.0
        %2539 = vadd.xlane.f32.xlu0 %v2538
        %v2540 = vpop.xlane.xlu0 %2539
        %v2541 = vsel %vm1712, %v2266, 0.0
        %2542 = vadd.xlane.f32.xlu0 %v2541
        %v2543 = vpop.xlane.xlu0 %2542
        %v2544 = vsel %vm1712, %v2268, 0.0
        %2545 = vadd.xlane.f32.xlu0 %v2544
        %v2546 = vpop.xlane.xlu0 %2545
        %v2547 = vsel %vm1712, %v2270, 0.0
        %2548 = vadd.xlane.f32.xlu0 %v2547
        %v2549 = vpop.xlane.xlu0 %2548
        %v2550 = vsel %vm1712, %v2272, 0.0
        %2551 = vadd.xlane.f32.xlu0 %v2550
        %v2552 = vpop.xlane.xlu0 %2551
        %v2553 = vsel %vm1712, %v2274, 0.0
        %2554 = vadd.xlane.f32.xlu0 %v2553
        %v2555 = vpop.xlane.xlu0 %2554
        %v2556 = vsel %vm1712, %v2276, 0.0
        %2557 = vadd.xlane.f32.xlu0 %v2556
        %v2558 = vpop.xlane.xlu0 %2557
        %v2559 = vsel %vm1712, %v2278, 0.0
        %2560 = vadd.xlane.f32.xlu0 %v2559
        %v2561 = vpop.xlane.xlu0 %2560
        %v2562 = vsel %vm1712, %v2280, 0.0
        %2563 = vadd.xlane.f32.xlu0 %v2562
        %v2564 = vpop.xlane.xlu0 %2563
        %v2565 = vsel %vm1712, %v2282, 0.0
        %2566 = vadd.xlane.f32.xlu0 %v2565
        %v2567 = vpop.xlane.xlu0 %2566
        %v2568 = vsel %vm1712, %v2284, 0.0
        %2569 = vadd.xlane.f32.xlu0 %v2568
        %v2570 = vpop.xlane.xlu0 %2569
        %v2571 = vsel %vm1712, %v2286, 0.0
        %2572 = vadd.xlane.f32.xlu0 %v2571
        %v2573 = vpop.xlane.xlu0 %2572
        %v2574 = vsel %vm1712, %v2288, 0.0
        %2575 = vadd.xlane.f32.xlu0 %v2574
        %v2576 = vpop.xlane.xlu0 %2575
        %v2577 = vsel %vm1712, %v2290, 0.0
        %2578 = vadd.xlane.f32.xlu0 %v2577
        %v2579 = vpop.xlane.xlu0 %2578
        %v2580 = vsel %vm1712, %v2292, 0.0
        %2581 = vadd.xlane.f32.xlu0 %v2580
        %v2582 = vpop.xlane.xlu0 %2581
        %v2583 = vsel %vm1712, %v2294, 0.0
        %2584 = vadd.xlane.f32.xlu0 %v2583
        %v2585 = vpop.xlane.xlu0 %2584
        %v2586 = vsel %vm1712, %v2296, 0.0
        %2587 = vadd.xlane.f32.xlu0 %v2586
        %v2588 = vpop.xlane.xlu0 %2587
        %v2589 = vsel %vm1712, %v2298, 0.0
        %2590 = vadd.xlane.f32.xlu0 %v2589
        %v2591 = vpop.xlane.xlu0 %2590
        %v2592 = vsel %vm1712, %v2300, 0.0
        %2593 = vadd.xlane.f32.xlu0 %v2592
        %v2594 = vpop.xlane.xlu0 %2593
        %v2595 = vsel %vm1712, %v2302, 0.0
        %2596 = vadd.xlane.f32.xlu0 %v2595
        %v2597 = vpop.xlane.xlu0 %2596
        %v2598 = vsel %vm1712, %v2304, 0.0
        %2599 = vadd.xlane.f32.xlu0 %v2598
        %v2600 = vpop.xlane.xlu0 %2599
        %v2601 = vsel %vm1712, %v2306, 0.0
        %2602 = vadd.xlane.f32.xlu0 %v2601
        %v2603 = vpop.xlane.xlu0 %2602
        %v2604 = vsel %vm1712, %v2308, 0.0
        %2605 = vadd.xlane.f32.xlu0 %v2604
        %v2606 = vpop.xlane.xlu0 %2605
        %v2607 = vsel %vm1712, %v2310, 0.0
        %2608 = vadd.xlane.f32.xlu0 %v2607
        %v2609 = vpop.xlane.xlu0 %2608
        %v2610 = vsel %vm1712, %v2312, 0.0
        %2611 = vadd.xlane.f32.xlu0 %v2610
        %v2612 = vpop.xlane.xlu0 %2611
        %v2613 = vsel %vm1712, %v2314, 0.0
        %2614 = vadd.xlane.f32.xlu0 %v2613
        %v2615 = vpop.xlane.xlu0 %2614
        %v2616 = vsel %vm1712, %v2316, 0.0
        %2617 = vadd.xlane.f32.xlu0 %v2616
        %v2618 = vpop.xlane.xlu0 %2617
        %v2619 = vsel %vm1712, %v2318, 0.0
        %2620 = vadd.xlane.f32.xlu0 %v2619
        %v2621 = vpop.xlane.xlu0 %2620
        %v2622 = vsel %vm1712, %v2320, 0.0
        %2623 = vadd.xlane.f32.xlu0 %v2622
        %v2624 = vpop.xlane.xlu0 %2623
        %v2625 = vsel %vm1712, %v2322, 0.0
        %2626 = vadd.xlane.f32.xlu0 %v2625
        %v2627 = vpop.xlane.xlu0 %2626
        %v2628 = vsel %vm1712, %v2324, 0.0
        %2629 = vadd.xlane.f32.xlu0 %v2628
        %v2630 = vpop.xlane.xlu0 %2629
        %v2631 = vsel %vm1712, %v2326, 0.0
        %2632 = vadd.xlane.f32.xlu0 %v2631
        %v2633 = vpop.xlane.xlu0 %2632
        %v2634 = vsel %vm1712, %v2328, 0.0
        %2635 = vadd.xlane.f32.xlu0 %v2634
        %v2636 = vpop.xlane.xlu0 %2635
        %v2637 = vsel %vm1712, %v2330, 0.0
        %2638 = vadd.xlane.f32.xlu0 %v2637
        %v2639 = vpop.xlane.xlu0 %2638
        %v2640 = vsel %vm1712, %v2332, 0.0
        %2641 = vadd.xlane.f32.xlu0 %v2640
        %v2642 = vpop.xlane.xlu0 %2641
        %v2643 = vsel %vm1712, %v2334, 0.0
        %2644 = vadd.xlane.f32.xlu0 %v2643
        %v2645 = vpop.xlane.xlu0 %2644
        %v2646 = vsel %vm1712, %v2336, 0.0
        %2647 = vadd.xlane.f32.xlu0 %v2646
        %v2648 = vpop.xlane.xlu0 %2647
        %v2649 = vsel %vm1712, %v2338, 0.0
        %2650 = vadd.xlane.f32.xlu0 %v2649
        %v2651 = vpop.xlane.xlu0 %2650
        %v2652 = vsel %vm1712, %v2340, 0.0
        %2653 = vadd.xlane.f32.xlu0 %v2652
        %v2654 = vpop.xlane.xlu0 %2653
        %v2655 = vsel %vm1712, %v2342, 0.0
        %2656 = vadd.xlane.f32.xlu0 %v2655
        %v2657 = vpop.xlane.xlu0 %2656
        %v2658 = vsel %vm1712, %v2344, 0.0
        %2659 = vadd.xlane.f32.xlu0 %v2658
        %v2660 = vpop.xlane.xlu0 %2659
        %v2661 = vsel %vm1712, %v2346, 0.0
        %2662 = vadd.xlane.f32.xlu0 %v2661
        %v2663 = vpop.xlane.xlu0 %2662
        %v2664 = vsel %vm1712, %v2348, 0.0
        %2665 = vadd.xlane.f32.xlu0 %v2664
        %v2666 = vpop.xlane.xlu0 %2665
        %v2667 = vsel %vm1712, %v2350, 0.0
        %2668 = vadd.xlane.f32.xlu0 %v2667
        %v2669 = vpop.xlane.xlu0 %2668
        %v2670 = vsel %vm1712, %v2352, 0.0
        %2671 = vadd.xlane.f32.xlu0 %v2670
        %v2672 = vpop.xlane.xlu0 %2671
        %v2673 = vsel %vm1712, %v2354, 0.0
        %2674 = vadd.xlane.f32.xlu0 %v2673
        %v2675 = vpop.xlane.xlu0 %2674
        %v2676 = vsel %vm1712, %v2356, 0.0
        %2677 = vadd.xlane.f32.xlu0 %v2676
        %v2678 = vpop.xlane.xlu0 %2677
        %v2679 = vsel %vm1712, %v2358, 0.0
        %2680 = vadd.xlane.f32.xlu0 %v2679
        %v2681 = vpop.xlane.xlu0 %2680
        %v2682 = vsel %vm1712, %v2360, 0.0
        %2683 = vadd.xlane.f32.xlu0 %v2682
        %v2684 = vpop.xlane.xlu0 %2683
        %v2685 = vsel %vm1712, %v2362, 0.0
        %2686 = vadd.xlane.f32.xlu0 %v2685
        %v2687 = vpop.xlane.xlu0 %2686
        %v2688 = vsel %vm1712, %v2364, 0.0
        %2689 = vadd.xlane.f32.xlu0 %v2688
        %v2690 = vpop.xlane.xlu0 %2689
        %v2691 = vsel %vm1712, %v2366, 0.0
        %2692 = vadd.xlane.f32.xlu0 %v2691
        %v2693 = vpop.xlane.xlu0 %2692
        %v2694 = vsel %vm1712, %v2368, 0.0
        %2695 = vadd.xlane.f32.xlu0 %v2694
        %v2696 = vpop.xlane.xlu0 %2695
        %v2697 = vsel %vm1712, %v2370, 0.0
        %2698 = vadd.xlane.f32.xlu0 %v2697
        %v2699 = vpop.xlane.xlu0 %2698
        %v2700 = vsel %vm1712, %v2372, 0.0
        %2701 = vadd.xlane.f32.xlu0 %v2700
        %v2702 = vpop.xlane.xlu0 %2701
        %v2703 = vsel %vm1712, %v2374, 0.0
        %2704 = vadd.xlane.f32.xlu0 %v2703
        %v2705 = vpop.xlane.xlu0 %2704
        %v2706 = vsel %vm1712, %v2376, 0.0
        %2707 = vadd.xlane.f32.xlu0 %v2706
        %v2708 = vpop.xlane.xlu0 %2707
        %v2709 = vsel %vm1712, %v2378, 0.0
        %2710 = vadd.xlane.f32.xlu0 %v2709
        %v2711 = vpop.xlane.xlu0 %2710
        %v2712 = vsel %vm1712, %v2380, 0.0
        %2713 = vadd.xlane.f32.xlu0 %v2712
        %v2714 = vpop.xlane.xlu0 %2713
        %v2715 = vsel %vm1712, %v2382, 0.0
        %2716 = vadd.xlane.f32.xlu0 %v2715
        %v2717 = vpop.xlane.xlu0 %2716
        %v2718 = vsel %vm1712, %v2384, 0.0
        %2719 = vadd.xlane.f32.xlu0 %v2718
        %v2720 = vpop.xlane.xlu0 %2719
        %v2721 = vsel %vm1712, %v2386, 0.0
        %2722 = vadd.xlane.f32.xlu0 %v2721
        %v2723 = vpop.xlane.xlu0 %2722
        %v2724 = vsel %vm1712, %v2388, 0.0
        %2725 = vadd.xlane.f32.xlu0 %v2724
        %v2726 = vpop.xlane.xlu0 %2725
        %v2727 = vsel %vm1712, %v2390, 0.0
        %2728 = vadd.xlane.f32.xlu0 %v2727
        %v2729 = vpop.xlane.xlu0 %2728
        %v2730 = vsel %vm1712, %v2392, 0.0
        %2731 = vadd.xlane.f32.xlu0 %v2730
        %v2732 = vpop.xlane.xlu0 %2731
        %v2733 = vsel %vm1712, %v2394, 0.0
        %2734 = vadd.xlane.f32.xlu0 %v2733
        %v2735 = vpop.xlane.xlu0 %2734
        %v2736 = vsel %vm1712, %v2396, 0.0
        %2737 = vadd.xlane.f32.xlu0 %v2736
        %v2738 = vpop.xlane.xlu0 %2737
        %v2739 = vsel %vm1712, %v2398, 0.0
        %2740 = vadd.xlane.f32.xlu0 %v2739
        %v2741 = vpop.xlane.xlu0 %2740
        %v2742 = vsel %vm1712, %v2400, 0.0
        %2743 = vadd.xlane.f32.xlu0 %v2742
        %v2744 = vpop.xlane.xlu0 %2743
        %v2745 = vsel %vm1712, %v2402, 0.0
        %2746 = vadd.xlane.f32.xlu0 %v2745
        %v2747 = vpop.xlane.xlu0 %2746
        %v2748 = vsel %vm1712, %v2404, 0.0
        %2749 = vadd.xlane.f32.xlu0 %v2748
        %v2750 = vpop.xlane.xlu0 %2749
        %v2751 = vsel %vm1712, %v2406, 0.0
        %2752 = vadd.xlane.f32.xlu0 %v2751
        %v2753 = vpop.xlane.xlu0 %2752
        %v2754 = vsel %vm1712, %v2408, 0.0
        %2755 = vadd.xlane.f32.xlu0 %v2754
        %v2756 = vpop.xlane.xlu0 %2755
        %v2757 = vsel %vm1712, %v2410, 0.0
        %2758 = vadd.xlane.f32.xlu0 %v2757
        %v2759 = vpop.xlane.xlu0 %2758
        %v2760 = vsel %vm1712, %v2412, 0.0
        %2761 = vadd.xlane.f32.xlu0 %v2760
        %v2762 = vpop.xlane.xlu0 %2761
        %v2763 = vsel %vm1712, %v2414, 0.0
        %2764 = vadd.xlane.f32.xlu0 %v2763
        %v2765 = vpop.xlane.xlu0 %2764
        %v2766 = vsel %vm1712, %v2416, 0.0
        %2767 = vadd.xlane.f32.xlu0 %v2766
        %v2768 = vpop.xlane.xlu0 %2767
        %v2769 = vsel %vm1712, %v2418, 0.0
        %2770 = vadd.xlane.f32.xlu0 %v2769
        %v2771 = vpop.xlane.xlu0 %2770
        %v2772 = vsel %vm1712, %v2420, 0.0
        %2773 = vadd.xlane.f32.xlu0 %v2772
        %v2774 = vpop.xlane.xlu0 %2773
        %v2775 = vsel %vm1712, %v2422, 0.0
        %2776 = vadd.xlane.f32.xlu0 %v2775
        %v2777 = vpop.xlane.xlu0 %2776
        %v2778 = vsel %vm1712, %v2424, 0.0
        %2779 = vadd.xlane.f32.xlu0 %v2778
        %v2780 = vpop.xlane.xlu0 %2779
        %v2781 = vsel %vm1712, %v2426, 0.0
        %2782 = vadd.xlane.f32.xlu0 %v2781
        %v2783 = vpop.xlane.xlu0 %2782
        %v2784 = vsel %vm1712, %v2428, 0.0
        %2785 = vadd.xlane.f32.xlu0 %v2784
        %v2786 = vpop.xlane.xlu0 %2785
        %v2787 = vsel %vm1712, %v2430, 0.0
        %2788 = vadd.xlane.f32.xlu0 %v2787
        %v2789 = vpop.xlane.xlu0 %2788
        %v2790 = vsel %vm1712, %v2432, 0.0
        %2791 = vadd.xlane.f32.xlu0 %v2790
        %v2792 = vpop.xlane.xlu0 %2791
        %v2793 = vsel %vm1712, %v2434, 0.0
        %2794 = vadd.xlane.f32.xlu0 %v2793
        %v2795 = vpop.xlane.xlu0 %2794
        %v2796 = vsel %vm1712, %v2436, 0.0
        %2797 = vadd.xlane.f32.xlu0 %v2796
        %v2798 = vpop.xlane.xlu0 %2797
        %v2799 = vsel %vm1712, %v2438, 0.0
        %2800 = vadd.xlane.f32.xlu0 %v2799
        %v2801 = vpop.xlane.xlu0 %2800
        %v2802 = vsel %vm1712, %v2440, 0.0
        %2803 = vadd.xlane.f32.xlu0 %v2802
        %v2804 = vpop.xlane.xlu0 %2803
        %v2805 = vsel %vm1712, %v2442, 0.0
        %2806 = vadd.xlane.f32.xlu0 %v2805
        %v2807 = vpop.xlane.xlu0 %2806
        %v2808 = vsel %vm1712, %v2444, 0.0
        %2809 = vadd.xlane.f32.xlu0 %v2808
        %v2810 = vpop.xlane.xlu0 %2809
        %v2811 = vsel %vm1712, %v2446, 0.0
        %2812 = vadd.xlane.f32.xlu0 %v2811
        %v2813 = vpop.xlane.xlu0 %2812
        %v2814 = vsel %vm1712, %v2448, 0.0
        %2815 = vadd.xlane.f32.xlu0 %v2814
        %v2816 = vpop.xlane.xlu0 %2815
        %v2817 = vsel %vm1712, %v2450, 0.0
        %2818 = vadd.xlane.f32.xlu0 %v2817
        %v2819 = vpop.xlane.xlu0 %2818
        %v2820 = vsel %vm1712, %v2452, 0.0
        %2821 = vadd.xlane.f32.xlu0 %v2820
        %v2822 = vpop.xlane.xlu0 %2821
        %v2823 = vsel %vm1712, %v2454, 0.0
        %2824 = vadd.xlane.f32.xlu0 %v2823
        %v2825 = vpop.xlane.xlu0 %2824
        %v2826 = vsel %vm1712, %v2456, 0.0
        %2827 = vadd.xlane.f32.xlu0 %v2826
        %v2828 = vpop.xlane.xlu0 %2827
        %v2829 = vsel %vm1712, %v2458, 0.0
        %2830 = vadd.xlane.f32.xlu0 %v2829
        %v2831 = vpop.xlane.xlu0 %2830
        %v2832 = vsel %vm1712, %v2460, 0.0
        %2833 = vadd.xlane.f32.xlu0 %v2832
        %v2834 = vpop.xlane.xlu0 %2833
        %v2835 = vsel %vm1712, %v2462, 0.0
        %2836 = vadd.xlane.f32.xlu0 %v2835
        %v2837 = vpop.xlane.xlu0 %2836
        %v2838 = vsel %vm1712, %v2464, 0.0
        %2839 = vadd.xlane.f32.xlu0 %v2838
        %v2840 = vpop.xlane.xlu0 %2839
        %v2841 = vsel %vm1712, %v2466, 0.0
        %2842 = vadd.xlane.f32.xlu0 %v2841
        %v2843 = vpop.xlane.xlu0 %2842
        %v2844 = vsel %vm1712, %v2468, 0.0
        %2845 = vadd.xlane.f32.xlu0 %v2844
        %v2846 = vpop.xlane.xlu0 %2845
        %v2847 = vsel %vm1712, %v2470, 0.0
        %2848 = vadd.xlane.f32.xlu0 %v2847
        %v2849 = vpop.xlane.xlu0 %2848
        %v2850 = vsel %vm1712, %v2472, 0.0
        %2851 = vadd.xlane.f32.xlu0 %v2850
        %v2852 = vpop.xlane.xlu0 %2851
        %v2853 = vsel %vm1712, %v2474, 0.0
        %2854 = vadd.xlane.f32.xlu0 %v2853
        %v2855 = vpop.xlane.xlu0 %2854
        %v2856 = vsel %vm1712, %v2476, 0.0
        %2857 = vadd.xlane.f32.xlu0 %v2856
        %v2858 = vpop.xlane.xlu0 %2857
        %v2859 = vsel %vm1712, %v2478, 0.0
        %2860 = vadd.xlane.f32.xlu0 %v2859
        %v2861 = vpop.xlane.xlu0 %2860
        %v2862 = vsel %vm1712, %v2480, 0.0
        %2863 = vadd.xlane.f32.xlu0 %v2862
        %v2864 = vpop.xlane.xlu0 %2863
        %v2865 = vrcp.pop %v2483
        %v2866 = vmul.f32 %v2226, %v2865
        %v2867 = vrcp.pop %v2486
        %v2868 = vmul.f32 %v2228, %v2867
        %v2869 = vrcp.pop %v2489
        %v2870 = vmul.f32 %v2230, %v2869
        %v2871 = vrcp.pop %v2492
        %v2872 = vmul.f32 %v2232, %v2871
        %v2873 = vrcp.pop %v2495
        %v2874 = vmul.f32 %v2234, %v2873
        %v2875 = vrcp.pop %v2498
        %v2876 = vmul.f32 %v2236, %v2875
        %v2877 = vrcp.pop %v2501
        %v2878 = vmul.f32 %v2238, %v2877
        %v2879 = vrcp.pop %v2504
        %v2880 = vmul.f32 %v2240, %v2879
        %v2881 = vrcp.pop %v2507
        %v2882 = vmul.f32 %v2242, %v2881
        %v2883 = vrcp.pop %v2510
        %v2884 = vmul.f32 %v2244, %v2883
        %v2885 = vrcp.pop %v2513
        %v2886 = vmul.f32 %v2246, %v2885
        %v2887 = vrcp.pop %v2516
        %v2888 = vmul.f32 %v2248, %v2887
        %v2889 = vrcp.pop %v2519
        %v2890 = vmul.f32 %v2250, %v2889
        %v2891 = vrcp.pop %v2522
        %v2892 = vmul.f32 %v2252, %v2891
        %v2893 = vrcp.pop %v2525
        %v2894 = vmul.f32 %v2254, %v2893
        %v2895 = vrcp.pop %v2528
        %v2896 = vmul.f32 %v2256, %v2895
        %v2897 = vrcp.pop %v2531
        %v2898 = vmul.f32 %v2258, %v2897
        %v2899 = vrcp.pop %v2534
        %v2900 = vmul.f32 %v2260, %v2899
        %v2901 = vrcp.pop %v2537
        %v2902 = vmul.f32 %v2262, %v2901
        %v2903 = vrcp.pop %v2540
        %v2904 = vmul.f32 %v2264, %v2903
        %v2905 = vrcp.pop %v2543
        %v2906 = vmul.f32 %v2266, %v2905
        %v2907 = vrcp.pop %v2546
        %v2908 = vmul.f32 %v2268, %v2907
        %v2909 = vrcp.pop %v2549
        %v2910 = vmul.f32 %v2270, %v2909
        %v2911 = vrcp.pop %v2552
        %v2912 = vmul.f32 %v2272, %v2911
        %v2913 = vrcp.pop %v2555
        %v2914 = vmul.f32 %v2274, %v2913
        %v2915 = vrcp.pop %v2558
        %v2916 = vmul.f32 %v2276, %v2915
        %v2917 = vrcp.pop %v2561
        %v2918 = vmul.f32 %v2278, %v2917
        %v2919 = vrcp.pop %v2564
        %v2920 = vmul.f32 %v2280, %v2919
        %v2921 = vrcp.pop %v2567
        %v2922 = vmul.f32 %v2282, %v2921
        %v2923 = vrcp.pop %v2570
        %v2924 = vmul.f32 %v2284, %v2923
        %v2925 = vrcp.pop %v2573
        %v2926 = vmul.f32 %v2286, %v2925
        %v2927 = vrcp.pop %v2576
        %v2928 = vmul.f32 %v2288, %v2927
        %v2929 = vrcp.pop %v2579
        %v2930 = vmul.f32 %v2290, %v2929
        %v2931 = vrcp.pop %v2582
        %v2932 = vmul.f32 %v2292, %v2931
        %v2933 = vrcp.pop %v2585
        %v2934 = vmul.f32 %v2294, %v2933
        %v2935 = vrcp.pop %v2588
        %v2936 = vmul.f32 %v2296, %v2935
        %v2937 = vrcp.pop %v2591
        %v2938 = vmul.f32 %v2298, %v2937
        %v2939 = vrcp.pop %v2594
        %v2940 = vmul.f32 %v2300, %v2939
        %v2941 = vrcp.pop %v2597
        %v2942 = vmul.f32 %v2302, %v2941
        %v2943 = vrcp.pop %v2600
        %v2944 = vmul.f32 %v2304, %v2943
        %v2945 = vrcp.pop %v2603
        %v2946 = vmul.f32 %v2306, %v2945
        %v2947 = vrcp.pop %v2606
        %v2948 = vmul.f32 %v2308, %v2947
        %v2949 = vrcp.pop %v2609
        %v2950 = vmul.f32 %v2310, %v2949
        %v2951 = vrcp.pop %v2612
        %v2952 = vmul.f32 %v2312, %v2951
        %v2953 = vrcp.pop %v2615
        %v2954 = vmul.f32 %v2314, %v2953
        %v2955 = vrcp.pop %v2618
        %v2956 = vmul.f32 %v2316, %v2955
        %v2957 = vrcp.pop %v2621
        %v2958 = vmul.f32 %v2318, %v2957
        %v2959 = vrcp.pop %v2624
        %v2960 = vmul.f32 %v2320, %v2959
        %v2961 = vrcp.pop %v2627
        %v2962 = vmul.f32 %v2322, %v2961
        %v2963 = vrcp.pop %v2630
        %v2964 = vmul.f32 %v2324, %v2963
        %v2965 = vrcp.pop %v2633
        %v2966 = vmul.f32 %v2326, %v2965
        %v2967 = vrcp.pop %v2636
        %v2968 = vmul.f32 %v2328, %v2967
        %v2969 = vrcp.pop %v2639
        %v2970 = vmul.f32 %v2330, %v2969
        %v2971 = vrcp.pop %v2642
        %v2972 = vmul.f32 %v2332, %v2971
        %v2973 = vrcp.pop %v2645
        %v2974 = vmul.f32 %v2334, %v2973
        %v2975 = vrcp.pop %v2648
        %v2976 = vmul.f32 %v2336, %v2975
        %v2977 = vrcp.pop %v2651
        %v2978 = vmul.f32 %v2338, %v2977
        %v2979 = vrcp.pop %v2654
        %v2980 = vmul.f32 %v2340, %v2979
        %v2981 = vrcp.pop %v2657
        %v2982 = vmul.f32 %v2342, %v2981
        %v2983 = vrcp.pop %v2660
        %v2984 = vmul.f32 %v2344, %v2983
        %v2985 = vrcp.pop %v2663
        %v2986 = vmul.f32 %v2346, %v2985
        %v2987 = vrcp.pop %v2666
        %v2988 = vmul.f32 %v2348, %v2987
        %v2989 = vrcp.pop %v2669
        %v2990 = vmul.f32 %v2350, %v2989
        %v2991 = vrcp.pop %v2672
        %v2992 = vmul.f32 %v2352, %v2991
        %v2993 = vrcp.pop %v2675
        %v2994 = vmul.f32 %v2354, %v2993
        %v2995 = vrcp.pop %v2678
        %v2996 = vmul.f32 %v2356, %v2995
        %v2997 = vrcp.pop %v2681
        %v2998 = vmul.f32 %v2358, %v2997
        %v2999 = vrcp.pop %v2684
        %v3000 = vmul.f32 %v2360, %v2999
        %v3001 = vrcp.pop %v2687
        %v3002 = vmul.f32 %v2362, %v3001
        %v3003 = vrcp.pop %v2690
        %v3004 = vmul.f32 %v2364, %v3003
        %v3005 = vrcp.pop %v2693
        %v3006 = vmul.f32 %v2366, %v3005
        %v3007 = vrcp.pop %v2696
        %v3008 = vmul.f32 %v2368, %v3007
        %v3009 = vrcp.pop %v2699
        %v3010 = vmul.f32 %v2370, %v3009
        %v3011 = vrcp.pop %v2702
        %v3012 = vmul.f32 %v2372, %v3011
        %v3013 = vrcp.pop %v2705
        %v3014 = vmul.f32 %v2374, %v3013
        %v3015 = vrcp.pop %v2708
        %v3016 = vmul.f32 %v2376, %v3015
        %v3017 = vrcp.pop %v2711
        %v3018 = vmul.f32 %v2378, %v3017
        %v3019 = vrcp.pop %v2714
        %v3020 = vmul.f32 %v2380, %v3019
        %v3021 = vrcp.pop %v2717
        %v3022 = vmul.f32 %v2382, %v3021
        %v3023 = vrcp.pop %v2720
        %v3024 = vmul.f32 %v2384, %v3023
        %v3025 = vrcp.pop %v2723
        %v3026 = vmul.f32 %v2386, %v3025
        %v3027 = vrcp.pop %v2726
        %v3028 = vmul.f32 %v2388, %v3027
        %v3029 = vrcp.pop %v2729
        %v3030 = vmul.f32 %v2390, %v3029
        %v3031 = vrcp.pop %v2732
        %v3032 = vmul.f32 %v2392, %v3031
        %v3033 = vrcp.pop %v2735
        %v3034 = vmul.f32 %v2394, %v3033
        %v3035 = vrcp.pop %v2738
        %v3036 = vmul.f32 %v2396, %v3035
        %v3037 = vrcp.pop %v2741
        %v3038 = vmul.f32 %v2398, %v3037
        %v3039 = vrcp.pop %v2744
        %v3040 = vmul.f32 %v2400, %v3039
        %v3041 = vrcp.pop %v2747
        %v3042 = vmul.f32 %v2402, %v3041
        %v3043 = vrcp.pop %v2750
        %v3044 = vmul.f32 %v2404, %v3043
        %v3045 = vrcp.pop %v2753
        %v3046 = vmul.f32 %v2406, %v3045
        %v3047 = vrcp.pop %v2756
        %v3048 = vmul.f32 %v2408, %v3047
        %v3049 = vrcp.pop %v2759
        %v3050 = vmul.f32 %v2410, %v3049
        %v3051 = vrcp.pop %v2762
        %v3052 = vmul.f32 %v2412, %v3051
        %v3053 = vrcp.pop %v2765
        %v3054 = vmul.f32 %v2414, %v3053
        %v3055 = vrcp.pop %v2768
        %v3056 = vmul.f32 %v2416, %v3055
        %v3057 = vrcp.pop %v2771
        %v3058 = vmul.f32 %v2418, %v3057
        %v3059 = vrcp.pop %v2774
        %v3060 = vmul.f32 %v2420, %v3059
        %v3061 = vrcp.pop %v2777
        %v3062 = vmul.f32 %v2422, %v3061
        %v3063 = vrcp.pop %v2780
        %v3064 = vmul.f32 %v2424, %v3063
        %v3065 = vrcp.pop %v2783
        %v3066 = vmul.f32 %v2426, %v3065
        %v3067 = vrcp.pop %v2786
        %v3068 = vmul.f32 %v2428, %v3067
        %v3069 = vrcp.pop %v2789
        %v3070 = vmul.f32 %v2430, %v3069
        %v3071 = vrcp.pop %v2792
        %v3072 = vmul.f32 %v2432, %v3071
        %v3073 = vrcp.pop %v2795
        %v3074 = vmul.f32 %v2434, %v3073
        %v3075 = vrcp.pop %v2798
        %v3076 = vmul.f32 %v2436, %v3075
        %v3077 = vrcp.pop %v2801
        %v3078 = vmul.f32 %v2438, %v3077
        %v3079 = vrcp.pop %v2804
        %v3080 = vmul.f32 %v2440, %v3079
        %v3081 = vrcp.pop %v2807
        %v3082 = vmul.f32 %v2442, %v3081
        %v3083 = vrcp.pop %v2810
        %v3084 = vmul.f32 %v2444, %v3083
        %v3085 = vrcp.pop %v2813
        %v3086 = vmul.f32 %v2446, %v3085
        %v3087 = vrcp.pop %v2816
        %v3088 = vmul.f32 %v2448, %v3087
        %v3089 = vrcp.pop %v2819
        %v3090 = vmul.f32 %v2450, %v3089
        %v3091 = vrcp.pop %v2822
        %v3092 = vmul.f32 %v2452, %v3091
        %v3093 = vrcp.pop %v2825
        %v3094 = vmul.f32 %v2454, %v3093
        %v3095 = vrcp.pop %v2828
        %v3096 = vmul.f32 %v2456, %v3095
        %v3097 = vrcp.pop %v2831
        %v3098 = vmul.f32 %v2458, %v3097
        %v3099 = vrcp.pop %v2834
        %v3100 = vmul.f32 %v2460, %v3099
        %v3101 = vrcp.pop %v2837
        %v3102 = vmul.f32 %v2462, %v3101
        %v3103 = vrcp.pop %v2840
        %v3104 = vmul.f32 %v2464, %v3103
        %v3105 = vrcp.pop %v2843
        %v3106 = vmul.f32 %v2466, %v3105
        %v3107 = vrcp.pop %v2846
        %v3108 = vmul.f32 %v2468, %v3107
        %v3109 = vrcp.pop %v2849
        %v3110 = vmul.f32 %v2470, %v3109
        %v3111 = vrcp.pop %v2852
        %v3112 = vmul.f32 %v2472, %v3111
        %v3113 = vrcp.pop %v2855
        %v3114 = vmul.f32 %v2474, %v3113
        %v3115 = vrcp.pop %v2858
        %v3116 = vmul.f32 %v2476, %v3115
        %v3117 = vrcp.pop %v2861
        %v3118 = vmul.f32 %v2478, %v3117
        %v3119 = vrcp.pop %v2864
        %v3120 = vmul.f32 %v2480, %v3119
        %v3121 = vsel %vm1580, %v937, -inf
        %v3122 = vsel %vm1580, %v942, -inf
        %v3123 = vsel %vm1580, %v947, -inf
        %v3124 = vsel %vm1580, %v952, -inf
        %v3125 = vsel %vm1580, %v957, -inf
        %v3126 = vsel %vm1580, %v962, -inf
        %v3127 = vsel %vm1580, %v967, -inf
        %v3128 = vsel %vm1580, %v972, -inf
        %v3129 = vsel %vm1580, %v977, -inf
        %v3130 = vsel %vm1580, %v982, -inf
        %v3131 = vsel %vm1580, %v987, -inf
        %v3132 = vsel %vm1580, %v992, -inf
        %v3133 = vsel %vm1580, %v997, -inf
        %v3134 = vsel %vm1580, %v1002, -inf
        %v3135 = vsel %vm1580, %v1007, -inf
        %v3136 = vsel %vm1580, %v1012, -inf
        %v3137 = vsel %vm1580, %v1017, -inf
        %v3138 = vsel %vm1580, %v1022, -inf
        %v3139 = vsel %vm1580, %v1027, -inf
        %v3140 = vsel %vm1580, %v1032, -inf
        %v3141 = vsel %vm1580, %v1037, -inf
        %v3142 = vsel %vm1580, %v1042, -inf
        %v3143 = vsel %vm1580, %v1047, -inf
        %v3144 = vsel %vm1580, %v1052, -inf
        %v3145 = vsel %vm1580, %v1057, -inf
        %v3146 = vsel %vm1580, %v1062, -inf
        %v3147 = vsel %vm1580, %v1067, -inf
        %v3148 = vsel %vm1580, %v1072, -inf
        %v3149 = vsel %vm1580, %v1077, -inf
        %v3150 = vsel %vm1580, %v1082, -inf
        %v3151 = vsel %vm1580, %v1087, -inf
        %v3152 = vsel %vm1580, %v1092, -inf
        %v3153 = vsel %vm1580, %v1097, -inf
        %v3154 = vsel %vm1580, %v1102, -inf
        %v3155 = vsel %vm1580, %v1107, -inf
        %v3156 = vsel %vm1580, %v1112, -inf
        %v3157 = vsel %vm1580, %v1117, -inf
        %v3158 = vsel %vm1580, %v1122, -inf
        %v3159 = vsel %vm1580, %v1127, -inf
        %v3160 = vsel %vm1580, %v1132, -inf
        %v3161 = vsel %vm1580, %v1137, -inf
        %v3162 = vsel %vm1580, %v1142, -inf
        %v3163 = vsel %vm1580, %v1147, -inf
        %v3164 = vsel %vm1580, %v1152, -inf
        %v3165 = vsel %vm1580, %v1157, -inf
        %v3166 = vsel %vm1580, %v1162, -inf
        %v3167 = vsel %vm1580, %v1167, -inf
        %v3168 = vsel %vm1580, %v1172, -inf
        %v3169 = vsel %vm1580, %v1177, -inf
        %v3170 = vsel %vm1580, %v1182, -inf
        %v3171 = vsel %vm1580, %v1187, -inf
        %v3172 = vsel %vm1580, %v1192, -inf
        %v3173 = vsel %vm1580, %v1197, -inf
        %v3174 = vsel %vm1580, %v1202, -inf
        %v3175 = vsel %vm1580, %v1207, -inf
        %v3176 = vsel %vm1580, %v1212, -inf
        %v3177 = vsel %vm1580, %v1217, -inf
        %v3178 = vsel %vm1580, %v1222, -inf
        %v3179 = vsel %vm1580, %v1227, -inf
        %v3180 = vsel %vm1580, %v1232, -inf
        %v3181 = vsel %vm1580, %v1237, -inf
        %v3182 = vsel %vm1580, %v1242, -inf
        %v3183 = vsel %vm1580, %v1247, -inf
        %v3184 = vsel %vm1580, %v1252, -inf
        %v3185 = vsel %vm1580, %v1257, -inf
        %v3186 = vsel %vm1580, %v1262, -inf
        %v3187 = vsel %vm1580, %v1267, -inf
        %v3188 = vsel %vm1580, %v1272, -inf
        %v3189 = vsel %vm1580, %v1277, -inf
        %v3190 = vsel %vm1580, %v1282, -inf
        %v3191 = vsel %vm1580, %v1287, -inf
        %v3192 = vsel %vm1580, %v1292, -inf
        %v3193 = vsel %vm1580, %v1297, -inf
        %v3194 = vsel %vm1580, %v1302, -inf
        %v3195 = vsel %vm1580, %v1307, -inf
        %v3196 = vsel %vm1580, %v1312, -inf
        %v3197 = vsel %vm1580, %v1317, -inf
        %v3198 = vsel %vm1580, %v1322, -inf
        %v3199 = vsel %vm1580, %v1327, -inf
        %v3200 = vsel %vm1580, %v1332, -inf
        %v3201 = vsel %vm1580, %v1337, -inf
        %v3202 = vsel %vm1580, %v1342, -inf
        %v3203 = vsel %vm1580, %v1347, -inf
        %v3204 = vsel %vm1580, %v1352, -inf
        %v3205 = vsel %vm1580, %v1357, -inf
        %v3206 = vsel %vm1580, %v1362, -inf
        %v3207 = vsel %vm1580, %v1367, -inf
        %v3208 = vsel %vm1580, %v1372, -inf
        %v3209 = vsel %vm1580, %v1377, -inf
        %v3210 = vsel %vm1580, %v1382, -inf
        %v3211 = vsel %vm1580, %v1387, -inf
        %v3212 = vsel %vm1580, %v1392, -inf
        %v3213 = vsel %vm1580, %v1397, -inf
        %v3214 = vsel %vm1580, %v1402, -inf
        %v3215 = vsel %vm1580, %v1407, -inf
        %v3216 = vsel %vm1580, %v1412, -inf
        %v3217 = vsel %vm1580, %v1417, -inf
        %v3218 = vsel %vm1580, %v1422, -inf
        %v3219 = vsel %vm1580, %v1427, -inf
        %v3220 = vsel %vm1580, %v1432, -inf
        %v3221 = vsel %vm1580, %v1437, -inf
        %v3222 = vsel %vm1580, %v1442, -inf
        %v3223 = vsel %vm1580, %v1447, -inf
        %v3224 = vsel %vm1580, %v1452, -inf
        %v3225 = vsel %vm1580, %v1457, -inf
        %v3226 = vsel %vm1580, %v1462, -inf
        %v3227 = vsel %vm1580, %v1467, -inf
        %v3228 = vsel %vm1580, %v1472, -inf
        %v3229 = vsel %vm1580, %v1477, -inf
        %v3230 = vsel %vm1580, %v1482, -inf
        %v3231 = vsel %vm1580, %v1487, -inf
        %v3232 = vsel %vm1580, %v1492, -inf
        %v3233 = vsel %vm1580, %v1497, -inf
        %v3234 = vsel %vm1580, %v1502, -inf
        %v3235 = vsel %vm1580, %v1507, -inf
        %v3236 = vsel %vm1580, %v1512, -inf
        %v3237 = vsel %vm1580, %v1517, -inf
        %v3238 = vsel %vm1580, %v1522, -inf
        %v3239 = vsel %vm1580, %v1527, -inf
        %v3240 = vsel %vm1580, %v1532, -inf
        %v3241 = vsel %vm1580, %v1537, -inf
        %v3242 = vsel %vm1580, %v1542, -inf
        %v3243 = vsel %vm1580, %v1547, -inf
        %v3244 = vsel %vm1580, %v1552, -inf
        %v3245 = vsel %vm1580, %v1557, -inf
        %v3246 = vsel %vm1580, %v1562, -inf
        %v3247 = vsel %vm1580, %v1567, -inf
        %v3248 = vsel %vm1580, %v1572, -inf
        %v3249 = vsel %vm1712, %v3121, -inf
        %3250 = vmax.xlane.f32.xlu0 %v3249
        %v3251 = vpop.xlane.xlu0 %3250
        %v3252 = vsel %vm1712, %v3122, -inf
        %3253 = vmax.xlane.f32.xlu0 %v3252
        %v3254 = vpop.xlane.xlu0 %3253
        %v3255 = vsel %vm1712, %v3123, -inf
        %3256 = vmax.xlane.f32.xlu0 %v3255
        %v3257 = vpop.xlane.xlu0 %3256
        %v3258 = vsel %vm1712, %v3124, -inf
        %3259 = vmax.xlane.f32.xlu0 %v3258
        %v3260 = vpop.xlane.xlu0 %3259
        %v3261 = vsel %vm1712, %v3125, -inf
        %3262 = vmax.xlane.f32.xlu0 %v3261
        %v3263 = vpop.xlane.xlu0 %3262
        %v3264 = vsel %vm1712, %v3126, -inf
        %3265 = vmax.xlane.f32.xlu0 %v3264
        %v3266 = vpop.xlane.xlu0 %3265
        %v3267 = vsel %vm1712, %v3127, -inf
        %3268 = vmax.xlane.f32.xlu0 %v3267
        %v3269 = vpop.xlane.xlu0 %3268
        %v3270 = vsel %vm1712, %v3128, -inf
        %3271 = vmax.xlane.f32.xlu0 %v3270
        %v3272 = vpop.xlane.xlu0 %3271
        %v3273 = vsel %vm1712, %v3129, -inf
        %3274 = vmax.xlane.f32.xlu0 %v3273
        %v3275 = vpop.xlane.xlu0 %3274
        %v3276 = vsel %vm1712, %v3130, -inf
        %3277 = vmax.xlane.f32.xlu0 %v3276
        %v3278 = vpop.xlane.xlu0 %3277
        %v3279 = vsel %vm1712, %v3131, -inf
        %3280 = vmax.xlane.f32.xlu0 %v3279
        %v3281 = vpop.xlane.xlu0 %3280
        %v3282 = vsel %vm1712, %v3132, -inf
        %3283 = vmax.xlane.f32.xlu0 %v3282
        %v3284 = vpop.xlane.xlu0 %3283
        %v3285 = vsel %vm1712, %v3133, -inf
        %3286 = vmax.xlane.f32.xlu0 %v3285
        %v3287 = vpop.xlane.xlu0 %3286
        %v3288 = vsel %vm1712, %v3134, -inf
        %3289 = vmax.xlane.f32.xlu0 %v3288
        %v3290 = vpop.xlane.xlu0 %3289
        %v3291 = vsel %vm1712, %v3135, -inf
        %3292 = vmax.xlane.f32.xlu0 %v3291
        %v3293 = vpop.xlane.xlu0 %3292
        %v3294 = vsel %vm1712, %v3136, -inf
        %3295 = vmax.xlane.f32.xlu0 %v3294
        %v3296 = vpop.xlane.xlu0 %3295
        %v3297 = vsel %vm1712, %v3137, -inf
        %3298 = vmax.xlane.f32.xlu0 %v3297
        %v3299 = vpop.xlane.xlu0 %3298
        %v3300 = vsel %vm1712, %v3138, -inf
        %3301 = vmax.xlane.f32.xlu0 %v3300
        %v3302 = vpop.xlane.xlu0 %3301
        %v3303 = vsel %vm1712, %v3139, -inf
        %3304 = vmax.xlane.f32.xlu0 %v3303
        %v3305 = vpop.xlane.xlu0 %3304
        %v3306 = vsel %vm1712, %v3140, -inf
        %3307 = vmax.xlane.f32.xlu0 %v3306
        %v3308 = vpop.xlane.xlu0 %3307
        %v3309 = vsel %vm1712, %v3141, -inf
        %3310 = vmax.xlane.f32.xlu0 %v3309
        %v3311 = vpop.xlane.xlu0 %3310
        %v3312 = vsel %vm1712, %v3142, -inf
        %3313 = vmax.xlane.f32.xlu0 %v3312
        %v3314 = vpop.xlane.xlu0 %3313
        %v3315 = vsel %vm1712, %v3143, -inf
        %3316 = vmax.xlane.f32.xlu0 %v3315
        %v3317 = vpop.xlane.xlu0 %3316
        %v3318 = vsel %vm1712, %v3144, -inf
        %3319 = vmax.xlane.f32.xlu0 %v3318
        %v3320 = vpop.xlane.xlu0 %3319
        %v3321 = vsel %vm1712, %v3145, -inf
        %3322 = vmax.xlane.f32.xlu0 %v3321
        %v3323 = vpop.xlane.xlu0 %3322
        %v3324 = vsel %vm1712, %v3146, -inf
        %3325 = vmax.xlane.f32.xlu0 %v3324
        %v3326 = vpop.xlane.xlu0 %3325
        %v3327 = vsel %vm1712, %v3147, -inf
        %3328 = vmax.xlane.f32.xlu0 %v3327
        %v3329 = vpop.xlane.xlu0 %3328
        %v3330 = vsel %vm1712, %v3148, -inf
        %3331 = vmax.xlane.f32.xlu0 %v3330
        %v3332 = vpop.xlane.xlu0 %3331
        %v3333 = vsel %vm1712, %v3149, -inf
        %3334 = vmax.xlane.f32.xlu0 %v3333
        %v3335 = vpop.xlane.xlu0 %3334
        %v3336 = vsel %vm1712, %v3150, -inf
        %3337 = vmax.xlane.f32.xlu0 %v3336
        %v3338 = vpop.xlane.xlu0 %3337
        %v3339 = vsel %vm1712, %v3151, -inf
        %3340 = vmax.xlane.f32.xlu0 %v3339
        %v3341 = vpop.xlane.xlu0 %3340
        %v3342 = vsel %vm1712, %v3152, -inf
        %3343 = vmax.xlane.f32.xlu0 %v3342
        %v3344 = vpop.xlane.xlu0 %3343
        %v3345 = vsel %vm1712, %v3153, -inf
        %3346 = vmax.xlane.f32.xlu0 %v3345
        %v3347 = vpop.xlane.xlu0 %3346
        %v3348 = vsel %vm1712, %v3154, -inf
        %3349 = vmax.xlane.f32.xlu0 %v3348
        %v3350 = vpop.xlane.xlu0 %3349
        %v3351 = vsel %vm1712, %v3155, -inf
        %3352 = vmax.xlane.f32.xlu0 %v3351
        %v3353 = vpop.xlane.xlu0 %3352
        %v3354 = vsel %vm1712, %v3156, -inf
        %3355 = vmax.xlane.f32.xlu0 %v3354
        %v3356 = vpop.xlane.xlu0 %3355
        %v3357 = vsel %vm1712, %v3157, -inf
        %3358 = vmax.xlane.f32.xlu0 %v3357
        %v3359 = vpop.xlane.xlu0 %3358
        %v3360 = vsel %vm1712, %v3158, -inf
        %3361 = vmax.xlane.f32.xlu0 %v3360
        %v3362 = vpop.xlane.xlu0 %3361
        %v3363 = vsel %vm1712, %v3159, -inf
        %3364 = vmax.xlane.f32.xlu0 %v3363
        %v3365 = vpop.xlane.xlu0 %3364
        %v3366 = vsel %vm1712, %v3160, -inf
        %3367 = vmax.xlane.f32.xlu0 %v3366
        %v3368 = vpop.xlane.xlu0 %3367
        %v3369 = vsel %vm1712, %v3161, -inf
        %3370 = vmax.xlane.f32.xlu0 %v3369
        %v3371 = vpop.xlane.xlu0 %3370
        %v3372 = vsel %vm1712, %v3162, -inf
        %3373 = vmax.xlane.f32.xlu0 %v3372
        %v3374 = vpop.xlane.xlu0 %3373
        %v3375 = vsel %vm1712, %v3163, -inf
        %3376 = vmax.xlane.f32.xlu0 %v3375
        %v3377 = vpop.xlane.xlu0 %3376
        %v3378 = vsel %vm1712, %v3164, -inf
        %3379 = vmax.xlane.f32.xlu0 %v3378
        %v3380 = vpop.xlane.xlu0 %3379
        %v3381 = vsel %vm1712, %v3165, -inf
        %3382 = vmax.xlane.f32.xlu0 %v3381
        %v3383 = vpop.xlane.xlu0 %3382
        %v3384 = vsel %vm1712, %v3166, -inf
        %3385 = vmax.xlane.f32.xlu0 %v3384
        %v3386 = vpop.xlane.xlu0 %3385
        %v3387 = vsel %vm1712, %v3167, -inf
        %3388 = vmax.xlane.f32.xlu0 %v3387
        %v3389 = vpop.xlane.xlu0 %3388
        %v3390 = vsel %vm1712, %v3168, -inf
        %3391 = vmax.xlane.f32.xlu0 %v3390
        %v3392 = vpop.xlane.xlu0 %3391
        %v3393 = vsel %vm1712, %v3169, -inf
        %3394 = vmax.xlane.f32.xlu0 %v3393
        %v3395 = vpop.xlane.xlu0 %3394
        %v3396 = vsel %vm1712, %v3170, -inf
        %3397 = vmax.xlane.f32.xlu0 %v3396
        %v3398 = vpop.xlane.xlu0 %3397
        %v3399 = vsel %vm1712, %v3171, -inf
        %3400 = vmax.xlane.f32.xlu0 %v3399
        %v3401 = vpop.xlane.xlu0 %3400
        %v3402 = vsel %vm1712, %v3172, -inf
        %3403 = vmax.xlane.f32.xlu0 %v3402
        %v3404 = vpop.xlane.xlu0 %3403
        %v3405 = vsel %vm1712, %v3173, -inf
        %3406 = vmax.xlane.f32.xlu0 %v3405
        %v3407 = vpop.xlane.xlu0 %3406
        %v3408 = vsel %vm1712, %v3174, -inf
        %3409 = vmax.xlane.f32.xlu0 %v3408
        %v3410 = vpop.xlane.xlu0 %3409
        %v3411 = vsel %vm1712, %v3175, -inf
        %3412 = vmax.xlane.f32.xlu0 %v3411
        %v3413 = vpop.xlane.xlu0 %3412
        %v3414 = vsel %vm1712, %v3176, -inf
        %3415 = vmax.xlane.f32.xlu0 %v3414
        %v3416 = vpop.xlane.xlu0 %3415
        %v3417 = vsel %vm1712, %v3177, -inf
        %3418 = vmax.xlane.f32.xlu0 %v3417
        %v3419 = vpop.xlane.xlu0 %3418
        %v3420 = vsel %vm1712, %v3178, -inf
        %3421 = vmax.xlane.f32.xlu0 %v3420
        %v3422 = vpop.xlane.xlu0 %3421
        %v3423 = vsel %vm1712, %v3179, -inf
        %3424 = vmax.xlane.f32.xlu0 %v3423
        %v3425 = vpop.xlane.xlu0 %3424
        %v3426 = vsel %vm1712, %v3180, -inf
        %3427 = vmax.xlane.f32.xlu0 %v3426
        %v3428 = vpop.xlane.xlu0 %3427
        %v3429 = vsel %vm1712, %v3181, -inf
        %3430 = vmax.xlane.f32.xlu0 %v3429
        %v3431 = vpop.xlane.xlu0 %3430
        %v3432 = vsel %vm1712, %v3182, -inf
        %3433 = vmax.xlane.f32.xlu0 %v3432
        %v3434 = vpop.xlane.xlu0 %3433
        %v3435 = vsel %vm1712, %v3183, -inf
        %3436 = vmax.xlane.f32.xlu0 %v3435
        %v3437 = vpop.xlane.xlu0 %3436
        %v3438 = vsel %vm1712, %v3184, -inf
        %3439 = vmax.xlane.f32.xlu0 %v3438
        %v3440 = vpop.xlane.xlu0 %3439
        %v3441 = vsel %vm1712, %v3185, -inf
        %3442 = vmax.xlane.f32.xlu0 %v3441
        %v3443 = vpop.xlane.xlu0 %3442
        %v3444 = vsel %vm1712, %v3186, -inf
        %3445 = vmax.xlane.f32.xlu0 %v3444
        %v3446 = vpop.xlane.xlu0 %3445
        %v3447 = vsel %vm1712, %v3187, -inf
        %3448 = vmax.xlane.f32.xlu0 %v3447
        %v3449 = vpop.xlane.xlu0 %3448
        %v3450 = vsel %vm1712, %v3188, -inf
        %3451 = vmax.xlane.f32.xlu0 %v3450
        %v3452 = vpop.xlane.xlu0 %3451
        %v3453 = vsel %vm1712, %v3189, -inf
        %3454 = vmax.xlane.f32.xlu0 %v3453
        %v3455 = vpop.xlane.xlu0 %3454
        %v3456 = vsel %vm1712, %v3190, -inf
        %3457 = vmax.xlane.f32.xlu0 %v3456
        %v3458 = vpop.xlane.xlu0 %3457
        %v3459 = vsel %vm1712, %v3191, -inf
        %3460 = vmax.xlane.f32.xlu0 %v3459
        %v3461 = vpop.xlane.xlu0 %3460
        %v3462 = vsel %vm1712, %v3192, -inf
        %3463 = vmax.xlane.f32.xlu0 %v3462
        %v3464 = vpop.xlane.xlu0 %3463
        %v3465 = vsel %vm1712, %v3193, -inf
        %3466 = vmax.xlane.f32.xlu0 %v3465
        %v3467 = vpop.xlane.xlu0 %3466
        %v3468 = vsel %vm1712, %v3194, -inf
        %3469 = vmax.xlane.f32.xlu0 %v3468
        %v3470 = vpop.xlane.xlu0 %3469
        %v3471 = vsel %vm1712, %v3195, -inf
        %3472 = vmax.xlane.f32.xlu0 %v3471
        %v3473 = vpop.xlane.xlu0 %3472
        %v3474 = vsel %vm1712, %v3196, -inf
        %3475 = vmax.xlane.f32.xlu0 %v3474
        %v3476 = vpop.xlane.xlu0 %3475
        %v3477 = vsel %vm1712, %v3197, -inf
        %3478 = vmax.xlane.f32.xlu0 %v3477
        %v3479 = vpop.xlane.xlu0 %3478
        %v3480 = vsel %vm1712, %v3198, -inf
        %3481 = vmax.xlane.f32.xlu0 %v3480
        %v3482 = vpop.xlane.xlu0 %3481
        %v3483 = vsel %vm1712, %v3199, -inf
        %3484 = vmax.xlane.f32.xlu0 %v3483
        %v3485 = vpop.xlane.xlu0 %3484
        %v3486 = vsel %vm1712, %v3200, -inf
        %3487 = vmax.xlane.f32.xlu0 %v3486
        %v3488 = vpop.xlane.xlu0 %3487
        %v3489 = vsel %vm1712, %v3201, -inf
        %3490 = vmax.xlane.f32.xlu0 %v3489
        %v3491 = vpop.xlane.xlu0 %3490
        %v3492 = vsel %vm1712, %v3202, -inf
        %3493 = vmax.xlane.f32.xlu0 %v3492
        %v3494 = vpop.xlane.xlu0 %3493
        %v3495 = vsel %vm1712, %v3203, -inf
        %3496 = vmax.xlane.f32.xlu0 %v3495
        %v3497 = vpop.xlane.xlu0 %3496
        %v3498 = vsel %vm1712, %v3204, -inf
        %3499 = vmax.xlane.f32.xlu0 %v3498
        %v3500 = vpop.xlane.xlu0 %3499
        %v3501 = vsel %vm1712, %v3205, -inf
        %3502 = vmax.xlane.f32.xlu0 %v3501
        %v3503 = vpop.xlane.xlu0 %3502
        %v3504 = vsel %vm1712, %v3206, -inf
        %3505 = vmax.xlane.f32.xlu0 %v3504
        %v3506 = vpop.xlane.xlu0 %3505
        %v3507 = vsel %vm1712, %v3207, -inf
        %3508 = vmax.xlane.f32.xlu0 %v3507
        %v3509 = vpop.xlane.xlu0 %3508
        %v3510 = vsel %vm1712, %v3208, -inf
        %3511 = vmax.xlane.f32.xlu0 %v3510
        %v3512 = vpop.xlane.xlu0 %3511
        %v3513 = vsel %vm1712, %v3209, -inf
        %3514 = vmax.xlane.f32.xlu0 %v3513
        %v3515 = vpop.xlane.xlu0 %3514
        %v3516 = vsel %vm1712, %v3210, -inf
        %3517 = vmax.xlane.f32.xlu0 %v3516
        %v3518 = vpop.xlane.xlu0 %3517
        %v3519 = vsel %vm1712, %v3211, -inf
        %3520 = vmax.xlane.f32.xlu0 %v3519
        %v3521 = vpop.xlane.xlu0 %3520
        %v3522 = vsel %vm1712, %v3212, -inf
        %3523 = vmax.xlane.f32.xlu0 %v3522
        %v3524 = vpop.xlane.xlu0 %3523
        %v3525 = vsel %vm1712, %v3213, -inf
        %3526 = vmax.xlane.f32.xlu0 %v3525
        %v3527 = vpop.xlane.xlu0 %3526
        %v3528 = vsel %vm1712, %v3214, -inf
        %3529 = vmax.xlane.f32.xlu0 %v3528
        %v3530 = vpop.xlane.xlu0 %3529
        %v3531 = vsel %vm1712, %v3215, -inf
        %3532 = vmax.xlane.f32.xlu0 %v3531
        %v3533 = vpop.xlane.xlu0 %3532
        %v3534 = vsel %vm1712, %v3216, -inf
        %3535 = vmax.xlane.f32.xlu0 %v3534
        %v3536 = vpop.xlane.xlu0 %3535
        %v3537 = vsel %vm1712, %v3217, -inf
        %3538 = vmax.xlane.f32.xlu0 %v3537
        %v3539 = vpop.xlane.xlu0 %3538
        %v3540 = vsel %vm1712, %v3218, -inf
        %3541 = vmax.xlane.f32.xlu0 %v3540
        %v3542 = vpop.xlane.xlu0 %3541
        %v3543 = vsel %vm1712, %v3219, -inf
        %3544 = vmax.xlane.f32.xlu0 %v3543
        %v3545 = vpop.xlane.xlu0 %3544
        %v3546 = vsel %vm1712, %v3220, -inf
        %3547 = vmax.xlane.f32.xlu0 %v3546
        %v3548 = vpop.xlane.xlu0 %3547
        %v3549 = vsel %vm1712, %v3221, -inf
        %3550 = vmax.xlane.f32.xlu0 %v3549
        %v3551 = vpop.xlane.xlu0 %3550
        %v3552 = vsel %vm1712, %v3222, -inf
        %3553 = vmax.xlane.f32.xlu0 %v3552
        %v3554 = vpop.xlane.xlu0 %3553
        %v3555 = vsel %vm1712, %v3223, -inf
        %3556 = vmax.xlane.f32.xlu0 %v3555
        %v3557 = vpop.xlane.xlu0 %3556
        %v3558 = vsel %vm1712, %v3224, -inf
        %3559 = vmax.xlane.f32.xlu0 %v3558
        %v3560 = vpop.xlane.xlu0 %3559
        %v3561 = vsel %vm1712, %v3225, -inf
        %3562 = vmax.xlane.f32.xlu0 %v3561
        %v3563 = vpop.xlane.xlu0 %3562
        %v3564 = vsel %vm1712, %v3226, -inf
        %3565 = vmax.xlane.f32.xlu0 %v3564
        %v3566 = vpop.xlane.xlu0 %3565
        %v3567 = vsel %vm1712, %v3227, -inf
        %3568 = vmax.xlane.f32.xlu0 %v3567
        %v3569 = vpop.xlane.xlu0 %3568
        %v3570 = vsel %vm1712, %v3228, -inf
        %3571 = vmax.xlane.f32.xlu0 %v3570
        %v3572 = vpop.xlane.xlu0 %3571
        %v3573 = vsel %vm1712, %v3229, -inf
        %3574 = vmax.xlane.f32.xlu0 %v3573
        %v3575 = vpop.xlane.xlu0 %3574
        %v3576 = vsel %vm1712, %v3230, -inf
        %3577 = vmax.xlane.f32.xlu0 %v3576
        %v3578 = vpop.xlane.xlu0 %3577
        %v3579 = vsel %vm1712, %v3231, -inf
        %3580 = vmax.xlane.f32.xlu0 %v3579
        %v3581 = vpop.xlane.xlu0 %3580
        %v3582 = vsel %vm1712, %v3232, -inf
        %3583 = vmax.xlane.f32.xlu0 %v3582
        %v3584 = vpop.xlane.xlu0 %3583
        %v3585 = vsel %vm1712, %v3233, -inf
        %3586 = vmax.xlane.f32.xlu0 %v3585
        %v3587 = vpop.xlane.xlu0 %3586
        %v3588 = vsel %vm1712, %v3234, -inf
        %3589 = vmax.xlane.f32.xlu0 %v3588
        %v3590 = vpop.xlane.xlu0 %3589
        %v3591 = vsel %vm1712, %v3235, -inf
        %3592 = vmax.xlane.f32.xlu0 %v3591
        %v3593 = vpop.xlane.xlu0 %3592
        %v3594 = vsel %vm1712, %v3236, -inf
        %3595 = vmax.xlane.f32.xlu0 %v3594
        %v3596 = vpop.xlane.xlu0 %3595
        %v3597 = vsel %vm1712, %v3237, -inf
        %3598 = vmax.xlane.f32.xlu0 %v3597
        %v3599 = vpop.xlane.xlu0 %3598
        %v3600 = vsel %vm1712, %v3238, -inf
        %3601 = vmax.xlane.f32.xlu0 %v3600
        %v3602 = vpop.xlane.xlu0 %3601
        %v3603 = vsel %vm1712, %v3239, -inf
        %3604 = vmax.xlane.f32.xlu0 %v3603
        %v3605 = vpop.xlane.xlu0 %3604
        %v3606 = vsel %vm1712, %v3240, -inf
        %3607 = vmax.xlane.f32.xlu0 %v3606
        %v3608 = vpop.xlane.xlu0 %3607
        %v3609 = vsel %vm1712, %v3241, -inf
        %3610 = vmax.xlane.f32.xlu0 %v3609
        %v3611 = vpop.xlane.xlu0 %3610
        %v3612 = vsel %vm1712, %v3242, -inf
        %3613 = vmax.xlane.f32.xlu0 %v3612
        %v3614 = vpop.xlane.xlu0 %3613
        %v3615 = vsel %vm1712, %v3243, -inf
        %3616 = vmax.xlane.f32.xlu0 %v3615
        %v3617 = vpop.xlane.xlu0 %3616
        %v3618 = vsel %vm1712, %v3244, -inf
        %3619 = vmax.xlane.f32.xlu0 %v3618
        %v3620 = vpop.xlane.xlu0 %3619
        %v3621 = vsel %vm1712, %v3245, -inf
        %3622 = vmax.xlane.f32.xlu0 %v3621
        %v3623 = vpop.xlane.xlu0 %3622
        %v3624 = vsel %vm1712, %v3246, -inf
        %3625 = vmax.xlane.f32.xlu0 %v3624
        %v3626 = vpop.xlane.xlu0 %3625
        %v3627 = vsel %vm1712, %v3247, -inf
        %3628 = vmax.xlane.f32.xlu0 %v3627
        %v3629 = vpop.xlane.xlu0 %3628
        %v3630 = vsel %vm1712, %v3248, -inf
        %3631 = vmax.xlane.f32.xlu0 %v3630
        %v3632 = vpop.xlane.xlu0 %3631
        %v3633 = vsub.f32 %v3121, %v3251
        %v3634 = vsub.f32 %v3122, %v3254
        %v3635 = vsub.f32 %v3123, %v3257
        %v3636 = vsub.f32 %v3124, %v3260
        %v3637 = vsub.f32 %v3125, %v3263
        %v3638 = vsub.f32 %v3126, %v3266
        %v3639 = vsub.f32 %v3127, %v3269
        %v3640 = vsub.f32 %v3128, %v3272
        %v3641 = vsub.f32 %v3129, %v3275
        %v3642 = vsub.f32 %v3130, %v3278
        %v3643 = vsub.f32 %v3131, %v3281
        %v3644 = vsub.f32 %v3132, %v3284
        %v3645 = vsub.f32 %v3133, %v3287
        %v3646 = vsub.f32 %v3134, %v3290
        %v3647 = vsub.f32 %v3135, %v3293
        %v3648 = vsub.f32 %v3136, %v3296
        %v3649 = vsub.f32 %v3137, %v3299
        %v3650 = vsub.f32 %v3138, %v3302
        %v3651 = vsub.f32 %v3139, %v3305
        %v3652 = vsub.f32 %v3140, %v3308
        %v3653 = vsub.f32 %v3141, %v3311
        %v3654 = vsub.f32 %v3142, %v3314
        %v3655 = vsub.f32 %v3143, %v3317
        %v3656 = vsub.f32 %v3144, %v3320
        %v3657 = vsub.f32 %v3145, %v3323
        %v3658 = vsub.f32 %v3146, %v3326
        %v3659 = vsub.f32 %v3147, %v3329
        %v3660 = vsub.f32 %v3148, %v3332
        %v3661 = vsub.f32 %v3149, %v3335
        %v3662 = vsub.f32 %v3150, %v3338
        %v3663 = vsub.f32 %v3151, %v3341
        %v3664 = vsub.f32 %v3152, %v3344
        %v3665 = vsub.f32 %v3153, %v3347
        %v3666 = vsub.f32 %v3154, %v3350
        %v3667 = vsub.f32 %v3155, %v3353
        %v3668 = vsub.f32 %v3156, %v3356
        %v3669 = vsub.f32 %v3157, %v3359
        %v3670 = vsub.f32 %v3158, %v3362
        %v3671 = vsub.f32 %v3159, %v3365
        %v3672 = vsub.f32 %v3160, %v3368
        %v3673 = vsub.f32 %v3161, %v3371
        %v3674 = vsub.f32 %v3162, %v3374
        %v3675 = vsub.f32 %v3163, %v3377
        %v3676 = vsub.f32 %v3164, %v3380
        %v3677 = vsub.f32 %v3165, %v3383
        %v3678 = vsub.f32 %v3166, %v3386
        %v3679 = vsub.f32 %v3167, %v3389
        %v3680 = vsub.f32 %v3168, %v3392
        %v3681 = vsub.f32 %v3169, %v3395
        %v3682 = vsub.f32 %v3170, %v3398
        %v3683 = vsub.f32 %v3171, %v3401
        %v3684 = vsub.f32 %v3172, %v3404
        %v3685 = vsub.f32 %v3173, %v3407
        %v3686 = vsub.f32 %v3174, %v3410
        %v3687 = vsub.f32 %v3175, %v3413
        %v3688 = vsub.f32 %v3176, %v3416
        %v3689 = vsub.f32 %v3177, %v3419
        %v3690 = vsub.f32 %v3178, %v3422
        %v3691 = vsub.f32 %v3179, %v3425
        %v3692 = vsub.f32 %v3180, %v3428
        %v3693 = vsub.f32 %v3181, %v3431
        %v3694 = vsub.f32 %v3182, %v3434
        %v3695 = vsub.f32 %v3183, %v3437
        %v3696 = vsub.f32 %v3184, %v3440
        %v3697 = vsub.f32 %v3185, %v3443
        %v3698 = vsub.f32 %v3186, %v3446
        %v3699 = vsub.f32 %v3187, %v3449
        %v3700 = vsub.f32 %v3188, %v3452
        %v3701 = vsub.f32 %v3189, %v3455
        %v3702 = vsub.f32 %v3190, %v3458
        %v3703 = vsub.f32 %v3191, %v3461
        %v3704 = vsub.f32 %v3192, %v3464
        %v3705 = vsub.f32 %v3193, %v3467
        %v3706 = vsub.f32 %v3194, %v3470
        %v3707 = vsub.f32 %v3195, %v3473
        %v3708 = vsub.f32 %v3196, %v3476
        %v3709 = vsub.f32 %v3197, %v3479
        %v3710 = vsub.f32 %v3198, %v3482
        %v3711 = vsub.f32 %v3199, %v3485
        %v3712 = vsub.f32 %v3200, %v3488
        %v3713 = vsub.f32 %v3201, %v3491
        %v3714 = vsub.f32 %v3202, %v3494
        %v3715 = vsub.f32 %v3203, %v3497
        %v3716 = vsub.f32 %v3204, %v3500
        %v3717 = vsub.f32 %v3205, %v3503
        %v3718 = vsub.f32 %v3206, %v3506
        %v3719 = vsub.f32 %v3207, %v3509
        %v3720 = vsub.f32 %v3208, %v3512
        %v3721 = vsub.f32 %v3209, %v3515
        %v3722 = vsub.f32 %v3210, %v3518
        %v3723 = vsub.f32 %v3211, %v3521
        %v3724 = vsub.f32 %v3212, %v3524
        %v3725 = vsub.f32 %v3213, %v3527
        %v3726 = vsub.f32 %v3214, %v3530
        %v3727 = vsub.f32 %v3215, %v3533
        %v3728 = vsub.f32 %v3216, %v3536
        %v3729 = vsub.f32 %v3217, %v3539
        %v3730 = vsub.f32 %v3218, %v3542
        %v3731 = vsub.f32 %v3219, %v3545
        %v3732 = vsub.f32 %v3220, %v3548
        %v3733 = vsub.f32 %v3221, %v3551
        %v3734 = vsub.f32 %v3222, %v3554
        %v3735 = vsub.f32 %v3223, %v3557
        %v3736 = vsub.f32 %v3224, %v3560
        %v3737 = vsub.f32 %v3225, %v3563
        %v3738 = vsub.f32 %v3226, %v3566
        %v3739 = vsub.f32 %v3227, %v3569
        %v3740 = vsub.f32 %v3228, %v3572
        %v3741 = vsub.f32 %v3229, %v3575
        %v3742 = vsub.f32 %v3230, %v3578
        %v3743 = vsub.f32 %v3231, %v3581
        %v3744 = vsub.f32 %v3232, %v3584
        %v3745 = vsub.f32 %v3233, %v3587
        %v3746 = vsub.f32 %v3234, %v3590
        %v3747 = vsub.f32 %v3235, %v3593
        %v3748 = vsub.f32 %v3236, %v3596
        %v3749 = vsub.f32 %v3237, %v3599
        %v3750 = vsub.f32 %v3238, %v3602
        %v3751 = vsub.f32 %v3239, %v3605
        %v3752 = vsub.f32 %v3240, %v3608
        %v3753 = vsub.f32 %v3241, %v3611
        %v3754 = vsub.f32 %v3242, %v3614
        %v3755 = vsub.f32 %v3243, %v3617
        %v3756 = vsub.f32 %v3244, %v3620
        %v3757 = vsub.f32 %v3245, %v3623
        %v3758 = vsub.f32 %v3246, %v3626
        %v3759 = vsub.f32 %v3247, %v3629
        %v3760 = vsub.f32 %v3248, %v3632
        %v3761 = vmul.f32 %v3633, 1.442695
        %v3762 = vpow.pop %v3761
        %v3763 = vmul.f32 %v3634, 1.442695
        %v3764 = vpow.pop %v3763
        %v3765 = vmul.f32 %v3635, 1.442695
        %v3766 = vpow.pop %v3765
        %v3767 = vmul.f32 %v3636, 1.442695
        %v3768 = vpow.pop %v3767
        %v3769 = vmul.f32 %v3637, 1.442695
        %v3770 = vpow.pop %v3769
        %v3771 = vmul.f32 %v3638, 1.442695
        %v3772 = vpow.pop %v3771
        %v3773 = vmul.f32 %v3639, 1.442695
        %v3774 = vpow.pop %v3773
        %v3775 = vmul.f32 %v3640, 1.442695
        %v3776 = vpow.pop %v3775
        %v3777 = vmul.f32 %v3641, 1.442695
        %v3778 = vpow.pop %v3777
        %v3779 = vmul.f32 %v3642, 1.442695
        %v3780 = vpow.pop %v3779
        %v3781 = vmul.f32 %v3643, 1.442695
        %v3782 = vpow.pop %v3781
        %v3783 = vmul.f32 %v3644, 1.442695
        %v3784 = vpow.pop %v3783
        %v3785 = vmul.f32 %v3645, 1.442695
        %v3786 = vpow.pop %v3785
        %v3787 = vmul.f32 %v3646, 1.442695
        %v3788 = vpow.pop %v3787
        %v3789 = vmul.f32 %v3647, 1.442695
        %v3790 = vpow.pop %v3789
        %v3791 = vmul.f32 %v3648, 1.442695
        %v3792 = vpow.pop %v3791
        %v3793 = vmul.f32 %v3649, 1.442695
        %v3794 = vpow.pop %v3793
        %v3795 = vmul.f32 %v3650, 1.442695
        %v3796 = vpow.pop %v3795
        %v3797 = vmul.f32 %v3651, 1.442695
        %v3798 = vpow.pop %v3797
        %v3799 = vmul.f32 %v3652, 1.442695
        %v3800 = vpow.pop %v3799
        %v3801 = vmul.f32 %v3653, 1.442695
        %v3802 = vpow.pop %v3801
        %v3803 = vmul.f32 %v3654, 1.442695
        %v3804 = vpow.pop %v3803
        %v3805 = vmul.f32 %v3655, 1.442695
        %v3806 = vpow.pop %v3805
        %v3807 = vmul.f32 %v3656, 1.442695
        %v3808 = vpow.pop %v3807
        %v3809 = vmul.f32 %v3657, 1.442695
        %v3810 = vpow.pop %v3809
        %v3811 = vmul.f32 %v3658, 1.442695
        %v3812 = vpow.pop %v3811
        %v3813 = vmul.f32 %v3659, 1.442695
        %v3814 = vpow.pop %v3813
        %v3815 = vmul.f32 %v3660, 1.442695
        %v3816 = vpow.pop %v3815
        %v3817 = vmul.f32 %v3661, 1.442695
        %v3818 = vpow.pop %v3817
        %v3819 = vmul.f32 %v3662, 1.442695
        %v3820 = vpow.pop %v3819
        %v3821 = vmul.f32 %v3663, 1.442695
        %v3822 = vpow.pop %v3821
        %v3823 = vmul.f32 %v3664, 1.442695
        %v3824 = vpow.pop %v3823
        %v3825 = vmul.f32 %v3665, 1.442695
        %v3826 = vpow.pop %v3825
        %v3827 = vmul.f32 %v3666, 1.442695
        %v3828 = vpow.pop %v3827
        %v3829 = vmul.f32 %v3667, 1.442695
        %v3830 = vpow.pop %v3829
        %v3831 = vmul.f32 %v3668, 1.442695
        %v3832 = vpow.pop %v3831
        %v3833 = vmul.f32 %v3669, 1.442695
        %v3834 = vpow.pop %v3833
        %v3835 = vmul.f32 %v3670, 1.442695
        %v3836 = vpow.pop %v3835
        %v3837 = vmul.f32 %v3671, 1.442695
        %v3838 = vpow.pop %v3837
        %v3839 = vmul.f32 %v3672, 1.442695
        %v3840 = vpow.pop %v3839
        %v3841 = vmul.f32 %v3673, 1.442695
        %v3842 = vpow.pop %v3841
        %v3843 = vmul.f32 %v3674, 1.442695
        %v3844 = vpow.pop %v3843
        %v3845 = vmul.f32 %v3675, 1.442695
        %v3846 = vpow.pop %v3845
        %v3847 = vmul.f32 %v3676, 1.442695
        %v3848 = vpow.pop %v3847
        %v3849 = vmul.f32 %v3677, 1.442695
        %v3850 = vpow.pop %v3849
        %v3851 = vmul.f32 %v3678, 1.442695
        %v3852 = vpow.pop %v3851
        %v3853 = vmul.f32 %v3679, 1.442695
        %v3854 = vpow.pop %v3853
        %v3855 = vmul.f32 %v3680, 1.442695
        %v3856 = vpow.pop %v3855
        %v3857 = vmul.f32 %v3681, 1.442695
        %v3858 = vpow.pop %v3857
        %v3859 = vmul.f32 %v3682, 1.442695
        %v3860 = vpow.pop %v3859
        %v3861 = vmul.f32 %v3683, 1.442695
        %v3862 = vpow.pop %v3861
        %v3863 = vmul.f32 %v3684, 1.442695
        %v3864 = vpow.pop %v3863
        %v3865 = vmul.f32 %v3685, 1.442695
        %v3866 = vpow.pop %v3865
        %v3867 = vmul.f32 %v3686, 1.442695
        %v3868 = vpow.pop %v3867
        %v3869 = vmul.f32 %v3687, 1.442695
        %v3870 = vpow.pop %v3869
        %v3871 = vmul.f32 %v3688, 1.442695
        %v3872 = vpow.pop %v3871
        %v3873 = vmul.f32 %v3689, 1.442695
        %v3874 = vpow.pop %v3873
        %v3875 = vmul.f32 %v3690, 1.442695
        %v3876 = vpow.pop %v3875
        %v3877 = vmul.f32 %v3691, 1.442695
        %v3878 = vpow.pop %v3877
        %v3879 = vmul.f32 %v3692, 1.442695
        %v3880 = vpow.pop %v3879
        %v3881 = vmul.f32 %v3693, 1.442695
        %v3882 = vpow.pop %v3881
        %v3883 = vmul.f32 %v3694, 1.442695
        %v3884 = vpow.pop %v3883
        %v3885 = vmul.f32 %v3695, 1.442695
        %v3886 = vpow.pop %v3885
        %v3887 = vmul.f32 %v3696, 1.442695
        %v3888 = vpow.pop %v3887
        %v3889 = vmul.f32 %v3697, 1.442695
        %v3890 = vpow.pop %v3889
        %v3891 = vmul.f32 %v3698, 1.442695
        %v3892 = vpow.pop %v3891
        %v3893 = vmul.f32 %v3699, 1.442695
        %v3894 = vpow.pop %v3893
        %v3895 = vmul.f32 %v3700, 1.442695
        %v3896 = vpow.pop %v3895
        %v3897 = vmul.f32 %v3701, 1.442695
        %v3898 = vpow.pop %v3897
        %v3899 = vmul.f32 %v3702, 1.442695
        %v3900 = vpow.pop %v3899
        %v3901 = vmul.f32 %v3703, 1.442695
        %v3902 = vpow.pop %v3901
        %v3903 = vmul.f32 %v3704, 1.442695
        %v3904 = vpow.pop %v3903
        %v3905 = vmul.f32 %v3705, 1.442695
        %v3906 = vpow.pop %v3905
        %v3907 = vmul.f32 %v3706, 1.442695
        %v3908 = vpow.pop %v3907
        %v3909 = vmul.f32 %v3707, 1.442695
        %v3910 = vpow.pop %v3909
        %v3911 = vmul.f32 %v3708, 1.442695
        %v3912 = vpow.pop %v3911
        %v3913 = vmul.f32 %v3709, 1.442695
        %v3914 = vpow.pop %v3913
        %v3915 = vmul.f32 %v3710, 1.442695
        %v3916 = vpow.pop %v3915
        %v3917 = vmul.f32 %v3711, 1.442695
        %v3918 = vpow.pop %v3917
        %v3919 = vmul.f32 %v3712, 1.442695
        %v3920 = vpow.pop %v3919
        %v3921 = vmul.f32 %v3713, 1.442695
        %v3922 = vpow.pop %v3921
        %v3923 = vmul.f32 %v3714, 1.442695
        %v3924 = vpow.pop %v3923
        %v3925 = vmul.f32 %v3715, 1.442695
        %v3926 = vpow.pop %v3925
        %v3927 = vmul.f32 %v3716, 1.442695
        %v3928 = vpow.pop %v3927
        %v3929 = vmul.f32 %v3717, 1.442695
        %v3930 = vpow.pop %v3929
        %v3931 = vmul.f32 %v3718, 1.442695
        %v3932 = vpow.pop %v3931
        %v3933 = vmul.f32 %v3719, 1.442695
        %v3934 = vpow.pop %v3933
        %v3935 = vmul.f32 %v3720, 1.442695
        %v3936 = vpow.pop %v3935
        %v3937 = vmul.f32 %v3721, 1.442695
        %v3938 = vpow.pop %v3937
        %v3939 = vmul.f32 %v3722, 1.442695
        %v3940 = vpow.pop %v3939
        %v3941 = vmul.f32 %v3723, 1.442695
        %v3942 = vpow.pop %v3941
        %v3943 = vmul.f32 %v3724, 1.442695
        %v3944 = vpow.pop %v3943
        %v3945 = vmul.f32 %v3725, 1.442695
        %v3946 = vpow.pop %v3945
        %v3947 = vmul.f32 %v3726, 1.442695
        %v3948 = vpow.pop %v3947
        %v3949 = vmul.f32 %v3727, 1.442695
        %v3950 = vpow.pop %v3949
        %v3951 = vmul.f32 %v3728, 1.442695
        %v3952 = vpow.pop %v3951
        %v3953 = vmul.f32 %v3729, 1.442695
        %v3954 = vpow.pop %v3953
        %v3955 = vmul.f32 %v3730, 1.442695
        %v3956 = vpow.pop %v3955
        %v3957 = vmul.f32 %v3731, 1.442695
        %v3958 = vpow.pop %v3957
        %v3959 = vmul.f32 %v3732, 1.442695
        %v3960 = vpow.pop %v3959
        %v3961 = vmul.f32 %v3733, 1.442695
        %v3962 = vpow.pop %v3961
        %v3963 = vmul.f32 %v3734, 1.442695
        %v3964 = vpow.pop %v3963
        %v3965 = vmul.f32 %v3735, 1.442695
        %v3966 = vpow.pop %v3965
        %v3967 = vmul.f32 %v3736, 1.442695
        %v3968 = vpow.pop %v3967
        %v3969 = vmul.f32 %v3737, 1.442695
        %v3970 = vpow.pop %v3969
        %v3971 = vmul.f32 %v3738, 1.442695
        %v3972 = vpow.pop %v3971
        %v3973 = vmul.f32 %v3739, 1.442695
        %v3974 = vpow.pop %v3973
        %v3975 = vmul.f32 %v3740, 1.442695
        %v3976 = vpow.pop %v3975
        %v3977 = vmul.f32 %v3741, 1.442695
        %v3978 = vpow.pop %v3977
        %v3979 = vmul.f32 %v3742, 1.442695
        %v3980 = vpow.pop %v3979
        %v3981 = vmul.f32 %v3743, 1.442695
        %v3982 = vpow.pop %v3981
        %v3983 = vmul.f32 %v3744, 1.442695
        %v3984 = vpow.pop %v3983
        %v3985 = vmul.f32 %v3745, 1.442695
        %v3986 = vpow.pop %v3985
        %v3987 = vmul.f32 %v3746, 1.442695
        %v3988 = vpow.pop %v3987
        %v3989 = vmul.f32 %v3747, 1.442695
        %v3990 = vpow.pop %v3989
        %v3991 = vmul.f32 %v3748, 1.442695
        %v3992 = vpow.pop %v3991
        %v3993 = vmul.f32 %v3749, 1.442695
        %v3994 = vpow.pop %v3993
        %v3995 = vmul.f32 %v3750, 1.442695
        %v3996 = vpow.pop %v3995
        %v3997 = vmul.f32 %v3751, 1.442695
        %v3998 = vpow.pop %v3997
        %v3999 = vmul.f32 %v3752, 1.442695
        %v4000 = vpow.pop %v3999
        %v4001 = vmul.f32 %v3753, 1.442695
        %v4002 = vpow.pop %v4001
        %v4003 = vmul.f32 %v3754, 1.442695
        %v4004 = vpow.pop %v4003
        %v4005 = vmul.f32 %v3755, 1.442695
        %v4006 = vpow.pop %v4005
        %v4007 = vmul.f32 %v3756, 1.442695
        %v4008 = vpow.pop %v4007
        %v4009 = vmul.f32 %v3757, 1.442695
        %v4010 = vpow.pop %v4009
        %v4011 = vmul.f32 %v3758, 1.442695
        %v4012 = vpow.pop %v4011
        %v4013 = vmul.f32 %v3759, 1.442695
        %v4014 = vpow.pop %v4013
        %v4015 = vmul.f32 %v3760, 1.442695
        %v4016 = vpow.pop %v4015
        %v4017 = vsel %vm1712, %v3762, 0.0
        %4018 = vadd.xlane.f32.xlu0 %v4017
        %v4019 = vpop.xlane.xlu0 %4018
        %v4020 = vsel %vm1712, %v3764, 0.0
        %4021 = vadd.xlane.f32.xlu0 %v4020
        %v4022 = vpop.xlane.xlu0 %4021
        %v4023 = vsel %vm1712, %v3766, 0.0
        %4024 = vadd.xlane.f32.xlu0 %v4023
        %v4025 = vpop.xlane.xlu0 %4024
        %v4026 = vsel %vm1712, %v3768, 0.0
        %4027 = vadd.xlane.f32.xlu0 %v4026
        %v4028 = vpop.xlane.xlu0 %4027
        %v4029 = vsel %vm1712, %v3770, 0.0
        %4030 = vadd.xlane.f32.xlu0 %v4029
        %v4031 = vpop.xlane.xlu0 %4030
        %v4032 = vsel %vm1712, %v3772, 0.0
        %4033 = vadd.xlane.f32.xlu0 %v4032
        %v4034 = vpop.xlane.xlu0 %4033
        %v4035 = vsel %vm1712, %v3774, 0.0
        %4036 = vadd.xlane.f32.xlu0 %v4035
        %v4037 = vpop.xlane.xlu0 %4036
        %v4038 = vsel %vm1712, %v3776, 0.0
        %4039 = vadd.xlane.f32.xlu0 %v4038
        %v4040 = vpop.xlane.xlu0 %4039
        %v4041 = vsel %vm1712, %v3778, 0.0
        %4042 = vadd.xlane.f32.xlu0 %v4041
        %v4043 = vpop.xlane.xlu0 %4042
        %v4044 = vsel %vm1712, %v3780, 0.0
        %4045 = vadd.xlane.f32.xlu0 %v4044
        %v4046 = vpop.xlane.xlu0 %4045
        %v4047 = vsel %vm1712, %v3782, 0.0
        %4048 = vadd.xlane.f32.xlu0 %v4047
        %v4049 = vpop.xlane.xlu0 %4048
        %v4050 = vsel %vm1712, %v3784, 0.0
        %4051 = vadd.xlane.f32.xlu0 %v4050
        %v4052 = vpop.xlane.xlu0 %4051
        %v4053 = vsel %vm1712, %v3786, 0.0
        %4054 = vadd.xlane.f32.xlu0 %v4053
        %v4055 = vpop.xlane.xlu0 %4054
        %v4056 = vsel %vm1712, %v3788, 0.0
        %4057 = vadd.xlane.f32.xlu0 %v4056
        %v4058 = vpop.xlane.xlu0 %4057
        %v4059 = vsel %vm1712, %v3790, 0.0
        %4060 = vadd.xlane.f32.xlu0 %v4059
        %v4061 = vpop.xlane.xlu0 %4060
        %v4062 = vsel %vm1712, %v3792, 0.0
        %4063 = vadd.xlane.f32.xlu0 %v4062
        %v4064 = vpop.xlane.xlu0 %4063
        %v4065 = vsel %vm1712, %v3794, 0.0
        %4066 = vadd.xlane.f32.xlu0 %v4065
        %v4067 = vpop.xlane.xlu0 %4066
        %v4068 = vsel %vm1712, %v3796, 0.0
        %4069 = vadd.xlane.f32.xlu0 %v4068
        %v4070 = vpop.xlane.xlu0 %4069
        %v4071 = vsel %vm1712, %v3798, 0.0
        %4072 = vadd.xlane.f32.xlu0 %v4071
        %v4073 = vpop.xlane.xlu0 %4072
        %v4074 = vsel %vm1712, %v3800, 0.0
        %4075 = vadd.xlane.f32.xlu0 %v4074
        %v4076 = vpop.xlane.xlu0 %4075
        %v4077 = vsel %vm1712, %v3802, 0.0
        %4078 = vadd.xlane.f32.xlu0 %v4077
        %v4079 = vpop.xlane.xlu0 %4078
        %v4080 = vsel %vm1712, %v3804, 0.0
        %4081 = vadd.xlane.f32.xlu0 %v4080
        %v4082 = vpop.xlane.xlu0 %4081
        %v4083 = vsel %vm1712, %v3806, 0.0
        %4084 = vadd.xlane.f32.xlu0 %v4083
        %v4085 = vpop.xlane.xlu0 %4084
        %v4086 = vsel %vm1712, %v3808, 0.0
        %4087 = vadd.xlane.f32.xlu0 %v4086
        %v4088 = vpop.xlane.xlu0 %4087
        %v4089 = vsel %vm1712, %v3810, 0.0
        %4090 = vadd.xlane.f32.xlu0 %v4089
        %v4091 = vpop.xlane.xlu0 %4090
        %v4092 = vsel %vm1712, %v3812, 0.0
        %4093 = vadd.xlane.f32.xlu0 %v4092
        %v4094 = vpop.xlane.xlu0 %4093
        %v4095 = vsel %vm1712, %v3814, 0.0
        %4096 = vadd.xlane.f32.xlu0 %v4095
        %v4097 = vpop.xlane.xlu0 %4096
        %v4098 = vsel %vm1712, %v3816, 0.0
        %4099 = vadd.xlane.f32.xlu0 %v4098
        %v4100 = vpop.xlane.xlu0 %4099
        %v4101 = vsel %vm1712, %v3818, 0.0
        %4102 = vadd.xlane.f32.xlu0 %v4101
        %v4103 = vpop.xlane.xlu0 %4102
        %v4104 = vsel %vm1712, %v3820, 0.0
        %4105 = vadd.xlane.f32.xlu0 %v4104
        %v4106 = vpop.xlane.xlu0 %4105
        %v4107 = vsel %vm1712, %v3822, 0.0
        %4108 = vadd.xlane.f32.xlu0 %v4107
        %v4109 = vpop.xlane.xlu0 %4108
        %v4110 = vsel %vm1712, %v3824, 0.0
        %4111 = vadd.xlane.f32.xlu0 %v4110
        %v4112 = vpop.xlane.xlu0 %4111
        %v4113 = vsel %vm1712, %v3826, 0.0
        %4114 = vadd.xlane.f32.xlu0 %v4113
        %v4115 = vpop.xlane.xlu0 %4114
        %v4116 = vsel %vm1712, %v3828, 0.0
        %4117 = vadd.xlane.f32.xlu0 %v4116
        %v4118 = vpop.xlane.xlu0 %4117
        %v4119 = vsel %vm1712, %v3830, 0.0
        %4120 = vadd.xlane.f32.xlu0 %v4119
        %v4121 = vpop.xlane.xlu0 %4120
        %v4122 = vsel %vm1712, %v3832, 0.0
        %4123 = vadd.xlane.f32.xlu0 %v4122
        %v4124 = vpop.xlane.xlu0 %4123
        %v4125 = vsel %vm1712, %v3834, 0.0
        %4126 = vadd.xlane.f32.xlu0 %v4125
        %v4127 = vpop.xlane.xlu0 %4126
        %v4128 = vsel %vm1712, %v3836, 0.0
        %4129 = vadd.xlane.f32.xlu0 %v4128
        %v4130 = vpop.xlane.xlu0 %4129
        %v4131 = vsel %vm1712, %v3838, 0.0
        %4132 = vadd.xlane.f32.xlu0 %v4131
        %v4133 = vpop.xlane.xlu0 %4132
        %v4134 = vsel %vm1712, %v3840, 0.0
        %4135 = vadd.xlane.f32.xlu0 %v4134
        %v4136 = vpop.xlane.xlu0 %4135
        %v4137 = vsel %vm1712, %v3842, 0.0
        %4138 = vadd.xlane.f32.xlu0 %v4137
        %v4139 = vpop.xlane.xlu0 %4138
        %v4140 = vsel %vm1712, %v3844, 0.0
        %4141 = vadd.xlane.f32.xlu0 %v4140
        %v4142 = vpop.xlane.xlu0 %4141
        %v4143 = vsel %vm1712, %v3846, 0.0
        %4144 = vadd.xlane.f32.xlu0 %v4143
        %v4145 = vpop.xlane.xlu0 %4144
        %v4146 = vsel %vm1712, %v3848, 0.0
        %4147 = vadd.xlane.f32.xlu0 %v4146
        %v4148 = vpop.xlane.xlu0 %4147
        %v4149 = vsel %vm1712, %v3850, 0.0
        %4150 = vadd.xlane.f32.xlu0 %v4149
        %v4151 = vpop.xlane.xlu0 %4150
        %v4152 = vsel %vm1712, %v3852, 0.0
        %4153 = vadd.xlane.f32.xlu0 %v4152
        %v4154 = vpop.xlane.xlu0 %4153
        %v4155 = vsel %vm1712, %v3854, 0.0
        %4156 = vadd.xlane.f32.xlu0 %v4155
        %v4157 = vpop.xlane.xlu0 %4156
        %v4158 = vsel %vm1712, %v3856, 0.0
        %4159 = vadd.xlane.f32.xlu0 %v4158
        %v4160 = vpop.xlane.xlu0 %4159
        %v4161 = vsel %vm1712, %v3858, 0.0
        %4162 = vadd.xlane.f32.xlu0 %v4161
        %v4163 = vpop.xlane.xlu0 %4162
        %v4164 = vsel %vm1712, %v3860, 0.0
        %4165 = vadd.xlane.f32.xlu0 %v4164
        %v4166 = vpop.xlane.xlu0 %4165
        %v4167 = vsel %vm1712, %v3862, 0.0
        %4168 = vadd.xlane.f32.xlu0 %v4167
        %v4169 = vpop.xlane.xlu0 %4168
        %v4170 = vsel %vm1712, %v3864, 0.0
        %4171 = vadd.xlane.f32.xlu0 %v4170
        %v4172 = vpop.xlane.xlu0 %4171
        %v4173 = vsel %vm1712, %v3866, 0.0
        %4174 = vadd.xlane.f32.xlu0 %v4173
        %v4175 = vpop.xlane.xlu0 %4174
        %v4176 = vsel %vm1712, %v3868, 0.0
        %4177 = vadd.xlane.f32.xlu0 %v4176
        %v4178 = vpop.xlane.xlu0 %4177
        %v4179 = vsel %vm1712, %v3870, 0.0
        %4180 = vadd.xlane.f32.xlu0 %v4179
        %v4181 = vpop.xlane.xlu0 %4180
        %v4182 = vsel %vm1712, %v3872, 0.0
        %4183 = vadd.xlane.f32.xlu0 %v4182
        %v4184 = vpop.xlane.xlu0 %4183
        %v4185 = vsel %vm1712, %v3874, 0.0
        %4186 = vadd.xlane.f32.xlu0 %v4185
        %v4187 = vpop.xlane.xlu0 %4186
        %v4188 = vsel %vm1712, %v3876, 0.0
        %4189 = vadd.xlane.f32.xlu0 %v4188
        %v4190 = vpop.xlane.xlu0 %4189
        %v4191 = vsel %vm1712, %v3878, 0.0
        %4192 = vadd.xlane.f32.xlu0 %v4191
        %v4193 = vpop.xlane.xlu0 %4192
        %v4194 = vsel %vm1712, %v3880, 0.0
        %4195 = vadd.xlane.f32.xlu0 %v4194
        %v4196 = vpop.xlane.xlu0 %4195
        %v4197 = vsel %vm1712, %v3882, 0.0
        %4198 = vadd.xlane.f32.xlu0 %v4197
        %v4199 = vpop.xlane.xlu0 %4198
        %v4200 = vsel %vm1712, %v3884, 0.0
        %4201 = vadd.xlane.f32.xlu0 %v4200
        %v4202 = vpop.xlane.xlu0 %4201
        %v4203 = vsel %vm1712, %v3886, 0.0
        %4204 = vadd.xlane.f32.xlu0 %v4203
        %v4205 = vpop.xlane.xlu0 %4204
        %v4206 = vsel %vm1712, %v3888, 0.0
        %4207 = vadd.xlane.f32.xlu0 %v4206
        %v4208 = vpop.xlane.xlu0 %4207
        %v4209 = vsel %vm1712, %v3890, 0.0
        %4210 = vadd.xlane.f32.xlu0 %v4209
        %v4211 = vpop.xlane.xlu0 %4210
        %v4212 = vsel %vm1712, %v3892, 0.0
        %4213 = vadd.xlane.f32.xlu0 %v4212
        %v4214 = vpop.xlane.xlu0 %4213
        %v4215 = vsel %vm1712, %v3894, 0.0
        %4216 = vadd.xlane.f32.xlu0 %v4215
        %v4217 = vpop.xlane.xlu0 %4216
        %v4218 = vsel %vm1712, %v3896, 0.0
        %4219 = vadd.xlane.f32.xlu0 %v4218
        %v4220 = vpop.xlane.xlu0 %4219
        %v4221 = vsel %vm1712, %v3898, 0.0
        %4222 = vadd.xlane.f32.xlu0 %v4221
        %v4223 = vpop.xlane.xlu0 %4222
        %v4224 = vsel %vm1712, %v3900, 0.0
        %4225 = vadd.xlane.f32.xlu0 %v4224
        %v4226 = vpop.xlane.xlu0 %4225
        %v4227 = vsel %vm1712, %v3902, 0.0
        %4228 = vadd.xlane.f32.xlu0 %v4227
        %v4229 = vpop.xlane.xlu0 %4228
        %v4230 = vsel %vm1712, %v3904, 0.0
        %4231 = vadd.xlane.f32.xlu0 %v4230
        %v4232 = vpop.xlane.xlu0 %4231
        %v4233 = vsel %vm1712, %v3906, 0.0
        %4234 = vadd.xlane.f32.xlu0 %v4233
        %v4235 = vpop.xlane.xlu0 %4234
        %v4236 = vsel %vm1712, %v3908, 0.0
        %4237 = vadd.xlane.f32.xlu0 %v4236
        %v4238 = vpop.xlane.xlu0 %4237
        %v4239 = vsel %vm1712, %v3910, 0.0
        %4240 = vadd.xlane.f32.xlu0 %v4239
        %v4241 = vpop.xlane.xlu0 %4240
        %v4242 = vsel %vm1712, %v3912, 0.0
        %4243 = vadd.xlane.f32.xlu0 %v4242
        %v4244 = vpop.xlane.xlu0 %4243
        %v4245 = vsel %vm1712, %v3914, 0.0
        %4246 = vadd.xlane.f32.xlu0 %v4245
        %v4247 = vpop.xlane.xlu0 %4246
        %v4248 = vsel %vm1712, %v3916, 0.0
        %4249 = vadd.xlane.f32.xlu0 %v4248
        %v4250 = vpop.xlane.xlu0 %4249
        %v4251 = vsel %vm1712, %v3918, 0.0
        %4252 = vadd.xlane.f32.xlu0 %v4251
        %v4253 = vpop.xlane.xlu0 %4252
        %v4254 = vsel %vm1712, %v3920, 0.0
        %4255 = vadd.xlane.f32.xlu0 %v4254
        %v4256 = vpop.xlane.xlu0 %4255
        %v4257 = vsel %vm1712, %v3922, 0.0
        %4258 = vadd.xlane.f32.xlu0 %v4257
        %v4259 = vpop.xlane.xlu0 %4258
        %v4260 = vsel %vm1712, %v3924, 0.0
        %4261 = vadd.xlane.f32.xlu0 %v4260
        %v4262 = vpop.xlane.xlu0 %4261
        %v4263 = vsel %vm1712, %v3926, 0.0
        %4264 = vadd.xlane.f32.xlu0 %v4263
        %v4265 = vpop.xlane.xlu0 %4264
        %v4266 = vsel %vm1712, %v3928, 0.0
        %4267 = vadd.xlane.f32.xlu0 %v4266
        %v4268 = vpop.xlane.xlu0 %4267
        %v4269 = vsel %vm1712, %v3930, 0.0
        %4270 = vadd.xlane.f32.xlu0 %v4269
        %v4271 = vpop.xlane.xlu0 %4270
        %v4272 = vsel %vm1712, %v3932, 0.0
        %4273 = vadd.xlane.f32.xlu0 %v4272
        %v4274 = vpop.xlane.xlu0 %4273
        %v4275 = vsel %vm1712, %v3934, 0.0
        %4276 = vadd.xlane.f32.xlu0 %v4275
        %v4277 = vpop.xlane.xlu0 %4276
        %v4278 = vsel %vm1712, %v3936, 0.0
        %4279 = vadd.xlane.f32.xlu0 %v4278
        %v4280 = vpop.xlane.xlu0 %4279
        %v4281 = vsel %vm1712, %v3938, 0.0
        %4282 = vadd.xlane.f32.xlu0 %v4281
        %v4283 = vpop.xlane.xlu0 %4282
        %v4284 = vsel %vm1712, %v3940, 0.0
        %4285 = vadd.xlane.f32.xlu0 %v4284
        %v4286 = vpop.xlane.xlu0 %4285
        %v4287 = vsel %vm1712, %v3942, 0.0
        %4288 = vadd.xlane.f32.xlu0 %v4287
        %v4289 = vpop.xlane.xlu0 %4288
        %v4290 = vsel %vm1712, %v3944, 0.0
        %4291 = vadd.xlane.f32.xlu0 %v4290
        %v4292 = vpop.xlane.xlu0 %4291
        %v4293 = vsel %vm1712, %v3946, 0.0
        %4294 = vadd.xlane.f32.xlu0 %v4293
        %v4295 = vpop.xlane.xlu0 %4294
        %v4296 = vsel %vm1712, %v3948, 0.0
        %4297 = vadd.xlane.f32.xlu0 %v4296
        %v4298 = vpop.xlane.xlu0 %4297
        %v4299 = vsel %vm1712, %v3950, 0.0
        %4300 = vadd.xlane.f32.xlu0 %v4299
        %v4301 = vpop.xlane.xlu0 %4300
        %v4302 = vsel %vm1712, %v3952, 0.0
        %4303 = vadd.xlane.f32.xlu0 %v4302
        %v4304 = vpop.xlane.xlu0 %4303
        %v4305 = vsel %vm1712, %v3954, 0.0
        %4306 = vadd.xlane.f32.xlu0 %v4305
        %v4307 = vpop.xlane.xlu0 %4306
        %v4308 = vsel %vm1712, %v3956, 0.0
        %4309 = vadd.xlane.f32.xlu0 %v4308
        %v4310 = vpop.xlane.xlu0 %4309
        %v4311 = vsel %vm1712, %v3958, 0.0
        %4312 = vadd.xlane.f32.xlu0 %v4311
        %v4313 = vpop.xlane.xlu0 %4312
        %v4314 = vsel %vm1712, %v3960, 0.0
        %4315 = vadd.xlane.f32.xlu0 %v4314
        %v4316 = vpop.xlane.xlu0 %4315
        %v4317 = vsel %vm1712, %v3962, 0.0
        %4318 = vadd.xlane.f32.xlu0 %v4317
        %v4319 = vpop.xlane.xlu0 %4318
        %v4320 = vsel %vm1712, %v3964, 0.0
        %4321 = vadd.xlane.f32.xlu0 %v4320
        %v4322 = vpop.xlane.xlu0 %4321
        %v4323 = vsel %vm1712, %v3966, 0.0
        %4324 = vadd.xlane.f32.xlu0 %v4323
        %v4325 = vpop.xlane.xlu0 %4324
        %v4326 = vsel %vm1712, %v3968, 0.0
        %4327 = vadd.xlane.f32.xlu0 %v4326
        %v4328 = vpop.xlane.xlu0 %4327
        %v4329 = vsel %vm1712, %v3970, 0.0
        %4330 = vadd.xlane.f32.xlu0 %v4329
        %v4331 = vpop.xlane.xlu0 %4330
        %v4332 = vsel %vm1712, %v3972, 0.0
        %4333 = vadd.xlane.f32.xlu0 %v4332
        %v4334 = vpop.xlane.xlu0 %4333
        %v4335 = vsel %vm1712, %v3974, 0.0
        %4336 = vadd.xlane.f32.xlu0 %v4335
        %v4337 = vpop.xlane.xlu0 %4336
        %v4338 = vsel %vm1712, %v3976, 0.0
        %4339 = vadd.xlane.f32.xlu0 %v4338
        %v4340 = vpop.xlane.xlu0 %4339
        %v4341 = vsel %vm1712, %v3978, 0.0
        %4342 = vadd.xlane.f32.xlu0 %v4341
        %v4343 = vpop.xlane.xlu0 %4342
        %v4344 = vsel %vm1712, %v3980, 0.0
        %4345 = vadd.xlane.f32.xlu0 %v4344
        %v4346 = vpop.xlane.xlu0 %4345
        %v4347 = vsel %vm1712, %v3982, 0.0
        %4348 = vadd.xlane.f32.xlu0 %v4347
        %v4349 = vpop.xlane.xlu0 %4348
        %v4350 = vsel %vm1712, %v3984, 0.0
        %4351 = vadd.xlane.f32.xlu0 %v4350
        %v4352 = vpop.xlane.xlu0 %4351
        %v4353 = vsel %vm1712, %v3986, 0.0
        %4354 = vadd.xlane.f32.xlu0 %v4353
        %v4355 = vpop.xlane.xlu0 %4354
        %v4356 = vsel %vm1712, %v3988, 0.0
        %4357 = vadd.xlane.f32.xlu0 %v4356
        %v4358 = vpop.xlane.xlu0 %4357
        %v4359 = vsel %vm1712, %v3990, 0.0
        %4360 = vadd.xlane.f32.xlu0 %v4359
        %v4361 = vpop.xlane.xlu0 %4360
        %v4362 = vsel %vm1712, %v3992, 0.0
        %4363 = vadd.xlane.f32.xlu0 %v4362
        %v4364 = vpop.xlane.xlu0 %4363
        %v4365 = vsel %vm1712, %v3994, 0.0
        %4366 = vadd.xlane.f32.xlu0 %v4365
        %v4367 = vpop.xlane.xlu0 %4366
        %v4368 = vsel %vm1712, %v3996, 0.0
        %4369 = vadd.xlane.f32.xlu0 %v4368
        %v4370 = vpop.xlane.xlu0 %4369
        %v4371 = vsel %vm1712, %v3998, 0.0
        %4372 = vadd.xlane.f32.xlu0 %v4371
        %v4373 = vpop.xlane.xlu0 %4372
        %v4374 = vsel %vm1712, %v4000, 0.0
        %4375 = vadd.xlane.f32.xlu0 %v4374
        %v4376 = vpop.xlane.xlu0 %4375
        %v4377 = vsel %vm1712, %v4002, 0.0
        %4378 = vadd.xlane.f32.xlu0 %v4377
        %v4379 = vpop.xlane.xlu0 %4378
        %v4380 = vsel %vm1712, %v4004, 0.0
        %4381 = vadd.xlane.f32.xlu0 %v4380
        %v4382 = vpop.xlane.xlu0 %4381
        %v4383 = vsel %vm1712, %v4006, 0.0
        %4384 = vadd.xlane.f32.xlu0 %v4383
        %v4385 = vpop.xlane.xlu0 %4384
        %v4386 = vsel %vm1712, %v4008, 0.0
        %4387 = vadd.xlane.f32.xlu0 %v4386
        %v4388 = vpop.xlane.xlu0 %4387
        %v4389 = vsel %vm1712, %v4010, 0.0
        %4390 = vadd.xlane.f32.xlu0 %v4389
        %v4391 = vpop.xlane.xlu0 %4390
        %v4392 = vsel %vm1712, %v4012, 0.0
        %4393 = vadd.xlane.f32.xlu0 %v4392
        %v4394 = vpop.xlane.xlu0 %4393
        %v4395 = vsel %vm1712, %v4014, 0.0
        %4396 = vadd.xlane.f32.xlu0 %v4395
        %v4397 = vpop.xlane.xlu0 %4396
        %v4398 = vsel %vm1712, %v4016, 0.0
        %4399 = vadd.xlane.f32.xlu0 %v4398
        %v4400 = vpop.xlane.xlu0 %4399
        %v4401 = vrcp.pop %v4019
        %v4402 = vmul.f32 %v3762, %v4401
        %v4403 = vrcp.pop %v4022
        %v4404 = vmul.f32 %v3764, %v4403
        %v4405 = vrcp.pop %v4025
        %v4406 = vmul.f32 %v3766, %v4405
        %v4407 = vrcp.pop %v4028
        %v4408 = vmul.f32 %v3768, %v4407
        %v4409 = vrcp.pop %v4031
        %v4410 = vmul.f32 %v3770, %v4409
        %v4411 = vrcp.pop %v4034
        %v4412 = vmul.f32 %v3772, %v4411
        %v4413 = vrcp.pop %v4037
        %v4414 = vmul.f32 %v3774, %v4413
        %v4415 = vrcp.pop %v4040
        %v4416 = vmul.f32 %v3776, %v4415
        %v4417 = vrcp.pop %v4043
        %v4418 = vmul.f32 %v3778, %v4417
        %v4419 = vrcp.pop %v4046
        %v4420 = vmul.f32 %v3780, %v4419
        %v4421 = vrcp.pop %v4049
        %v4422 = vmul.f32 %v3782, %v4421
        %v4423 = vrcp.pop %v4052
        %v4424 = vmul.f32 %v3784, %v4423
        %v4425 = vrcp.pop %v4055
        %v4426 = vmul.f32 %v3786, %v4425
        %v4427 = vrcp.pop %v4058
        %v4428 = vmul.f32 %v3788, %v4427
        %v4429 = vrcp.pop %v4061
        %v4430 = vmul.f32 %v3790, %v4429
        %v4431 = vrcp.pop %v4064
        %v4432 = vmul.f32 %v3792, %v4431
        %v4433 = vrcp.pop %v4067
        %v4434 = vmul.f32 %v3794, %v4433
        %v4435 = vrcp.pop %v4070
        %v4436 = vmul.f32 %v3796, %v4435
        %v4437 = vrcp.pop %v4073
        %v4438 = vmul.f32 %v3798, %v4437
        %v4439 = vrcp.pop %v4076
        %v4440 = vmul.f32 %v3800, %v4439
        %v4441 = vrcp.pop %v4079
        %v4442 = vmul.f32 %v3802, %v4441
        %v4443 = vrcp.pop %v4082
        %v4444 = vmul.f32 %v3804, %v4443
        %v4445 = vrcp.pop %v4085
        %v4446 = vmul.f32 %v3806, %v4445
        %v4447 = vrcp.pop %v4088
        %v4448 = vmul.f32 %v3808, %v4447
        %v4449 = vrcp.pop %v4091
        %v4450 = vmul.f32 %v3810, %v4449
        %v4451 = vrcp.pop %v4094
        %v4452 = vmul.f32 %v3812, %v4451
        %v4453 = vrcp.pop %v4097
        %v4454 = vmul.f32 %v3814, %v4453
        %v4455 = vrcp.pop %v4100
        %v4456 = vmul.f32 %v3816, %v4455
        %v4457 = vrcp.pop %v4103
        %v4458 = vmul.f32 %v3818, %v4457
        %v4459 = vrcp.pop %v4106
        %v4460 = vmul.f32 %v3820, %v4459
        %v4461 = vrcp.pop %v4109
        %v4462 = vmul.f32 %v3822, %v4461
        %v4463 = vrcp.pop %v4112
        %v4464 = vmul.f32 %v3824, %v4463
        %v4465 = vrcp.pop %v4115
        %v4466 = vmul.f32 %v3826, %v4465
        %v4467 = vrcp.pop %v4118
        %v4468 = vmul.f32 %v3828, %v4467
        %v4469 = vrcp.pop %v4121
        %v4470 = vmul.f32 %v3830, %v4469
        %v4471 = vrcp.pop %v4124
        %v4472 = vmul.f32 %v3832, %v4471
        %v4473 = vrcp.pop %v4127
        %v4474 = vmul.f32 %v3834, %v4473
        %v4475 = vrcp.pop %v4130
        %v4476 = vmul.f32 %v3836, %v4475
        %v4477 = vrcp.pop %v4133
        %v4478 = vmul.f32 %v3838, %v4477
        %v4479 = vrcp.pop %v4136
        %v4480 = vmul.f32 %v3840, %v4479
        %v4481 = vrcp.pop %v4139
        %v4482 = vmul.f32 %v3842, %v4481
        %v4483 = vrcp.pop %v4142
        %v4484 = vmul.f32 %v3844, %v4483
        %v4485 = vrcp.pop %v4145
        %v4486 = vmul.f32 %v3846, %v4485
        %v4487 = vrcp.pop %v4148
        %v4488 = vmul.f32 %v3848, %v4487
        %v4489 = vrcp.pop %v4151
        %v4490 = vmul.f32 %v3850, %v4489
        %v4491 = vrcp.pop %v4154
        %v4492 = vmul.f32 %v3852, %v4491
        %v4493 = vrcp.pop %v4157
        %v4494 = vmul.f32 %v3854, %v4493
        %v4495 = vrcp.pop %v4160
        %v4496 = vmul.f32 %v3856, %v4495
        %v4497 = vrcp.pop %v4163
        %v4498 = vmul.f32 %v3858, %v4497
        %v4499 = vrcp.pop %v4166
        %v4500 = vmul.f32 %v3860, %v4499
        %v4501 = vrcp.pop %v4169
        %v4502 = vmul.f32 %v3862, %v4501
        %v4503 = vrcp.pop %v4172
        %v4504 = vmul.f32 %v3864, %v4503
        %v4505 = vrcp.pop %v4175
        %v4506 = vmul.f32 %v3866, %v4505
        %v4507 = vrcp.pop %v4178
        %v4508 = vmul.f32 %v3868, %v4507
        %v4509 = vrcp.pop %v4181
        %v4510 = vmul.f32 %v3870, %v4509
        %v4511 = vrcp.pop %v4184
        %v4512 = vmul.f32 %v3872, %v4511
        %v4513 = vrcp.pop %v4187
        %v4514 = vmul.f32 %v3874, %v4513
        %v4515 = vrcp.pop %v4190
        %v4516 = vmul.f32 %v3876, %v4515
        %v4517 = vrcp.pop %v4193
        %v4518 = vmul.f32 %v3878, %v4517
        %v4519 = vrcp.pop %v4196
        %v4520 = vmul.f32 %v3880, %v4519
        %v4521 = vrcp.pop %v4199
        %v4522 = vmul.f32 %v3882, %v4521
        %v4523 = vrcp.pop %v4202
        %v4524 = vmul.f32 %v3884, %v4523
        %v4525 = vrcp.pop %v4205
        %v4526 = vmul.f32 %v3886, %v4525
        %v4527 = vrcp.pop %v4208
        %v4528 = vmul.f32 %v3888, %v4527
        %v4529 = vrcp.pop %v4211
        %v4530 = vmul.f32 %v3890, %v4529
        %v4531 = vrcp.pop %v4214
        %v4532 = vmul.f32 %v3892, %v4531
        %v4533 = vrcp.pop %v4217
        %v4534 = vmul.f32 %v3894, %v4533
        %v4535 = vrcp.pop %v4220
        %v4536 = vmul.f32 %v3896, %v4535
        %v4537 = vrcp.pop %v4223
        %v4538 = vmul.f32 %v3898, %v4537
        %v4539 = vrcp.pop %v4226
        %v4540 = vmul.f32 %v3900, %v4539
        %v4541 = vrcp.pop %v4229
        %v4542 = vmul.f32 %v3902, %v4541
        %v4543 = vrcp.pop %v4232
        %v4544 = vmul.f32 %v3904, %v4543
        %v4545 = vrcp.pop %v4235
        %v4546 = vmul.f32 %v3906, %v4545
        %v4547 = vrcp.pop %v4238
        %v4548 = vmul.f32 %v3908, %v4547
        %v4549 = vrcp.pop %v4241
        %v4550 = vmul.f32 %v3910, %v4549
        %v4551 = vrcp.pop %v4244
        %v4552 = vmul.f32 %v3912, %v4551
        %v4553 = vrcp.pop %v4247
        %v4554 = vmul.f32 %v3914, %v4553
        %v4555 = vrcp.pop %v4250
        %v4556 = vmul.f32 %v3916, %v4555
        %v4557 = vrcp.pop %v4253
        %v4558 = vmul.f32 %v3918, %v4557
        %v4559 = vrcp.pop %v4256
        %v4560 = vmul.f32 %v3920, %v4559
        %v4561 = vrcp.pop %v4259
        %v4562 = vmul.f32 %v3922, %v4561
        %v4563 = vrcp.pop %v4262
        %v4564 = vmul.f32 %v3924, %v4563
        %v4565 = vrcp.pop %v4265
        %v4566 = vmul.f32 %v3926, %v4565
        %v4567 = vrcp.pop %v4268
        %v4568 = vmul.f32 %v3928, %v4567
        %v4569 = vrcp.pop %v4271
        %v4570 = vmul.f32 %v3930, %v4569
        %v4571 = vrcp.pop %v4274
        %v4572 = vmul.f32 %v3932, %v4571
        %v4573 = vrcp.pop %v4277
        %v4574 = vmul.f32 %v3934, %v4573
        %v4575 = vrcp.pop %v4280
        %v4576 = vmul.f32 %v3936, %v4575
        %v4577 = vrcp.pop %v4283
        %v4578 = vmul.f32 %v3938, %v4577
        %v4579 = vrcp.pop %v4286
        %v4580 = vmul.f32 %v3940, %v4579
        %v4581 = vrcp.pop %v4289
        %v4582 = vmul.f32 %v3942, %v4581
        %v4583 = vrcp.pop %v4292
        %v4584 = vmul.f32 %v3944, %v4583
        %v4585 = vrcp.pop %v4295
        %v4586 = vmul.f32 %v3946, %v4585
        %v4587 = vrcp.pop %v4298
        %v4588 = vmul.f32 %v3948, %v4587
        %v4589 = vrcp.pop %v4301
        %v4590 = vmul.f32 %v3950, %v4589
        %v4591 = vrcp.pop %v4304
        %v4592 = vmul.f32 %v3952, %v4591
        %v4593 = vrcp.pop %v4307
        %v4594 = vmul.f32 %v3954, %v4593
        %v4595 = vrcp.pop %v4310
        %v4596 = vmul.f32 %v3956, %v4595
        %v4597 = vrcp.pop %v4313
        %v4598 = vmul.f32 %v3958, %v4597
        %v4599 = vrcp.pop %v4316
        %v4600 = vmul.f32 %v3960, %v4599
        %v4601 = vrcp.pop %v4319
        %v4602 = vmul.f32 %v3962, %v4601
        %v4603 = vrcp.pop %v4322
        %v4604 = vmul.f32 %v3964, %v4603
        %v4605 = vrcp.pop %v4325
        %v4606 = vmul.f32 %v3966, %v4605
        %v4607 = vrcp.pop %v4328
        %v4608 = vmul.f32 %v3968, %v4607
        %v4609 = vrcp.pop %v4331
        %v4610 = vmul.f32 %v3970, %v4609
        %v4611 = vrcp.pop %v4334
        %v4612 = vmul.f32 %v3972, %v4611
        %v4613 = vrcp.pop %v4337
        %v4614 = vmul.f32 %v3974, %v4613
        %v4615 = vrcp.pop %v4340
        %v4616 = vmul.f32 %v3976, %v4615
        %v4617 = vrcp.pop %v4343
        %v4618 = vmul.f32 %v3978, %v4617
        %v4619 = vrcp.pop %v4346
        %v4620 = vmul.f32 %v3980, %v4619
        %v4621 = vrcp.pop %v4349
        %v4622 = vmul.f32 %v3982, %v4621
        %v4623 = vrcp.pop %v4352
        %v4624 = vmul.f32 %v3984, %v4623
        %v4625 = vrcp.pop %v4355
        %v4626 = vmul.f32 %v3986, %v4625
        %v4627 = vrcp.pop %v4358
        %v4628 = vmul.f32 %v3988, %v4627
        %v4629 = vrcp.pop %v4361
        %v4630 = vmul.f32 %v3990, %v4629
        %v4631 = vrcp.pop %v4364
        %v4632 = vmul.f32 %v3992, %v4631
        %v4633 = vrcp.pop %v4367
        %v4634 = vmul.f32 %v3994, %v4633
        %v4635 = vrcp.pop %v4370
        %v4636 = vmul.f32 %v3996, %v4635
        %v4637 = vrcp.pop %v4373
        %v4638 = vmul.f32 %v3998, %v4637
        %v4639 = vrcp.pop %v4376
        %v4640 = vmul.f32 %v4000, %v4639
        %v4641 = vrcp.pop %v4379
        %v4642 = vmul.f32 %v4002, %v4641
        %v4643 = vrcp.pop %v4382
        %v4644 = vmul.f32 %v4004, %v4643
        %v4645 = vrcp.pop %v4385
        %v4646 = vmul.f32 %v4006, %v4645
        %v4647 = vrcp.pop %v4388
        %v4648 = vmul.f32 %v4008, %v4647
        %v4649 = vrcp.pop %v4391
        %v4650 = vmul.f32 %v4010, %v4649
        %v4651 = vrcp.pop %v4394
        %v4652 = vmul.f32 %v4012, %v4651
        %v4653 = vrcp.pop %v4397
        %v4654 = vmul.f32 %v4014, %v4653
        %v4655 = vrcp.pop %v4400
        %v4656 = vmul.f32 %v4016, %v4655
        %v4657 = vxor.u32 %v937, 2147483648
        %v4658 = vxor.u32 %v942, 2147483648
        %v4659 = vxor.u32 %v947, 2147483648
        %v4660 = vxor.u32 %v952, 2147483648
        %v4661 = vxor.u32 %v957, 2147483648
        %v4662 = vxor.u32 %v962, 2147483648
        %v4663 = vxor.u32 %v967, 2147483648
        %v4664 = vxor.u32 %v972, 2147483648
        %v4665 = vxor.u32 %v977, 2147483648
        %v4666 = vxor.u32 %v982, 2147483648
        %v4667 = vxor.u32 %v987, 2147483648
        %v4668 = vxor.u32 %v992, 2147483648
        %v4669 = vxor.u32 %v997, 2147483648
        %v4670 = vxor.u32 %v1002, 2147483648
        %v4671 = vxor.u32 %v1007, 2147483648
        %v4672 = vxor.u32 %v1012, 2147483648
        %v4673 = vxor.u32 %v1017, 2147483648
        %v4674 = vxor.u32 %v1022, 2147483648
        %v4675 = vxor.u32 %v1027, 2147483648
        %v4676 = vxor.u32 %v1032, 2147483648
        %v4677 = vxor.u32 %v1037, 2147483648
        %v4678 = vxor.u32 %v1042, 2147483648
        %v4679 = vxor.u32 %v1047, 2147483648
        %v4680 = vxor.u32 %v1052, 2147483648
        %v4681 = vxor.u32 %v1057, 2147483648
        %v4682 = vxor.u32 %v1062, 2147483648
        %v4683 = vxor.u32 %v1067, 2147483648
        %v4684 = vxor.u32 %v1072, 2147483648
        %v4685 = vxor.u32 %v1077, 2147483648
        %v4686 = vxor.u32 %v1082, 2147483648
        %v4687 = vxor.u32 %v1087, 2147483648
        %v4688 = vxor.u32 %v1092, 2147483648
        %v4689 = vxor.u32 %v1097, 2147483648
        %v4690 = vxor.u32 %v1102, 2147483648
        %v4691 = vxor.u32 %v1107, 2147483648
        %v4692 = vxor.u32 %v1112, 2147483648
        %v4693 = vxor.u32 %v1117, 2147483648
        %v4694 = vxor.u32 %v1122, 2147483648
        %v4695 = vxor.u32 %v1127, 2147483648
        %v4696 = vxor.u32 %v1132, 2147483648
        %v4697 = vxor.u32 %v1137, 2147483648
        %v4698 = vxor.u32 %v1142, 2147483648
        %v4699 = vxor.u32 %v1147, 2147483648
        %v4700 = vxor.u32 %v1152, 2147483648
        %v4701 = vxor.u32 %v1157, 2147483648
        %v4702 = vxor.u32 %v1162, 2147483648
        %v4703 = vxor.u32 %v1167, 2147483648
        %v4704 = vxor.u32 %v1172, 2147483648
        %v4705 = vxor.u32 %v1177, 2147483648
        %v4706 = vxor.u32 %v1182, 2147483648
        %v4707 = vxor.u32 %v1187, 2147483648
        %v4708 = vxor.u32 %v1192, 2147483648
        %v4709 = vxor.u32 %v1197, 2147483648
        %v4710 = vxor.u32 %v1202, 2147483648
        %v4711 = vxor.u32 %v1207, 2147483648
        %v4712 = vxor.u32 %v1212, 2147483648
        %v4713 = vxor.u32 %v1217, 2147483648
        %v4714 = vxor.u32 %v1222, 2147483648
        %v4715 = vxor.u32 %v1227, 2147483648
        %v4716 = vxor.u32 %v1232, 2147483648
        %v4717 = vxor.u32 %v1237, 2147483648
        %v4718 = vxor.u32 %v1242, 2147483648
        %v4719 = vxor.u32 %v1247, 2147483648
        %v4720 = vxor.u32 %v1252, 2147483648
        %v4721 = vxor.u32 %v1257, 2147483648
        %v4722 = vxor.u32 %v1262, 2147483648
        %v4723 = vxor.u32 %v1267, 2147483648
        %v4724 = vxor.u32 %v1272, 2147483648
        %v4725 = vxor.u32 %v1277, 2147483648
        %v4726 = vxor.u32 %v1282, 2147483648
        %v4727 = vxor.u32 %v1287, 2147483648
        %v4728 = vxor.u32 %v1292, 2147483648
        %v4729 = vxor.u32 %v1297, 2147483648
        %v4730 = vxor.u32 %v1302, 2147483648
        %v4731 = vxor.u32 %v1307, 2147483648
        %v4732 = vxor.u32 %v1312, 2147483648
        %v4733 = vxor.u32 %v1317, 2147483648
        %v4734 = vxor.u32 %v1322, 2147483648
        %v4735 = vxor.u32 %v1327, 2147483648
        %v4736 = vxor.u32 %v1332, 2147483648
        %v4737 = vxor.u32 %v1337, 2147483648
        %v4738 = vxor.u32 %v1342, 2147483648
        %v4739 = vxor.u32 %v1347, 2147483648
        %v4740 = vxor.u32 %v1352, 2147483648
        %v4741 = vxor.u32 %v1357, 2147483648
        %v4742 = vxor.u32 %v1362, 2147483648
        %v4743 = vxor.u32 %v1367, 2147483648
        %v4744 = vxor.u32 %v1372, 2147483648
        %v4745 = vxor.u32 %v1377, 2147483648
        %v4746 = vxor.u32 %v1382, 2147483648
        %v4747 = vxor.u32 %v1387, 2147483648
        %v4748 = vxor.u32 %v1392, 2147483648
        %v4749 = vxor.u32 %v1397, 2147483648
        %v4750 = vxor.u32 %v1402, 2147483648
        %v4751 = vxor.u32 %v1407, 2147483648
        %v4752 = vxor.u32 %v1412, 2147483648
        %v4753 = vxor.u32 %v1417, 2147483648
        %v4754 = vxor.u32 %v1422, 2147483648
        %v4755 = vxor.u32 %v1427, 2147483648
        %v4756 = vxor.u32 %v1432, 2147483648
        %v4757 = vxor.u32 %v1437, 2147483648
        %v4758 = vxor.u32 %v1442, 2147483648
        %v4759 = vxor.u32 %v1447, 2147483648
        %v4760 = vxor.u32 %v1452, 2147483648
        %v4761 = vxor.u32 %v1457, 2147483648
        %v4762 = vxor.u32 %v1462, 2147483648
        %v4763 = vxor.u32 %v1467, 2147483648
        %v4764 = vxor.u32 %v1472, 2147483648
        %v4765 = vxor.u32 %v1477, 2147483648
        %v4766 = vxor.u32 %v1482, 2147483648
        %v4767 = vxor.u32 %v1487, 2147483648
        %v4768 = vxor.u32 %v1492, 2147483648
        %v4769 = vxor.u32 %v1497, 2147483648
        %v4770 = vxor.u32 %v1502, 2147483648
        %v4771 = vxor.u32 %v1507, 2147483648
        %v4772 = vxor.u32 %v1512, 2147483648
        %v4773 = vxor.u32 %v1517, 2147483648
        %v4774 = vxor.u32 %v1522, 2147483648
        %v4775 = vxor.u32 %v1527, 2147483648
        %v4776 = vxor.u32 %v1532, 2147483648
        %v4777 = vxor.u32 %v1537, 2147483648
        %v4778 = vxor.u32 %v1542, 2147483648
        %v4779 = vxor.u32 %v1547, 2147483648
        %v4780 = vxor.u32 %v1552, 2147483648
        %v4781 = vxor.u32 %v1557, 2147483648
        %v4782 = vxor.u32 %v1562, 2147483648
        %v4783 = vxor.u32 %v1567, 2147483648
        %v4784 = vxor.u32 %v1572, 2147483648
        %v4785 = vmul.f32 %v4657, 1.442695
        %v4786 = vpow.pop %v4785
        %v4787 = vmul.f32 %v4658, 1.442695
        %v4788 = vpow.pop %v4787
        %v4789 = vmul.f32 %v4659, 1.442695
        %v4790 = vpow.pop %v4789
        %v4791 = vmul.f32 %v4660, 1.442695
        %v4792 = vpow.pop %v4791
        %v4793 = vmul.f32 %v4661, 1.442695
        %v4794 = vpow.pop %v4793
        %v4795 = vmul.f32 %v4662, 1.442695
        %v4796 = vpow.pop %v4795
        %v4797 = vmul.f32 %v4663, 1.442695
        %v4798 = vpow.pop %v4797
        %v4799 = vmul.f32 %v4664, 1.442695
        %v4800 = vpow.pop %v4799
        %v4801 = vmul.f32 %v4665, 1.442695
        %v4802 = vpow.pop %v4801
        %v4803 = vmul.f32 %v4666, 1.442695
        %v4804 = vpow.pop %v4803
        %v4805 = vmul.f32 %v4667, 1.442695
        %v4806 = vpow.pop %v4805
        %v4807 = vmul.f32 %v4668, 1.442695
        %v4808 = vpow.pop %v4807
        %v4809 = vmul.f32 %v4669, 1.442695
        %v4810 = vpow.pop %v4809
        %v4811 = vmul.f32 %v4670, 1.442695
        %v4812 = vpow.pop %v4811
        %v4813 = vmul.f32 %v4671, 1.442695
        %v4814 = vpow.pop %v4813
        %v4815 = vmul.f32 %v4672, 1.442695
        %v4816 = vpow.pop %v4815
        %v4817 = vmul.f32 %v4673, 1.442695
        %v4818 = vpow.pop %v4817
        %v4819 = vmul.f32 %v4674, 1.442695
        %v4820 = vpow.pop %v4819
        %v4821 = vmul.f32 %v4675, 1.442695
        %v4822 = vpow.pop %v4821
        %v4823 = vmul.f32 %v4676, 1.442695
        %v4824 = vpow.pop %v4823
        %v4825 = vmul.f32 %v4677, 1.442695
        %v4826 = vpow.pop %v4825
        %v4827 = vmul.f32 %v4678, 1.442695
        %v4828 = vpow.pop %v4827
        %v4829 = vmul.f32 %v4679, 1.442695
        %v4830 = vpow.pop %v4829
        %v4831 = vmul.f32 %v4680, 1.442695
        %v4832 = vpow.pop %v4831
        %v4833 = vmul.f32 %v4681, 1.442695
        %v4834 = vpow.pop %v4833
        %v4835 = vmul.f32 %v4682, 1.442695
        %v4836 = vpow.pop %v4835
        %v4837 = vmul.f32 %v4683, 1.442695
        %v4838 = vpow.pop %v4837
        %v4839 = vmul.f32 %v4684, 1.442695
        %v4840 = vpow.pop %v4839
        %v4841 = vmul.f32 %v4685, 1.442695
        %v4842 = vpow.pop %v4841
        %v4843 = vmul.f32 %v4686, 1.442695
        %v4844 = vpow.pop %v4843
        %v4845 = vmul.f32 %v4687, 1.442695
        %v4846 = vpow.pop %v4845
        %v4847 = vmul.f32 %v4688, 1.442695
        %v4848 = vpow.pop %v4847
        %v4849 = vmul.f32 %v4689, 1.442695
        %v4850 = vpow.pop %v4849
        %v4851 = vmul.f32 %v4690, 1.442695
        %v4852 = vpow.pop %v4851
        %v4853 = vmul.f32 %v4691, 1.442695
        %v4854 = vpow.pop %v4853
        %v4855 = vmul.f32 %v4692, 1.442695
        %v4856 = vpow.pop %v4855
        %v4857 = vmul.f32 %v4693, 1.442695
        %v4858 = vpow.pop %v4857
        %v4859 = vmul.f32 %v4694, 1.442695
        %v4860 = vpow.pop %v4859
        %v4861 = vmul.f32 %v4695, 1.442695
        %v4862 = vpow.pop %v4861
        %v4863 = vmul.f32 %v4696, 1.442695
        %v4864 = vpow.pop %v4863
        %v4865 = vmul.f32 %v4697, 1.442695
        %v4866 = vpow.pop %v4865
        %v4867 = vmul.f32 %v4698, 1.442695
        %v4868 = vpow.pop %v4867
        %v4869 = vmul.f32 %v4699, 1.442695
        %v4870 = vpow.pop %v4869
        %v4871 = vmul.f32 %v4700, 1.442695
        %v4872 = vpow.pop %v4871
        %v4873 = vmul.f32 %v4701, 1.442695
        %v4874 = vpow.pop %v4873
        %v4875 = vmul.f32 %v4702, 1.442695
        %v4876 = vpow.pop %v4875
        %v4877 = vmul.f32 %v4703, 1.442695
        %v4878 = vpow.pop %v4877
        %v4879 = vmul.f32 %v4704, 1.442695
        %v4880 = vpow.pop %v4879
        %v4881 = vmul.f32 %v4705, 1.442695
        %v4882 = vpow.pop %v4881
        %v4883 = vmul.f32 %v4706, 1.442695
        %v4884 = vpow.pop %v4883
        %v4885 = vmul.f32 %v4707, 1.442695
        %v4886 = vpow.pop %v4885
        %v4887 = vmul.f32 %v4708, 1.442695
        %v4888 = vpow.pop %v4887
        %v4889 = vmul.f32 %v4709, 1.442695
        %v4890 = vpow.pop %v4889
        %v4891 = vmul.f32 %v4710, 1.442695
        %v4892 = vpow.pop %v4891
        %v4893 = vmul.f32 %v4711, 1.442695
        %v4894 = vpow.pop %v4893
        %v4895 = vmul.f32 %v4712, 1.442695
        %v4896 = vpow.pop %v4895
        %v4897 = vmul.f32 %v4713, 1.442695
        %v4898 = vpow.pop %v4897
        %v4899 = vmul.f32 %v4714, 1.442695
        %v4900 = vpow.pop %v4899
        %v4901 = vmul.f32 %v4715, 1.442695
        %v4902 = vpow.pop %v4901
        %v4903 = vmul.f32 %v4716, 1.442695
        %v4904 = vpow.pop %v4903
        %v4905 = vmul.f32 %v4717, 1.442695
        %v4906 = vpow.pop %v4905
        %v4907 = vmul.f32 %v4718, 1.442695
        %v4908 = vpow.pop %v4907
        %v4909 = vmul.f32 %v4719, 1.442695
        %v4910 = vpow.pop %v4909
        %v4911 = vmul.f32 %v4720, 1.442695
        %v4912 = vpow.pop %v4911
        %v4913 = vmul.f32 %v4721, 1.442695
        %v4914 = vpow.pop %v4913
        %v4915 = vmul.f32 %v4722, 1.442695
        %v4916 = vpow.pop %v4915
        %v4917 = vmul.f32 %v4723, 1.442695
        %v4918 = vpow.pop %v4917
        %v4919 = vmul.f32 %v4724, 1.442695
        %v4920 = vpow.pop %v4919
        %v4921 = vmul.f32 %v4725, 1.442695
        %v4922 = vpow.pop %v4921
        %v4923 = vmul.f32 %v4726, 1.442695
        %v4924 = vpow.pop %v4923
        %v4925 = vmul.f32 %v4727, 1.442695
        %v4926 = vpow.pop %v4925
        %v4927 = vmul.f32 %v4728, 1.442695
        %v4928 = vpow.pop %v4927
        %v4929 = vmul.f32 %v4729, 1.442695
        %v4930 = vpow.pop %v4929
        %v4931 = vmul.f32 %v4730, 1.442695
        %v4932 = vpow.pop %v4931
        %v4933 = vmul.f32 %v4731, 1.442695
        %v4934 = vpow.pop %v4933
        %v4935 = vmul.f32 %v4732, 1.442695
        %v4936 = vpow.pop %v4935
        %v4937 = vmul.f32 %v4733, 1.442695
        %v4938 = vpow.pop %v4937
        %v4939 = vmul.f32 %v4734, 1.442695
        %v4940 = vpow.pop %v4939
        %v4941 = vmul.f32 %v4735, 1.442695
        %v4942 = vpow.pop %v4941
        %v4943 = vmul.f32 %v4736, 1.442695
        %v4944 = vpow.pop %v4943
        %v4945 = vmul.f32 %v4737, 1.442695
        %v4946 = vpow.pop %v4945
        %v4947 = vmul.f32 %v4738, 1.442695
        %v4948 = vpow.pop %v4947
        %v4949 = vmul.f32 %v4739, 1.442695
        %v4950 = vpow.pop %v4949
        %v4951 = vmul.f32 %v4740, 1.442695
        %v4952 = vpow.pop %v4951
        %v4953 = vmul.f32 %v4741, 1.442695
        %v4954 = vpow.pop %v4953
        %v4955 = vmul.f32 %v4742, 1.442695
        %v4956 = vpow.pop %v4955
        %v4957 = vmul.f32 %v4743, 1.442695
        %v4958 = vpow.pop %v4957
        %v4959 = vmul.f32 %v4744, 1.442695
        %v4960 = vpow.pop %v4959
        %v4961 = vmul.f32 %v4745, 1.442695
        %v4962 = vpow.pop %v4961
        %v4963 = vmul.f32 %v4746, 1.442695
        %v4964 = vpow.pop %v4963
        %v4965 = vmul.f32 %v4747, 1.442695
        %v4966 = vpow.pop %v4965
        %v4967 = vmul.f32 %v4748, 1.442695
        %v4968 = vpow.pop %v4967
        %v4969 = vmul.f32 %v4749, 1.442695
        %v4970 = vpow.pop %v4969
        %v4971 = vmul.f32 %v4750, 1.442695
        %v4972 = vpow.pop %v4971
        %v4973 = vmul.f32 %v4751, 1.442695
        %v4974 = vpow.pop %v4973
        %v4975 = vmul.f32 %v4752, 1.442695
        %v4976 = vpow.pop %v4975
        %v4977 = vmul.f32 %v4753, 1.442695
        %v4978 = vpow.pop %v4977
        %v4979 = vmul.f32 %v4754, 1.442695
        %v4980 = vpow.pop %v4979
        %v4981 = vmul.f32 %v4755, 1.442695
        %v4982 = vpow.pop %v4981
        %v4983 = vmul.f32 %v4756, 1.442695
        %v4984 = vpow.pop %v4983
        %v4985 = vmul.f32 %v4757, 1.442695
        %v4986 = vpow.pop %v4985
        %v4987 = vmul.f32 %v4758, 1.442695
        %v4988 = vpow.pop %v4987
        %v4989 = vmul.f32 %v4759, 1.442695
        %v4990 = vpow.pop %v4989
        %v4991 = vmul.f32 %v4760, 1.442695
        %v4992 = vpow.pop %v4991
        %v4993 = vmul.f32 %v4761, 1.442695
        %v4994 = vpow.pop %v4993
        %v4995 = vmul.f32 %v4762, 1.442695
        %v4996 = vpow.pop %v4995
        %v4997 = vmul.f32 %v4763, 1.442695
        %v4998 = vpow.pop %v4997
        %v4999 = vmul.f32 %v4764, 1.442695
        %v5000 = vpow.pop %v4999
        %v5001 = vmul.f32 %v4765, 1.442695
        %v5002 = vpow.pop %v5001
        %v5003 = vmul.f32 %v4766, 1.442695
        %v5004 = vpow.pop %v5003
        %v5005 = vmul.f32 %v4767, 1.442695
        %v5006 = vpow.pop %v5005
        %v5007 = vmul.f32 %v4768, 1.442695
        %v5008 = vpow.pop %v5007
        %v5009 = vmul.f32 %v4769, 1.442695
        %v5010 = vpow.pop %v5009
        %v5011 = vmul.f32 %v4770, 1.442695
        %v5012 = vpow.pop %v5011
        %v5013 = vmul.f32 %v4771, 1.442695
        %v5014 = vpow.pop %v5013
        %v5015 = vmul.f32 %v4772, 1.442695
        %v5016 = vpow.pop %v5015
        %v5017 = vmul.f32 %v4773, 1.442695
        %v5018 = vpow.pop %v5017
        %v5019 = vmul.f32 %v4774, 1.442695
        %v5020 = vpow.pop %v5019
        %v5021 = vmul.f32 %v4775, 1.442695
        %v5022 = vpow.pop %v5021
        %v5023 = vmul.f32 %v4776, 1.442695
        %v5024 = vpow.pop %v5023
        %v5025 = vmul.f32 %v4777, 1.442695
        %v5026 = vpow.pop %v5025
        %v5027 = vmul.f32 %v4778, 1.442695
        %v5028 = vpow.pop %v5027
        %v5029 = vmul.f32 %v4779, 1.442695
        %v5030 = vpow.pop %v5029
        %v5031 = vmul.f32 %v4780, 1.442695
        %v5032 = vpow.pop %v5031
        %v5033 = vmul.f32 %v4781, 1.442695
        %v5034 = vpow.pop %v5033
        %v5035 = vmul.f32 %v4782, 1.442695
        %v5036 = vpow.pop %v5035
        %v5037 = vmul.f32 %v4783, 1.442695
        %v5038 = vpow.pop %v5037
        %v5039 = vmul.f32 %v4784, 1.442695
        %v5040 = vpow.pop %v5039
        %v5041 = vadd.f32 %v4786, 1.0
        %v5042 = vadd.f32 %v4788, 1.0
        %v5043 = vadd.f32 %v4790, 1.0
        %v5044 = vadd.f32 %v4792, 1.0
        %v5045 = vadd.f32 %v4794, 1.0
        %v5046 = vadd.f32 %v4796, 1.0
        %v5047 = vadd.f32 %v4798, 1.0
        %v5048 = vadd.f32 %v4800, 1.0
        %v5049 = vadd.f32 %v4802, 1.0
        %v5050 = vadd.f32 %v4804, 1.0
        %v5051 = vadd.f32 %v4806, 1.0
        %v5052 = vadd.f32 %v4808, 1.0
        %v5053 = vadd.f32 %v4810, 1.0
        %v5054 = vadd.f32 %v4812, 1.0
        %v5055 = vadd.f32 %v4814, 1.0
        %v5056 = vadd.f32 %v4816, 1.0
        %v5057 = vadd.f32 %v4818, 1.0
        %v5058 = vadd.f32 %v4820, 1.0
        %v5059 = vadd.f32 %v4822, 1.0
        %v5060 = vadd.f32 %v4824, 1.0
        %v5061 = vadd.f32 %v4826, 1.0
        %v5062 = vadd.f32 %v4828, 1.0
        %v5063 = vadd.f32 %v4830, 1.0
        %v5064 = vadd.f32 %v4832, 1.0
        %v5065 = vadd.f32 %v4834, 1.0
        %v5066 = vadd.f32 %v4836, 1.0
        %v5067 = vadd.f32 %v4838, 1.0
        %v5068 = vadd.f32 %v4840, 1.0
        %v5069 = vadd.f32 %v4842, 1.0
        %v5070 = vadd.f32 %v4844, 1.0
        %v5071 = vadd.f32 %v4846, 1.0
        %v5072 = vadd.f32 %v4848, 1.0
        %v5073 = vadd.f32 %v4850, 1.0
        %v5074 = vadd.f32 %v4852, 1.0
        %v5075 = vadd.f32 %v4854, 1.0
        %v5076 = vadd.f32 %v4856, 1.0
        %v5077 = vadd.f32 %v4858, 1.0
        %v5078 = vadd.f32 %v4860, 1.0
        %v5079 = vadd.f32 %v4862, 1.0
        %v5080 = vadd.f32 %v4864, 1.0
        %v5081 = vadd.f32 %v4866, 1.0
        %v5082 = vadd.f32 %v4868, 1.0
        %v5083 = vadd.f32 %v4870, 1.0
        %v5084 = vadd.f32 %v4872, 1.0
        %v5085 = vadd.f32 %v4874, 1.0
        %v5086 = vadd.f32 %v4876, 1.0
        %v5087 = vadd.f32 %v4878, 1.0
        %v5088 = vadd.f32 %v4880, 1.0
        %v5089 = vadd.f32 %v4882, 1.0
        %v5090 = vadd.f32 %v4884, 1.0
        %v5091 = vadd.f32 %v4886, 1.0
        %v5092 = vadd.f32 %v4888, 1.0
        %v5093 = vadd.f32 %v4890, 1.0
        %v5094 = vadd.f32 %v4892, 1.0
        %v5095 = vadd.f32 %v4894, 1.0
        %v5096 = vadd.f32 %v4896, 1.0
        %v5097 = vadd.f32 %v4898, 1.0
        %v5098 = vadd.f32 %v4900, 1.0
        %v5099 = vadd.f32 %v4902, 1.0
        %v5100 = vadd.f32 %v4904, 1.0
        %v5101 = vadd.f32 %v4906, 1.0
        %v5102 = vadd.f32 %v4908, 1.0
        %v5103 = vadd.f32 %v4910, 1.0
        %v5104 = vadd.f32 %v4912, 1.0
        %v5105 = vadd.f32 %v4914, 1.0
        %v5106 = vadd.f32 %v4916, 1.0
        %v5107 = vadd.f32 %v4918, 1.0
        %v5108 = vadd.f32 %v4920, 1.0
        %v5109 = vadd.f32 %v4922, 1.0
        %v5110 = vadd.f32 %v4924, 1.0
        %v5111 = vadd.f32 %v4926, 1.0
        %v5112 = vadd.f32 %v4928, 1.0
        %v5113 = vadd.f32 %v4930, 1.0
        %v5114 = vadd.f32 %v4932, 1.0
        %v5115 = vadd.f32 %v4934, 1.0
        %v5116 = vadd.f32 %v4936, 1.0
        %v5117 = vadd.f32 %v4938, 1.0
        %v5118 = vadd.f32 %v4940, 1.0
        %v5119 = vadd.f32 %v4942, 1.0
        %v5120 = vadd.f32 %v4944, 1.0
        %v5121 = vadd.f32 %v4946, 1.0
        %v5122 = vadd.f32 %v4948, 1.0
        %v5123 = vadd.f32 %v4950, 1.0
        %v5124 = vadd.f32 %v4952, 1.0
        %v5125 = vadd.f32 %v4954, 1.0
        %v5126 = vadd.f32 %v4956, 1.0
        %v5127 = vadd.f32 %v4958, 1.0
        %v5128 = vadd.f32 %v4960, 1.0
        %v5129 = vadd.f32 %v4962, 1.0
        %v5130 = vadd.f32 %v4964, 1.0
        %v5131 = vadd.f32 %v4966, 1.0
        %v5132 = vadd.f32 %v4968, 1.0
        %v5133 = vadd.f32 %v4970, 1.0
        %v5134 = vadd.f32 %v4972, 1.0
        %v5135 = vadd.f32 %v4974, 1.0
        %v5136 = vadd.f32 %v4976, 1.0
        %v5137 = vadd.f32 %v4978, 1.0
        %v5138 = vadd.f32 %v4980, 1.0
        %v5139 = vadd.f32 %v4982, 1.0
        %v5140 = vadd.f32 %v4984, 1.0
        %v5141 = vadd.f32 %v4986, 1.0
        %v5142 = vadd.f32 %v4988, 1.0
        %v5143 = vadd.f32 %v4990, 1.0
        %v5144 = vadd.f32 %v4992, 1.0
        %v5145 = vadd.f32 %v4994, 1.0
        %v5146 = vadd.f32 %v4996, 1.0
        %v5147 = vadd.f32 %v4998, 1.0
        %v5148 = vadd.f32 %v5000, 1.0
        %v5149 = vadd.f32 %v5002, 1.0
        %v5150 = vadd.f32 %v5004, 1.0
        %v5151 = vadd.f32 %v5006, 1.0
        %v5152 = vadd.f32 %v5008, 1.0
        %v5153 = vadd.f32 %v5010, 1.0
        %v5154 = vadd.f32 %v5012, 1.0
        %v5155 = vadd.f32 %v5014, 1.0
        %v5156 = vadd.f32 %v5016, 1.0
        %v5157 = vadd.f32 %v5018, 1.0
        %v5158 = vadd.f32 %v5020, 1.0
        %v5159 = vadd.f32 %v5022, 1.0
        %v5160 = vadd.f32 %v5024, 1.0
        %v5161 = vadd.f32 %v5026, 1.0
        %v5162 = vadd.f32 %v5028, 1.0
        %v5163 = vadd.f32 %v5030, 1.0
        %v5164 = vadd.f32 %v5032, 1.0
        %v5165 = vadd.f32 %v5034, 1.0
        %v5166 = vadd.f32 %v5036, 1.0
        %v5167 = vadd.f32 %v5038, 1.0
        %v5168 = vadd.f32 %v5040, 1.0
        %v5169 = vrcp.pop %v5041
        %v5170 = vmul.f32 1.0, %v5169
        %v5171 = vrcp.pop %v5042
        %v5172 = vmul.f32 1.0, %v5171
        %v5173 = vrcp.pop %v5043
        %v5174 = vmul.f32 1.0, %v5173
        %v5175 = vrcp.pop %v5044
        %v5176 = vmul.f32 1.0, %v5175
        %v5177 = vrcp.pop %v5045
        %v5178 = vmul.f32 1.0, %v5177
        %v5179 = vrcp.pop %v5046
        %v5180 = vmul.f32 1.0, %v5179
        %v5181 = vrcp.pop %v5047
        %v5182 = vmul.f32 1.0, %v5181
        %v5183 = vrcp.pop %v5048
        %v5184 = vmul.f32 1.0, %v5183
        %v5185 = vrcp.pop %v5049
        %v5186 = vmul.f32 1.0, %v5185
        %v5187 = vrcp.pop %v5050
        %v5188 = vmul.f32 1.0, %v5187
        %v5189 = vrcp.pop %v5051
        %v5190 = vmul.f32 1.0, %v5189
        %v5191 = vrcp.pop %v5052
        %v5192 = vmul.f32 1.0, %v5191
        %v5193 = vrcp.pop %v5053
        %v5194 = vmul.f32 1.0, %v5193
        %v5195 = vrcp.pop %v5054
        %v5196 = vmul.f32 1.0, %v5195
        %v5197 = vrcp.pop %v5055
        %v5198 = vmul.f32 1.0, %v5197
        %v5199 = vrcp.pop %v5056
        %v5200 = vmul.f32 1.0, %v5199
        %v5201 = vrcp.pop %v5057
        %v5202 = vmul.f32 1.0, %v5201
        %v5203 = vrcp.pop %v5058
        %v5204 = vmul.f32 1.0, %v5203
        %v5205 = vrcp.pop %v5059
        %v5206 = vmul.f32 1.0, %v5205
        %v5207 = vrcp.pop %v5060
        %v5208 = vmul.f32 1.0, %v5207
        %v5209 = vrcp.pop %v5061
        %v5210 = vmul.f32 1.0, %v5209
        %v5211 = vrcp.pop %v5062
        %v5212 = vmul.f32 1.0, %v5211
        %v5213 = vrcp.pop %v5063
        %v5214 = vmul.f32 1.0, %v5213
        %v5215 = vrcp.pop %v5064
        %v5216 = vmul.f32 1.0, %v5215
        %v5217 = vrcp.pop %v5065
        %v5218 = vmul.f32 1.0, %v5217
        %v5219 = vrcp.pop %v5066
        %v5220 = vmul.f32 1.0, %v5219
        %v5221 = vrcp.pop %v5067
        %v5222 = vmul.f32 1.0, %v5221
        %v5223 = vrcp.pop %v5068
        %v5224 = vmul.f32 1.0, %v5223
        %v5225 = vrcp.pop %v5069
        %v5226 = vmul.f32 1.0, %v5225
        %v5227 = vrcp.pop %v5070
        %v5228 = vmul.f32 1.0, %v5227
        %v5229 = vrcp.pop %v5071
        %v5230 = vmul.f32 1.0, %v5229
        %v5231 = vrcp.pop %v5072
        %v5232 = vmul.f32 1.0, %v5231
        %v5233 = vrcp.pop %v5073
        %v5234 = vmul.f32 1.0, %v5233
        %v5235 = vrcp.pop %v5074
        %v5236 = vmul.f32 1.0, %v5235
        %v5237 = vrcp.pop %v5075
        %v5238 = vmul.f32 1.0, %v5237
        %v5239 = vrcp.pop %v5076
        %v5240 = vmul.f32 1.0, %v5239
        %v5241 = vrcp.pop %v5077
        %v5242 = vmul.f32 1.0, %v5241
        %v5243 = vrcp.pop %v5078
        %v5244 = vmul.f32 1.0, %v5243
        %v5245 = vrcp.pop %v5079
        %v5246 = vmul.f32 1.0, %v5245
        %v5247 = vrcp.pop %v5080
        %v5248 = vmul.f32 1.0, %v5247
        %v5249 = vrcp.pop %v5081
        %v5250 = vmul.f32 1.0, %v5249
        %v5251 = vrcp.pop %v5082
        %v5252 = vmul.f32 1.0, %v5251
        %v5253 = vrcp.pop %v5083
        %v5254 = vmul.f32 1.0, %v5253
        %v5255 = vrcp.pop %v5084
        %v5256 = vmul.f32 1.0, %v5255
        %v5257 = vrcp.pop %v5085
        %v5258 = vmul.f32 1.0, %v5257
        %v5259 = vrcp.pop %v5086
        %v5260 = vmul.f32 1.0, %v5259
        %v5261 = vrcp.pop %v5087
        %v5262 = vmul.f32 1.0, %v5261
        %v5263 = vrcp.pop %v5088
        %v5264 = vmul.f32 1.0, %v5263
        %v5265 = vrcp.pop %v5089
        %v5266 = vmul.f32 1.0, %v5265
        %v5267 = vrcp.pop %v5090
        %v5268 = vmul.f32 1.0, %v5267
        %v5269 = vrcp.pop %v5091
        %v5270 = vmul.f32 1.0, %v5269
        %v5271 = vrcp.pop %v5092
        %v5272 = vmul.f32 1.0, %v5271
        %v5273 = vrcp.pop %v5093
        %v5274 = vmul.f32 1.0, %v5273
        %v5275 = vrcp.pop %v5094
        %v5276 = vmul.f32 1.0, %v5275
        %v5277 = vrcp.pop %v5095
        %v5278 = vmul.f32 1.0, %v5277
        %v5279 = vrcp.pop %v5096
        %v5280 = vmul.f32 1.0, %v5279
        %v5281 = vrcp.pop %v5097
        %v5282 = vmul.f32 1.0, %v5281
        %v5283 = vrcp.pop %v5098
        %v5284 = vmul.f32 1.0, %v5283
        %v5285 = vrcp.pop %v5099
        %v5286 = vmul.f32 1.0, %v5285
        %v5287 = vrcp.pop %v5100
        %v5288 = vmul.f32 1.0, %v5287
        %v5289 = vrcp.pop %v5101
        %v5290 = vmul.f32 1.0, %v5289
        %v5291 = vrcp.pop %v5102
        %v5292 = vmul.f32 1.0, %v5291
        %v5293 = vrcp.pop %v5103
        %v5294 = vmul.f32 1.0, %v5293
        %v5295 = vrcp.pop %v5104
        %v5296 = vmul.f32 1.0, %v5295
        %v5297 = vrcp.pop %v5105
        %v5298 = vmul.f32 1.0, %v5297
        %v5299 = vrcp.pop %v5106
        %v5300 = vmul.f32 1.0, %v5299
        %v5301 = vrcp.pop %v5107
        %v5302 = vmul.f32 1.0, %v5301
        %v5303 = vrcp.pop %v5108
        %v5304 = vmul.f32 1.0, %v5303
        %v5305 = vrcp.pop %v5109
        %v5306 = vmul.f32 1.0, %v5305
        %v5307 = vrcp.pop %v5110
        %v5308 = vmul.f32 1.0, %v5307
        %v5309 = vrcp.pop %v5111
        %v5310 = vmul.f32 1.0, %v5309
        %v5311 = vrcp.pop %v5112
        %v5312 = vmul.f32 1.0, %v5311
        %v5313 = vrcp.pop %v5113
        %v5314 = vmul.f32 1.0, %v5313
        %v5315 = vrcp.pop %v5114
        %v5316 = vmul.f32 1.0, %v5315
        %v5317 = vrcp.pop %v5115
        %v5318 = vmul.f32 1.0, %v5317
        %v5319 = vrcp.pop %v5116
        %v5320 = vmul.f32 1.0, %v5319
        %v5321 = vrcp.pop %v5117
        %v5322 = vmul.f32 1.0, %v5321
        %v5323 = vrcp.pop %v5118
        %v5324 = vmul.f32 1.0, %v5323
        %v5325 = vrcp.pop %v5119
        %v5326 = vmul.f32 1.0, %v5325
        %v5327 = vrcp.pop %v5120
        %v5328 = vmul.f32 1.0, %v5327
        %v5329 = vrcp.pop %v5121
        %v5330 = vmul.f32 1.0, %v5329
        %v5331 = vrcp.pop %v5122
        %v5332 = vmul.f32 1.0, %v5331
        %v5333 = vrcp.pop %v5123
        %v5334 = vmul.f32 1.0, %v5333
        %v5335 = vrcp.pop %v5124
        %v5336 = vmul.f32 1.0, %v5335
        %v5337 = vrcp.pop %v5125
        %v5338 = vmul.f32 1.0, %v5337
        %v5339 = vrcp.pop %v5126
        %v5340 = vmul.f32 1.0, %v5339
        %v5341 = vrcp.pop %v5127
        %v5342 = vmul.f32 1.0, %v5341
        %v5343 = vrcp.pop %v5128
        %v5344 = vmul.f32 1.0, %v5343
        %v5345 = vrcp.pop %v5129
        %v5346 = vmul.f32 1.0, %v5345
        %v5347 = vrcp.pop %v5130
        %v5348 = vmul.f32 1.0, %v5347
        %v5349 = vrcp.pop %v5131
        %v5350 = vmul.f32 1.0, %v5349
        %v5351 = vrcp.pop %v5132
        %v5352 = vmul.f32 1.0, %v5351
        %v5353 = vrcp.pop %v5133
        %v5354 = vmul.f32 1.0, %v5353
        %v5355 = vrcp.pop %v5134
        %v5356 = vmul.f32 1.0, %v5355
        %v5357 = vrcp.pop %v5135
        %v5358 = vmul.f32 1.0, %v5357
        %v5359 = vrcp.pop %v5136
        %v5360 = vmul.f32 1.0, %v5359
        %v5361 = vrcp.pop %v5137
        %v5362 = vmul.f32 1.0, %v5361
        %v5363 = vrcp.pop %v5138
        %v5364 = vmul.f32 1.0, %v5363
        %v5365 = vrcp.pop %v5139
        %v5366 = vmul.f32 1.0, %v5365
        %v5367 = vrcp.pop %v5140
        %v5368 = vmul.f32 1.0, %v5367
        %v5369 = vrcp.pop %v5141
        %v5370 = vmul.f32 1.0, %v5369
        %v5371 = vrcp.pop %v5142
        %v5372 = vmul.f32 1.0, %v5371
        %v5373 = vrcp.pop %v5143
        %v5374 = vmul.f32 1.0, %v5373
        %v5375 = vrcp.pop %v5144
        %v5376 = vmul.f32 1.0, %v5375
        %v5377 = vrcp.pop %v5145
        %v5378 = vmul.f32 1.0, %v5377
        %v5379 = vrcp.pop %v5146
        %v5380 = vmul.f32 1.0, %v5379
        %v5381 = vrcp.pop %v5147
        %v5382 = vmul.f32 1.0, %v5381
        %v5383 = vrcp.pop %v5148
        %v5384 = vmul.f32 1.0, %v5383
        %v5385 = vrcp.pop %v5149
        %v5386 = vmul.f32 1.0, %v5385
        %v5387 = vrcp.pop %v5150
        %v5388 = vmul.f32 1.0, %v5387
        %v5389 = vrcp.pop %v5151
        %v5390 = vmul.f32 1.0, %v5389
        %v5391 = vrcp.pop %v5152
        %v5392 = vmul.f32 1.0, %v5391
        %v5393 = vrcp.pop %v5153
        %v5394 = vmul.f32 1.0, %v5393
        %v5395 = vrcp.pop %v5154
        %v5396 = vmul.f32 1.0, %v5395
        %v5397 = vrcp.pop %v5155
        %v5398 = vmul.f32 1.0, %v5397
        %v5399 = vrcp.pop %v5156
        %v5400 = vmul.f32 1.0, %v5399
        %v5401 = vrcp.pop %v5157
        %v5402 = vmul.f32 1.0, %v5401
        %v5403 = vrcp.pop %v5158
        %v5404 = vmul.f32 1.0, %v5403
        %v5405 = vrcp.pop %v5159
        %v5406 = vmul.f32 1.0, %v5405
        %v5407 = vrcp.pop %v5160
        %v5408 = vmul.f32 1.0, %v5407
        %v5409 = vrcp.pop %v5161
        %v5410 = vmul.f32 1.0, %v5409
        %v5411 = vrcp.pop %v5162
        %v5412 = vmul.f32 1.0, %v5411
        %v5413 = vrcp.pop %v5163
        %v5414 = vmul.f32 1.0, %v5413
        %v5415 = vrcp.pop %v5164
        %v5416 = vmul.f32 1.0, %v5415
        %v5417 = vrcp.pop %v5165
        %v5418 = vmul.f32 1.0, %v5417
        %v5419 = vrcp.pop %v5166
        %v5420 = vmul.f32 1.0, %v5419
        %v5421 = vrcp.pop %v5167
        %v5422 = vmul.f32 1.0, %v5421
        %v5423 = vrcp.pop %v5168
        %v5424 = vmul.f32 1.0, %v5423
        %v5425 = vtanh.pop %v937
        %v5426 = vtanh.pop %v942
        %v5427 = vtanh.pop %v947
        %v5428 = vtanh.pop %v952
        %v5429 = vtanh.pop %v957
        %v5430 = vtanh.pop %v962
        %v5431 = vtanh.pop %v967
        %v5432 = vtanh.pop %v972
        %v5433 = vtanh.pop %v977
        %v5434 = vtanh.pop %v982
        %v5435 = vtanh.pop %v987
        %v5436 = vtanh.pop %v992
        %v5437 = vtanh.pop %v997
        %v5438 = vtanh.pop %v1002
        %v5439 = vtanh.pop %v1007
        %v5440 = vtanh.pop %v1012
        %v5441 = vtanh.pop %v1017
        %v5442 = vtanh.pop %v1022
        %v5443 = vtanh.pop %v1027
        %v5444 = vtanh.pop %v1032
        %v5445 = vtanh.pop %v1037
        %v5446 = vtanh.pop %v1042
        %v5447 = vtanh.pop %v1047
        %v5448 = vtanh.pop %v1052
        %v5449 = vtanh.pop %v1057
        %v5450 = vtanh.pop %v1062
        %v5451 = vtanh.pop %v1067
        %v5452 = vtanh.pop %v1072
        %v5453 = vtanh.pop %v1077
        %v5454 = vtanh.pop %v1082
        %v5455 = vtanh.pop %v1087
        %v5456 = vtanh.pop %v1092
        %v5457 = vtanh.pop %v1097
        %v5458 = vtanh.pop %v1102
        %v5459 = vtanh.pop %v1107
        %v5460 = vtanh.pop %v1112
        %v5461 = vtanh.pop %v1117
        %v5462 = vtanh.pop %v1122
        %v5463 = vtanh.pop %v1127
        %v5464 = vtanh.pop %v1132
        %v5465 = vtanh.pop %v1137
        %v5466 = vtanh.pop %v1142
        %v5467 = vtanh.pop %v1147
        %v5468 = vtanh.pop %v1152
        %v5469 = vtanh.pop %v1157
        %v5470 = vtanh.pop %v1162
        %v5471 = vtanh.pop %v1167
        %v5472 = vtanh.pop %v1172
        %v5473 = vtanh.pop %v1177
        %v5474 = vtanh.pop %v1182
        %v5475 = vtanh.pop %v1187
        %v5476 = vtanh.pop %v1192
        %v5477 = vtanh.pop %v1197
        %v5478 = vtanh.pop %v1202
        %v5479 = vtanh.pop %v1207
        %v5480 = vtanh.pop %v1212
        %v5481 = vtanh.pop %v1217
        %v5482 = vtanh.pop %v1222
        %v5483 = vtanh.pop %v1227
        %v5484 = vtanh.pop %v1232
        %v5485 = vtanh.pop %v1237
        %v5486 = vtanh.pop %v1242
        %v5487 = vtanh.pop %v1247
        %v5488 = vtanh.pop %v1252
        %v5489 = vtanh.pop %v1257
        %v5490 = vtanh.pop %v1262
        %v5491 = vtanh.pop %v1267
        %v5492 = vtanh.pop %v1272
        %v5493 = vtanh.pop %v1277
        %v5494 = vtanh.pop %v1282
        %v5495 = vtanh.pop %v1287
        %v5496 = vtanh.pop %v1292
        %v5497 = vtanh.pop %v1297
        %v5498 = vtanh.pop %v1302
        %v5499 = vtanh.pop %v1307
        %v5500 = vtanh.pop %v1312
        %v5501 = vtanh.pop %v1317
        %v5502 = vtanh.pop %v1322
        %v5503 = vtanh.pop %v1327
        %v5504 = vtanh.pop %v1332
        %v5505 = vtanh.pop %v1337
        %v5506 = vtanh.pop %v1342
        %v5507 = vtanh.pop %v1347
        %v5508 = vtanh.pop %v1352
        %v5509 = vtanh.pop %v1357
        %v5510 = vtanh.pop %v1362
        %v5511 = vtanh.pop %v1367
        %v5512 = vtanh.pop %v1372
        %v5513 = vtanh.pop %v1377
        %v5514 = vtanh.pop %v1382
        %v5515 = vtanh.pop %v1387
        %v5516 = vtanh.pop %v1392
        %v5517 = vtanh.pop %v1397
        %v5518 = vtanh.pop %v1402
        %v5519 = vtanh.pop %v1407
        %v5520 = vtanh.pop %v1412
        %v5521 = vtanh.pop %v1417
        %v5522 = vtanh.pop %v1422
        %v5523 = vtanh.pop %v1427
        %v5524 = vtanh.pop %v1432
        %v5525 = vtanh.pop %v1437
        %v5526 = vtanh.pop %v1442
        %v5527 = vtanh.pop %v1447
        %v5528 = vtanh.pop %v1452
        %v5529 = vtanh.pop %v1457
        %v5530 = vtanh.pop %v1462
        %v5531 = vtanh.pop %v1467
        %v5532 = vtanh.pop %v1472
        %v5533 = vtanh.pop %v1477
        %v5534 = vtanh.pop %v1482
        %v5535 = vtanh.pop %v1487
        %v5536 = vtanh.pop %v1492
        %v5537 = vtanh.pop %v1497
        %v5538 = vtanh.pop %v1502
        %v5539 = vtanh.pop %v1507
        %v5540 = vtanh.pop %v1512
        %v5541 = vtanh.pop %v1517
        %v5542 = vtanh.pop %v1522
        %v5543 = vtanh.pop %v1527
        %v5544 = vtanh.pop %v1532
        %v5545 = vtanh.pop %v1537
        %v5546 = vtanh.pop %v1542
        %v5547 = vtanh.pop %v1547
        %v5548 = vtanh.pop %v1552
        %v5549 = vtanh.pop %v1557
        %v5550 = vtanh.pop %v1562
        %v5551 = vtanh.pop %v1567
        %v5552 = vtanh.pop %v1572
        %v5553 = vsel %vm1583, %v5170, %v5425
        %v5554 = vsel %vm1583, %v5172, %v5426
        %v5555 = vsel %vm1583, %v5174, %v5427
        %v5556 = vsel %vm1583, %v5176, %v5428
        %v5557 = vsel %vm1583, %v5178, %v5429
        %v5558 = vsel %vm1583, %v5180, %v5430
        %v5559 = vsel %vm1583, %v5182, %v5431
        %v5560 = vsel %vm1583, %v5184, %v5432
        %v5561 = vsel %vm1583, %v5186, %v5433
        %v5562 = vsel %vm1583, %v5188, %v5434
        %v5563 = vsel %vm1583, %v5190, %v5435
        %v5564 = vsel %vm1583, %v5192, %v5436
        %v5565 = vsel %vm1583, %v5194, %v5437
        %v5566 = vsel %vm1583, %v5196, %v5438
        %v5567 = vsel %vm1583, %v5198, %v5439
        %v5568 = vsel %vm1583, %v5200, %v5440
        %v5569 = vsel %vm1583, %v5202, %v5441
        %v5570 = vsel %vm1583, %v5204, %v5442
        %v5571 = vsel %vm1583, %v5206, %v5443
        %v5572 = vsel %vm1583, %v5208, %v5444
        %v5573 = vsel %vm1583, %v5210, %v5445
        %v5574 = vsel %vm1583, %v5212, %v5446
        %v5575 = vsel %vm1583, %v5214, %v5447
        %v5576 = vsel %vm1583, %v5216, %v5448
        %v5577 = vsel %vm1583, %v5218, %v5449
        %v5578 = vsel %vm1583, %v5220, %v5450
        %v5579 = vsel %vm1583, %v5222, %v5451
        %v5580 = vsel %vm1583, %v5224, %v5452
        %v5581 = vsel %vm1583, %v5226, %v5453
        %v5582 = vsel %vm1583, %v5228, %v5454
        %v5583 = vsel %vm1583, %v5230, %v5455
        %v5584 = vsel %vm1583, %v5232, %v5456
        %v5585 = vsel %vm1583, %v5234, %v5457
        %v5586 = vsel %vm1583, %v5236, %v5458
        %v5587 = vsel %vm1583, %v5238, %v5459
        %v5588 = vsel %vm1583, %v5240, %v5460
        %v5589 = vsel %vm1583, %v5242, %v5461
        %v5590 = vsel %vm1583, %v5244, %v5462
        %v5591 = vsel %vm1583, %v5246, %v5463
        %v5592 = vsel %vm1583, %v5248, %v5464
        %v5593 = vsel %vm1583, %v5250, %v5465
        %v5594 = vsel %vm1583, %v5252, %v5466
        %v5595 = vsel %vm1583, %v5254, %v5467
        %v5596 = vsel %vm1583, %v5256, %v5468
        %v5597 = vsel %vm1583, %v5258, %v5469
        %v5598 = vsel %vm1583, %v5260, %v5470
        %v5599 = vsel %vm1583, %v5262, %v5471
        %v5600 = vsel %vm1583, %v5264, %v5472
        %v5601 = vsel %vm1583, %v5266, %v5473
        %v5602 = vsel %vm1583, %v5268, %v5474
        %v5603 = vsel %vm1583, %v5270, %v5475
        %v5604 = vsel %vm1583, %v5272, %v5476
        %v5605 = vsel %vm1583, %v5274, %v5477
        %v5606 = vsel %vm1583, %v5276, %v5478
        %v5607 = vsel %vm1583, %v5278, %v5479
        %v5608 = vsel %vm1583, %v5280, %v5480
        %v5609 = vsel %vm1583, %v5282, %v5481
        %v5610 = vsel %vm1583, %v5284, %v5482
        %v5611 = vsel %vm1583, %v5286, %v5483
        %v5612 = vsel %vm1583, %v5288, %v5484
        %v5613 = vsel %vm1583, %v5290, %v5485
        %v5614 = vsel %vm1583, %v5292, %v5486
        %v5615 = vsel %vm1583, %v5294, %v5487
        %v5616 = vsel %vm1583, %v5296, %v5488
        %v5617 = vsel %vm1583, %v5298, %v5489
        %v5618 = vsel %vm1583, %v5300, %v5490
        %v5619 = vsel %vm1583, %v5302, %v5491
        %v5620 = vsel %vm1583, %v5304, %v5492
        %v5621 = vsel %vm1583, %v5306, %v5493
        %v5622 = vsel %vm1583, %v5308, %v5494
        %v5623 = vsel %vm1583, %v5310, %v5495
        %v5624 = vsel %vm1583, %v5312, %v5496
        %v5625 = vsel %vm1583, %v5314, %v5497
        %v5626 = vsel %vm1583, %v5316, %v5498
        %v5627 = vsel %vm1583, %v5318, %v5499
        %v5628 = vsel %vm1583, %v5320, %v5500
        %v5629 = vsel %vm1583, %v5322, %v5501
        %v5630 = vsel %vm1583, %v5324, %v5502
        %v5631 = vsel %vm1583, %v5326, %v5503
        %v5632 = vsel %vm1583, %v5328, %v5504
        %v5633 = vsel %vm1583, %v5330, %v5505
        %v5634 = vsel %vm1583, %v5332, %v5506
        %v5635 = vsel %vm1583, %v5334, %v5507
        %v5636 = vsel %vm1583, %v5336, %v5508
        %v5637 = vsel %vm1583, %v5338, %v5509
        %v5638 = vsel %vm1583, %v5340, %v5510
        %v5639 = vsel %vm1583, %v5342, %v5511
        %v5640 = vsel %vm1583, %v5344, %v5512
        %v5641 = vsel %vm1583, %v5346, %v5513
        %v5642 = vsel %vm1583, %v5348, %v5514
        %v5643 = vsel %vm1583, %v5350, %v5515
        %v5644 = vsel %vm1583, %v5352, %v5516
        %v5645 = vsel %vm1583, %v5354, %v5517
        %v5646 = vsel %vm1583, %v5356, %v5518
        %v5647 = vsel %vm1583, %v5358, %v5519
        %v5648 = vsel %vm1583, %v5360, %v5520
        %v5649 = vsel %vm1583, %v5362, %v5521
        %v5650 = vsel %vm1583, %v5364, %v5522
        %v5651 = vsel %vm1583, %v5366, %v5523
        %v5652 = vsel %vm1583, %v5368, %v5524
        %v5653 = vsel %vm1583, %v5370, %v5525
        %v5654 = vsel %vm1583, %v5372, %v5526
        %v5655 = vsel %vm1583, %v5374, %v5527
        %v5656 = vsel %vm1583, %v5376, %v5528
        %v5657 = vsel %vm1583, %v5378, %v5529
        %v5658 = vsel %vm1583, %v5380, %v5530
        %v5659 = vsel %vm1583, %v5382, %v5531
        %v5660 = vsel %vm1583, %v5384, %v5532
        %v5661 = vsel %vm1583, %v5386, %v5533
        %v5662 = vsel %vm1583, %v5388, %v5534
        %v5663 = vsel %vm1583, %v5390, %v5535
        %v5664 = vsel %vm1583, %v5392, %v5536
        %v5665 = vsel %vm1583, %v5394, %v5537
        %v5666 = vsel %vm1583, %v5396, %v5538
        %v5667 = vsel %vm1583, %v5398, %v5539
        %v5668 = vsel %vm1583, %v5400, %v5540
        %v5669 = vsel %vm1583, %v5402, %v5541
        %v5670 = vsel %vm1583, %v5404, %v5542
        %v5671 = vsel %vm1583, %v5406, %v5543
        %v5672 = vsel %vm1583, %v5408, %v5544
        %v5673 = vsel %vm1583, %v5410, %v5545
        %v5674 = vsel %vm1583, %v5412, %v5546
        %v5675 = vsel %vm1583, %v5414, %v5547
        %v5676 = vsel %vm1583, %v5416, %v5548
        %v5677 = vsel %vm1583, %v5418, %v5549
        %v5678 = vsel %vm1583, %v5420, %v5550
        %v5679 = vsel %vm1583, %v5422, %v5551
        %v5680 = vsel %vm1583, %v5424, %v5552
        %v5681 = vsel %vm1580, %v4402, %v5553
        %v5682 = vsel %vm1580, %v4404, %v5554
        %v5683 = vsel %vm1580, %v4406, %v5555
        %v5684 = vsel %vm1580, %v4408, %v5556
        %v5685 = vsel %vm1580, %v4410, %v5557
        %v5686 = vsel %vm1580, %v4412, %v5558
        %v5687 = vsel %vm1580, %v4414, %v5559
        %v5688 = vsel %vm1580, %v4416, %v5560
        %v5689 = vsel %vm1580, %v4418, %v5561
        %v5690 = vsel %vm1580, %v4420, %v5562
        %v5691 = vsel %vm1580, %v4422, %v5563
        %v5692 = vsel %vm1580, %v4424, %v5564
        %v5693 = vsel %vm1580, %v4426, %v5565
        %v5694 = vsel %vm1580, %v4428, %v5566
        %v5695 = vsel %vm1580, %v4430, %v5567
        %v5696 = vsel %vm1580, %v4432, %v5568
        %v5697 = vsel %vm1580, %v4434, %v5569
        %v5698 = vsel %vm1580, %v4436, %v5570
        %v5699 = vsel %vm1580, %v4438, %v5571
        %v5700 = vsel %vm1580, %v4440, %v5572
        %v5701 = vsel %vm1580, %v4442, %v5573
        %v5702 = vsel %vm1580, %v4444, %v5574
        %v5703 = vsel %vm1580, %v4446, %v5575
        %v5704 = vsel %vm1580, %v4448, %v5576
        %v5705 = vsel %vm1580, %v4450, %v5577
        %v5706 = vsel %vm1580, %v4452, %v5578
        %v5707 = vsel %vm1580, %v4454, %v5579
        %v5708 = vsel %vm1580, %v4456, %v5580
        %v5709 = vsel %vm1580, %v4458, %v5581
        %v5710 = vsel %vm1580, %v4460, %v5582
        %v5711 = vsel %vm1580, %v4462, %v5583
        %v5712 = vsel %vm1580, %v4464, %v5584
        %v5713 = vsel %vm1580, %v4466, %v5585
        %v5714 = vsel %vm1580, %v4468, %v5586
        %v5715 = vsel %vm1580, %v4470, %v5587
        %v5716 = vsel %vm1580, %v4472, %v5588
        %v5717 = vsel %vm1580, %v4474, %v5589
        %v5718 = vsel %vm1580, %v4476, %v5590
        %v5719 = vsel %vm1580, %v4478, %v5591
        %v5720 = vsel %vm1580, %v4480, %v5592
        %v5721 = vsel %vm1580, %v4482, %v5593
        %v5722 = vsel %vm1580, %v4484, %v5594
        %v5723 = vsel %vm1580, %v4486, %v5595
        %v5724 = vsel %vm1580, %v4488, %v5596
        %v5725 = vsel %vm1580, %v4490, %v5597
        %v5726 = vsel %vm1580, %v4492, %v5598
        %v5727 = vsel %vm1580, %v4494, %v5599
        %v5728 = vsel %vm1580, %v4496, %v5600
        %v5729 = vsel %vm1580, %v4498, %v5601
        %v5730 = vsel %vm1580, %v4500, %v5602
        %v5731 = vsel %vm1580, %v4502, %v5603
        %v5732 = vsel %vm1580, %v4504, %v5604
        %v5733 = vsel %vm1580, %v4506, %v5605
        %v5734 = vsel %vm1580, %v4508, %v5606
        %v5735 = vsel %vm1580, %v4510, %v5607
        %v5736 = vsel %vm1580, %v4512, %v5608
        %v5737 = vsel %vm1580, %v4514, %v5609
        %v5738 = vsel %vm1580, %v4516, %v5610
        %v5739 = vsel %vm1580, %v4518, %v5611
        %v5740 = vsel %vm1580, %v4520, %v5612
        %v5741 = vsel %vm1580, %v4522, %v5613
        %v5742 = vsel %vm1580, %v4524, %v5614
        %v5743 = vsel %vm1580, %v4526, %v5615
        %v5744 = vsel %vm1580, %v4528, %v5616
        %v5745 = vsel %vm1580, %v4530, %v5617
        %v5746 = vsel %vm1580, %v4532, %v5618
        %v5747 = vsel %vm1580, %v4534, %v5619
        %v5748 = vsel %vm1580, %v4536, %v5620
        %v5749 = vsel %vm1580, %v4538, %v5621
        %v5750 = vsel %vm1580, %v4540, %v5622
        %v5751 = vsel %vm1580, %v4542, %v5623
        %v5752 = vsel %vm1580, %v4544, %v5624
        %v5753 = vsel %vm1580, %v4546, %v5625
        %v5754 = vsel %vm1580, %v4548, %v5626
        %v5755 = vsel %vm1580, %v4550, %v5627
        %v5756 = vsel %vm1580, %v4552, %v5628
        %v5757 = vsel %vm1580, %v4554, %v5629
        %v5758 = vsel %vm1580, %v4556, %v5630
        %v5759 = vsel %vm1580, %v4558, %v5631
        %v5760 = vsel %vm1580, %v4560, %v5632
        %v5761 = vsel %vm1580, %v4562, %v5633
        %v5762 = vsel %vm1580, %v4564, %v5634
        %v5763 = vsel %vm1580, %v4566, %v5635
        %v5764 = vsel %vm1580, %v4568, %v5636
        %v5765 = vsel %vm1580, %v4570, %v5637
        %v5766 = vsel %vm1580, %v4572, %v5638
        %v5767 = vsel %vm1580, %v4574, %v5639
        %v5768 = vsel %vm1580, %v4576, %v5640
        %v5769 = vsel %vm1580, %v4578, %v5641
        %v5770 = vsel %vm1580, %v4580, %v5642
        %v5771 = vsel %vm1580, %v4582, %v5643
        %v5772 = vsel %vm1580, %v4584, %v5644
        %v5773 = vsel %vm1580, %v4586, %v5645
        %v5774 = vsel %vm1580, %v4588, %v5646
        %v5775 = vsel %vm1580, %v4590, %v5647
        %v5776 = vsel %vm1580, %v4592, %v5648
        %v5777 = vsel %vm1580, %v4594, %v5649
        %v5778 = vsel %vm1580, %v4596, %v5650
        %v5779 = vsel %vm1580, %v4598, %v5651
        %v5780 = vsel %vm1580, %v4600, %v5652
        %v5781 = vsel %vm1580, %v4602, %v5653
        %v5782 = vsel %vm1580, %v4604, %v5654
        %v5783 = vsel %vm1580, %v4606, %v5655
        %v5784 = vsel %vm1580, %v4608, %v5656
        %v5785 = vsel %vm1580, %v4610, %v5657
        %v5786 = vsel %vm1580, %v4612, %v5658
        %v5787 = vsel %vm1580, %v4614, %v5659
        %v5788 = vsel %vm1580, %v4616, %v5660
        %v5789 = vsel %vm1580, %v4618, %v5661
        %v5790 = vsel %vm1580, %v4620, %v5662
        %v5791 = vsel %vm1580, %v4622, %v5663
        %v5792 = vsel %vm1580, %v4624, %v5664
        %v5793 = vsel %vm1580, %v4626, %v5665
        %v5794 = vsel %vm1580, %v4628, %v5666
        %v5795 = vsel %vm1580, %v4630, %v5667
        %v5796 = vsel %vm1580, %v4632, %v5668
        %v5797 = vsel %vm1580, %v4634, %v5669
        %v5798 = vsel %vm1580, %v4636, %v5670
        %v5799 = vsel %vm1580, %v4638, %v5671
        %v5800 = vsel %vm1580, %v4640, %v5672
        %v5801 = vsel %vm1580, %v4642, %v5673
        %v5802 = vsel %vm1580, %v4644, %v5674
        %v5803 = vsel %vm1580, %v4646, %v5675
        %v5804 = vsel %vm1580, %v4648, %v5676
        %v5805 = vsel %vm1580, %v4650, %v5677
        %v5806 = vsel %vm1580, %v4652, %v5678
        %v5807 = vsel %vm1580, %v4654, %v5679
        %v5808 = vsel %vm1580, %v4656, %v5680
        %v5809 = vsel %vm1577, %v2866, %v5681
        %v5810 = vsel %vm1577, %v2868, %v5682
        %v5811 = vsel %vm1577, %v2870, %v5683
        %v5812 = vsel %vm1577, %v2872, %v5684
        %v5813 = vsel %vm1577, %v2874, %v5685
        %v5814 = vsel %vm1577, %v2876, %v5686
        %v5815 = vsel %vm1577, %v2878, %v5687
        %v5816 = vsel %vm1577, %v2880, %v5688
        %v5817 = vsel %vm1577, %v2882, %v5689
        %v5818 = vsel %vm1577, %v2884, %v5690
        %v5819 = vsel %vm1577, %v2886, %v5691
        %v5820 = vsel %vm1577, %v2888, %v5692
        %v5821 = vsel %vm1577, %v2890, %v5693
        %v5822 = vsel %vm1577, %v2892, %v5694
        %v5823 = vsel %vm1577, %v2894, %v5695
        %v5824 = vsel %vm1577, %v2896, %v5696
        %v5825 = vsel %vm1577, %v2898, %v5697
        %v5826 = vsel %vm1577, %v2900, %v5698
        %v5827 = vsel %vm1577, %v2902, %v5699
        %v5828 = vsel %vm1577, %v2904, %v5700
        %v5829 = vsel %vm1577, %v2906, %v5701
        %v5830 = vsel %vm1577, %v2908, %v5702
        %v5831 = vsel %vm1577, %v2910, %v5703
        %v5832 = vsel %vm1577, %v2912, %v5704
        %v5833 = vsel %vm1577, %v2914, %v5705
        %v5834 = vsel %vm1577, %v2916, %v5706
        %v5835 = vsel %vm1577, %v2918, %v5707
        %v5836 = vsel %vm1577, %v2920, %v5708
        %v5837 = vsel %vm1577, %v2922, %v5709
        %v5838 = vsel %vm1577, %v2924, %v5710
        %v5839 = vsel %vm1577, %v2926, %v5711
        %v5840 = vsel %vm1577, %v2928, %v5712
        %v5841 = vsel %vm1577, %v2930, %v5713
        %v5842 = vsel %vm1577, %v2932, %v5714
        %v5843 = vsel %vm1577, %v2934, %v5715
        %v5844 = vsel %vm1577, %v2936, %v5716
        %v5845 = vsel %vm1577, %v2938, %v5717
        %v5846 = vsel %vm1577, %v2940, %v5718
        %v5847 = vsel %vm1577, %v2942, %v5719
        %v5848 = vsel %vm1577, %v2944, %v5720
        %v5849 = vsel %vm1577, %v2946, %v5721
        %v5850 = vsel %vm1577, %v2948, %v5722
        %v5851 = vsel %vm1577, %v2950, %v5723
        %v5852 = vsel %vm1577, %v2952, %v5724
        %v5853 = vsel %vm1577, %v2954, %v5725
        %v5854 = vsel %vm1577, %v2956, %v5726
        %v5855 = vsel %vm1577, %v2958, %v5727
        %v5856 = vsel %vm1577, %v2960, %v5728
        %v5857 = vsel %vm1577, %v2962, %v5729
        %v5858 = vsel %vm1577, %v2964, %v5730
        %v5859 = vsel %vm1577, %v2966, %v5731
        %v5860 = vsel %vm1577, %v2968, %v5732
        %v5861 = vsel %vm1577, %v2970, %v5733
        %v5862 = vsel %vm1577, %v2972, %v5734
        %v5863 = vsel %vm1577, %v2974, %v5735
        %v5864 = vsel %vm1577, %v2976, %v5736
        %v5865 = vsel %vm1577, %v2978, %v5737
        %v5866 = vsel %vm1577, %v2980, %v5738
        %v5867 = vsel %vm1577, %v2982, %v5739
        %v5868 = vsel %vm1577, %v2984, %v5740
        %v5869 = vsel %vm1577, %v2986, %v5741
        %v5870 = vsel %vm1577, %v2988, %v5742
        %v5871 = vsel %vm1577, %v2990, %v5743
        %v5872 = vsel %vm1577, %v2992, %v5744
        %v5873 = vsel %vm1577, %v2994, %v5745
        %v5874 = vsel %vm1577, %v2996, %v5746
        %v5875 = vsel %vm1577, %v2998, %v5747
        %v5876 = vsel %vm1577, %v3000, %v5748
        %v5877 = vsel %vm1577, %v3002, %v5749
        %v5878 = vsel %vm1577, %v3004, %v5750
        %v5879 = vsel %vm1577, %v3006, %v5751
        %v5880 = vsel %vm1577, %v3008, %v5752
        %v5881 = vsel %vm1577, %v3010, %v5753
        %v5882 = vsel %vm1577, %v3012, %v5754
        %v5883 = vsel %vm1577, %v3014, %v5755
        %v5884 = vsel %vm1577, %v3016, %v5756
        %v5885 = vsel %vm1577, %v3018, %v5757
        %v5886 = vsel %vm1577, %v3020, %v5758
        %v5887 = vsel %vm1577, %v3022, %v5759
        %v5888 = vsel %vm1577, %v3024, %v5760
        %v5889 = vsel %vm1577, %v3026, %v5761
        %v5890 = vsel %vm1577, %v3028, %v5762
        %v5891 = vsel %vm1577, %v3030, %v5763
        %v5892 = vsel %vm1577, %v3032, %v5764
        %v5893 = vsel %vm1577, %v3034, %v5765
        %v5894 = vsel %vm1577, %v3036, %v5766
        %v5895 = vsel %vm1577, %v3038, %v5767
        %v5896 = vsel %vm1577, %v3040, %v5768
        %v5897 = vsel %vm1577, %v3042, %v5769
        %v5898 = vsel %vm1577, %v3044, %v5770
        %v5899 = vsel %vm1577, %v3046, %v5771
        %v5900 = vsel %vm1577, %v3048, %v5772
        %v5901 = vsel %vm1577, %v3050, %v5773
        %v5902 = vsel %vm1577, %v3052, %v5774
        %v5903 = vsel %vm1577, %v3054, %v5775
        %v5904 = vsel %vm1577, %v3056, %v5776
        %v5905 = vsel %vm1577, %v3058, %v5777
        %v5906 = vsel %vm1577, %v3060, %v5778
        %v5907 = vsel %vm1577, %v3062, %v5779
        %v5908 = vsel %vm1577, %v3064, %v5780
        %v5909 = vsel %vm1577, %v3066, %v5781
        %v5910 = vsel %vm1577, %v3068, %v5782
        %v5911 = vsel %vm1577, %v3070, %v5783
        %v5912 = vsel %vm1577, %v3072, %v5784
        %v5913 = vsel %vm1577, %v3074, %v5785
        %v5914 = vsel %vm1577, %v3076, %v5786
        %v5915 = vsel %vm1577, %v3078, %v5787
        %v5916 = vsel %vm1577, %v3080, %v5788
        %v5917 = vsel %vm1577, %v3082, %v5789
        %v5918 = vsel %vm1577, %v3084, %v5790
        %v5919 = vsel %vm1577, %v3086, %v5791
        %v5920 = vsel %vm1577, %v3088, %v5792
        %v5921 = vsel %vm1577, %v3090, %v5793
        %v5922 = vsel %vm1577, %v3092, %v5794
        %v5923 = vsel %vm1577, %v3094, %v5795
        %v5924 = vsel %vm1577, %v3096, %v5796
        %v5925 = vsel %vm1577, %v3098, %v5797
        %v5926 = vsel %vm1577, %v3100, %v5798
        %v5927 = vsel %vm1577, %v3102, %v5799
        %v5928 = vsel %vm1577, %v3104, %v5800
        %v5929 = vsel %vm1577, %v3106, %v5801
        %v5930 = vsel %vm1577, %v3108, %v5802
        %v5931 = vsel %vm1577, %v3110, %v5803
        %v5932 = vsel %vm1577, %v3112, %v5804
        %v5933 = vsel %vm1577, %v3114, %v5805
        %v5934 = vsel %vm1577, %v3116, %v5806
        %v5935 = vsel %vm1577, %v3118, %v5807
        %v5936 = vsel %vm1577, %v3120, %v5808
        %5937 = vst.msk [vmem:[%s456] sm:$0xff] %vm1712, %v5809
        %5938 = vst.msk [vmem:[%s456 + $0x8] sm:$0xff] %vm1712, %v5810
        %5939 = vst.msk [vmem:[%s456 + $0x10] sm:$0xff] %vm1712, %v5811
        %5940 = vst.msk [vmem:[%s456 + $0x18] sm:$0xff] %vm1712, %v5812
        %5941 = vst.msk [vmem:[%s456 + $0x20] sm:$0xff] %vm1712, %v5813
        %5942 = vst.msk [vmem:[%s456 + $0x28] sm:$0xff] %vm1712, %v5814
        %5943 = vst.msk [vmem:[%s456 + $0x30] sm:$0xff] %vm1712, %v5815
        %5944 = vst.msk [vmem:[%s456 + $0x38] sm:$0xff] %vm1712, %v5816
        %5945 = vst.msk [vmem:[%s456 + $0x40] sm:$0xff] %vm1712, %v5817
        %5946 = vst.msk [vmem:[%s456 + $0x48] sm:$0xff] %vm1712, %v5818
        %5947 = vst.msk [vmem:[%s456 + $0x50] sm:$0xff] %vm1712, %v5819
        %5948 = vst.msk [vmem:[%s456 + $0x58] sm:$0xff] %vm1712, %v5820
        %5949 = vst.msk [vmem:[%s456 + $0x60] sm:$0xff] %vm1712, %v5821
        %5950 = vst.msk [vmem:[%s456 + $0x68] sm:$0xff] %vm1712, %v5822
        %5951 = vst.msk [vmem:[%s456 + $0x70] sm:$0xff] %vm1712, %v5823
        %5952 = vst.msk [vmem:[%s456 + $0x78] sm:$0xff] %vm1712, %v5824
        %5953 = vst.msk [vmem:[%s456 + $0x80] sm:$0xff] %vm1712, %v5825
        %5954 = vst.msk [vmem:[%s456 + $0x88] sm:$0xff] %vm1712, %v5826
        %5955 = vst.msk [vmem:[%s456 + $0x90] sm:$0xff] %vm1712, %v5827
        %5956 = vst.msk [vmem:[%s456 + $0x98] sm:$0xff] %vm1712, %v5828
        %5957 = vst.msk [vmem:[%s456 + $0xa0] sm:$0xff] %vm1712, %v5829
        %5958 = vst.msk [vmem:[%s456 + $0xa8] sm:$0xff] %vm1712, %v5830
        %5959 = vst.msk [vmem:[%s456 + $0xb0] sm:$0xff] %vm1712, %v5831
        %5960 = vst.msk [vmem:[%s456 + $0xb8] sm:$0xff] %vm1712, %v5832
        %5961 = vst.msk [vmem:[%s456 + $0xc0] sm:$0xff] %vm1712, %v5833
        %5962 = vst.msk [vmem:[%s456 + $0xc8] sm:$0xff] %vm1712, %v5834
        %5963 = vst.msk [vmem:[%s456 + $0xd0] sm:$0xff] %vm1712, %v5835
        %5964 = vst.msk [vmem:[%s456 + $0xd8] sm:$0xff] %vm1712, %v5836
        %5965 = vst.msk [vmem:[%s456 + $0xe0] sm:$0xff] %vm1712, %v5837
        %5966 = vst.msk [vmem:[%s456 + $0xe8] sm:$0xff] %vm1712, %v5838
        %5967 = vst.msk [vmem:[%s456 + $0xf0] sm:$0xff] %vm1712, %v5839
        %5968 = vst.msk [vmem:[%s456 + $0xf8] sm:$0xff] %vm1712, %v5840
        %5969 = vst.msk [vmem:[%s456 + $0x100] sm:$0xff] %vm1712, %v5841
        %5970 = vst.msk [vmem:[%s456 + $0x108] sm:$0xff] %vm1712, %v5842
        %5971 = vst.msk [vmem:[%s456 + $0x110] sm:$0xff] %vm1712, %v5843
        %5972 = vst.msk [vmem:[%s456 + $0x118] sm:$0xff] %vm1712, %v5844
        %5973 = vst.msk [vmem:[%s456 + $0x120] sm:$0xff] %vm1712, %v5845
        %5974 = vst.msk [vmem:[%s456 + $0x128] sm:$0xff] %vm1712, %v5846
        %5975 = vst.msk [vmem:[%s456 + $0x130] sm:$0xff] %vm1712, %v5847
        %5976 = vst.msk [vmem:[%s456 + $0x138] sm:$0xff] %vm1712, %v5848
        %5977 = vst.msk [vmem:[%s456 + $0x140] sm:$0xff] %vm1712, %v5849
        %5978 = vst.msk [vmem:[%s456 + $0x148] sm:$0xff] %vm1712, %v5850
        %5979 = vst.msk [vmem:[%s456 + $0x150] sm:$0xff] %vm1712, %v5851
        %5980 = vst.msk [vmem:[%s456 + $0x158] sm:$0xff] %vm1712, %v5852
        %5981 = vst.msk [vmem:[%s456 + $0x160] sm:$0xff] %vm1712, %v5853
        %5982 = vst.msk [vmem:[%s456 + $0x168] sm:$0xff] %vm1712, %v5854
        %5983 = vst.msk [vmem:[%s456 + $0x170] sm:$0xff] %vm1712, %v5855
        %5984 = vst.msk [vmem:[%s456 + $0x178] sm:$0xff] %vm1712, %v5856
        %5985 = vst.msk [vmem:[%s456 + $0x180] sm:$0xff] %vm1712, %v5857
        %5986 = vst.msk [vmem:[%s456 + $0x188] sm:$0xff] %vm1712, %v5858
        %5987 = vst.msk [vmem:[%s456 + $0x190] sm:$0xff] %vm1712, %v5859
        %5988 = vst.msk [vmem:[%s456 + $0x198] sm:$0xff] %vm1712, %v5860
        %5989 = vst.msk [vmem:[%s456 + $0x1a0] sm:$0xff] %vm1712, %v5861
        %5990 = vst.msk [vmem:[%s456 + $0x1a8] sm:$0xff] %vm1712, %v5862
        %5991 = vst.msk [vmem:[%s456 + $0x1b0] sm:$0xff] %vm1712, %v5863
        %5992 = vst.msk [vmem:[%s456 + $0x1b8] sm:$0xff] %vm1712, %v5864
        %5993 = vst.msk [vmem:[%s456 + $0x1c0] sm:$0xff] %vm1712, %v5865
        %5994 = vst.msk [vmem:[%s456 + $0x1c8] sm:$0xff] %vm1712, %v5866
        %5995 = vst.msk [vmem:[%s456 + $0x1d0] sm:$0xff] %vm1712, %v5867
        %5996 = vst.msk [vmem:[%s456 + $0x1d8] sm:$0xff] %vm1712, %v5868
        %5997 = vst.msk [vmem:[%s456 + $0x1e0] sm:$0xff] %vm1712, %v5869
        %5998 = vst.msk [vmem:[%s456 + $0x1e8] sm:$0xff] %vm1712, %v5870
        %5999 = vst.msk [vmem:[%s456 + $0x1f0] sm:$0xff] %vm1712, %v5871
        %6000 = vst.msk [vmem:[%s456 + $0x1f8] sm:$0xff] %vm1712, %v5872
        %6001 = vst.msk [vmem:[%s456 + $0x200] sm:$0xff] %vm1712, %v5873
        %6002 = vst.msk [vmem:[%s456 + $0x208] sm:$0xff] %vm1712, %v5874
        %6003 = vst.msk [vmem:[%s456 + $0x210] sm:$0xff] %vm1712, %v5875
        %6004 = vst.msk [vmem:[%s456 + $0x218] sm:$0xff] %vm1712, %v5876
        %6005 = vst.msk [vmem:[%s456 + $0x220] sm:$0xff] %vm1712, %v5877
        %6006 = vst.msk [vmem:[%s456 + $0x228] sm:$0xff] %vm1712, %v5878
        %6007 = vst.msk [vmem:[%s456 + $0x230] sm:$0xff] %vm1712, %v5879
        %6008 = vst.msk [vmem:[%s456 + $0x238] sm:$0xff] %vm1712, %v5880
        %6009 = vst.msk [vmem:[%s456 + $0x240] sm:$0xff] %vm1712, %v5881
        %6010 = vst.msk [vmem:[%s456 + $0x248] sm:$0xff] %vm1712, %v5882
        %6011 = vst.msk [vmem:[%s456 + $0x250] sm:$0xff] %vm1712, %v5883
        %6012 = vst.msk [vmem:[%s456 + $0x258] sm:$0xff] %vm1712, %v5884
        %6013 = vst.msk [vmem:[%s456 + $0x260] sm:$0xff] %vm1712, %v5885
        %6014 = vst.msk [vmem:[%s456 + $0x268] sm:$0xff] %vm1712, %v5886
        %6015 = vst.msk [vmem:[%s456 + $0x270] sm:$0xff] %vm1712, %v5887
        %6016 = vst.msk [vmem:[%s456 + $0x278] sm:$0xff] %vm1712, %v5888
        %6017 = vst.msk [vmem:[%s456 + $0x280] sm:$0xff] %vm1712, %v5889
        %6018 = vst.msk [vmem:[%s456 + $0x288] sm:$0xff] %vm1712, %v5890
        %6019 = vst.msk [vmem:[%s456 + $0x290] sm:$0xff] %vm1712, %v5891
        %6020 = vst.msk [vmem:[%s456 + $0x298] sm:$0xff] %vm1712, %v5892
        %6021 = vst.msk [vmem:[%s456 + $0x2a0] sm:$0xff] %vm1712, %v5893
        %6022 = vst.msk [vmem:[%s456 + $0x2a8] sm:$0xff] %vm1712, %v5894
        %6023 = vst.msk [vmem:[%s456 + $0x2b0] sm:$0xff] %vm1712, %v5895
        %6024 = vst.msk [vmem:[%s456 + $0x2b8] sm:$0xff] %vm1712, %v5896
        %6025 = vst.msk [vmem:[%s456 + $0x2c0] sm:$0xff] %vm1712, %v5897
        %6026 = vst.msk [vmem:[%s456 + $0x2c8] sm:$0xff] %vm1712, %v5898
        %6027 = vst.msk [vmem:[%s456 + $0x2d0] sm:$0xff] %vm1712, %v5899
        %6028 = vst.msk [vmem:[%s456 + $0x2d8] sm:$0xff] %vm1712, %v5900
        %6029 = vst.msk [vmem:[%s456 + $0x2e0] sm:$0xff] %vm1712, %v5901
        %6030 = vst.msk [vmem:[%s456 + $0x2e8] sm:$0xff] %vm1712, %v5902
        %6031 = vst.msk [vmem:[%s456 + $0x2f0] sm:$0xff] %vm1712, %v5903
        %6032 = vst.msk [vmem:[%s456 + $0x2f8] sm:$0xff] %vm1712, %v5904
        %6033 = vst.msk [vmem:[%s456 + $0x300] sm:$0xff] %vm1712, %v5905
        %6034 = vst.msk [vmem:[%s456 + $0x308] sm:$0xff] %vm1712, %v5906
        %6035 = vst.msk [vmem:[%s456 + $0x310] sm:$0xff] %vm1712, %v5907
        %6036 = vst.msk [vmem:[%s456 + $0x318] sm:$0xff] %vm1712, %v5908
        %6037 = vst.msk [vmem:[%s456 + $0x320] sm:$0xff] %vm1712, %v5909
        %6038 = vst.msk [vmem:[%s456 + $0x328] sm:$0xff] %vm1712, %v5910
        %6039 = vst.msk [vmem:[%s456 + $0x330] sm:$0xff] %vm1712, %v5911
        %6040 = vst.msk [vmem:[%s456 + $0x338] sm:$0xff] %vm1712, %v5912
        %6041 = vst.msk [vmem:[%s456 + $0x340] sm:$0xff] %vm1712, %v5913
        %6042 = vst.msk [vmem:[%s456 + $0x348] sm:$0xff] %vm1712, %v5914
        %6043 = vst.msk [vmem:[%s456 + $0x350] sm:$0xff] %vm1712, %v5915
        %6044 = vst.msk [vmem:[%s456 + $0x358] sm:$0xff] %vm1712, %v5916
        %6045 = vst.msk [vmem:[%s456 + $0x360] sm:$0xff] %vm1712, %v5917
        %6046 = vst.msk [vmem:[%s456 + $0x368] sm:$0xff] %vm1712, %v5918
        %6047 = vst.msk [vmem:[%s456 + $0x370] sm:$0xff] %vm1712, %v5919
        %6048 = vst.msk [vmem:[%s456 + $0x378] sm:$0xff] %vm1712, %v5920
        %6049 = vst.msk [vmem:[%s456 + $0x380] sm:$0xff] %vm1712, %v5921
        %6050 = vst.msk [vmem:[%s456 + $0x388] sm:$0xff] %vm1712, %v5922
        %6051 = vst.msk [vmem:[%s456 + $0x390] sm:$0xff] %vm1712, %v5923
        %6052 = vst.msk [vmem:[%s456 + $0x398] sm:$0xff] %vm1712, %v5924
        %6053 = vst.msk [vmem:[%s456 + $0x3a0] sm:$0xff] %vm1712, %v5925
        %6054 = vst.msk [vmem:[%s456 + $0x3a8] sm:$0xff] %vm1712, %v5926
        %6055 = vst.msk [vmem:[%s456 + $0x3b0] sm:$0xff] %vm1712, %v5927
        %6056 = vst.msk [vmem:[%s456 + $0x3b8] sm:$0xff] %vm1712, %v5928
        %6057 = vst.msk [vmem:[%s456 + $0x3c0] sm:$0xff] %vm1712, %v5929
        %6058 = vst.msk [vmem:[%s456 + $0x3c8] sm:$0xff] %vm1712, %v5930
        %6059 = vst.msk [vmem:[%s456 + $0x3d0] sm:$0xff] %vm1712, %v5931
        %6060 = vst.msk [vmem:[%s456 + $0x3d8] sm:$0xff] %vm1712, %v5932
        %6061 = vst.msk [vmem:[%s456 + $0x3e0] sm:$0xff] %vm1712, %v5933
        %6062 = vst.msk [vmem:[%s456 + $0x3e8] sm:$0xff] %vm1712, %v5934
        %6063 = vst.msk [vmem:[%s456 + $0x3f0] sm:$0xff] %vm1712, %v5935
        %6064 = vst.msk [vmem:[%s456 + $0x3f8] sm:$0xff] %vm1712, %v5936
        %s6065 = sand.u32 %s106, 1
        %s6066 = sand.u32 %s106, 1
        %s6067 = smul.addr %s6066, 1024
        %s6068 = scalar_lea.vmem [#allocation3], %s6067
        // Predicated region
        $region56: #{ancsh_head_forward.1} parent=50 // pred_check
          %p6069 = pneg %p116
        $region57: #{ancsh_head_forward.1} parent=50 // pred_check_branch
          %6071 = sbr.rel (%p6069) target = $region59
        $region58: #{ancsh_head_forward.1} parent=50 // pred_region
          %s6072 = smul.u32 128, %s19
          %s6073 = ssub.s32 250, %s6072
          %p6074 = scmp.lt.s32.totalorder %s6073, 128
          %s6075 = scalar_select %p6074, %s6073, 128
          %s6076 = smul.u32 128, %s6075
          %p6077 = scmp.ne.s32.totalorder 0, %s6076
          %s6078 = smul.addr %s18, 250
          %s6079 = sadd.s32 %s6072, %s6078
          %s6080 = smul.addr %s6079, 8
          %s6081 = scalar_lea.vmem %s3, %s6080
          // Predicated region
          $region60: #{ancsh_head_forward.1} parent=58 // pred_check
            %p6082 = pneg %p6077
          $region61: #{ancsh_head_forward.1} parent=58 // pred_check_branch
            %6084 = sbr.rel (%p6082) target = $region63
          $region62: #{ancsh_head_forward.1} parent=58 // pred_region
            // Predicated region
            $region64: #{ancsh_head_forward.1} parent=62 // pred_check
              _
            $region65: #{ancsh_head_forward.1} parent=62 // pred_check_branch
              %6086 = sbr.rel (0) target = $region67
            $region66: #{ancsh_head_forward.1} parent=62 // pred_region
              // Predicated region
              $region86: #{ancsh_head_forward.1} parent=66 // pred_check
                _
              $region87: #{ancsh_head_forward.1} parent=66 // pred_check_branch
                %6261 = sbr.rel (0) target = $region89
              $region88: #{ancsh_head_forward.1} parent=66 // pred_region
                %s6262 = sshrl.u32 %s6075, 6
                // While loop
                $region90: #{ancsh_head_forward.1} parent=88 // loop_pre_header
                  _
                $region91: #{ancsh_head_forward.1} parent=88 // loop_header
                  %s6264 = sphi 0, %s6266
                  %p6265 = scmp.ge.s32.totalorder %s6264, %s6262
                  %s6269 = sphi 0, %s6402
                  %s6270 = sphi %s6068, %s6405
                  %s6271 = sphi %s6081, %s6406
                $region92: #{ancsh_head_forward.1} parent=88 // loop_header_branch
                  %6268 = sbr.rel (%p6265) target = $region96
                $region93: #{ancsh_head_forward.1} parent=88 // loop_body
                  %v6272 = vld [vmem:[%s6270] sm:$0xff]
                  %6273 = vst [vmem:[%s6271] sm:$0xff] %v6272
                  %v6274 = vld [vmem:[%s6270 + $0x8] sm:$0xff]
                  %6275 = vst [vmem:[%s6271 + $0x8] sm:$0xff] %v6274
                  %v6276 = vld [vmem:[%s6270 + $0x10] sm:$0xff]
                  %6277 = vst [vmem:[%s6271 + $0x10] sm:$0xff] %v6276
                  %v6278 = vld [vmem:[%s6270 + $0x18] sm:$0xff]
                  %6279 = vst [vmem:[%s6271 + $0x18] sm:$0xff] %v6278
                  %v6280 = vld [vmem:[%s6270 + $0x20] sm:$0xff]
                  %6281 = vst [vmem:[%s6271 + $0x20] sm:$0xff] %v6280
                  %v6282 = vld [vmem:[%s6270 + $0x28] sm:$0xff]
                  %6283 = vst [vmem:[%s6271 + $0x28] sm:$0xff] %v6282
                  %v6284 = vld [vmem:[%s6270 + $0x30] sm:$0xff]
                  %6285 = vst [vmem:[%s6271 + $0x30] sm:$0xff] %v6284
                  %v6286 = vld [vmem:[%s6270 + $0x38] sm:$0xff]
                  %6287 = vst [vmem:[%s6271 + $0x38] sm:$0xff] %v6286
                  %v6288 = vld [vmem:[%s6270 + $0x40] sm:$0xff]
                  %6289 = vst [vmem:[%s6271 + $0x40] sm:$0xff] %v6288
                  %v6290 = vld [vmem:[%s6270 + $0x48] sm:$0xff]
                  %6291 = vst [vmem:[%s6271 + $0x48] sm:$0xff] %v6290
                  %v6292 = vld [vmem:[%s6270 + $0x50] sm:$0xff]
                  %6293 = vst [vmem:[%s6271 + $0x50] sm:$0xff] %v6292
                  %v6294 = vld [vmem:[%s6270 + $0x58] sm:$0xff]
                  %6295 = vst [vmem:[%s6271 + $0x58] sm:$0xff] %v6294
                  %v6296 = vld [vmem:[%s6270 + $0x60] sm:$0xff]
                  %6297 = vst [vmem:[%s6271 + $0x60] sm:$0xff] %v6296
                  %v6298 = vld [vmem:[%s6270 + $0x68] sm:$0xff]
                  %6299 = vst [vmem:[%s6271 + $0x68] sm:$0xff] %v6298
                  %v6300 = vld [vmem:[%s6270 + $0x70] sm:$0xff]
                  %6301 = vst [vmem:[%s6271 + $0x70] sm:$0xff] %v6300
                  %v6302 = vld [vmem:[%s6270 + $0x78] sm:$0xff]
                  %6303 = vst [vmem:[%s6271 + $0x78] sm:$0xff] %v6302
                  %v6304 = vld [vmem:[%s6270 + $0x80] sm:$0xff]
                  %6305 = vst [vmem:[%s6271 + $0x80] sm:$0xff] %v6304
                  %v6306 = vld [vmem:[%s6270 + $0x88] sm:$0xff]
                  %6307 = vst [vmem:[%s6271 + $0x88] sm:$0xff] %v6306
                  %v6308 = vld [vmem:[%s6270 + $0x90] sm:$0xff]
                  %6309 = vst [vmem:[%s6271 + $0x90] sm:$0xff] %v6308
                  %v6310 = vld [vmem:[%s6270 + $0x98] sm:$0xff]
                  %6311 = vst [vmem:[%s6271 + $0x98] sm:$0xff] %v6310
                  %v6312 = vld [vmem:[%s6270 + $0xa0] sm:$0xff]
                  %6313 = vst [vmem:[%s6271 + $0xa0] sm:$0xff] %v6312
                  %v6314 = vld [vmem:[%s6270 + $0xa8] sm:$0xff]
                  %6315 = vst [vmem:[%s6271 + $0xa8] sm:$0xff] %v6314
                  %v6316 = vld [vmem:[%s6270 + $0xb0] sm:$0xff]
                  %6317 = vst [vmem:[%s6271 + $0xb0] sm:$0xff] %v6316
                  %v6318 = vld [vmem:[%s6270 + $0xb8] sm:$0xff]
                  %6319 = vst [vmem:[%s6271 + $0xb8] sm:$0xff] %v6318
                  %v6320 = vld [vmem:[%s6270 + $0xc0] sm:$0xff]
                  %6321 = vst [vmem:[%s6271 + $0xc0] sm:$0xff] %v6320
                  %v6322 = vld [vmem:[%s6270 + $0xc8] sm:$0xff]
                  %6323 = vst [vmem:[%s6271 + $0xc8] sm:$0xff] %v6322
                  %v6324 = vld [vmem:[%s6270 + $0xd0] sm:$0xff]
                  %6325 = vst [vmem:[%s6271 + $0xd0] sm:$0xff] %v6324
                  %v6326 = vld [vmem:[%s6270 + $0xd8] sm:$0xff]
                  %6327 = vst [vmem:[%s6271 + $0xd8] sm:$0xff] %v6326
                  %v6328 = vld [vmem:[%s6270 + $0xe0] sm:$0xff]
                  %6329 = vst [vmem:[%s6271 + $0xe0] sm:$0xff] %v6328
                  %v6330 = vld [vmem:[%s6270 + $0xe8] sm:$0xff]
                  %6331 = vst [vmem:[%s6271 + $0xe8] sm:$0xff] %v6330
                  %v6332 = vld [vmem:[%s6270 + $0xf0] sm:$0xff]
                  %6333 = vst [vmem:[%s6271 + $0xf0] sm:$0xff] %v6332
                  %v6334 = vld [vmem:[%s6270 + $0xf8] sm:$0xff]
                  %6335 = vst [vmem:[%s6271 + $0xf8] sm:$0xff] %v6334
                  %v6336 = vld [vmem:[%s6270 + $0x100] sm:$0xff]
                  %6337 = vst [vmem:[%s6271 + $0x100] sm:$0xff] %v6336
                  %v6338 = vld [vmem:[%s6270 + $0x108] sm:$0xff]
                  %6339 = vst [vmem:[%s6271 + $0x108] sm:$0xff] %v6338
                  %v6340 = vld [vmem:[%s6270 + $0x110] sm:$0xff]
                  %6341 = vst [vmem:[%s6271 + $0x110] sm:$0xff] %v6340
                  %v6342 = vld [vmem:[%s6270 + $0x118] sm:$0xff]
                  %6343 = vst [vmem:[%s6271 + $0x118] sm:$0xff] %v6342
                  %v6344 = vld [vmem:[%s6270 + $0x120] sm:$0xff]
                  %6345 = vst [vmem:[%s6271 + $0x120] sm:$0xff] %v6344
                  %v6346 = vld [vmem:[%s6270 + $0x128] sm:$0xff]
                  %6347 = vst [vmem:[%s6271 + $0x128] sm:$0xff] %v6346
                  %v6348 = vld [vmem:[%s6270 + $0x130] sm:$0xff]
                  %6349 = vst [vmem:[%s6271 + $0x130] sm:$0xff] %v6348
                  %v6350 = vld [vmem:[%s6270 + $0x138] sm:$0xff]
                  %6351 = vst [vmem:[%s6271 + $0x138] sm:$0xff] %v6350
                  %v6352 = vld [vmem:[%s6270 + $0x140] sm:$0xff]
                  %6353 = vst [vmem:[%s6271 + $0x140] sm:$0xff] %v6352
                  %v6354 = vld [vmem:[%s6270 + $0x148] sm:$0xff]
                  %6355 = vst [vmem:[%s6271 + $0x148] sm:$0xff] %v6354
                  %v6356 = vld [vmem:[%s6270 + $0x150] sm:$0xff]
                  %6357 = vst [vmem:[%s6271 + $0x150] sm:$0xff] %v6356
                  %v6358 = vld [vmem:[%s6270 + $0x158] sm:$0xff]
                  %6359 = vst [vmem:[%s6271 + $0x158] sm:$0xff] %v6358
                  %v6360 = vld [vmem:[%s6270 + $0x160] sm:$0xff]
                  %6361 = vst [vmem:[%s6271 + $0x160] sm:$0xff] %v6360
                  %v6362 = vld [vmem:[%s6270 + $0x168] sm:$0xff]
                  %6363 = vst [vmem:[%s6271 + $0x168] sm:$0xff] %v6362
                  %v6364 = vld [vmem:[%s6270 + $0x170] sm:$0xff]
                  %6365 = vst [vmem:[%s6271 + $0x170] sm:$0xff] %v6364
                  %v6366 = vld [vmem:[%s6270 + $0x178] sm:$0xff]
                  %6367 = vst [vmem:[%s6271 + $0x178] sm:$0xff] %v6366
                  %v6368 = vld [vmem:[%s6270 + $0x180] sm:$0xff]
                  %6369 = vst [vmem:[%s6271 + $0x180] sm:$0xff] %v6368
                  %v6370 = vld [vmem:[%s6270 + $0x188] sm:$0xff]
                  %6371 = vst [vmem:[%s6271 + $0x188] sm:$0xff] %v6370
                  %v6372 = vld [vmem:[%s6270 + $0x190] sm:$0xff]
                  %6373 = vst [vmem:[%s6271 + $0x190] sm:$0xff] %v6372
                  %v6374 = vld [vmem:[%s6270 + $0x198] sm:$0xff]
                  %6375 = vst [vmem:[%s6271 + $0x198] sm:$0xff] %v6374
                  %v6376 = vld [vmem:[%s6270 + $0x1a0] sm:$0xff]
                  %6377 = vst [vmem:[%s6271 + $0x1a0] sm:$0xff] %v6376
                  %v6378 = vld [vmem:[%s6270 + $0x1a8] sm:$0xff]
                  %6379 = vst [vmem:[%s6271 + $0x1a8] sm:$0xff] %v6378
                  %v6380 = vld [vmem:[%s6270 + $0x1b0] sm:$0xff]
                  %6381 = vst [vmem:[%s6271 + $0x1b0] sm:$0xff] %v6380
                  %v6382 = vld [vmem:[%s6270 + $0x1b8] sm:$0xff]
                  %6383 = vst [vmem:[%s6271 + $0x1b8] sm:$0xff] %v6382
                  %v6384 = vld [vmem:[%s6270 + $0x1c0] sm:$0xff]
                  %6385 = vst [vmem:[%s6271 + $0x1c0] sm:$0xff] %v6384
                  %v6386 = vld [vmem:[%s6270 + $0x1c8] sm:$0xff]
                  %6387 = vst [vmem:[%s6271 + $0x1c8] sm:$0xff] %v6386
                  %v6388 = vld [vmem:[%s6270 + $0x1d0] sm:$0xff]
                  %6389 = vst [vmem:[%s6271 + $0x1d0] sm:$0xff] %v6388
                  %v6390 = vld [vmem:[%s6270 + $0x1d8] sm:$0xff]
                  %6391 = vst [vmem:[%s6271 + $0x1d8] sm:$0xff] %v6390
                  %v6392 = vld [vmem:[%s6270 + $0x1e0] sm:$0xff]
                  %6393 = vst [vmem:[%s6271 + $0x1e0] sm:$0xff] %v6392
                  %v6394 = vld [vmem:[%s6270 + $0x1e8] sm:$0xff]
                  %6395 = vst [vmem:[%s6271 + $0x1e8] sm:$0xff] %v6394
                  %v6396 = vld [vmem:[%s6270 + $0x1f0] sm:$0xff]
                  %6397 = vst [vmem:[%s6271 + $0x1f0] sm:$0xff] %v6396
                  %v6398 = vld [vmem:[%s6270 + $0x1f8] sm:$0xff]
                  %6399 = vst [vmem:[%s6271 + $0x1f8] sm:$0xff] %v6398
                  %s6400 = sadd.s32 1, %s6269
                  %p6401 = scmp.ge.s32.totalorder %s6400, %s6262
                  %s6402 = scalar_select %p6401, 0, %s6400
                  %s6403 = smul.u32 %s6402, 512
                  %s6404 = smul.u32 %s6402, 512
                  %s6405 = scalar_lea.vmem %s6068, %s6403 [#allocation3]
                  %s6406 = scalar_lea.vmem %s6081, %s6404
                $region94: #{ancsh_head_forward.1} parent=88 // loop_footer
                  %s6266 = sadd.s32 %s6264, 1
                $region95: #{ancsh_head_forward.1} parent=88 // loop_footer_branch
                  %6263 = sbr.rel target = $region91
                $region96: #{ancsh_head_forward.1} parent=88 // loop_exit
                  _
                %s6407 = sshrl.u32 %s6075, 6
                %s6408 = sand.u32 %s6075, 63
                %s6409 = smul.u32 %s6407, 64
                %s6410 = smul.u32 8, %s6409
                %s6411 = scalar_lea.vmem %s6068, %s6410 [#allocation3]
                %s6412 = smul.u32 8, %s6409
                %s6413 = scalar_lea.vmem %s6081, %s6412
                // While loop
                $region97: #{ancsh_head_forward.1} parent=88 // loop_pre_header
                  _
                $region98: #{ancsh_head_forward.1} parent=88 // loop_header
                  %s6415 = sphi 0, %s6417
                  %p6416 = scmp.ge.s32.totalorder %s6415, %s6408
                  %s6420 = sphi 0, %s6427
                  %s6421 = sphi %s6411, %s6430
                  %s6422 = sphi %s6413, %s6431
                $region99: #{ancsh_head_forward.1} parent=88 // loop_header_branch
                  %6419 = sbr.rel (%p6416) target = $region103
                $region100: #{ancsh_head_forward.1} parent=88 // loop_body
                  %v6423 = vld [vmem:[%s6421] sm:$0xff]
                  %6424 = vst [vmem:[%s6422] sm:$0xff] %v6423
                  %s6425 = sadd.s32 1, %s6420
                  %p6426 = scmp.ge.s32.totalorder %s6425, %s6408
                  %s6427 = scalar_select %p6426, 0, %s6425
                  %s6428 = smul.u32 %s6427, 8
                  %s6429 = smul.u32 %s6427, 8
                  %s6430 = scalar_lea.vmem %s6411, %s6428 [#allocation3]
                  %s6431 = scalar_lea.vmem %s6413, %s6429
                $region101: #{ancsh_head_forward.1} parent=88 // loop_footer
                  %s6417 = sadd.s32 %s6415, 1
                $region102: #{ancsh_head_forward.1} parent=88 // loop_footer_branch
                  %6414 = sbr.rel target = $region98
                $region103: #{ancsh_head_forward.1} parent=88 // loop_exit
                  _
              $region89: #{ancsh_head_forward.1} parent=66 // pred_fallthru
                _
              // Predicated region
              $region104: #{ancsh_head_forward.1} parent=66 // pred_check
                _
              $region105: #{ancsh_head_forward.1} parent=66 // pred_check_branch
                %6433 = sbr.rel target = $region107
              $region106: #{ancsh_head_forward.1} parent=66 // pred_region
                _
              $region107: #{ancsh_head_forward.1} parent=66 // pred_fallthru
                _
            $region67: #{ancsh_head_forward.1} parent=62 // pred_fallthru
              _
            // Predicated region
            $region68: #{ancsh_head_forward.1} parent=62 // pred_check
              _
            $region69: #{ancsh_head_forward.1} parent=62 // pred_check_branch
              %6088 = sbr.rel target = $region71
            $region70: #{ancsh_head_forward.1} parent=62 // pred_region
              %s6090 = sshrl.u32 %s6075, 6
              // While loop
              $region72: #{ancsh_head_forward.1} parent=70 // loop_pre_header
                _
              $region73: #{ancsh_head_forward.1} parent=70 // loop_header
                %s6092 = sphi 0, %s6094
                %p6093 = scmp.ge.s32.totalorder %s6092, %s6090
                %s6097 = sphi 0, %s6230
                %s6098 = sphi %s6068, %s6233
                %s6099 = sphi %s6081, %s6234
              $region74: #{ancsh_head_forward.1} parent=70 // loop_header_branch
                %6096 = sbr.rel (%p6093) target = $region78
              $region75: #{ancsh_head_forward.1} parent=70 // loop_body
                %v6100 = vld [vmem:[%s6098] sm:$0xff]
                %6101 = vst [vmem:[%s6099] sm:$0xff] %v6100
                %v6102 = vld [vmem:[%s6098 + $0x8] sm:$0xff]
                %6103 = vst [vmem:[%s6099 + $0x8] sm:$0xff] %v6102
                %v6104 = vld [vmem:[%s6098 + $0x10] sm:$0xff]
                %6105 = vst [vmem:[%s6099 + $0x10] sm:$0xff] %v6104
                %v6106 = vld [vmem:[%s6098 + $0x18] sm:$0xff]
                %6107 = vst [vmem:[%s6099 + $0x18] sm:$0xff] %v6106
                %v6108 = vld [vmem:[%s6098 + $0x20] sm:$0xff]
                %6109 = vst [vmem:[%s6099 + $0x20] sm:$0xff] %v6108
                %v6110 = vld [vmem:[%s6098 + $0x28] sm:$0xff]
                %6111 = vst [vmem:[%s6099 + $0x28] sm:$0xff] %v6110
                %v6112 = vld [vmem:[%s6098 + $0x30] sm:$0xff]
                %6113 = vst [vmem:[%s6099 + $0x30] sm:$0xff] %v6112
                %v6114 = vld [vmem:[%s6098 + $0x38] sm:$0xff]
                %6115 = vst [vmem:[%s6099 + $0x38] sm:$0xff] %v6114
                %v6116 = vld [vmem:[%s6098 + $0x40] sm:$0xff]
                %6117 = vst [vmem:[%s6099 + $0x40] sm:$0xff] %v6116
                %v6118 = vld [vmem:[%s6098 + $0x48] sm:$0xff]
                %6119 = vst [vmem:[%s6099 + $0x48] sm:$0xff] %v6118
                %v6120 = vld [vmem:[%s6098 + $0x50] sm:$0xff]
                %6121 = vst [vmem:[%s6099 + $0x50] sm:$0xff] %v6120
                %v6122 = vld [vmem:[%s6098 + $0x58] sm:$0xff]
                %6123 = vst [vmem:[%s6099 + $0x58] sm:$0xff] %v6122
                %v6124 = vld [vmem:[%s6098 + $0x60] sm:$0xff]
                %6125 = vst [vmem:[%s6099 + $0x60] sm:$0xff] %v6124
                %v6126 = vld [vmem:[%s6098 + $0x68] sm:$0xff]
                %6127 = vst [vmem:[%s6099 + $0x68] sm:$0xff] %v6126
                %v6128 = vld [vmem:[%s6098 + $0x70] sm:$0xff]
                %6129 = vst [vmem:[%s6099 + $0x70] sm:$0xff] %v6128
                %v6130 = vld [vmem:[%s6098 + $0x78] sm:$0xff]
                %6131 = vst [vmem:[%s6099 + $0x78] sm:$0xff] %v6130
                %v6132 = vld [vmem:[%s6098 + $0x80] sm:$0xff]
                %6133 = vst [vmem:[%s6099 + $0x80] sm:$0xff] %v6132
                %v6134 = vld [vmem:[%s6098 + $0x88] sm:$0xff]
                %6135 = vst [vmem:[%s6099 + $0x88] sm:$0xff] %v6134
                %v6136 = vld [vmem:[%s6098 + $0x90] sm:$0xff]
                %6137 = vst [vmem:[%s6099 + $0x90] sm:$0xff] %v6136
                %v6138 = vld [vmem:[%s6098 + $0x98] sm:$0xff]
                %6139 = vst [vmem:[%s6099 + $0x98] sm:$0xff] %v6138
                %v6140 = vld [vmem:[%s6098 + $0xa0] sm:$0xff]
                %6141 = vst [vmem:[%s6099 + $0xa0] sm:$0xff] %v6140
                %v6142 = vld [vmem:[%s6098 + $0xa8] sm:$0xff]
                %6143 = vst [vmem:[%s6099 + $0xa8] sm:$0xff] %v6142
                %v6144 = vld [vmem:[%s6098 + $0xb0] sm:$0xff]
                %6145 = vst [vmem:[%s6099 + $0xb0] sm:$0xff] %v6144
                %v6146 = vld [vmem:[%s6098 + $0xb8] sm:$0xff]
                %6147 = vst [vmem:[%s6099 + $0xb8] sm:$0xff] %v6146
                %v6148 = vld [vmem:[%s6098 + $0xc0] sm:$0xff]
                %6149 = vst [vmem:[%s6099 + $0xc0] sm:$0xff] %v6148
                %v6150 = vld [vmem:[%s6098 + $0xc8] sm:$0xff]
                %6151 = vst [vmem:[%s6099 + $0xc8] sm:$0xff] %v6150
                %v6152 = vld [vmem:[%s6098 + $0xd0] sm:$0xff]
                %6153 = vst [vmem:[%s6099 + $0xd0] sm:$0xff] %v6152
                %v6154 = vld [vmem:[%s6098 + $0xd8] sm:$0xff]
                %6155 = vst [vmem:[%s6099 + $0xd8] sm:$0xff] %v6154
                %v6156 = vld [vmem:[%s6098 + $0xe0] sm:$0xff]
                %6157 = vst [vmem:[%s6099 + $0xe0] sm:$0xff] %v6156
                %v6158 = vld [vmem:[%s6098 + $0xe8] sm:$0xff]
                %6159 = vst [vmem:[%s6099 + $0xe8] sm:$0xff] %v6158
                %v6160 = vld [vmem:[%s6098 + $0xf0] sm:$0xff]
                %6161 = vst [vmem:[%s6099 + $0xf0] sm:$0xff] %v6160
                %v6162 = vld [vmem:[%s6098 + $0xf8] sm:$0xff]
                %6163 = vst [vmem:[%s6099 + $0xf8] sm:$0xff] %v6162
                %v6164 = vld [vmem:[%s6098 + $0x100] sm:$0xff]
                %6165 = vst [vmem:[%s6099 + $0x100] sm:$0xff] %v6164
                %v6166 = vld [vmem:[%s6098 + $0x108] sm:$0xff]
                %6167 = vst [vmem:[%s6099 + $0x108] sm:$0xff] %v6166
                %v6168 = vld [vmem:[%s6098 + $0x110] sm:$0xff]
                %6169 = vst [vmem:[%s6099 + $0x110] sm:$0xff] %v6168
                %v6170 = vld [vmem:[%s6098 + $0x118] sm:$0xff]
                %6171 = vst [vmem:[%s6099 + $0x118] sm:$0xff] %v6170
                %v6172 = vld [vmem:[%s6098 + $0x120] sm:$0xff]
                %6173 = vst [vmem:[%s6099 + $0x120] sm:$0xff] %v6172
                %v6174 = vld [vmem:[%s6098 + $0x128] sm:$0xff]
                %6175 = vst [vmem:[%s6099 + $0x128] sm:$0xff] %v6174
                %v6176 = vld [vmem:[%s6098 + $0x130] sm:$0xff]
                %6177 = vst [vmem:[%s6099 + $0x130] sm:$0xff] %v6176
                %v6178 = vld [vmem:[%s6098 + $0x138] sm:$0xff]
                %6179 = vst [vmem:[%s6099 + $0x138] sm:$0xff] %v6178
                %v6180 = vld [vmem:[%s6098 + $0x140] sm:$0xff]
                %6181 = vst [vmem:[%s6099 + $0x140] sm:$0xff] %v6180
                %v6182 = vld [vmem:[%s6098 + $0x148] sm:$0xff]
                %6183 = vst [vmem:[%s6099 + $0x148] sm:$0xff] %v6182
                %v6184 = vld [vmem:[%s6098 + $0x150] sm:$0xff]
                %6185 = vst [vmem:[%s6099 + $0x150] sm:$0xff] %v6184
                %v6186 = vld [vmem:[%s6098 + $0x158] sm:$0xff]
                %6187 = vst [vmem:[%s6099 + $0x158] sm:$0xff] %v6186
                %v6188 = vld [vmem:[%s6098 + $0x160] sm:$0xff]
                %6189 = vst [vmem:[%s6099 + $0x160] sm:$0xff] %v6188
                %v6190 = vld [vmem:[%s6098 + $0x168] sm:$0xff]
                %6191 = vst [vmem:[%s6099 + $0x168] sm:$0xff] %v6190
                %v6192 = vld [vmem:[%s6098 + $0x170] sm:$0xff]
                %6193 = vst [vmem:[%s6099 + $0x170] sm:$0xff] %v6192
                %v6194 = vld [vmem:[%s6098 + $0x178] sm:$0xff]
                %6195 = vst [vmem:[%s6099 + $0x178] sm:$0xff] %v6194
                %v6196 = vld [vmem:[%s6098 + $0x180] sm:$0xff]
                %6197 = vst [vmem:[%s6099 + $0x180] sm:$0xff] %v6196
                %v6198 = vld [vmem:[%s6098 + $0x188] sm:$0xff]
                %6199 = vst [vmem:[%s6099 + $0x188] sm:$0xff] %v6198
                %v6200 = vld [vmem:[%s6098 + $0x190] sm:$0xff]
                %6201 = vst [vmem:[%s6099 + $0x190] sm:$0xff] %v6200
                %v6202 = vld [vmem:[%s6098 + $0x198] sm:$0xff]
                %6203 = vst [vmem:[%s6099 + $0x198] sm:$0xff] %v6202
                %v6204 = vld [vmem:[%s6098 + $0x1a0] sm:$0xff]
                %6205 = vst [vmem:[%s6099 + $0x1a0] sm:$0xff] %v6204
                %v6206 = vld [vmem:[%s6098 + $0x1a8] sm:$0xff]
                %6207 = vst [vmem:[%s6099 + $0x1a8] sm:$0xff] %v6206
                %v6208 = vld [vmem:[%s6098 + $0x1b0] sm:$0xff]
                %6209 = vst [vmem:[%s6099 + $0x1b0] sm:$0xff] %v6208
                %v6210 = vld [vmem:[%s6098 + $0x1b8] sm:$0xff]
                %6211 = vst [vmem:[%s6099 + $0x1b8] sm:$0xff] %v6210
                %v6212 = vld [vmem:[%s6098 + $0x1c0] sm:$0xff]
                %6213 = vst [vmem:[%s6099 + $0x1c0] sm:$0xff] %v6212
                %v6214 = vld [vmem:[%s6098 + $0x1c8] sm:$0xff]
                %6215 = vst [vmem:[%s6099 + $0x1c8] sm:$0xff] %v6214
                %v6216 = vld [vmem:[%s6098 + $0x1d0] sm:$0xff]
                %6217 = vst [vmem:[%s6099 + $0x1d0] sm:$0xff] %v6216
                %v6218 = vld [vmem:[%s6098 + $0x1d8] sm:$0xff]
                %6219 = vst [vmem:[%s6099 + $0x1d8] sm:$0xff] %v6218
                %v6220 = vld [vmem:[%s6098 + $0x1e0] sm:$0xff]
                %6221 = vst [vmem:[%s6099 + $0x1e0] sm:$0xff] %v6220
                %v6222 = vld [vmem:[%s6098 + $0x1e8] sm:$0xff]
                %6223 = vst [vmem:[%s6099 + $0x1e8] sm:$0xff] %v6222
                %v6224 = vld [vmem:[%s6098 + $0x1f0] sm:$0xff]
                %6225 = vst [vmem:[%s6099 + $0x1f0] sm:$0xff] %v6224
                %v6226 = vld [vmem:[%s6098 + $0x1f8] sm:$0xff]
                %6227 = vst [vmem:[%s6099 + $0x1f8] sm:$0xff] %v6226
                %s6228 = sadd.s32 1, %s6097
                %p6229 = scmp.ge.s32.totalorder %s6228, %s6090
                %s6230 = scalar_select %p6229, 0, %s6228
                %s6231 = smul.u32 %s6230, 512
                %s6232 = smul.u32 %s6230, 512
                %s6233 = scalar_lea.vmem %s6068, %s6231 [#allocation3]
                %s6234 = scalar_lea.vmem %s6081, %s6232
              $region76: #{ancsh_head_forward.1} parent=70 // loop_footer
                %s6094 = sadd.s32 %s6092, 1
              $region77: #{ancsh_head_forward.1} parent=70 // loop_footer_branch
                %6091 = sbr.rel target = $region73
              $region78: #{ancsh_head_forward.1} parent=70 // loop_exit
                _
              %s6235 = sshrl.u32 %s6075, 6
              %s6236 = sand.u32 %s6075, 63
              %s6237 = smul.u32 %s6235, 64
              %s6238 = smul.u32 8, %s6237
              %s6239 = scalar_lea.vmem %s6068, %s6238 [#allocation3]
              %s6240 = smul.u32 8, %s6237
              %s6241 = scalar_lea.vmem %s6081, %s6240
              // While loop
              $region79: #{ancsh_head_forward.1} parent=70 // loop_pre_header
                _
              $region80: #{ancsh_head_forward.1} parent=70 // loop_header
                %s6243 = sphi 0, %s6245
                %p6244 = scmp.ge.s32.totalorder %s6243, %s6236
                %s6248 = sphi 0, %s6255
                %s6249 = sphi %s6239, %s6258
                %s6250 = sphi %s6241, %s6259
              $region81: #{ancsh_head_forward.1} parent=70 // loop_header_branch
                %6247 = sbr.rel (%p6244) target = $region85
              $region82: #{ancsh_head_forward.1} parent=70 // loop_body
                %v6251 = vld [vmem:[%s6249] sm:$0xff]
                %6252 = vst [vmem:[%s6250] sm:$0xff] %v6251
                %s6253 = sadd.s32 1, %s6248
                %p6254 = scmp.ge.s32.totalorder %s6253, %s6236
                %s6255 = scalar_select %p6254, 0, %s6253
                %s6256 = smul.u32 %s6255, 8
                %s6257 = smul.u32 %s6255, 8
                %s6258 = scalar_lea.vmem %s6239, %s6256 [#allocation3]
                %s6259 = scalar_lea.vmem %s6241, %s6257
              $region83: #{ancsh_head_forward.1} parent=70 // loop_footer
                %s6245 = sadd.s32 %s6243, 1
              $region84: #{ancsh_head_forward.1} parent=70 // loop_footer_branch
                %6242 = sbr.rel target = $region80
              $region85: #{ancsh_head_forward.1} parent=70 // loop_exit
                _
            $region71: #{ancsh_head_forward.1} parent=62 // pred_fallthru
              _
          $region63: #{ancsh_head_forward.1} parent=58 // pred_fallthru
            _
          %6434 = vnop
        $region59: #{ancsh_head_forward.1} parent=50 // pred_fallthru
          _
      $region51: #{ancsh_head_forward.1} parent=5 // pred_fallthru
        _
      %p6435 = scmp.le.s32.totalorder 2, %s9
      // Predicated region
      $region108: #{ancsh_head_forward.1} parent=5 // pred_check
        %p6436 = pneg %p6435
      $region109: #{ancsh_head_forward.1} parent=5 // pred_check_branch
        %6438 = sbr.rel (%p6436) target = $region111
      $region110: #{ancsh_head_forward.1} parent=5 // pred_region
        %s6439 = ssub.s32 %s9, 2
        // Predicated region
        $region112: #{ancsh_head_forward.1} parent=110 // pred_check
          %p6440 = pneg %p122
        $region113: #{ancsh_head_forward.1} parent=110 // pred_check_branch
          %6442 = sbr.rel (%p6440) target = $region115
        $region114: #{ancsh_head_forward.1} parent=110 // pred_region
          %s6443 = sand.u32 %s107, 1
          %s6444 = sand.u32 %s107, 1
          %s6445 = smul.addr %s6444, 1024
          %s6446 = scalar_lea.vmem [#allocation3], %s6445
        $region115: #{ancsh_head_forward.1} parent=110 // pred_fallthru
          _
      $region111: #{ancsh_head_forward.1} parent=5 // pred_fallthru
        _
    $region6: #{ancsh_head_forward.1} parent=1 // loop_footer
      %s13 = sadd.s32 1, %s9
    $region7: #{ancsh_head_forward.1} parent=1 // loop_footer_branch
      %8 = sbr.rel target = $region3
    $region8: #{ancsh_head_forward.1} parent=1 // loop_exit
      _

</llo_original>
